<compile_context>
chip_gen: v6e
topology: v6e:2x2x1
jax: 0.10.0
libtpu: 0.0.40
codegen_flags: <defaults>
</compile_context>

<pallas_src>
import math

import numpy as np
import jax
import jax.numpy as jnp
from jax.experimental import pallas as pl
from jax.experimental.pallas import tpu as pltpu

DIM = 32
NUM_HEADS = 4
HEAD_DIM = DIM // NUM_HEADS
WINDOW = (4, 4)
SHIFT = (2, 2)
MLP_HIDDEN = int(DIM * 4.0)
LN_EPS = 1e-5


def _gelu_exact(x):
    # exact (erf) GELU; erf via Abramowitz-Stegun 7.1.26 polynomial, |abs err| < 1.5e-7.
    z = x * 0.7071067811865476
    az = jnp.abs(z)
    t = 1.0 / (1.0 + 0.3275911 * az)
    poly = ((((1.061405429 * t - 1.453152027) * t + 1.421413741) * t
             - 0.284496736) * t + 0.254829592) * t
    erf_abs = 1.0 - poly * jnp.exp(-az * az)
    erf = jnp.where(z >= 0.0, erf_abs, -erf_abs)
    return 0.5 * x * (1.0 + erf)


# ----------------------------------------------------------------------------
# Fused kernel: qkv -> cosine window attention (all heads/windows batched) ->
#               proj -> LN1+residual -> MLP(GELU) -> LN2+residual
# ----------------------------------------------------------------------------
def swin_block_v2_kernel(x_ref, qkvw_ref, projw_ref, w1_ref, w2_ref,
                         vecs_ref, scale_ref, bias_ref, mask_ref,
                         o_ref, stage_ref, tok_ref):
    T, C = x_ref.shape                       # T = B*nW*N tokens (all batches, all windows)
    nh, N, _ = bias_ref.shape
    nW = mask_ref.shape[0]
    hd = C // nh
    G = T // N                               # B*nW windows
    B = G // nW
    Hd = w1_ref.shape[1]
    bf = jnp.bfloat16

    x = x_ref[...]                           # (T, C) f32
    vecs = vecs_ref[...]                     # (8, >=128) packed small vectors (f32)

    # ---- fused QKV projection: one MXU matmul, bf16 operands, f32 accumulation ----
    qkv = jnp.dot(x.astype(bf), qkvw_ref[...],
                  preferred_element_type=jnp.float32)            # (T, 3C)
    qkv = qkv + vecs[0:1, :3 * C]                                # qkv bias (k part zeroed)

    # ---- lanes -> head-major batch, staged once through VMEM scratch (no relayout risk) ----
    # stage_ref: (3, nh, T, hd); each store is a plain (T, hd) lane slice of the qkv output.
    for j in range(3):
        for h in range(nh):
            col = (j * nh + h) * hd
            stage_ref[j, h] = qkv[:, col:col + hd]

    # (nh, T, hd) -> (nh*G, N, hd): leading/second-minor regrouping, lane dim untouched.
    q = stage_ref[0].reshape(nh * G, N, hd)
    k = stage_ref[1].reshape(nh * G, N, hd)
    v = stage_ref[2].reshape(nh * G, N, hd)

    # ---- Swin-V2 cosine attention, all heads & windows in one batched dot each ----
    # F.normalize(x, eps=1e-12) == x * rsqrt(max(||x||^2, 1e-24))   (EUP rsqrt)
    qn = q * jax.lax.rsqrt(jnp.maximum(jnp.sum(q * q, -1, keepdims=True), 1e-24))
    kn = k * jax.lax.rsqrt(jnp.maximum(jnp.sum(k * k, -1, keepdims=True), 1e-24))
    qn = qn * scale_ref[...][:, :, None]     # per-head clamp(logit_scale).exp(), repeated per window

    attn = jnp.einsum('bqd,bkd->bqk', qn.astype(bf), kn.astype(bf),
                      preferred_element_type=jnp.float32)        # (nh*G, N, N)

    # relative-position bias (per head) + shift mask (per window): in-kernel broadcast adds.
    attn = (attn.reshape(nh, G, N, N)
            + bias_ref[...].reshape(nh, 1, N, N)).reshape(nh * B, nW, N, N)
    attn = attn + mask_ref[...].reshape(1, nW, N, N)
    attn = attn.reshape(nh * G, N, N)

    # exact softmax over keys
    attn = attn - jnp.max(attn, axis=-1, keepdims=True)
    p = jnp.exp(attn)
    p = p * pl.reciprocal(jnp.sum(p, axis=-1, keepdims=True), approx=False)

    o = jnp.einsum('bqk,bkd->bqd', p.astype(bf), v.astype(bf),
                   preferred_element_type=jnp.float32)           # (nh*G, N, hd)

    # ---- heads -> token layout (T, C) via 4 lane-offset scratch stores, then ONE proj matmul ----
    o_h = o.reshape(nh, T, hd)
    for h in range(nh):
        tok_ref[:, h * hd:(h + 1) * hd] = o_h[h]
    a = jnp.dot(tok_ref[...].astype(bf), projw_ref[...],
                preferred_element_type=jnp.float32) + vecs[2:3, :C]      # (T, C)

    def layernorm(t, w, b):
        mu = jnp.mean(t, axis=-1, keepdims=True)
        var = jnp.mean((t - mu) * (t - mu), axis=-1, keepdims=True)
        return (t - mu) * jax.lax.rsqrt(var + LN_EPS) * w + b

    # ---- post-norm residuals + MLP (per-token ops, windowed layout commutes) ----
    y = x + layernorm(a, vecs[3:4, :C], vecs[4:5, :C])

    hmid = jnp.dot(y.astype(bf), w1_ref[...],
                   preferred_element_type=jnp.float32) + vecs[1:2, :Hd]
    hmid = _gelu_exact(hmid)
    m = jnp.dot(hmid.astype(bf), w2_ref[...],
                preferred_element_type=jnp.float32) + vecs[5:6, :C]
    out = y + layernorm(m, vecs[6:7, :C], vecs[7:8, :C])
    o_ref[...] = out


def swin_block_pallas(x2, qkv_w_t, proj_w_t, w1_t, w2_t, vecs, scale_rep, rel_bias, mask):
    T, C = x2.shape
    nh, N, _ = rel_bias.shape
    nW = mask.shape[0]
    Hd = w1_t.shape[1]
    hd = C // nh
    c2 = lambda i: (0, 0)
    c3 = lambda i: (0, 0, 0)
    return pl.pallas_call(
        swin_block_v2_kernel,
        out_shape=jax.ShapeDtypeStruct((T, C), jnp.float32),
        grid=(1,),                                  # batch folded into the matmul M dim
        in_specs=[
            pl.BlockSpec((T, C), c2),               # tokens (all batches, all windows)
            pl.BlockSpec((C, 3 * C), c2),           # qkv weight (bf16)
            pl.BlockSpec((C, C), c2),               # proj weight (bf16)
            pl.BlockSpec((C, Hd), c2),              # mlp w1 (bf16)
            pl.BlockSpec((Hd, C), c2),              # mlp w2 (bf16)
            pl.BlockSpec(vecs.shape, c2),           # packed biases / LN vectors (f32)
            pl.BlockSpec(scale_rep.shape, c2),      # per-(head,window) logit scale
            pl.BlockSpec((nh, N, N), c3),           # relative-position bias
            pl.BlockSpec((nW, N, N), c3),           # shift mask
        ],
        out_specs=pl.BlockSpec((T, C), c2),
        scratch_shapes=[
            pltpu.VMEM((3, nh, T, hd), jnp.float32),   # head-major q/k/v staging
            pltpu.VMEM((T, C), jnp.float32),           # token-major attention output
        ],
        compiler_params=pltpu.CompilerParams(dimension_semantics=("arbitrary",)),
    )(x2, qkv_w_t, proj_w_t, w1_t, w2_t, vecs, scale_rep, rel_bias, mask)


# ----------------------------------------------------------------------------
# Host-side glue: relative-position machinery + window partition (plain JAX / numpy)
# ----------------------------------------------------------------------------
def make_relative_position_index(wh, ww):
    gh, gw = np.meshgrid(np.arange(wh), np.arange(ww), indexing="ij")
    coords = np.stack([gh, gw]).reshape(2, -1)
    rel = coords[:, :, None] - coords[:, None, :]
    rel = rel.transpose(1, 2, 0).copy()
    rel[..., 0] += wh - 1
    rel[..., 1] += ww - 1
    rel[..., 0] *= 2 * ww - 1
    return rel.sum(-1).reshape(-1)


def make_relative_coords_table(wh, ww):
    rh = np.arange(-(wh - 1), wh, dtype=np.float32)
    rw = np.arange(-(ww - 1), ww, dtype=np.float32)
    gh, gw = np.meshgrid(rh, rw, indexing="ij")
    table = np.stack([gh, gw], axis=-1)[None]
    table[..., 0] /= (wh - 1)
    table[..., 1] /= (ww - 1)
    table *= 8.0
    table = np.sign(table) * np.log2(np.abs(table) + 1.0) / 3.0
    return table.astype(np.float32)


def make_attention_mask(pad_H, pad_W, wh, ww, sh, sw):
    nWh, nWw = pad_H // wh, pad_W // ww
    nW, N = nWh * nWw, wh * ww
    if sh == 0 and sw == 0:
        return np.zeros((nW, N, N), np.float32)
    img = np.zeros((pad_H, pad_W), np.float32)
    cnt = 0
    for h0, h1 in ((0, -wh), (-wh, -sh), (-sh, None)):
        for w0, w1 in ((0, -ww), (-ww, -sw), (-sw, None)):
            img[h0:h1, w0:w1] = cnt
            cnt += 1
    img = img.reshape(nWh, wh, nWw, ww).transpose(0, 2, 1, 3).reshape(nW, N)
    diff = img[:, None, :] - img[:, :, None]
    return np.where(diff != 0, -100.0, 0.0).astype(np.float32)


def swin_block_v2_forward(x, p):
    B, H, W, C = x.shape
    wh, ww = WINDOW
    pad_r = (ww - W % ww) % ww
    pad_b = (wh - H % wh) % wh
    xp = jnp.pad(x, ((0, 0), (0, pad_b), (0, pad_r), (0, 0)))
    pad_H, pad_W = H + pad_b, W + pad_r
    sh, sw = SHIFT
    if wh >= pad_H:
        sh = 0
    if ww >= pad_W:
        sw = 0
    if sh or sw:
        xp = jnp.roll(xp, shift=(-sh, -sw), axis=(1, 2))
    nWh, nWw = pad_H // wh, pad_W // ww
    nW, N = nWh * nWw, wh * ww
    xw = xp.reshape(B, nWh, wh, nWw, ww, C).transpose(0, 1, 3, 2, 4, 5)
    x2 = xw.reshape(B * nW * N, C)                               # all tokens, window-major

    # continuous relative position bias (tiny cpb-MLP; host-side glue)
    table = jnp.asarray(make_relative_coords_table(wh, ww)).reshape(-1, 2)
    hcpb = jax.nn.relu(table @ p["cpb_w1"].T + p["cpb_b1"])
    bias_table = hcpb @ p["cpb_w2"].T
    rel_idx = make_relative_position_index(wh, ww)
    rel_bias = bias_table[rel_idx].reshape(N, N, NUM_HEADS).transpose(2, 0, 1)
    rel_bias = (16.0 * jax.nn.sigmoid(rel_bias)).astype(jnp.float32)   # (nh, N, N)

    mask = jnp.asarray(make_attention_mask(pad_H, pad_W, wh, ww, sh, sw))  # (nW, N, N)

    qkv_b = p["qkv_b"].at[C:2 * C].set(0.0)                      # V2: zero k bias
    scale_exp = jnp.exp(jnp.minimum(p["logit_scale"], math.log(100.0)))   # (nh,)
    G = B * nW
    scale_rep = jnp.repeat(scale_exp, G)[:, None].astype(jnp.float32)     # (nh*G, 1)

    Hd = p["mlp_w1"].shape[0]
    width = 128 * max(1, -(-max(3 * C, Hd, C) // 128))

    def row(v):
        return jnp.pad(v.astype(jnp.float32), (0, width - v.shape[0]))

    # one packed (8, width) VMEM input instead of ~10 tiny padded buffers
    vecs = jnp.stack([row(qkv_b), row(p["mlp_b1"]), row(p["proj_b"]),
                      row(p["ln1_w"]), row(p["ln1_b"]), row(p["mlp_b2"]),
                      row(p["ln2_w"]), row(p["ln2_b"])], axis=0)

    bfc = jnp.bfloat16
    out2 = swin_block_pallas(
        x2,
        p["qkv_w"].T.astype(bfc), p["proj_w"].T.astype(bfc),
        p["mlp_w1"].T.astype(bfc), p["mlp_w2"].T.astype(bfc),
        vecs, scale_rep, rel_bias, mask)

    xr = out2.reshape(B, nWh, nWw, wh, ww, C).transpose(0, 1, 3, 2, 4, 5)
    xr = xr.reshape(B, pad_H, pad_W, C)
    if sh or sw:
        xr = jnp.roll(xr, shift=(sh, sw), axis=(1, 2))
    return xr[:, :H, :W, :]


if __name__ == "__main__":
    key = jax.random.PRNGKey(0)
    ks = jax.random.split(key, 16)
    s = 0.05
    params = dict(
        qkv_w=s * jax.random.normal(ks[0], (3 * DIM, DIM), jnp.float32),
        qkv_b=s * jax.random.normal(ks[1], (3 * DIM,), jnp.float32),
        proj_w=s * jax.random.normal(ks[2], (DIM, DIM), jnp.float32),
        proj_b=s * jax.random.normal(ks[3], (DIM,), jnp.float32),
        logit_scale=jnp.full((NUM_HEADS,), math.log(10.0), jnp.float32),
        cpb_w1=s * jax.random.normal(ks[4], (512, 2), jnp.float32),
        cpb_b1=s * jax.random.normal(ks[5], (512,), jnp.float32),
        cpb_w2=s * jax.random.normal(ks[6], (NUM_HEADS, 512), jnp.float32),
        ln1_w=1.0 + 0.1 * jax.random.normal(ks[7], (DIM,), jnp.float32),
        ln1_b=0.02 * jax.random.normal(ks[8], (DIM,), jnp.float32),
        ln2_w=1.0 + 0.1 * jax.random.normal(ks[9], (DIM,), jnp.float32),
        ln2_b=0.02 * jax.random.normal(ks[10], (DIM,), jnp.float32),
        mlp_w1=s * jax.random.normal(ks[11], (MLP_HIDDEN, DIM), jnp.float32),
        mlp_b1=1e-6 * jax.random.normal(ks[12], (MLP_HIDDEN,), jnp.float32),
        mlp_w2=s * jax.random.normal(ks[13], (DIM, MLP_HIDDEN), jnp.float32),
        mlp_b2=1e-6 * jax.random.normal(ks[14], (DIM,), jnp.float32),
    )
    x = jax.random.normal(ks[15], (2, 8, 8, DIM), jnp.float32)
    out = swin_block_v2_forward(x, params)
    jax.block_until_ready(out)
    print("KERNEL_OK")
</pallas_src>

<mosaic_0001>
module attributes {stable_mosaic.version = 11 : i64} {
  func.func @swin_block_v2_kernel(%arg0: i32, %arg1: memref<128x32xf32, #tpu.memory_space<vmem>>, %arg2: memref<32x96xbf16, #tpu.memory_space<vmem>>, %arg3: memref<32x32xbf16, #tpu.memory_space<vmem>>, %arg4: memref<32x128xbf16, #tpu.memory_space<vmem>>, %arg5: memref<128x32xbf16, #tpu.memory_space<vmem>>, %arg6: memref<8x128xf32, #tpu.memory_space<vmem>>, %arg7: memref<32x1xf32, #tpu.memory_space<vmem>>, %arg8: memref<4x16x16xf32, #tpu.memory_space<vmem>>, %arg9: memref<4x16x16xf32, #tpu.memory_space<vmem>>, %arg10: memref<128x32xf32, #tpu.memory_space<vmem>>, %arg11: memref<3x4x128x8xf32, #tpu.memory_space<vmem>>, %arg12: memref<128x32xf32, #tpu.memory_space<vmem>>) attributes {dimension_semantics = [#tpu.dimension_semantics<arbitrary>], iteration_bounds = array<i64: 1>, scalar_prefetch = 0 : i64, scratch_operands = 2 : i64, tpu.core_type = #tpu.core_type<tc>, window_params = [{pipeline_mode = #tpu.pipeline_mode<synchronous>, transform_indices = @transform_0, window_bounds = array<i64: 128, 32>}, {pipeline_mode = #tpu.pipeline_mode<synchronous>, transform_indices = @transform_1, window_bounds = array<i64: 32, 96>}, {pipeline_mode = #tpu.pipeline_mode<synchronous>, transform_indices = @transform_2, window_bounds = array<i64: 32, 32>}, {pipeline_mode = #tpu.pipeline_mode<synchronous>, transform_indices = @transform_3, window_bounds = array<i64: 32, 128>}, {pipeline_mode = #tpu.pipeline_mode<synchronous>, transform_indices = @transform_4, window_bounds = array<i64: 128, 32>}, {pipeline_mode = #tpu.pipeline_mode<synchronous>, transform_indices = @transform_5, window_bounds = array<i64: 8, 128>}, {pipeline_mode = #tpu.pipeline_mode<synchronous>, transform_indices = @transform_6, window_bounds = array<i64: 32, 1>}, {pipeline_mode = #tpu.pipeline_mode<synchronous>, transform_indices = @transform_7, window_bounds = array<i64: 4, 16, 16>}, {pipeline_mode = #tpu.pipeline_mode<synchronous>, transform_indices = @transform_8, window_bounds = array<i64: 4, 16, 16>}, {pipeline_mode = #tpu.pipeline_mode<synchronous>, transform_indices = @transform_9, window_bounds = array<i64: 128, 32>}]} {
    %c0 = arith.constant 0 : index
    %c0_0 = arith.constant 0 : index
    %0 = vector.load %arg1[%c0, %c0_0] : memref<128x32xf32, #tpu.memory_space<vmem>>, vector<128x32xf32>
    %c0_1 = arith.constant 0 : index
    %c0_2 = arith.constant 0 : index
    %1 = vector.load %arg6[%c0_1, %c0_2] : memref<8x128xf32, #tpu.memory_space<vmem>>, vector<8x128xf32>
    %2 = arith.truncf %0 : vector<128x32xf32> to vector<128x32xbf16>
    %c0_3 = arith.constant 0 : index
    %c0_4 = arith.constant 0 : index
    %3 = vector.load %arg2[%c0_3, %c0_4] : memref<32x96xbf16, #tpu.memory_space<vmem>>, vector<32x96xbf16>
    %cst = arith.constant dense<0.000000e+00> : vector<128x96xf32>
    %4 = tpu.matmul %2, %3, %cst {dimension_numbers = #tpu.dot_dimension_numbers<[1], [0], [0], [1], [0, 0, 1, 1], [], []>} : vector<128x32xbf16>, vector<32x96xbf16>, vector<128x96xf32> -> vector<128x96xf32>
    %5 = vector.extract_strided_slice %1 {offsets = [0, 0], sizes = [1, 96], strides = [1, 1]} : vector<8x128xf32> to vector<1x96xf32>
    %6 = vector.broadcast %5 : vector<1x96xf32> to vector<128x96xf32>
    %7 = arith.addf %4, %6 : vector<128x96xf32>
    %8 = vector.extract_strided_slice %7 {offsets = [0, 0], sizes = [128, 8], strides = [1, 1]} : vector<128x96xf32> to vector<128x8xf32>
    %c0_5 = arith.constant 0 : index
    %c0_6 = arith.constant 0 : index
    %c0_7 = arith.constant 0 : index
    %c0_8 = arith.constant 0 : index
    %9 = vector.load %arg11[%c0_5, %c0_6, %c0_7, %c0_8] : memref<3x4x128x8xf32, #tpu.memory_space<vmem>>, vector<1x1x128x8xf32>
    %10 = vector.shape_cast %9 : vector<1x1x128x8xf32> to vector<128x8xf32>
    %11 = vector.shape_cast %8 : vector<128x8xf32> to vector<1x1x128x8xf32>
    tpu.vector_store %arg11[%c0_5, %c0_6, %c0_7, %c0_8], %11 {strides = array<i32>} : memref<3x4x128x8xf32, #tpu.memory_space<vmem>>, vector<1x1x128x8xf32>,
    %12 = vector.extract_strided_slice %7 {offsets = [0, 8], sizes = [128, 8], strides = [1, 1]} : vector<128x96xf32> to vector<128x8xf32>
    %c0_9 = arith.constant 0 : index
    %c1 = arith.constant 1 : index
    %c0_10 = arith.constant 0 : index
    %c0_11 = arith.constant 0 : index
    %13 = vector.load %arg11[%c0_9, %c1, %c0_10, %c0_11] : memref<3x4x128x8xf32, #tpu.memory_space<vmem>>, vector<1x1x128x8xf32>
    %14 = vector.shape_cast %13 : vector<1x1x128x8xf32> to vector<128x8xf32>
    %15 = vector.shape_cast %12 : vector<128x8xf32> to vector<1x1x128x8xf32>
    tpu.vector_store %arg11[%c0_9, %c1, %c0_10, %c0_11], %15 {strides = array<i32>} : memref<3x4x128x8xf32, #tpu.memory_space<vmem>>, vector<1x1x128x8xf32>,
    %16 = vector.extract_strided_slice %7 {offsets = [0, 16], sizes = [128, 8], strides = [1, 1]} : vector<128x96xf32> to vector<128x8xf32>
    %c0_12 = arith.constant 0 : index
    %c2 = arith.constant 2 : index
    %c0_13 = arith.constant 0 : index
    %c0_14 = arith.constant 0 : index
    %17 = vector.load %arg11[%c0_12, %c2, %c0_13, %c0_14] : memref<3x4x128x8xf32, #tpu.memory_space<vmem>>, vector<1x1x128x8xf32>
    %18 = vector.shape_cast %17 : vector<1x1x128x8xf32> to vector<128x8xf32>
    %19 = vector.shape_cast %16 : vector<128x8xf32> to vector<1x1x128x8xf32>
    tpu.vector_store %arg11[%c0_12, %c2, %c0_13, %c0_14], %19 {strides = array<i32>} : memref<3x4x128x8xf32, #tpu.memory_space<vmem>>, vector<1x1x128x8xf32>,
    %20 = vector.extract_strided_slice %7 {offsets = [0, 24], sizes = [128, 8], strides = [1, 1]} : vector<128x96xf32> to vector<128x8xf32>
    %c0_15 = arith.constant 0 : index
    %c3 = arith.constant 3 : index
    %c0_16 = arith.constant 0 : index
    %c0_17 = arith.constant 0 : index
    %21 = vector.load %arg11[%c0_15, %c3, %c0_16, %c0_17] : memref<3x4x128x8xf32, #tpu.memory_space<vmem>>, vector<1x1x128x8xf32>
    %22 = vector.shape_cast %21 : vector<1x1x128x8xf32> to vector<128x8xf32>
    %23 = vector.shape_cast %20 : vector<128x8xf32> to vector<1x1x128x8xf32>
    tpu.vector_store %arg11[%c0_15, %c3, %c0_16, %c0_17], %23 {strides = array<i32>} : memref<3x4x128x8xf32, #tpu.memory_space<vmem>>, vector<1x1x128x8xf32>,
    %24 = vector.extract_strided_slice %7 {offsets = [0, 32], sizes = [128, 8], strides = [1, 1]} : vector<128x96xf32> to vector<128x8xf32>
    %c1_18 = arith.constant 1 : index
    %c0_19 = arith.constant 0 : index
    %c0_20 = arith.constant 0 : index
    %c0_21 = arith.constant 0 : index
    %25 = vector.load %arg11[%c1_18, %c0_19, %c0_20, %c0_21] : memref<3x4x128x8xf32, #tpu.memory_space<vmem>>, vector<1x1x128x8xf32>
    %26 = vector.shape_cast %25 : vector<1x1x128x8xf32> to vector<128x8xf32>
    %27 = vector.shape_cast %24 : vector<128x8xf32> to vector<1x1x128x8xf32>
    tpu.vector_store %arg11[%c1_18, %c0_19, %c0_20, %c0_21], %27 {strides = array<i32>} : memref<3x4x128x8xf32, #tpu.memory_space<vmem>>, vector<1x1x128x8xf32>,
    %28 = vector.extract_strided_slice %7 {offsets = [0, 40], sizes = [128, 8], strides = [1, 1]} : vector<128x96xf32> to vector<128x8xf32>
    %c1_22 = arith.constant 1 : index
    %c1_23 = arith.constant 1 : index
    %c0_24 = arith.constant 0 : index
    %c0_25 = arith.constant 0 : index
    %29 = vector.load %arg11[%c1_22, %c1_23, %c0_24, %c0_25] : memref<3x4x128x8xf32, #tpu.memory_space<vmem>>, vector<1x1x128x8xf32>
    %30 = vector.shape_cast %29 : vector<1x1x128x8xf32> to vector<128x8xf32>
    %31 = vector.shape_cast %28 : vector<128x8xf32> to vector<1x1x128x8xf32>
    tpu.vector_store %arg11[%c1_22, %c1_23, %c0_24, %c0_25], %31 {strides = array<i32>} : memref<3x4x128x8xf32, #tpu.memory_space<vmem>>, vector<1x1x128x8xf32>,
    %32 = vector.extract_strided_slice %7 {offsets = [0, 48], sizes = [128, 8], strides = [1, 1]} : vector<128x96xf32> to vector<128x8xf32>
    %c1_26 = arith.constant 1 : index
    %c2_27 = arith.constant 2 : index
    %c0_28 = arith.constant 0 : index
    %c0_29 = arith.constant 0 : index
    %33 = vector.load %arg11[%c1_26, %c2_27, %c0_28, %c0_29] : memref<3x4x128x8xf32, #tpu.memory_space<vmem>>, vector<1x1x128x8xf32>
    %34 = vector.shape_cast %33 : vector<1x1x128x8xf32> to vector<128x8xf32>
    %35 = vector.shape_cast %32 : vector<128x8xf32> to vector<1x1x128x8xf32>
    tpu.vector_store %arg11[%c1_26, %c2_27, %c0_28, %c0_29], %35 {strides = array<i32>} : memref<3x4x128x8xf32, #tpu.memory_space<vmem>>, vector<1x1x128x8xf32>,
    %36 = vector.extract_strided_slice %7 {offsets = [0, 56], sizes = [128, 8], strides = [1, 1]} : vector<128x96xf32> to vector<128x8xf32>
    %c1_30 = arith.constant 1 : index
    %c3_31 = arith.constant 3 : index
    %c0_32 = arith.constant 0 : index
    %c0_33 = arith.constant 0 : index
    %37 = vector.load %arg11[%c1_30, %c3_31, %c0_32, %c0_33] : memref<3x4x128x8xf32, #tpu.memory_space<vmem>>, vector<1x1x128x8xf32>
    %38 = vector.shape_cast %37 : vector<1x1x128x8xf32> to vector<128x8xf32>
    %39 = vector.shape_cast %36 : vector<128x8xf32> to vector<1x1x128x8xf32>
    tpu.vector_store %arg11[%c1_30, %c3_31, %c0_32, %c0_33], %39 {strides = array<i32>} : memref<3x4x128x8xf32, #tpu.memory_space<vmem>>, vector<1x1x128x8xf32>,
    %40 = vector.extract_strided_slice %7 {offsets = [0, 64], sizes = [128, 8], strides = [1, 1]} : vector<128x96xf32> to vector<128x8xf32>
    %c2_34 = arith.constant 2 : index
    %c0_35 = arith.constant 0 : index
    %c0_36 = arith.constant 0 : index
    %c0_37 = arith.constant 0 : index
    %41 = vector.load %arg11[%c2_34, %c0_35, %c0_36, %c0_37] : memref<3x4x128x8xf32, #tpu.memory_space<vmem>>, vector<1x1x128x8xf32>
    %42 = vector.shape_cast %41 : vector<1x1x128x8xf32> to vector<128x8xf32>
    %43 = vector.shape_cast %40 : vector<128x8xf32> to vector<1x1x128x8xf32>
    tpu.vector_store %arg11[%c2_34, %c0_35, %c0_36, %c0_37], %43 {strides = array<i32>} : memref<3x4x128x8xf32, #tpu.memory_space<vmem>>, vector<1x1x128x8xf32>,
    %44 = vector.extract_strided_slice %7 {offsets = [0, 72], sizes = [128, 8], strides = [1, 1]} : vector<128x96xf32> to vector<128x8xf32>
    %c2_38 = arith.constant 2 : index
    %c1_39 = arith.constant 1 : index
    %c0_40 = arith.constant 0 : index
    %c0_41 = arith.constant 0 : index
    %45 = vector.load %arg11[%c2_38, %c1_39, %c0_40, %c0_41] : memref<3x4x128x8xf32, #tpu.memory_space<vmem>>, vector<1x1x128x8xf32>
    %46 = vector.shape_cast %45 : vector<1x1x128x8xf32> to vector<128x8xf32>
    %47 = vector.shape_cast %44 : vector<128x8xf32> to vector<1x1x128x8xf32>
    tpu.vector_store %arg11[%c2_38, %c1_39, %c0_40, %c0_41], %47 {strides = array<i32>} : memref<3x4x128x8xf32, #tpu.memory_space<vmem>>, vector<1x1x128x8xf32>,
    %48 = vector.extract_strided_slice %7 {offsets = [0, 80], sizes = [128, 8], strides = [1, 1]} : vector<128x96xf32> to vector<128x8xf32>
    %c2_42 = arith.constant 2 : index
    %c2_43 = arith.constant 2 : index
    %c0_44 = arith.constant 0 : index
    %c0_45 = arith.constant 0 : index
    %49 = vector.load %arg11[%c2_42, %c2_43, %c0_44, %c0_45] : memref<3x4x128x8xf32, #tpu.memory_space<vmem>>, vector<1x1x128x8xf32>
    %50 = vector.shape_cast %49 : vector<1x1x128x8xf32> to vector<128x8xf32>
    %51 = vector.shape_cast %48 : vector<128x8xf32> to vector<1x1x128x8xf32>
    tpu.vector_store %arg11[%c2_42, %c2_43, %c0_44, %c0_45], %51 {strides = array<i32>} : memref<3x4x128x8xf32, #tpu.memory_space<vmem>>, vector<1x1x128x8xf32>,
    %52 = vector.extract_strided_slice %7 {offsets = [0, 88], sizes = [128, 8], strides = [1, 1]} : vector<128x96xf32> to vector<128x8xf32>
    %c2_46 = arith.constant 2 : index
    %c3_47 = arith.constant 3 : index
    %c0_48 = arith.constant 0 : index
    %c0_49 = arith.constant 0 : index
    %53 = vector.load %arg11[%c2_46, %c3_47, %c0_48, %c0_49] : memref<3x4x128x8xf32, #tpu.memory_space<vmem>>, vector<1x1x128x8xf32>
    %54 = vector.shape_cast %53 : vector<1x1x128x8xf32> to vector<128x8xf32>
    %55 = vector.shape_cast %52 : vector<128x8xf32> to vector<1x1x128x8xf32>
    tpu.vector_store %arg11[%c2_46, %c3_47, %c0_48, %c0_49], %55 {strides = array<i32>} : memref<3x4x128x8xf32, #tpu.memory_space<vmem>>, vector<1x1x128x8xf32>,
    %c0_50 = arith.constant 0 : index
    %c0_51 = arith.constant 0 : index
    %c0_52 = arith.constant 0 : index
    %c0_53 = arith.constant 0 : index
    %56 = vector.load %arg11[%c0_50, %c0_51, %c0_52, %c0_53] : memref<3x4x128x8xf32, #tpu.memory_space<vmem>>, vector<1x4x128x8xf32>
    %57 = vector.shape_cast %56 : vector<1x4x128x8xf32> to vector<4x128x8xf32>
    %58 = vector.shape_cast %57 : vector<4x128x8xf32> to vector<32x16x8xf32>
    %c1_54 = arith.constant 1 : index
    %c0_55 = arith.constant 0 : index
    %c0_56 = arith.constant 0 : index
    %c0_57 = arith.constant 0 : index
    %59 = vector.load %arg11[%c1_54, %c0_55, %c0_56, %c0_57] : memref<3x4x128x8xf32, #tpu.memory_space<vmem>>, vector<1x4x128x8xf32>
    %60 = vector.shape_cast %59 : vector<1x4x128x8xf32> to vector<4x128x8xf32>
    %61 = vector.shape_cast %60 : vector<4x128x8xf32> to vector<32x16x8xf32>
    %c2_58 = arith.constant 2 : index
    %c0_59 = arith.constant 0 : index
    %c0_60 = arith.constant 0 : index
    %c0_61 = arith.constant 0 : index
    %62 = vector.load %arg11[%c2_58, %c0_59, %c0_60, %c0_61] : memref<3x4x128x8xf32, #tpu.memory_space<vmem>>, vector<1x4x128x8xf32>
    %63 = vector.shape_cast %62 : vector<1x4x128x8xf32> to vector<4x128x8xf32>
    %64 = vector.shape_cast %63 : vector<4x128x8xf32> to vector<32x16x8xf32>
    %65 = arith.mulf %58, %58 : vector<32x16x8xf32>
    %cst_62 = arith.constant dense<0.000000e+00> : vector<32x16xf32>
    %66 = vector.multi_reduction <add>, %65, %cst_62 [2] : vector<32x16x8xf32> to vector<32x16xf32>
    %67 = vector.shape_cast %66 : vector<32x16xf32> to vector<32x16x1xf32>
    %cst_63 = arith.constant 1.000000e-24 : f32
    %68 = vector.broadcast %cst_63 : f32 to vector<32x16x1xf32>
    %69 = arith.maximumf %67, %68 : vector<32x16x1xf32>
    %70 = math.rsqrt %69 : vector<32x16x1xf32>
    %71 = vector.broadcast %70 : vector<32x16x1xf32> to vector<32x16x8xf32>
    %72 = arith.mulf %58, %71 : vector<32x16x8xf32>
    %73 = arith.mulf %61, %61 : vector<32x16x8xf32>
    %cst_64 = arith.constant dense<0.000000e+00> : vector<32x16xf32>
    %74 = vector.multi_reduction <add>, %73, %cst_64 [2] : vector<32x16x8xf32> to vector<32x16xf32>
    %75 = vector.shape_cast %74 : vector<32x16xf32> to vector<32x16x1xf32>
    %cst_65 = arith.constant 1.000000e-24 : f32
    %76 = vector.broadcast %cst_65 : f32 to vector<32x16x1xf32>
    %77 = arith.maximumf %75, %76 : vector<32x16x1xf32>
    %78 = math.rsqrt %77 : vector<32x16x1xf32>
    %79 = vector.broadcast %78 : vector<32x16x1xf32> to vector<32x16x8xf32>
    %80 = arith.mulf %61, %79 : vector<32x16x8xf32>
    %c0_66 = arith.constant 0 : index
    %c0_67 = arith.constant 0 : index
    %81 = vector.load %arg7[%c0_66, %c0_67] : memref<32x1xf32, #tpu.memory_space<vmem>>, vector<32x1xf32>
    %82 = vector.shape_cast %81 : vector<32x1xf32> to vector<32x1x1xf32>
    %83 = vector.broadcast %82 : vector<32x1x1xf32> to vector<32x16x8xf32>
    %84 = arith.mulf %72, %83 : vector<32x16x8xf32>
    %85 = arith.truncf %84 : vector<32x16x8xf32> to vector<32x16x8xbf16>
    %86 = arith.truncf %80 : vector<32x16x8xf32> to vector<32x16x8xbf16>
    "tpu.trace_start"() <{level = 10 : i32, message = "bqd,bkd->bqk"}> : () -> ()
    %cst_68 = arith.constant dense<0.000000e+00> : vector<32x16x16xf32>
    %87 = tpu.matmul %85, %86, %cst_68 {dimension_numbers = #tpu.dot_dimension_numbers<[2], [2], [1], [1], [0, 0, 0, 1, 1, 1], [0], [0]>} : vector<32x16x8xbf16>, vector<32x16x8xbf16>, vector<32x16x16xf32> -> vector<32x16x16xf32>
    "tpu.trace_stop"() : () -> ()
    %88 = vector.shape_cast %87 : vector<32x16x16xf32> to vector<4x8x16x16xf32>
    %c0_69 = arith.constant 0 : index
    %c0_70 = arith.constant 0 : index
    %c0_71 = arith.constant 0 : index
    %89 = vector.load %arg8[%c0_69, %c0_70, %c0_71] : memref<4x16x16xf32, #tpu.memory_space<vmem>>, vector<4x16x16xf32>
    %90 = vector.shape_cast %89 : vector<4x16x16xf32> to vector<4x1x16x16xf32>
    %91 = vector.broadcast %90 : vector<4x1x16x16xf32> to vector<4x8x16x16xf32>
    %92 = arith.addf %88, %91 : vector<4x8x16x16xf32>
    %93 = vector.shape_cast %92 : vector<4x8x16x16xf32> to vector<8x4x16x16xf32>
    %c0_72 = arith.constant 0 : index
    %c0_73 = arith.constant 0 : index
    %c0_74 = arith.constant 0 : index
    %94 = vector.load %arg9[%c0_72, %c0_73, %c0_74] : memref<4x16x16xf32, #tpu.memory_space<vmem>>, vector<4x16x16xf32>
    %95 = vector.shape_cast %94 : vector<4x16x16xf32> to vector<1x4x16x16xf32>
    %96 = vector.broadcast %95 : vector<1x4x16x16xf32> to vector<8x4x16x16xf32>
    %97 = arith.addf %93, %96 : vector<8x4x16x16xf32>
    %98 = vector.shape_cast %97 : vector<8x4x16x16xf32> to vector<32x16x16xf32>
    %cst_75 = arith.constant dense<0xFF800000> : vector<32x16xf32>
    %99 = vector.multi_reduction <maximumf>, %98, %cst_75 [2] : vector<32x16x16xf32> to vector<32x16xf32>
    %100 = vector.shape_cast %99 : vector<32x16xf32> to vector<32x16x1xf32>
    %101 = vector.broadcast %100 : vector<32x16x1xf32> to vector<32x16x16xf32>
    %102 = arith.subf %98, %101 : vector<32x16x16xf32>
    %103 = math.exp %102 : vector<32x16x16xf32>
    %cst_76 = arith.constant dense<0.000000e+00> : vector<32x16xf32>
    %104 = vector.multi_reduction <add>, %103, %cst_76 [2] : vector<32x16x16xf32> to vector<32x16xf32>
    %105 = vector.shape_cast %104 : vector<32x16xf32> to vector<32x16x1xf32>
    %106 = tpu.reciprocal %105 : vector<32x16x1xf32> -> vector<32x16x1xf32>
    %107 = vector.broadcast %106 : vector<32x16x1xf32> to vector<32x16x16xf32>
    %108 = arith.mulf %103, %107 : vector<32x16x16xf32>
    %109 = arith.truncf %108 : vector<32x16x16xf32> to vector<32x16x16xbf16>
    %110 = arith.truncf %64 : vector<32x16x8xf32> to vector<32x16x8xbf16>
    "tpu.trace_start"() <{level = 10 : i32, message = "bqk,bkd->bqd"}> : () -> ()
    %cst_77 = arith.constant dense<0.000000e+00> : vector<32x16x8xf32>
    %111 = tpu.matmul %109, %110, %cst_77 {dimension_numbers = #tpu.dot_dimension_numbers<[2], [1], [1], [2], [0, 0, 0, 1, 1, 2], [0], [0]>} : vector<32x16x16xbf16>, vector<32x16x8xbf16>, vector<32x16x8xf32> -> vector<32x16x8xf32>
    "tpu.trace_stop"() : () -> ()
    %112 = vector.shape_cast %111 : vector<32x16x8xf32> to vector<4x128x8xf32>
    %113 = vector.extract_strided_slice %112 {offsets = [0, 0, 0], sizes = [1, 128, 8], strides = [1, 1, 1]} : vector<4x128x8xf32> to vector<1x128x8xf32>
    %114 = vector.shape_cast %113 : vector<1x128x8xf32> to vector<128x8xf32>
    %c0_78 = arith.constant 0 : index
    %c0_79 = arith.constant 0 : index
    %115 = vector.load %arg12[%c0_78, %c0_79] : memref<128x32xf32, #tpu.memory_space<vmem>>, vector<128x8xf32>
    tpu.vector_store %arg12[%c0_78, %c0_79], %114 {strides = array<i32>} : memref<128x32xf32, #tpu.memory_space<vmem>>, vector<128x8xf32>,
    %116 = vector.extract_strided_slice %112 {offsets = [1, 0, 0], sizes = [1, 128, 8], strides = [1, 1, 1]} : vector<4x128x8xf32> to vector<1x128x8xf32>
    %117 = vector.shape_cast %116 : vector<1x128x8xf32> to vector<128x8xf32>
    %c0_80 = arith.constant 0 : index
    %c8 = arith.constant 8 : index
    %118 = vector.load %arg12[%c0_80, %c8] : memref<128x32xf32, #tpu.memory_space<vmem>>, vector<128x8xf32>
    tpu.vector_store %arg12[%c0_80, %c8], %117 {strides = array<i32>} : memref<128x32xf32, #tpu.memory_space<vmem>>, vector<128x8xf32>,
    %119 = vector.extract_strided_slice %112 {offsets = [2, 0, 0], sizes = [1, 128, 8], strides = [1, 1, 1]} : vector<4x128x8xf32> to vector<1x128x8xf32>
    %120 = vector.shape_cast %119 : vector<1x128x8xf32> to vector<128x8xf32>
    %c0_81 = arith.constant 0 : index
    %c16 = arith.constant 16 : index
    %121 = vector.load %arg12[%c0_81, %c16] : memref<128x32xf32, #tpu.memory_space<vmem>>, vector<128x8xf32>
    tpu.vector_store %arg12[%c0_81, %c16], %120 {strides = array<i32>} : memref<128x32xf32, #tpu.memory_space<vmem>>, vector<128x8xf32>,
    %122 = vector.extract_strided_slice %112 {offsets = [3, 0, 0], sizes = [1, 128, 8], strides = [1, 1, 1]} : vector<4x128x8xf32> to vector<1x128x8xf32>
    %123 = vector.shape_cast %122 : vector<1x128x8xf32> to vector<128x8xf32>
    %c0_82 = arith.constant 0 : index
    %c24 = arith.constant 24 : index
    %124 = vector.load %arg12[%c0_82, %c24] : memref<128x32xf32, #tpu.memory_space<vmem>>, vector<128x8xf32>
    tpu.vector_store %arg12[%c0_82, %c24], %123 {strides = array<i32>} : memref<128x32xf32, #tpu.memory_space<vmem>>, vector<128x8xf32>,
    %c0_83 = arith.constant 0 : index
    %c0_84 = arith.constant 0 : index
    %125 = vector.load %arg12[%c0_83, %c0_84] : memref<128x32xf32, #tpu.memory_space<vmem>>, vector<128x32xf32>
    %126 = arith.truncf %125 : vector<128x32xf32> to vector<128x32xbf16>
    %c0_85 = arith.constant 0 : index
    %c0_86 = arith.constant 0 : index
    %127 = vector.load %arg3[%c0_85, %c0_86] : memref<32x32xbf16, #tpu.memory_space<vmem>>, vector<32x32xbf16>
    %cst_87 = arith.constant dense<0.000000e+00> : vector<128x32xf32>
    %128 = tpu.matmul %126, %127, %cst_87 {dimension_numbers = #tpu.dot_dimension_numbers<[1], [0], [0], [1], [0, 0, 1, 1], [], []>} : vector<128x32xbf16>, vector<32x32xbf16>, vector<128x32xf32> -> vector<128x32xf32>
    %129 = vector.extract_strided_slice %1 {offsets = [2, 0], sizes = [1, 32], strides = [1, 1]} : vector<8x128xf32> to vector<1x32xf32>
    %130 = vector.broadcast %129 : vector<1x32xf32> to vector<128x32xf32>
    %131 = arith.addf %128, %130 : vector<128x32xf32>
    %132 = vector.extract_strided_slice %1 {offsets = [3, 0], sizes = [1, 32], strides = [1, 1]} : vector<8x128xf32> to vector<1x32xf32>
    %133 = vector.extract_strided_slice %1 {offsets = [4, 0], sizes = [1, 32], strides = [1, 1]} : vector<8x128xf32> to vector<1x32xf32>
    %cst_88 = arith.constant dense<0.000000e+00> : vector<128xf32>
    %134 = vector.multi_reduction <add>, %131, %cst_88 [1] : vector<128x32xf32> to vector<128xf32>
    %135 = vector.shape_cast %134 : vector<128xf32> to vector<128x1xf32>
    %cst_89 = arith.constant 3.200000e+01 : f32
    %136 = vector.broadcast %cst_89 : f32 to vector<128x1xf32>
    %137 = arith.divf %135, %136 : vector<128x1xf32>
    %138 = vector.broadcast %137 : vector<128x1xf32> to vector<128x32xf32>
    %139 = arith.subf %131, %138 : vector<128x32xf32>
    %140 = vector.broadcast %137 : vector<128x1xf32> to vector<128x32xf32>
    %141 = arith.subf %131, %140 : vector<128x32xf32>
    %142 = arith.mulf %139, %141 : vector<128x32xf32>
    %cst_90 = arith.constant dense<0.000000e+00> : vector<128xf32>
    %143 = vector.multi_reduction <add>, %142, %cst_90 [1] : vector<128x32xf32> to vector<128xf32>
    %144 = vector.shape_cast %143 : vector<128xf32> to vector<128x1xf32>
    %cst_91 = arith.constant 3.200000e+01 : f32
    %145 = vector.broadcast %cst_91 : f32 to vector<128x1xf32>
    %146 = arith.divf %144, %145 : vector<128x1xf32>
    %147 = vector.broadcast %137 : vector<128x1xf32> to vector<128x32xf32>
    %148 = arith.subf %131, %147 : vector<128x32xf32>
    %cst_92 = arith.constant 9.99999974E-6 : f32
    %149 = vector.broadcast %cst_92 : f32 to vector<128x1xf32>
    %150 = arith.addf %146, %149 : vector<128x1xf32>
    %151 = math.rsqrt %150 : vector<128x1xf32>
    %152 = vector.broadcast %151 : vector<128x1xf32> to vector<128x32xf32>
    %153 = arith.mulf %148, %152 : vector<128x32xf32>
    %154 = vector.broadcast %132 : vector<1x32xf32> to vector<128x32xf32>
    %155 = arith.mulf %153, %154 : vector<128x32xf32>
    %156 = vector.broadcast %133 : vector<1x32xf32> to vector<128x32xf32>
    %157 = arith.addf %155, %156 : vector<128x32xf32>
    %158 = arith.addf %0, %157 : vector<128x32xf32>
    %159 = arith.truncf %158 : vector<128x32xf32> to vector<128x32xbf16>
    %c0_93 = arith.constant 0 : index
    %c0_94 = arith.constant 0 : index
    %160 = vector.load %arg4[%c0_93, %c0_94] : memref<32x128xbf16, #tpu.memory_space<vmem>>, vector<32x128xbf16>
    %cst_95 = arith.constant dense<0.000000e+00> : vector<128x128xf32>
    %161 = tpu.matmul %159, %160, %cst_95 {dimension_numbers = #tpu.dot_dimension_numbers<[1], [0], [0], [1], [0, 0, 1, 1], [], []>} : vector<128x32xbf16>, vector<32x128xbf16>, vector<128x128xf32> -> vector<128x128xf32>
    %162 = vector.extract_strided_slice %1 {offsets = [1, 0], sizes = [1, 128], strides = [1, 1]} : vector<8x128xf32> to vector<1x128xf32>
    %163 = vector.broadcast %162 : vector<1x128xf32> to vector<128x128xf32>
    %164 = arith.addf %161, %163 : vector<128x128xf32>
    %cst_96 = arith.constant 0.707106769 : f32
    %165 = vector.broadcast %cst_96 : f32 to vector<128x128xf32>
    %166 = arith.mulf %164, %165 : vector<128x128xf32>
    %167 = math.absf %166 : vector<128x128xf32>
    %cst_97 = arith.constant 0.327591091 : f32
    %168 = vector.broadcast %cst_97 : f32 to vector<128x128xf32>
    %169 = arith.mulf %168, %167 : vector<128x128xf32>
    %cst_98 = arith.constant 1.000000e+00 : f32
    %170 = vector.broadcast %cst_98 : f32 to vector<128x128xf32>
    %171 = arith.addf %170, %169 : vector<128x128xf32>
    %cst_99 = arith.constant 1.000000e+00 : f32
    %172 = vector.broadcast %cst_99 : f32 to vector<128x128xf32>
    %173 = arith.divf %172, %171 : vector<128x128xf32>
    %cst_100 = arith.constant 1.06140542 : f32
    %174 = vector.broadcast %cst_100 : f32 to vector<128x128xf32>
    %175 = arith.mulf %174, %173 : vector<128x128xf32>
    %cst_101 = arith.constant 1.45315206 : f32
    %176 = vector.broadcast %cst_101 : f32 to vector<128x128xf32>
    %177 = arith.subf %175, %176 : vector<128x128xf32>
    %178 = arith.mulf %177, %173 : vector<128x128xf32>
    %cst_102 = arith.constant 1.42141378 : f32
    %179 = vector.broadcast %cst_102 : f32 to vector<128x128xf32>
    %180 = arith.addf %178, %179 : vector<128x128xf32>
    %181 = arith.mulf %180, %173 : vector<128x128xf32>
    %cst_103 = arith.constant 0.284496725 : f32
    %182 = vector.broadcast %cst_103 : f32 to vector<128x128xf32>
    %183 = arith.subf %181, %182 : vector<128x128xf32>
    %184 = arith.mulf %183, %173 : vector<128x128xf32>
    %cst_104 = arith.constant 0.254829586 : f32
    %185 = vector.broadcast %cst_104 : f32 to vector<128x128xf32>
    %186 = arith.addf %184, %185 : vector<128x128xf32>
    %187 = arith.mulf %186, %173 : vector<128x128xf32>
    %cst_105 = arith.constant 0.000000e+00 : f32
    %188 = vector.broadcast %cst_105 : f32 to vector<128x128xf32>
    %189 = arith.subf %188, %167 : vector<128x128xf32>
    %190 = arith.mulf %189, %167 : vector<128x128xf32>
    %191 = math.exp %190 : vector<128x128xf32>
    %192 = arith.mulf %187, %191 : vector<128x128xf32>
    %cst_106 = arith.constant 1.000000e+00 : f32
    %193 = vector.broadcast %cst_106 : f32 to vector<128x128xf32>
    %194 = arith.subf %193, %192 : vector<128x128xf32>
    %cst_107 = arith.constant 0.000000e+00 : f32
    %195 = vector.broadcast %cst_107 : f32 to vector<128x128xf32>
    %196 = arith.cmpf oge, %166, %195 : vector<128x128xf32>
    %cst_108 = arith.constant 0.000000e+00 : f32
    %197 = vector.broadcast %cst_108 : f32 to vector<128x128xf32>
    %198 = arith.subf %197, %194 : vector<128x128xf32>
    %199 = arith.select %196, %194, %198 : vector<128x128xi1>, vector<128x128xf32>
    %cst_109 = arith.constant 5.000000e-01 : f32
    %200 = vector.broadcast %cst_109 : f32 to vector<128x128xf32>
    %201 = arith.mulf %200, %164 : vector<128x128xf32>
    %cst_110 = arith.constant 1.000000e+00 : f32
    %202 = vector.broadcast %cst_110 : f32 to vector<128x128xf32>
    %203 = arith.addf %202, %199 : vector<128x128xf32>
    %204 = arith.mulf %201, %203 : vector<128x128xf32>
    %205 = arith.truncf %204 : vector<128x128xf32> to vector<128x128xbf16>
    %c0_111 = arith.constant 0 : index
    %c0_112 = arith.constant 0 : index
    %206 = vector.load %arg5[%c0_111, %c0_112] : memref<128x32xbf16, #tpu.memory_space<vmem>>, vector<128x32xbf16>
    %cst_113 = arith.constant dense<0.000000e+00> : vector<128x32xf32>
    %207 = tpu.matmul %205, %206, %cst_113 {dimension_numbers = #tpu.dot_dimension_numbers<[1], [0], [0], [1], [0, 0, 1, 1], [], []>} : vector<128x128xbf16>, vector<128x32xbf16>, vector<128x32xf32> -> vector<128x32xf32>
    %208 = vector.extract_strided_slice %1 {offsets = [5, 0], sizes = [1, 32], strides = [1, 1]} : vector<8x128xf32> to vector<1x32xf32>
    %209 = vector.broadcast %208 : vector<1x32xf32> to vector<128x32xf32>
    %210 = arith.addf %207, %209 : vector<128x32xf32>
    %211 = vector.extract_strided_slice %1 {offsets = [6, 0], sizes = [1, 32], strides = [1, 1]} : vector<8x128xf32> to vector<1x32xf32>
    %212 = vector.extract_strided_slice %1 {offsets = [7, 0], sizes = [1, 32], strides = [1, 1]} : vector<8x128xf32> to vector<1x32xf32>
    %cst_114 = arith.constant dense<0.000000e+00> : vector<128xf32>
    %213 = vector.multi_reduction <add>, %210, %cst_114 [1] : vector<128x32xf32> to vector<128xf32>
    %214 = vector.shape_cast %213 : vector<128xf32> to vector<128x1xf32>
    %cst_115 = arith.constant 3.200000e+01 : f32
    %215 = vector.broadcast %cst_115 : f32 to vector<128x1xf32>
    %216 = arith.divf %214, %215 : vector<128x1xf32>
    %217 = vector.broadcast %216 : vector<128x1xf32> to vector<128x32xf32>
    %218 = arith.subf %210, %217 : vector<128x32xf32>
    %219 = vector.broadcast %216 : vector<128x1xf32> to vector<128x32xf32>
    %220 = arith.subf %210, %219 : vector<128x32xf32>
    %221 = arith.mulf %218, %220 : vector<128x32xf32>
    %cst_116 = arith.constant dense<0.000000e+00> : vector<128xf32>
    %222 = vector.multi_reduction <add>, %221, %cst_116 [1] : vector<128x32xf32> to vector<128xf32>
    %223 = vector.shape_cast %222 : vector<128xf32> to vector<128x1xf32>
    %cst_117 = arith.constant 3.200000e+01 : f32
    %224 = vector.broadcast %cst_117 : f32 to vector<128x1xf32>
    %225 = arith.divf %223, %224 : vector<128x1xf32>
    %226 = vector.broadcast %216 : vector<128x1xf32> to vector<128x32xf32>
    %227 = arith.subf %210, %226 : vector<128x32xf32>
    %cst_118 = arith.constant 9.99999974E-6 : f32
    %228 = vector.broadcast %cst_118 : f32 to vector<128x1xf32>
    %229 = arith.addf %225, %228 : vector<128x1xf32>
    %230 = math.rsqrt %229 : vector<128x1xf32>
    %231 = vector.broadcast %230 : vector<128x1xf32> to vector<128x32xf32>
    %232 = arith.mulf %227, %231 : vector<128x32xf32>
    %233 = vector.broadcast %211 : vector<1x32xf32> to vector<128x32xf32>
    %234 = arith.mulf %232, %233 : vector<128x32xf32>
    %235 = vector.broadcast %212 : vector<1x32xf32> to vector<128x32xf32>
    %236 = arith.addf %234, %235 : vector<128x32xf32>
    %237 = arith.addf %158, %236 : vector<128x32xf32>
    %c0_119 = arith.constant 0 : index
    %c0_120 = arith.constant 0 : index
    %238 = vector.load %arg10[%c0_119, %c0_120] : memref<128x32xf32, #tpu.memory_space<vmem>>, vector<128x32xf32>
    tpu.vector_store %arg10[%c0_119, %c0_120], %237 {strides = array<i32>} : memref<128x32xf32, #tpu.memory_space<vmem>>, vector<128x32xf32>,
    return
  }
  func.func @transform_0(%arg0: i32) -> (i32, i32) {
    %c0_i32 = arith.constant 0 : i32
    %c0_i32_0 = arith.constant 0 : i32
    %c0_i32_1 = arith.constant 0 : i32
    return %c0_i32, %c0_i32_0 : i32, i32
  }
  func.func @transform_1(%arg0: i32) -> (i32, i32) {
    %c0_i32 = arith.constant 0 : i32
    %c0_i32_0 = arith.constant 0 : i32
    %c0_i32_1 = arith.constant 0 : i32
    return %c0_i32, %c0_i32_0 : i32, i32
  }
  func.func @transform_2(%arg0: i32) -> (i32, i32) {
    %c0_i32 = arith.constant 0 : i32
    %c0_i32_0 = arith.constant 0 : i32
    %c0_i32_1 = arith.constant 0 : i32
    return %c0_i32, %c0_i32_0 : i32, i32
  }
  func.func @transform_3(%arg0: i32) -> (i32, i32) {
    %c0_i32 = arith.constant 0 : i32
    %c0_i32_0 = arith.constant 0 : i32
    %c0_i32_1 = arith.constant 0 : i32
    return %c0_i32, %c0_i32_0 : i32, i32
  }
  func.func @transform_4(%arg0: i32) -> (i32, i32) {
    %c0_i32 = arith.constant 0 : i32
    %c0_i32_0 = arith.constant 0 : i32
    %c0_i32_1 = arith.constant 0 : i32
    return %c0_i32, %c0_i32_0 : i32, i32
  }
  func.func @transform_5(%arg0: i32) -> (i32, i32) {
    %c0_i32 = arith.constant 0 : i32
    %c0_i32_0 = arith.constant 0 : i32
    %c0_i32_1 = arith.constant 0 : i32
    return %c0_i32, %c0_i32_0 : i32, i32
  }
  func.func @transform_6(%arg0: i32) -> (i32, i32) {
    %c0_i32 = arith.constant 0 : i32
    %c0_i32_0 = arith.constant 0 : i32
    %c0_i32_1 = arith.constant 0 : i32
    return %c0_i32, %c0_i32_0 : i32, i32
  }
  func.func @transform_7(%arg0: i32) -> (i32, i32, i32) {
    %c0_i32 = arith.constant 0 : i32
    %c0_i32_0 = arith.constant 0 : i32
    %c0_i32_1 = arith.constant 0 : i32
    %c0_i32_2 = arith.constant 0 : i32
    return %c0_i32, %c0_i32_0, %c0_i32_1 : i32, i32, i32
  }
  func.func @transform_8(%arg0: i32) -> (i32, i32, i32) {
    %c0_i32 = arith.constant 0 : i32
    %c0_i32_0 = arith.constant 0 : i32
    %c0_i32_1 = arith.constant 0 : i32
    %c0_i32_2 = arith.constant 0 : i32
    return %c0_i32, %c0_i32_0, %c0_i32_1 : i32, i32, i32
  }
  func.func @transform_9(%arg0: i32) -> (i32, i32) {
    %c0_i32 = arith.constant 0 : i32
    %c0_i32_0 = arith.constant 0 : i32
    %c0_i32_1 = arith.constant 0 : i32
    return %c0_i32, %c0_i32_0 : i32, i32
  }
}

</mosaic_0001>

<llo_original>
// kernel: tpu_custom_call.1
$region0: #{tpu_custom_call.1}
  #allocation0 [shape = 'u32[]', space=smem, size = 0x4, offset = 0x4, fixed_abs, tag = 'smem constant byte address 0x4 - core index']
  #allocation1 [shape = 'u32[144,128]{1,0:T(1,128)}', space=vmem, size = 0x12000, scoped, tag = 'internal scratch']
  #allocation2 [shape = 'f32[3,4,128,8]{3,2,1,0:T(8,128)}', space=vmem, size = 0xc0000, scoped, tag = 'scratch operand']
  #allocation3 [shape = 'f32[128,32]{1,0:T(8,128)}', space=vmem, size = 0x10000, scoped, tag = 'scratch operand']
  %s0 = inlined_call_operand.vmem [shape: f32[128,32], index: 0, kind: input, shape index: {}]
  %s1 = inlined_call_operand.vmem [shape: bf16[32,96], index: 1, kind: input, shape index: {}]
  %s2 = inlined_call_operand.vmem [shape: bf16[32,32], index: 2, kind: input, shape index: {}]
  %s3 = inlined_call_operand.vmem [shape: bf16[32,128], index: 3, kind: input, shape index: {}]
  %s4 = inlined_call_operand.vmem [shape: bf16[128,32], index: 4, kind: input, shape index: {}]
  %s5 = inlined_call_operand.vmem [shape: f32[8,128], index: 5, kind: input, shape index: {}]
  %s6 = inlined_call_operand.vmem [shape: f32[32,1], index: 6, kind: input, shape index: {}]
  %s7 = inlined_call_operand.vmem [shape: f32[4,16,16], index: 7, kind: input, shape index: {}]
  %s8 = inlined_call_operand.vmem [shape: f32[4,16,16], index: 8, kind: input, shape index: {}]
  %s9 = inlined_call_operand.vmem [shape: f32[128,32], index: 9, kind: output, shape index: {}]
  %s10 = sld [smem:[#allocation0]]
  $region46: #{tpu_custom_call.1} parent=0
    _
  %s12 = ssub.s32 1, %s10
  %s13 = scalar_select 0, %s12, %s10
  // Predicated region
  $region2: #{tpu_custom_call.1} parent=0 // pred_check
    _
  $region3: #{tpu_custom_call.1} parent=0 // pred_check_branch
    %15 = sbr.rel (0) target = $region5
  $region4: #{tpu_custom_call.1} parent=0 // pred_region
    _
  $region5: #{tpu_custom_call.1} parent=0 // pred_fallthru
    _
  // Predicated region
  $region6: #{tpu_custom_call.1} parent=0 // pred_check
    _
  $region7: #{tpu_custom_call.1} parent=0 // pred_check_branch
    %17 = sbr.rel (0) target = $region9
  $region8: #{tpu_custom_call.1} parent=0 // pred_region
    _
  $region9: #{tpu_custom_call.1} parent=0 // pred_fallthru
    _
  // Predicated region
  $region10: #{tpu_custom_call.1} parent=0 // pred_check
    _
  $region11: #{tpu_custom_call.1} parent=0 // pred_check_branch
    %19 = sbr.rel (0) target = $region13
  $region12: #{tpu_custom_call.1} parent=0 // pred_region
    _
  $region13: #{tpu_custom_call.1} parent=0 // pred_fallthru
    _
  // Predicated region
  $region14: #{tpu_custom_call.1} parent=0 // pred_check
    _
  $region15: #{tpu_custom_call.1} parent=0 // pred_check_branch
    %21 = sbr.rel (0) target = $region17
  $region16: #{tpu_custom_call.1} parent=0 // pred_region
    _
  $region17: #{tpu_custom_call.1} parent=0 // pred_fallthru
    _
  // Predicated region
  $region18: #{tpu_custom_call.1} parent=0 // pred_check
    _
  $region19: #{tpu_custom_call.1} parent=0 // pred_check_branch
    %23 = sbr.rel (0) target = $region21
  $region20: #{tpu_custom_call.1} parent=0 // pred_region
    _
  $region21: #{tpu_custom_call.1} parent=0 // pred_fallthru
    _
  // Predicated region
  $region22: #{tpu_custom_call.1} parent=0 // pred_check
    _
  $region23: #{tpu_custom_call.1} parent=0 // pred_check_branch
    %25 = sbr.rel (0) target = $region25
  $region24: #{tpu_custom_call.1} parent=0 // pred_region
    _
  $region25: #{tpu_custom_call.1} parent=0 // pred_fallthru
    _
  // Predicated region
  $region26: #{tpu_custom_call.1} parent=0 // pred_check
    _
  $region27: #{tpu_custom_call.1} parent=0 // pred_check_branch
    %27 = sbr.rel (0) target = $region29
  $region28: #{tpu_custom_call.1} parent=0 // pred_region
    _
  $region29: #{tpu_custom_call.1} parent=0 // pred_fallthru
    _
  // Predicated region
  $region30: #{tpu_custom_call.1} parent=0 // pred_check
    _
  $region31: #{tpu_custom_call.1} parent=0 // pred_check_branch
    %29 = sbr.rel (0) target = $region33
  $region32: #{tpu_custom_call.1} parent=0 // pred_region
    _
  $region33: #{tpu_custom_call.1} parent=0 // pred_fallthru
    _
  // Predicated region
  $region34: #{tpu_custom_call.1} parent=0 // pred_check
    _
  $region35: #{tpu_custom_call.1} parent=0 // pred_check_branch
    %31 = sbr.rel (0) target = $region37
  $region36: #{tpu_custom_call.1} parent=0 // pred_region
    _
  $region37: #{tpu_custom_call.1} parent=0 // pred_fallthru
    _
  %v33 = vld [vmem:[%s0] sm:$0xff]
  %v34 = vld [vmem:[%s0 + $0x8] sm:$0xff]
  %v35 = vld [vmem:[%s0 + $0x10] sm:$0xff]
  %v36 = vld [vmem:[%s0 + $0x18] sm:$0xff]
  %v37 = vld [vmem:[%s0 + $0x20] sm:$0xff]
  %v38 = vld [vmem:[%s0 + $0x28] sm:$0xff]
  %v39 = vld [vmem:[%s0 + $0x30] sm:$0xff]
  %v40 = vld [vmem:[%s0 + $0x38] sm:$0xff]
  %v41 = vld [vmem:[%s0 + $0x40] sm:$0xff]
  %v42 = vld [vmem:[%s0 + $0x48] sm:$0xff]
  %v43 = vld [vmem:[%s0 + $0x50] sm:$0xff]
  %v44 = vld [vmem:[%s0 + $0x58] sm:$0xff]
  %v45 = vld [vmem:[%s0 + $0x60] sm:$0xff]
  %v46 = vld [vmem:[%s0 + $0x68] sm:$0xff]
  %v47 = vld [vmem:[%s0 + $0x70] sm:$0xff]
  %v48 = vld [vmem:[%s0 + $0x78] sm:$0xff]
  %v49 = vld [vmem:[%s5] sm:$0xff]
  %v50 = vpack.c.bf16 %v34, %v33
  %v51 = vpack.c.bf16 %v36, %v35
  %v52 = vpack.c.bf16 %v38, %v37
  %v53 = vpack.c.bf16 %v40, %v39
  %v54 = vpack.c.bf16 %v42, %v41
  %v55 = vpack.c.bf16 %v44, %v43
  %v56 = vpack.c.bf16 %v46, %v45
  %v57 = vpack.c.bf16 %v48, %v47
  %v58 = vld [vmem:[%s1] sm:$0xf]
  %v59 = vld [vmem:[%s1 + $0x4] sm:$0xf]
  %v60 = vld [vmem:[%s1 + $0x8] sm:$0xf]
  %v61 = vld [vmem:[%s1 + $0xc] sm:$0xf]
  %v62 = vlaneseq
  %v63 = vshrl.u32 %v62, 7
  %v64 = vsub.s32 0, %v63
  %v65 = vrot.slane %v49, %v64
  %v70 = vunpack.c.l.b16 %v58
  %v71 = vunpack.c.l.b16 %v59
  %v72 = vunpack.c.l.b16 %v60
  %v73 = vunpack.c.l.b16 %v61
  %v74 = vpack.c.b16 %v71, %v70
  %v75 = vpack.c.b16 %v73, %v72
  %vm78 = vcmask 261120
  %v80 = vsel %vm78, %v50, 0
  %v83 = vsel %vm78, %v51, 0
  %v86 = vsel %vm78, %v52, 0
  %v89 = vsel %vm78, %v53, 0
  %v92 = vsel %vm78, %v54, 0
  %v95 = vsel %vm78, %v55, 0
  %v98 = vsel %vm78, %v56, 0
  %v101 = vsel %vm78, %v57, 0
  %103 = vmatprep.subr.bf16.mxu0 0
  %104 = vmatpush1.bf16.msra.mxu0 0
  %105 = vmatprep.subr.bf16.mxu0 0
  %106 = vmatpush1.bf16.msra.mxu0 0
  %107 = vmatprep.subr.bf16.mxu0 0
  %108 = vmatpush1.bf16.msra.mxu0 0
  %109 = vmatprep.subr.bf16.mxu0 0
  %110 = vmatpush1.bf16.msra.mxu0 0
  %111 = vmatprep.subr.bf16.mxu0 0
  %112 = vmatpush1.bf16.msra.mxu0 0
  %113 = vmatprep.subr.bf16.mxu0 0
  %114 = vmatpush1.bf16.msra.mxu0 0
  %115 = vmatprep.subr.bf16.mxu0 0
  %116 = vmatpush1.bf16.msra.mxu0 %v75
  %117 = vmatprep.subr.bf16.mxu0 0
  %118 = vmatpush1.bf16.msra.mxu0 %v74
  %119 = vmatprep.subr.bf16.mxu0 0
  %120 = vmatpush2.bf16.msra.mxu0 0
  %121 = vmatprep.subr.bf16.mxu0 0
  %122 = vmatpush2.bf16.msra.mxu0 0
  %123 = vmatprep.subr.bf16.mxu0 0
  %124 = vmatpush2.bf16.msra.mxu0 0
  %125 = vmatprep.subr.bf16.mxu0 0
  %126 = vmatpush2.bf16.msra.mxu0 0
  %127 = vmatprep.subr.bf16.mxu0 0
  %128 = vmatpush2.bf16.msra.mxu0 0
  %129 = vmatprep.subr.bf16.mxu0 0
  %130 = vmatpush2.bf16.msra.mxu0 0
  %131 = vmatprep.subr.bf16.mxu0 0
  %132 = vmatpush2.bf16.msra.mxu0 0
  %133 = vmatprep.subr.bf16.mxu0 0
  %134 = vmatpush2.bf16.msra.mxu0 0
  %135 = vmatprep.mubr.bf16.mxu0 0
  %136 = vmatmul.mubr.bf16.gmra.mxu0 %v80
  %v137 = vpop.f32.mrf.mxu0
  %v138 = vadd.f32 %v65, %v137
  %v139 = vpop.f32.mrf.mxu0
  %v140 = vpop.f32.mrf.mxu0
  %v141 = vadd.f32 %v65, %v140
  %v142 = vpop.f32.mrf.mxu0
  %143 = vmatprep.mubr.bf16.mxu0 0
  %144 = vmatmul.mubr.bf16.gmra.mxu0 %v83
  %v145 = vpop.f32.mrf.mxu0
  %v146 = vadd.f32 %v65, %v145
  %v147 = vpop.f32.mrf.mxu0
  %v148 = vpop.f32.mrf.mxu0
  %v149 = vadd.f32 %v65, %v148
  %v150 = vpop.f32.mrf.mxu0
  %151 = vmatprep.mubr.bf16.mxu0 0
  %152 = vmatmul.mubr.bf16.gmra.mxu0 %v86
  %v153 = vpop.f32.mrf.mxu0
  %v154 = vadd.f32 %v65, %v153
  %v155 = vpop.f32.mrf.mxu0
  %v156 = vpop.f32.mrf.mxu0
  %v157 = vadd.f32 %v65, %v156
  %v158 = vpop.f32.mrf.mxu0
  %159 = vmatprep.mubr.bf16.mxu0 0
  %160 = vmatmul.mubr.bf16.gmra.mxu0 %v89
  %v161 = vpop.f32.mrf.mxu0
  %v162 = vadd.f32 %v65, %v161
  %v163 = vpop.f32.mrf.mxu0
  %v164 = vpop.f32.mrf.mxu0
  %v165 = vadd.f32 %v65, %v164
  %v166 = vpop.f32.mrf.mxu0
  %167 = vmatprep.mubr.bf16.mxu0 0
  %168 = vmatmul.mubr.bf16.gmra.mxu0 %v92
  %v169 = vpop.f32.mrf.mxu0
  %v170 = vadd.f32 %v65, %v169
  %v171 = vpop.f32.mrf.mxu0
  %v172 = vpop.f32.mrf.mxu0
  %v173 = vadd.f32 %v65, %v172
  %v174 = vpop.f32.mrf.mxu0
  %175 = vmatprep.mubr.bf16.mxu0 0
  %176 = vmatmul.mubr.bf16.gmra.mxu0 %v95
  %v177 = vpop.f32.mrf.mxu0
  %v178 = vadd.f32 %v65, %v177
  %v179 = vpop.f32.mrf.mxu0
  %v180 = vpop.f32.mrf.mxu0
  %v181 = vadd.f32 %v65, %v180
  %v182 = vpop.f32.mrf.mxu0
  %183 = vmatprep.mubr.bf16.mxu0 0
  %184 = vmatmul.mubr.bf16.gmra.mxu0 %v98
  %v185 = vpop.f32.mrf.mxu0
  %v186 = vadd.f32 %v65, %v185
  %v187 = vpop.f32.mrf.mxu0
  %v188 = vpop.f32.mrf.mxu0
  %v189 = vadd.f32 %v65, %v188
  %v190 = vpop.f32.mrf.mxu0
  %191 = vmatprep.mubr.bf16.mxu0 0
  %192 = vmatmul.mubr.bf16.gmra.mxu0 %v101
  %v193 = vpop.f32.mrf.mxu0
  %v194 = vadd.f32 %v65, %v193
  %v195 = vpop.f32.mrf.mxu0
  %v196 = vpop.f32.mrf.mxu0
  %v197 = vadd.f32 %v65, %v196
  %v198 = vpop.f32.mrf.mxu0
  %199 = vdwg.mxu0
  %vm200 = vcmask 64512
  %201 = vst.msk [vmem:[#allocation2] sm:$0xff] %vm200, %v138
  %202 = vst.msk [vmem:[#allocation2 + $0x8] sm:$0xff] %vm200, %v141
  %203 = vst.msk [vmem:[#allocation2 + $0x10] sm:$0xff] %vm200, %v146
  %204 = vst.msk [vmem:[#allocation2 + $0x18] sm:$0xff] %vm200, %v149
  %205 = vst.msk [vmem:[#allocation2 + $0x20] sm:$0xff] %vm200, %v154
  %206 = vst.msk [vmem:[#allocation2 + $0x28] sm:$0xff] %vm200, %v157
  %207 = vst.msk [vmem:[#allocation2 + $0x30] sm:$0xff] %vm200, %v162
  %208 = vst.msk [vmem:[#allocation2 + $0x38] sm:$0xff] %vm200, %v165
  %209 = vst.msk [vmem:[#allocation2 + $0x40] sm:$0xff] %vm200, %v170
  %210 = vst.msk [vmem:[#allocation2 + $0x48] sm:$0xff] %vm200, %v173
  %211 = vst.msk [vmem:[#allocation2 + $0x50] sm:$0xff] %vm200, %v178
  %212 = vst.msk [vmem:[#allocation2 + $0x58] sm:$0xff] %vm200, %v181
  %213 = vst.msk [vmem:[#allocation2 + $0x60] sm:$0xff] %vm200, %v186
  %214 = vst.msk [vmem:[#allocation2 + $0x68] sm:$0xff] %vm200, %v189
  %215 = vst.msk [vmem:[#allocation2 + $0x70] sm:$0xff] %vm200, %v194
  %216 = vst.msk [vmem:[#allocation2 + $0x78] sm:$0xff] %vm200, %v197
  %233 = vrot.lane.b32.xlu0 %v138, 120
  %v234 = vpop.permute.xlu0 %233
  %235 = vrot.lane.b32.xlu0 %v141, 120
  %v236 = vpop.permute.xlu0 %235
  %237 = vrot.lane.b32.xlu0 %v146, 120
  %v238 = vpop.permute.xlu0 %237
  %239 = vrot.lane.b32.xlu0 %v149, 120
  %v240 = vpop.permute.xlu0 %239
  %241 = vrot.lane.b32.xlu0 %v154, 120
  %v242 = vpop.permute.xlu0 %241
  %243 = vrot.lane.b32.xlu0 %v157, 120
  %v244 = vpop.permute.xlu0 %243
  %245 = vrot.lane.b32.xlu0 %v162, 120
  %v246 = vpop.permute.xlu0 %245
  %247 = vrot.lane.b32.xlu0 %v165, 120
  %v248 = vpop.permute.xlu0 %247
  %249 = vrot.lane.b32.xlu0 %v170, 120
  %v250 = vpop.permute.xlu0 %249
  %251 = vrot.lane.b32.xlu0 %v173, 120
  %v252 = vpop.permute.xlu0 %251
  %253 = vrot.lane.b32.xlu0 %v178, 120
  %v254 = vpop.permute.xlu0 %253
  %255 = vrot.lane.b32.xlu0 %v181, 120
  %v256 = vpop.permute.xlu0 %255
  %257 = vrot.lane.b32.xlu0 %v186, 120
  %v258 = vpop.permute.xlu0 %257
  %259 = vrot.lane.b32.xlu0 %v189, 120
  %v260 = vpop.permute.xlu0 %259
  %261 = vrot.lane.b32.xlu0 %v194, 120
  %v262 = vpop.permute.xlu0 %261
  %263 = vrot.lane.b32.xlu0 %v197, 120
  %v264 = vpop.permute.xlu0 %263
  %s281 = scalar_lea.vmem [#allocation2], 128
  %282 = vst.msk [vmem:[%s281] sm:$0xff] %vm200, %v234
  %283 = vst.msk [vmem:[%s281 + $0x8] sm:$0xff] %vm200, %v236
  %284 = vst.msk [vmem:[%s281 + $0x10] sm:$0xff] %vm200, %v238
  %285 = vst.msk [vmem:[%s281 + $0x18] sm:$0xff] %vm200, %v240
  %286 = vst.msk [vmem:[%s281 + $0x20] sm:$0xff] %vm200, %v242
  %287 = vst.msk [vmem:[%s281 + $0x28] sm:$0xff] %vm200, %v244
  %288 = vst.msk [vmem:[%s281 + $0x30] sm:$0xff] %vm200, %v246
  %289 = vst.msk [vmem:[%s281 + $0x38] sm:$0xff] %vm200, %v248
  %290 = vst.msk [vmem:[%s281 + $0x40] sm:$0xff] %vm200, %v250
  %291 = vst.msk [vmem:[%s281 + $0x48] sm:$0xff] %vm200, %v252
  %292 = vst.msk [vmem:[%s281 + $0x50] sm:$0xff] %vm200, %v254
  %293 = vst.msk [vmem:[%s281 + $0x58] sm:$0xff] %vm200, %v256
  %294 = vst.msk [vmem:[%s281 + $0x60] sm:$0xff] %vm200, %v258
  %295 = vst.msk [vmem:[%s281 + $0x68] sm:$0xff] %vm200, %v260
  %296 = vst.msk [vmem:[%s281 + $0x70] sm:$0xff] %vm200, %v262
  %297 = vst.msk [vmem:[%s281 + $0x78] sm:$0xff] %vm200, %v264
  %298 = vrot.lane.b32.xlu0 %v138, 112
  %v299 = vpop.permute.xlu0 %298
  %300 = vrot.lane.b32.xlu0 %v141, 112
  %v301 = vpop.permute.xlu0 %300
  %302 = vrot.lane.b32.xlu0 %v146, 112
  %v303 = vpop.permute.xlu0 %302
  %304 = vrot.lane.b32.xlu0 %v149, 112
  %v305 = vpop.permute.xlu0 %304
  %306 = vrot.lane.b32.xlu0 %v154, 112
  %v307 = vpop.permute.xlu0 %306
  %308 = vrot.lane.b32.xlu0 %v157, 112
  %v309 = vpop.permute.xlu0 %308
  %310 = vrot.lane.b32.xlu0 %v162, 112
  %v311 = vpop.permute.xlu0 %310
  %312 = vrot.lane.b32.xlu0 %v165, 112
  %v313 = vpop.permute.xlu0 %312
  %314 = vrot.lane.b32.xlu0 %v170, 112
  %v315 = vpop.permute.xlu0 %314
  %316 = vrot.lane.b32.xlu0 %v173, 112
  %v317 = vpop.permute.xlu0 %316
  %318 = vrot.lane.b32.xlu0 %v178, 112
  %v319 = vpop.permute.xlu0 %318
  %320 = vrot.lane.b32.xlu0 %v181, 112
  %v321 = vpop.permute.xlu0 %320
  %322 = vrot.lane.b32.xlu0 %v186, 112
  %v323 = vpop.permute.xlu0 %322
  %324 = vrot.lane.b32.xlu0 %v189, 112
  %v325 = vpop.permute.xlu0 %324
  %326 = vrot.lane.b32.xlu0 %v194, 112
  %v327 = vpop.permute.xlu0 %326
  %328 = vrot.lane.b32.xlu0 %v197, 112
  %v329 = vpop.permute.xlu0 %328
  %s346 = scalar_lea.vmem [#allocation2], 256
  %347 = vst.msk [vmem:[%s346] sm:$0xff] %vm200, %v299
  %348 = vst.msk [vmem:[%s346 + $0x8] sm:$0xff] %vm200, %v301
  %349 = vst.msk [vmem:[%s346 + $0x10] sm:$0xff] %vm200, %v303
  %350 = vst.msk [vmem:[%s346 + $0x18] sm:$0xff] %vm200, %v305
  %351 = vst.msk [vmem:[%s346 + $0x20] sm:$0xff] %vm200, %v307
  %352 = vst.msk [vmem:[%s346 + $0x28] sm:$0xff] %vm200, %v309
  %353 = vst.msk [vmem:[%s346 + $0x30] sm:$0xff] %vm200, %v311
  %354 = vst.msk [vmem:[%s346 + $0x38] sm:$0xff] %vm200, %v313
  %355 = vst.msk [vmem:[%s346 + $0x40] sm:$0xff] %vm200, %v315
  %356 = vst.msk [vmem:[%s346 + $0x48] sm:$0xff] %vm200, %v317
  %357 = vst.msk [vmem:[%s346 + $0x50] sm:$0xff] %vm200, %v319
  %358 = vst.msk [vmem:[%s346 + $0x58] sm:$0xff] %vm200, %v321
  %359 = vst.msk [vmem:[%s346 + $0x60] sm:$0xff] %vm200, %v323
  %360 = vst.msk [vmem:[%s346 + $0x68] sm:$0xff] %vm200, %v325
  %361 = vst.msk [vmem:[%s346 + $0x70] sm:$0xff] %vm200, %v327
  %362 = vst.msk [vmem:[%s346 + $0x78] sm:$0xff] %vm200, %v329
  %363 = vrot.lane.b32.xlu0 %v138, 104
  %v364 = vpop.permute.xlu0 %363
  %365 = vrot.lane.b32.xlu0 %v141, 104
  %v366 = vpop.permute.xlu0 %365
  %367 = vrot.lane.b32.xlu0 %v146, 104
  %v368 = vpop.permute.xlu0 %367
  %369 = vrot.lane.b32.xlu0 %v149, 104
  %v370 = vpop.permute.xlu0 %369
  %371 = vrot.lane.b32.xlu0 %v154, 104
  %v372 = vpop.permute.xlu0 %371
  %373 = vrot.lane.b32.xlu0 %v157, 104
  %v374 = vpop.permute.xlu0 %373
  %375 = vrot.lane.b32.xlu0 %v162, 104
  %v376 = vpop.permute.xlu0 %375
  %377 = vrot.lane.b32.xlu0 %v165, 104
  %v378 = vpop.permute.xlu0 %377
  %379 = vrot.lane.b32.xlu0 %v170, 104
  %v380 = vpop.permute.xlu0 %379
  %381 = vrot.lane.b32.xlu0 %v173, 104
  %v382 = vpop.permute.xlu0 %381
  %383 = vrot.lane.b32.xlu0 %v178, 104
  %v384 = vpop.permute.xlu0 %383
  %385 = vrot.lane.b32.xlu0 %v181, 104
  %v386 = vpop.permute.xlu0 %385
  %387 = vrot.lane.b32.xlu0 %v186, 104
  %v388 = vpop.permute.xlu0 %387
  %389 = vrot.lane.b32.xlu0 %v189, 104
  %v390 = vpop.permute.xlu0 %389
  %391 = vrot.lane.b32.xlu0 %v194, 104
  %v392 = vpop.permute.xlu0 %391
  %393 = vrot.lane.b32.xlu0 %v197, 104
  %v394 = vpop.permute.xlu0 %393
  %s411 = scalar_lea.vmem [#allocation2], 384
  %412 = vst.msk [vmem:[%s411] sm:$0xff] %vm200, %v364
  %413 = vst.msk [vmem:[%s411 + $0x8] sm:$0xff] %vm200, %v366
  %414 = vst.msk [vmem:[%s411 + $0x10] sm:$0xff] %vm200, %v368
  %415 = vst.msk [vmem:[%s411 + $0x18] sm:$0xff] %vm200, %v370
  %416 = vst.msk [vmem:[%s411 + $0x20] sm:$0xff] %vm200, %v372
  %417 = vst.msk [vmem:[%s411 + $0x28] sm:$0xff] %vm200, %v374
  %418 = vst.msk [vmem:[%s411 + $0x30] sm:$0xff] %vm200, %v376
  %419 = vst.msk [vmem:[%s411 + $0x38] sm:$0xff] %vm200, %v378
  %420 = vst.msk [vmem:[%s411 + $0x40] sm:$0xff] %vm200, %v380
  %421 = vst.msk [vmem:[%s411 + $0x48] sm:$0xff] %vm200, %v382
  %422 = vst.msk [vmem:[%s411 + $0x50] sm:$0xff] %vm200, %v384
  %423 = vst.msk [vmem:[%s411 + $0x58] sm:$0xff] %vm200, %v386
  %424 = vst.msk [vmem:[%s411 + $0x60] sm:$0xff] %vm200, %v388
  %425 = vst.msk [vmem:[%s411 + $0x68] sm:$0xff] %vm200, %v390
  %426 = vst.msk [vmem:[%s411 + $0x70] sm:$0xff] %vm200, %v392
  %427 = vst.msk [vmem:[%s411 + $0x78] sm:$0xff] %vm200, %v394
  %428 = vrot.lane.b32.xlu0 %v138, 96
  %v429 = vpop.permute.xlu0 %428
  %430 = vrot.lane.b32.xlu0 %v141, 96
  %v431 = vpop.permute.xlu0 %430
  %432 = vrot.lane.b32.xlu0 %v146, 96
  %v433 = vpop.permute.xlu0 %432
  %434 = vrot.lane.b32.xlu0 %v149, 96
  %v435 = vpop.permute.xlu0 %434
  %436 = vrot.lane.b32.xlu0 %v154, 96
  %v437 = vpop.permute.xlu0 %436
  %438 = vrot.lane.b32.xlu0 %v157, 96
  %v439 = vpop.permute.xlu0 %438
  %440 = vrot.lane.b32.xlu0 %v162, 96
  %v441 = vpop.permute.xlu0 %440
  %442 = vrot.lane.b32.xlu0 %v165, 96
  %v443 = vpop.permute.xlu0 %442
  %444 = vrot.lane.b32.xlu0 %v170, 96
  %v445 = vpop.permute.xlu0 %444
  %446 = vrot.lane.b32.xlu0 %v173, 96
  %v447 = vpop.permute.xlu0 %446
  %448 = vrot.lane.b32.xlu0 %v178, 96
  %v449 = vpop.permute.xlu0 %448
  %450 = vrot.lane.b32.xlu0 %v181, 96
  %v451 = vpop.permute.xlu0 %450
  %452 = vrot.lane.b32.xlu0 %v186, 96
  %v453 = vpop.permute.xlu0 %452
  %454 = vrot.lane.b32.xlu0 %v189, 96
  %v455 = vpop.permute.xlu0 %454
  %456 = vrot.lane.b32.xlu0 %v194, 96
  %v457 = vpop.permute.xlu0 %456
  %458 = vrot.lane.b32.xlu0 %v197, 96
  %v459 = vpop.permute.xlu0 %458
  %s476 = scalar_lea.vmem [#allocation2], 512
  %477 = vst.msk [vmem:[%s476] sm:$0xff] %vm200, %v429
  %478 = vst.msk [vmem:[%s476 + $0x8] sm:$0xff] %vm200, %v431
  %479 = vst.msk [vmem:[%s476 + $0x10] sm:$0xff] %vm200, %v433
  %480 = vst.msk [vmem:[%s476 + $0x18] sm:$0xff] %vm200, %v435
  %481 = vst.msk [vmem:[%s476 + $0x20] sm:$0xff] %vm200, %v437
  %482 = vst.msk [vmem:[%s476 + $0x28] sm:$0xff] %vm200, %v439
  %483 = vst.msk [vmem:[%s476 + $0x30] sm:$0xff] %vm200, %v441
  %484 = vst.msk [vmem:[%s476 + $0x38] sm:$0xff] %vm200, %v443
  %485 = vst.msk [vmem:[%s476 + $0x40] sm:$0xff] %vm200, %v445
  %486 = vst.msk [vmem:[%s476 + $0x48] sm:$0xff] %vm200, %v447
  %487 = vst.msk [vmem:[%s476 + $0x50] sm:$0xff] %vm200, %v449
  %488 = vst.msk [vmem:[%s476 + $0x58] sm:$0xff] %vm200, %v451
  %489 = vst.msk [vmem:[%s476 + $0x60] sm:$0xff] %vm200, %v453
  %490 = vst.msk [vmem:[%s476 + $0x68] sm:$0xff] %vm200, %v455
  %491 = vst.msk [vmem:[%s476 + $0x70] sm:$0xff] %vm200, %v457
  %492 = vst.msk [vmem:[%s476 + $0x78] sm:$0xff] %vm200, %v459
  %493 = vrot.lane.b32.xlu0 %v138, 88
  %v494 = vpop.permute.xlu0 %493
  %495 = vrot.lane.b32.xlu0 %v141, 88
  %v496 = vpop.permute.xlu0 %495
  %497 = vrot.lane.b32.xlu0 %v146, 88
  %v498 = vpop.permute.xlu0 %497
  %499 = vrot.lane.b32.xlu0 %v149, 88
  %v500 = vpop.permute.xlu0 %499
  %501 = vrot.lane.b32.xlu0 %v154, 88
  %v502 = vpop.permute.xlu0 %501
  %503 = vrot.lane.b32.xlu0 %v157, 88
  %v504 = vpop.permute.xlu0 %503
  %505 = vrot.lane.b32.xlu0 %v162, 88
  %v506 = vpop.permute.xlu0 %505
  %507 = vrot.lane.b32.xlu0 %v165, 88
  %v508 = vpop.permute.xlu0 %507
  %509 = vrot.lane.b32.xlu0 %v170, 88
  %v510 = vpop.permute.xlu0 %509
  %511 = vrot.lane.b32.xlu0 %v173, 88
  %v512 = vpop.permute.xlu0 %511
  %513 = vrot.lane.b32.xlu0 %v178, 88
  %v514 = vpop.permute.xlu0 %513
  %515 = vrot.lane.b32.xlu0 %v181, 88
  %v516 = vpop.permute.xlu0 %515
  %517 = vrot.lane.b32.xlu0 %v186, 88
  %v518 = vpop.permute.xlu0 %517
  %519 = vrot.lane.b32.xlu0 %v189, 88
  %v520 = vpop.permute.xlu0 %519
  %521 = vrot.lane.b32.xlu0 %v194, 88
  %v522 = vpop.permute.xlu0 %521
  %523 = vrot.lane.b32.xlu0 %v197, 88
  %v524 = vpop.permute.xlu0 %523
  %s541 = scalar_lea.vmem [#allocation2], 640
  %542 = vst.msk [vmem:[%s541] sm:$0xff] %vm200, %v494
  %543 = vst.msk [vmem:[%s541 + $0x8] sm:$0xff] %vm200, %v496
  %544 = vst.msk [vmem:[%s541 + $0x10] sm:$0xff] %vm200, %v498
  %545 = vst.msk [vmem:[%s541 + $0x18] sm:$0xff] %vm200, %v500
  %546 = vst.msk [vmem:[%s541 + $0x20] sm:$0xff] %vm200, %v502
  %547 = vst.msk [vmem:[%s541 + $0x28] sm:$0xff] %vm200, %v504
  %548 = vst.msk [vmem:[%s541 + $0x30] sm:$0xff] %vm200, %v506
  %549 = vst.msk [vmem:[%s541 + $0x38] sm:$0xff] %vm200, %v508
  %550 = vst.msk [vmem:[%s541 + $0x40] sm:$0xff] %vm200, %v510
  %551 = vst.msk [vmem:[%s541 + $0x48] sm:$0xff] %vm200, %v512
  %552 = vst.msk [vmem:[%s541 + $0x50] sm:$0xff] %vm200, %v514
  %553 = vst.msk [vmem:[%s541 + $0x58] sm:$0xff] %vm200, %v516
  %554 = vst.msk [vmem:[%s541 + $0x60] sm:$0xff] %vm200, %v518
  %555 = vst.msk [vmem:[%s541 + $0x68] sm:$0xff] %vm200, %v520
  %556 = vst.msk [vmem:[%s541 + $0x70] sm:$0xff] %vm200, %v522
  %557 = vst.msk [vmem:[%s541 + $0x78] sm:$0xff] %vm200, %v524
  %558 = vrot.lane.b32.xlu0 %v138, 80
  %v559 = vpop.permute.xlu0 %558
  %560 = vrot.lane.b32.xlu0 %v141, 80
  %v561 = vpop.permute.xlu0 %560
  %562 = vrot.lane.b32.xlu0 %v146, 80
  %v563 = vpop.permute.xlu0 %562
  %564 = vrot.lane.b32.xlu0 %v149, 80
  %v565 = vpop.permute.xlu0 %564
  %566 = vrot.lane.b32.xlu0 %v154, 80
  %v567 = vpop.permute.xlu0 %566
  %568 = vrot.lane.b32.xlu0 %v157, 80
  %v569 = vpop.permute.xlu0 %568
  %570 = vrot.lane.b32.xlu0 %v162, 80
  %v571 = vpop.permute.xlu0 %570
  %572 = vrot.lane.b32.xlu0 %v165, 80
  %v573 = vpop.permute.xlu0 %572
  %574 = vrot.lane.b32.xlu0 %v170, 80
  %v575 = vpop.permute.xlu0 %574
  %576 = vrot.lane.b32.xlu0 %v173, 80
  %v577 = vpop.permute.xlu0 %576
  %578 = vrot.lane.b32.xlu0 %v178, 80
  %v579 = vpop.permute.xlu0 %578
  %580 = vrot.lane.b32.xlu0 %v181, 80
  %v581 = vpop.permute.xlu0 %580
  %582 = vrot.lane.b32.xlu0 %v186, 80
  %v583 = vpop.permute.xlu0 %582
  %584 = vrot.lane.b32.xlu0 %v189, 80
  %v585 = vpop.permute.xlu0 %584
  %586 = vrot.lane.b32.xlu0 %v194, 80
  %v587 = vpop.permute.xlu0 %586
  %588 = vrot.lane.b32.xlu0 %v197, 80
  %v589 = vpop.permute.xlu0 %588
  %s606 = scalar_lea.vmem [#allocation2], 768
  %607 = vst.msk [vmem:[%s606] sm:$0xff] %vm200, %v559
  %608 = vst.msk [vmem:[%s606 + $0x8] sm:$0xff] %vm200, %v561
  %609 = vst.msk [vmem:[%s606 + $0x10] sm:$0xff] %vm200, %v563
  %610 = vst.msk [vmem:[%s606 + $0x18] sm:$0xff] %vm200, %v565
  %611 = vst.msk [vmem:[%s606 + $0x20] sm:$0xff] %vm200, %v567
  %612 = vst.msk [vmem:[%s606 + $0x28] sm:$0xff] %vm200, %v569
  %613 = vst.msk [vmem:[%s606 + $0x30] sm:$0xff] %vm200, %v571
  %614 = vst.msk [vmem:[%s606 + $0x38] sm:$0xff] %vm200, %v573
  %615 = vst.msk [vmem:[%s606 + $0x40] sm:$0xff] %vm200, %v575
  %616 = vst.msk [vmem:[%s606 + $0x48] sm:$0xff] %vm200, %v577
  %617 = vst.msk [vmem:[%s606 + $0x50] sm:$0xff] %vm200, %v579
  %618 = vst.msk [vmem:[%s606 + $0x58] sm:$0xff] %vm200, %v581
  %619 = vst.msk [vmem:[%s606 + $0x60] sm:$0xff] %vm200, %v583
  %620 = vst.msk [vmem:[%s606 + $0x68] sm:$0xff] %vm200, %v585
  %621 = vst.msk [vmem:[%s606 + $0x70] sm:$0xff] %vm200, %v587
  %622 = vst.msk [vmem:[%s606 + $0x78] sm:$0xff] %vm200, %v589
  %623 = vrot.lane.b32.xlu0 %v138, 72
  %v624 = vpop.permute.xlu0 %623
  %625 = vrot.lane.b32.xlu0 %v141, 72
  %v626 = vpop.permute.xlu0 %625
  %627 = vrot.lane.b32.xlu0 %v146, 72
  %v628 = vpop.permute.xlu0 %627
  %629 = vrot.lane.b32.xlu0 %v149, 72
  %v630 = vpop.permute.xlu0 %629
  %631 = vrot.lane.b32.xlu0 %v154, 72
  %v632 = vpop.permute.xlu0 %631
  %633 = vrot.lane.b32.xlu0 %v157, 72
  %v634 = vpop.permute.xlu0 %633
  %635 = vrot.lane.b32.xlu0 %v162, 72
  %v636 = vpop.permute.xlu0 %635
  %637 = vrot.lane.b32.xlu0 %v165, 72
  %v638 = vpop.permute.xlu0 %637
  %639 = vrot.lane.b32.xlu0 %v170, 72
  %v640 = vpop.permute.xlu0 %639
  %641 = vrot.lane.b32.xlu0 %v173, 72
  %v642 = vpop.permute.xlu0 %641
  %643 = vrot.lane.b32.xlu0 %v178, 72
  %v644 = vpop.permute.xlu0 %643
  %645 = vrot.lane.b32.xlu0 %v181, 72
  %v646 = vpop.permute.xlu0 %645
  %647 = vrot.lane.b32.xlu0 %v186, 72
  %v648 = vpop.permute.xlu0 %647
  %649 = vrot.lane.b32.xlu0 %v189, 72
  %v650 = vpop.permute.xlu0 %649
  %651 = vrot.lane.b32.xlu0 %v194, 72
  %v652 = vpop.permute.xlu0 %651
  %653 = vrot.lane.b32.xlu0 %v197, 72
  %v654 = vpop.permute.xlu0 %653
  %s671 = scalar_lea.vmem [#allocation2], 896
  %672 = vst.msk [vmem:[%s671] sm:$0xff] %vm200, %v624
  %673 = vst.msk [vmem:[%s671 + $0x8] sm:$0xff] %vm200, %v626
  %674 = vst.msk [vmem:[%s671 + $0x10] sm:$0xff] %vm200, %v628
  %675 = vst.msk [vmem:[%s671 + $0x18] sm:$0xff] %vm200, %v630
  %676 = vst.msk [vmem:[%s671 + $0x20] sm:$0xff] %vm200, %v632
  %677 = vst.msk [vmem:[%s671 + $0x28] sm:$0xff] %vm200, %v634
  %678 = vst.msk [vmem:[%s671 + $0x30] sm:$0xff] %vm200, %v636
  %679 = vst.msk [vmem:[%s671 + $0x38] sm:$0xff] %vm200, %v638
  %680 = vst.msk [vmem:[%s671 + $0x40] sm:$0xff] %vm200, %v640
  %681 = vst.msk [vmem:[%s671 + $0x48] sm:$0xff] %vm200, %v642
  %682 = vst.msk [vmem:[%s671 + $0x50] sm:$0xff] %vm200, %v644
  %683 = vst.msk [vmem:[%s671 + $0x58] sm:$0xff] %vm200, %v646
  %684 = vst.msk [vmem:[%s671 + $0x60] sm:$0xff] %vm200, %v648
  %685 = vst.msk [vmem:[%s671 + $0x68] sm:$0xff] %vm200, %v650
  %686 = vst.msk [vmem:[%s671 + $0x70] sm:$0xff] %vm200, %v652
  %687 = vst.msk [vmem:[%s671 + $0x78] sm:$0xff] %vm200, %v654
  %688 = vrot.lane.b32.xlu0 %v138, 64
  %v689 = vpop.permute.xlu0 %688
  %690 = vrot.lane.b32.xlu0 %v141, 64
  %v691 = vpop.permute.xlu0 %690
  %692 = vrot.lane.b32.xlu0 %v146, 64
  %v693 = vpop.permute.xlu0 %692
  %694 = vrot.lane.b32.xlu0 %v149, 64
  %v695 = vpop.permute.xlu0 %694
  %696 = vrot.lane.b32.xlu0 %v154, 64
  %v697 = vpop.permute.xlu0 %696
  %698 = vrot.lane.b32.xlu0 %v157, 64
  %v699 = vpop.permute.xlu0 %698
  %700 = vrot.lane.b32.xlu0 %v162, 64
  %v701 = vpop.permute.xlu0 %700
  %702 = vrot.lane.b32.xlu0 %v165, 64
  %v703 = vpop.permute.xlu0 %702
  %704 = vrot.lane.b32.xlu0 %v170, 64
  %v705 = vpop.permute.xlu0 %704
  %706 = vrot.lane.b32.xlu0 %v173, 64
  %v707 = vpop.permute.xlu0 %706
  %708 = vrot.lane.b32.xlu0 %v178, 64
  %v709 = vpop.permute.xlu0 %708
  %710 = vrot.lane.b32.xlu0 %v181, 64
  %v711 = vpop.permute.xlu0 %710
  %712 = vrot.lane.b32.xlu0 %v186, 64
  %v713 = vpop.permute.xlu0 %712
  %714 = vrot.lane.b32.xlu0 %v189, 64
  %v715 = vpop.permute.xlu0 %714
  %716 = vrot.lane.b32.xlu0 %v194, 64
  %v717 = vpop.permute.xlu0 %716
  %718 = vrot.lane.b32.xlu0 %v197, 64
  %v719 = vpop.permute.xlu0 %718
  %s736 = scalar_lea.vmem [#allocation2], 1024
  %737 = vst.msk [vmem:[%s736] sm:$0xff] %vm200, %v689
  %738 = vst.msk [vmem:[%s736 + $0x8] sm:$0xff] %vm200, %v691
  %739 = vst.msk [vmem:[%s736 + $0x10] sm:$0xff] %vm200, %v693
  %740 = vst.msk [vmem:[%s736 + $0x18] sm:$0xff] %vm200, %v695
  %741 = vst.msk [vmem:[%s736 + $0x20] sm:$0xff] %vm200, %v697
  %742 = vst.msk [vmem:[%s736 + $0x28] sm:$0xff] %vm200, %v699
  %743 = vst.msk [vmem:[%s736 + $0x30] sm:$0xff] %vm200, %v701
  %744 = vst.msk [vmem:[%s736 + $0x38] sm:$0xff] %vm200, %v703
  %745 = vst.msk [vmem:[%s736 + $0x40] sm:$0xff] %vm200, %v705
  %746 = vst.msk [vmem:[%s736 + $0x48] sm:$0xff] %vm200, %v707
  %747 = vst.msk [vmem:[%s736 + $0x50] sm:$0xff] %vm200, %v709
  %748 = vst.msk [vmem:[%s736 + $0x58] sm:$0xff] %vm200, %v711
  %749 = vst.msk [vmem:[%s736 + $0x60] sm:$0xff] %vm200, %v713
  %750 = vst.msk [vmem:[%s736 + $0x68] sm:$0xff] %vm200, %v715
  %751 = vst.msk [vmem:[%s736 + $0x70] sm:$0xff] %vm200, %v717
  %752 = vst.msk [vmem:[%s736 + $0x78] sm:$0xff] %vm200, %v719
  %753 = vrot.lane.b32.xlu0 %v138, 56
  %v754 = vpop.permute.xlu0 %753
  %755 = vrot.lane.b32.xlu0 %v141, 56
  %v756 = vpop.permute.xlu0 %755
  %757 = vrot.lane.b32.xlu0 %v146, 56
  %v758 = vpop.permute.xlu0 %757
  %759 = vrot.lane.b32.xlu0 %v149, 56
  %v760 = vpop.permute.xlu0 %759
  %761 = vrot.lane.b32.xlu0 %v154, 56
  %v762 = vpop.permute.xlu0 %761
  %763 = vrot.lane.b32.xlu0 %v157, 56
  %v764 = vpop.permute.xlu0 %763
  %765 = vrot.lane.b32.xlu0 %v162, 56
  %v766 = vpop.permute.xlu0 %765
  %767 = vrot.lane.b32.xlu0 %v165, 56
  %v768 = vpop.permute.xlu0 %767
  %769 = vrot.lane.b32.xlu0 %v170, 56
  %v770 = vpop.permute.xlu0 %769
  %771 = vrot.lane.b32.xlu0 %v173, 56
  %v772 = vpop.permute.xlu0 %771
  %773 = vrot.lane.b32.xlu0 %v178, 56
  %v774 = vpop.permute.xlu0 %773
  %775 = vrot.lane.b32.xlu0 %v181, 56
  %v776 = vpop.permute.xlu0 %775
  %777 = vrot.lane.b32.xlu0 %v186, 56
  %v778 = vpop.permute.xlu0 %777
  %779 = vrot.lane.b32.xlu0 %v189, 56
  %v780 = vpop.permute.xlu0 %779
  %781 = vrot.lane.b32.xlu0 %v194, 56
  %v782 = vpop.permute.xlu0 %781
  %783 = vrot.lane.b32.xlu0 %v197, 56
  %v784 = vpop.permute.xlu0 %783
  %s801 = scalar_lea.vmem [#allocation2], 1152
  %802 = vst.msk [vmem:[%s801] sm:$0xff] %vm200, %v754
  %803 = vst.msk [vmem:[%s801 + $0x8] sm:$0xff] %vm200, %v756
  %804 = vst.msk [vmem:[%s801 + $0x10] sm:$0xff] %vm200, %v758
  %805 = vst.msk [vmem:[%s801 + $0x18] sm:$0xff] %vm200, %v760
  %806 = vst.msk [vmem:[%s801 + $0x20] sm:$0xff] %vm200, %v762
  %807 = vst.msk [vmem:[%s801 + $0x28] sm:$0xff] %vm200, %v764
  %808 = vst.msk [vmem:[%s801 + $0x30] sm:$0xff] %vm200, %v766
  %809 = vst.msk [vmem:[%s801 + $0x38] sm:$0xff] %vm200, %v768
  %810 = vst.msk [vmem:[%s801 + $0x40] sm:$0xff] %vm200, %v770
  %811 = vst.msk [vmem:[%s801 + $0x48] sm:$0xff] %vm200, %v772
  %812 = vst.msk [vmem:[%s801 + $0x50] sm:$0xff] %vm200, %v774
  %813 = vst.msk [vmem:[%s801 + $0x58] sm:$0xff] %vm200, %v776
  %814 = vst.msk [vmem:[%s801 + $0x60] sm:$0xff] %vm200, %v778
  %815 = vst.msk [vmem:[%s801 + $0x68] sm:$0xff] %vm200, %v780
  %816 = vst.msk [vmem:[%s801 + $0x70] sm:$0xff] %vm200, %v782
  %817 = vst.msk [vmem:[%s801 + $0x78] sm:$0xff] %vm200, %v784
  %818 = vrot.lane.b32.xlu0 %v138, 48
  %v819 = vpop.permute.xlu0 %818
  %820 = vrot.lane.b32.xlu0 %v141, 48
  %v821 = vpop.permute.xlu0 %820
  %822 = vrot.lane.b32.xlu0 %v146, 48
  %v823 = vpop.permute.xlu0 %822
  %824 = vrot.lane.b32.xlu0 %v149, 48
  %v825 = vpop.permute.xlu0 %824
  %826 = vrot.lane.b32.xlu0 %v154, 48
  %v827 = vpop.permute.xlu0 %826
  %828 = vrot.lane.b32.xlu0 %v157, 48
  %v829 = vpop.permute.xlu0 %828
  %830 = vrot.lane.b32.xlu0 %v162, 48
  %v831 = vpop.permute.xlu0 %830
  %832 = vrot.lane.b32.xlu0 %v165, 48
  %v833 = vpop.permute.xlu0 %832
  %834 = vrot.lane.b32.xlu0 %v170, 48
  %v835 = vpop.permute.xlu0 %834
  %836 = vrot.lane.b32.xlu0 %v173, 48
  %v837 = vpop.permute.xlu0 %836
  %838 = vrot.lane.b32.xlu0 %v178, 48
  %v839 = vpop.permute.xlu0 %838
  %840 = vrot.lane.b32.xlu0 %v181, 48
  %v841 = vpop.permute.xlu0 %840
  %842 = vrot.lane.b32.xlu0 %v186, 48
  %v843 = vpop.permute.xlu0 %842
  %844 = vrot.lane.b32.xlu0 %v189, 48
  %v845 = vpop.permute.xlu0 %844
  %846 = vrot.lane.b32.xlu0 %v194, 48
  %v847 = vpop.permute.xlu0 %846
  %848 = vrot.lane.b32.xlu0 %v197, 48
  %v849 = vpop.permute.xlu0 %848
  %s866 = scalar_lea.vmem [#allocation2], 1280
  %867 = vst.msk [vmem:[%s866] sm:$0xff] %vm200, %v819
  %868 = vst.msk [vmem:[%s866 + $0x8] sm:$0xff] %vm200, %v821
  %869 = vst.msk [vmem:[%s866 + $0x10] sm:$0xff] %vm200, %v823
  %870 = vst.msk [vmem:[%s866 + $0x18] sm:$0xff] %vm200, %v825
  %871 = vst.msk [vmem:[%s866 + $0x20] sm:$0xff] %vm200, %v827
  %872 = vst.msk [vmem:[%s866 + $0x28] sm:$0xff] %vm200, %v829
  %873 = vst.msk [vmem:[%s866 + $0x30] sm:$0xff] %vm200, %v831
  %874 = vst.msk [vmem:[%s866 + $0x38] sm:$0xff] %vm200, %v833
  %875 = vst.msk [vmem:[%s866 + $0x40] sm:$0xff] %vm200, %v835
  %876 = vst.msk [vmem:[%s866 + $0x48] sm:$0xff] %vm200, %v837
  %877 = vst.msk [vmem:[%s866 + $0x50] sm:$0xff] %vm200, %v839
  %878 = vst.msk [vmem:[%s866 + $0x58] sm:$0xff] %vm200, %v841
  %879 = vst.msk [vmem:[%s866 + $0x60] sm:$0xff] %vm200, %v843
  %880 = vst.msk [vmem:[%s866 + $0x68] sm:$0xff] %vm200, %v845
  %881 = vst.msk [vmem:[%s866 + $0x70] sm:$0xff] %vm200, %v847
  %882 = vst.msk [vmem:[%s866 + $0x78] sm:$0xff] %vm200, %v849
  %883 = vrot.lane.b32.xlu0 %v138, 40
  %v884 = vpop.permute.xlu0 %883
  %885 = vrot.lane.b32.xlu0 %v141, 40
  %v886 = vpop.permute.xlu0 %885
  %887 = vrot.lane.b32.xlu0 %v146, 40
  %v888 = vpop.permute.xlu0 %887
  %889 = vrot.lane.b32.xlu0 %v149, 40
  %v890 = vpop.permute.xlu0 %889
  %891 = vrot.lane.b32.xlu0 %v154, 40
  %v892 = vpop.permute.xlu0 %891
  %893 = vrot.lane.b32.xlu0 %v157, 40
  %v894 = vpop.permute.xlu0 %893
  %895 = vrot.lane.b32.xlu0 %v162, 40
  %v896 = vpop.permute.xlu0 %895
  %897 = vrot.lane.b32.xlu0 %v165, 40
  %v898 = vpop.permute.xlu0 %897
  %899 = vrot.lane.b32.xlu0 %v170, 40
  %v900 = vpop.permute.xlu0 %899
  %901 = vrot.lane.b32.xlu0 %v173, 40
  %v902 = vpop.permute.xlu0 %901
  %903 = vrot.lane.b32.xlu0 %v178, 40
  %v904 = vpop.permute.xlu0 %903
  %905 = vrot.lane.b32.xlu0 %v181, 40
  %v906 = vpop.permute.xlu0 %905
  %907 = vrot.lane.b32.xlu0 %v186, 40
  %v908 = vpop.permute.xlu0 %907
  %909 = vrot.lane.b32.xlu0 %v189, 40
  %v910 = vpop.permute.xlu0 %909
  %911 = vrot.lane.b32.xlu0 %v194, 40
  %v912 = vpop.permute.xlu0 %911
  %913 = vrot.lane.b32.xlu0 %v197, 40
  %v914 = vpop.permute.xlu0 %913
  %s931 = scalar_lea.vmem [#allocation2], 1408
  %932 = vst.msk [vmem:[%s931] sm:$0xff] %vm200, %v884
  %933 = vst.msk [vmem:[%s931 + $0x8] sm:$0xff] %vm200, %v886
  %934 = vst.msk [vmem:[%s931 + $0x10] sm:$0xff] %vm200, %v888
  %935 = vst.msk [vmem:[%s931 + $0x18] sm:$0xff] %vm200, %v890
  %936 = vst.msk [vmem:[%s931 + $0x20] sm:$0xff] %vm200, %v892
  %937 = vst.msk [vmem:[%s931 + $0x28] sm:$0xff] %vm200, %v894
  %938 = vst.msk [vmem:[%s931 + $0x30] sm:$0xff] %vm200, %v896
  %939 = vst.msk [vmem:[%s931 + $0x38] sm:$0xff] %vm200, %v898
  %940 = vst.msk [vmem:[%s931 + $0x40] sm:$0xff] %vm200, %v900
  %941 = vst.msk [vmem:[%s931 + $0x48] sm:$0xff] %vm200, %v902
  %942 = vst.msk [vmem:[%s931 + $0x50] sm:$0xff] %vm200, %v904
  %943 = vst.msk [vmem:[%s931 + $0x58] sm:$0xff] %vm200, %v906
  %944 = vst.msk [vmem:[%s931 + $0x60] sm:$0xff] %vm200, %v908
  %945 = vst.msk [vmem:[%s931 + $0x68] sm:$0xff] %vm200, %v910
  %946 = vst.msk [vmem:[%s931 + $0x70] sm:$0xff] %vm200, %v912
  %947 = vst.msk [vmem:[%s931 + $0x78] sm:$0xff] %vm200, %v914
  %v948 = vld [vmem:[#allocation2] sm:$0xff]
  %v949 = vld [vmem:[#allocation2 + $0x8] sm:$0xff]
  %v950 = vld [vmem:[#allocation2 + $0x10] sm:$0xff]
  %v951 = vld [vmem:[#allocation2 + $0x18] sm:$0xff]
  %v952 = vld [vmem:[#allocation2 + $0x20] sm:$0xff]
  %v953 = vld [vmem:[#allocation2 + $0x28] sm:$0xff]
  %v954 = vld [vmem:[#allocation2 + $0x30] sm:$0xff]
  %v955 = vld [vmem:[#allocation2 + $0x38] sm:$0xff]
  %v956 = vld [vmem:[#allocation2 + $0x40] sm:$0xff]
  %v957 = vld [vmem:[#allocation2 + $0x48] sm:$0xff]
  %v958 = vld [vmem:[#allocation2 + $0x50] sm:$0xff]
  %v959 = vld [vmem:[#allocation2 + $0x58] sm:$0xff]
  %v960 = vld [vmem:[#allocation2 + $0x60] sm:$0xff]
  %v961 = vld [vmem:[#allocation2 + $0x68] sm:$0xff]
  %v962 = vld [vmem:[#allocation2 + $0x70] sm:$0xff]
  %v963 = vld [vmem:[#allocation2 + $0x78] sm:$0xff]
  %v964 = vld [vmem:[#allocation2 + $0x80] sm:$0xff]
  %v965 = vld [vmem:[#allocation2 + $0x88] sm:$0xff]
  %v966 = vld [vmem:[#allocation2 + $0x90] sm:$0xff]
  %v967 = vld [vmem:[#allocation2 + $0x98] sm:$0xff]
  %v968 = vld [vmem:[#allocation2 + $0xa0] sm:$0xff]
  %v969 = vld [vmem:[#allocation2 + $0xa8] sm:$0xff]
  %v970 = vld [vmem:[#allocation2 + $0xb0] sm:$0xff]
  %v971 = vld [vmem:[#allocation2 + $0xb8] sm:$0xff]
  %v972 = vld [vmem:[#allocation2 + $0xc0] sm:$0xff]
  %v973 = vld [vmem:[#allocation2 + $0xc8] sm:$0xff]
  %v974 = vld [vmem:[#allocation2 + $0xd0] sm:$0xff]
  %v975 = vld [vmem:[#allocation2 + $0xd8] sm:$0xff]
  %v976 = vld [vmem:[#allocation2 + $0xe0] sm:$0xff]
  %v977 = vld [vmem:[#allocation2 + $0xe8] sm:$0xff]
  %v978 = vld [vmem:[#allocation2 + $0xf0] sm:$0xff]
  %v979 = vld [vmem:[#allocation2 + $0xf8] sm:$0xff]
  %v980 = vld [vmem:[#allocation2 + $0x100] sm:$0xff]
  %v981 = vld [vmem:[#allocation2 + $0x108] sm:$0xff]
  %v982 = vld [vmem:[#allocation2 + $0x110] sm:$0xff]
  %v983 = vld [vmem:[#allocation2 + $0x118] sm:$0xff]
  %v984 = vld [vmem:[#allocation2 + $0x120] sm:$0xff]
  %v985 = vld [vmem:[#allocation2 + $0x128] sm:$0xff]
  %v986 = vld [vmem:[#allocation2 + $0x130] sm:$0xff]
  %v987 = vld [vmem:[#allocation2 + $0x138] sm:$0xff]
  %v988 = vld [vmem:[#allocation2 + $0x140] sm:$0xff]
  %v989 = vld [vmem:[#allocation2 + $0x148] sm:$0xff]
  %v990 = vld [vmem:[#allocation2 + $0x150] sm:$0xff]
  %v991 = vld [vmem:[#allocation2 + $0x158] sm:$0xff]
  %v992 = vld [vmem:[#allocation2 + $0x160] sm:$0xff]
  %v993 = vld [vmem:[#allocation2 + $0x168] sm:$0xff]
  %v994 = vld [vmem:[#allocation2 + $0x170] sm:$0xff]
  %v995 = vld [vmem:[#allocation2 + $0x178] sm:$0xff]
  %v996 = vld [vmem:[#allocation2 + $0x180] sm:$0xff]
  %v997 = vld [vmem:[#allocation2 + $0x188] sm:$0xff]
  %v998 = vld [vmem:[#allocation2 + $0x190] sm:$0xff]
  %v999 = vld [vmem:[#allocation2 + $0x198] sm:$0xff]
  %v1000 = vld [vmem:[#allocation2 + $0x1a0] sm:$0xff]
  %v1001 = vld [vmem:[#allocation2 + $0x1a8] sm:$0xff]
  %v1002 = vld [vmem:[#allocation2 + $0x1b0] sm:$0xff]
  %v1003 = vld [vmem:[#allocation2 + $0x1b8] sm:$0xff]
  %v1004 = vld [vmem:[#allocation2 + $0x1c0] sm:$0xff]
  %v1005 = vld [vmem:[#allocation2 + $0x1c8] sm:$0xff]
  %v1006 = vld [vmem:[#allocation2 + $0x1d0] sm:$0xff]
  %v1007 = vld [vmem:[#allocation2 + $0x1d8] sm:$0xff]
  %v1008 = vld [vmem:[#allocation2 + $0x1e0] sm:$0xff]
  %v1009 = vld [vmem:[#allocation2 + $0x1e8] sm:$0xff]
  %v1010 = vld [vmem:[#allocation2 + $0x1f0] sm:$0xff]
  %v1011 = vld [vmem:[#allocation2 + $0x1f8] sm:$0xff]
  %v1012 = vld [vmem:[%s476] sm:$0xff]
  %v1013 = vld [vmem:[%s476 + $0x8] sm:$0xff]
  %v1014 = vld [vmem:[%s476 + $0x10] sm:$0xff]
  %v1015 = vld [vmem:[%s476 + $0x18] sm:$0xff]
  %v1016 = vld [vmem:[%s476 + $0x20] sm:$0xff]
  %v1017 = vld [vmem:[%s476 + $0x28] sm:$0xff]
  %v1018 = vld [vmem:[%s476 + $0x30] sm:$0xff]
  %v1019 = vld [vmem:[%s476 + $0x38] sm:$0xff]
  %v1020 = vld [vmem:[%s476 + $0x40] sm:$0xff]
  %v1021 = vld [vmem:[%s476 + $0x48] sm:$0xff]
  %v1022 = vld [vmem:[%s476 + $0x50] sm:$0xff]
  %v1023 = vld [vmem:[%s476 + $0x58] sm:$0xff]
  %v1024 = vld [vmem:[%s476 + $0x60] sm:$0xff]
  %v1025 = vld [vmem:[%s476 + $0x68] sm:$0xff]
  %v1026 = vld [vmem:[%s476 + $0x70] sm:$0xff]
  %v1027 = vld [vmem:[%s476 + $0x78] sm:$0xff]
  %v1028 = vld [vmem:[%s476 + $0x80] sm:$0xff]
  %v1029 = vld [vmem:[%s476 + $0x88] sm:$0xff]
  %v1030 = vld [vmem:[%s476 + $0x90] sm:$0xff]
  %v1031 = vld [vmem:[%s476 + $0x98] sm:$0xff]
  %v1032 = vld [vmem:[%s476 + $0xa0] sm:$0xff]
  %v1033 = vld [vmem:[%s476 + $0xa8] sm:$0xff]
  %v1034 = vld [vmem:[%s476 + $0xb0] sm:$0xff]
  %v1035 = vld [vmem:[%s476 + $0xb8] sm:$0xff]
  %v1036 = vld [vmem:[%s476 + $0xc0] sm:$0xff]
  %v1037 = vld [vmem:[%s476 + $0xc8] sm:$0xff]
  %v1038 = vld [vmem:[%s476 + $0xd0] sm:$0xff]
  %v1039 = vld [vmem:[%s476 + $0xd8] sm:$0xff]
  %v1040 = vld [vmem:[%s476 + $0xe0] sm:$0xff]
  %v1041 = vld [vmem:[%s476 + $0xe8] sm:$0xff]
  %v1042 = vld [vmem:[%s476 + $0xf0] sm:$0xff]
  %v1043 = vld [vmem:[%s476 + $0xf8] sm:$0xff]
  %v1044 = vld [vmem:[%s476 + $0x100] sm:$0xff]
  %v1045 = vld [vmem:[%s476 + $0x108] sm:$0xff]
  %v1046 = vld [vmem:[%s476 + $0x110] sm:$0xff]
  %v1047 = vld [vmem:[%s476 + $0x118] sm:$0xff]
  %v1048 = vld [vmem:[%s476 + $0x120] sm:$0xff]
  %v1049 = vld [vmem:[%s476 + $0x128] sm:$0xff]
  %v1050 = vld [vmem:[%s476 + $0x130] sm:$0xff]
  %v1051 = vld [vmem:[%s476 + $0x138] sm:$0xff]
  %v1052 = vld [vmem:[%s476 + $0x140] sm:$0xff]
  %v1053 = vld [vmem:[%s476 + $0x148] sm:$0xff]
  %v1054 = vld [vmem:[%s476 + $0x150] sm:$0xff]
  %v1055 = vld [vmem:[%s476 + $0x158] sm:$0xff]
  %v1056 = vld [vmem:[%s476 + $0x160] sm:$0xff]
  %v1057 = vld [vmem:[%s476 + $0x168] sm:$0xff]
  %v1058 = vld [vmem:[%s476 + $0x170] sm:$0xff]
  %v1059 = vld [vmem:[%s476 + $0x178] sm:$0xff]
  %v1060 = vld [vmem:[%s476 + $0x180] sm:$0xff]
  %v1061 = vld [vmem:[%s476 + $0x188] sm:$0xff]
  %v1062 = vld [vmem:[%s476 + $0x190] sm:$0xff]
  %v1063 = vld [vmem:[%s476 + $0x198] sm:$0xff]
  %v1064 = vld [vmem:[%s476 + $0x1a0] sm:$0xff]
  %v1065 = vld [vmem:[%s476 + $0x1a8] sm:$0xff]
  %v1066 = vld [vmem:[%s476 + $0x1b0] sm:$0xff]
  %v1067 = vld [vmem:[%s476 + $0x1b8] sm:$0xff]
  %v1068 = vld [vmem:[%s476 + $0x1c0] sm:$0xff]
  %v1069 = vld [vmem:[%s476 + $0x1c8] sm:$0xff]
  %v1070 = vld [vmem:[%s476 + $0x1d0] sm:$0xff]
  %v1071 = vld [vmem:[%s476 + $0x1d8] sm:$0xff]
  %v1072 = vld [vmem:[%s476 + $0x1e0] sm:$0xff]
  %v1073 = vld [vmem:[%s476 + $0x1e8] sm:$0xff]
  %v1074 = vld [vmem:[%s476 + $0x1f0] sm:$0xff]
  %v1075 = vld [vmem:[%s476 + $0x1f8] sm:$0xff]
  %v1076 = vld [vmem:[%s736] sm:$0xff]
  %v1077 = vld [vmem:[%s736 + $0x8] sm:$0xff]
  %v1078 = vld [vmem:[%s736 + $0x10] sm:$0xff]
  %v1079 = vld [vmem:[%s736 + $0x18] sm:$0xff]
  %v1080 = vld [vmem:[%s736 + $0x20] sm:$0xff]
  %v1081 = vld [vmem:[%s736 + $0x28] sm:$0xff]
  %v1082 = vld [vmem:[%s736 + $0x30] sm:$0xff]
  %v1083 = vld [vmem:[%s736 + $0x38] sm:$0xff]
  %v1084 = vld [vmem:[%s736 + $0x40] sm:$0xff]
  %v1085 = vld [vmem:[%s736 + $0x48] sm:$0xff]
  %v1086 = vld [vmem:[%s736 + $0x50] sm:$0xff]
  %v1087 = vld [vmem:[%s736 + $0x58] sm:$0xff]
  %v1088 = vld [vmem:[%s736 + $0x60] sm:$0xff]
  %v1089 = vld [vmem:[%s736 + $0x68] sm:$0xff]
  %v1090 = vld [vmem:[%s736 + $0x70] sm:$0xff]
  %v1091 = vld [vmem:[%s736 + $0x78] sm:$0xff]
  %v1092 = vld [vmem:[%s736 + $0x80] sm:$0xff]
  %v1093 = vld [vmem:[%s736 + $0x88] sm:$0xff]
  %v1094 = vld [vmem:[%s736 + $0x90] sm:$0xff]
  %v1095 = vld [vmem:[%s736 + $0x98] sm:$0xff]
  %v1096 = vld [vmem:[%s736 + $0xa0] sm:$0xff]
  %v1097 = vld [vmem:[%s736 + $0xa8] sm:$0xff]
  %v1098 = vld [vmem:[%s736 + $0xb0] sm:$0xff]
  %v1099 = vld [vmem:[%s736 + $0xb8] sm:$0xff]
  %v1100 = vld [vmem:[%s736 + $0xc0] sm:$0xff]
  %v1101 = vld [vmem:[%s736 + $0xc8] sm:$0xff]
  %v1102 = vld [vmem:[%s736 + $0xd0] sm:$0xff]
  %v1103 = vld [vmem:[%s736 + $0xd8] sm:$0xff]
  %v1104 = vld [vmem:[%s736 + $0xe0] sm:$0xff]
  %v1105 = vld [vmem:[%s736 + $0xe8] sm:$0xff]
  %v1106 = vld [vmem:[%s736 + $0xf0] sm:$0xff]
  %v1107 = vld [vmem:[%s736 + $0xf8] sm:$0xff]
  %v1108 = vld [vmem:[%s736 + $0x100] sm:$0xff]
  %v1109 = vld [vmem:[%s736 + $0x108] sm:$0xff]
  %v1110 = vld [vmem:[%s736 + $0x110] sm:$0xff]
  %v1111 = vld [vmem:[%s736 + $0x118] sm:$0xff]
  %v1112 = vld [vmem:[%s736 + $0x120] sm:$0xff]
  %v1113 = vld [vmem:[%s736 + $0x128] sm:$0xff]
  %v1114 = vld [vmem:[%s736 + $0x130] sm:$0xff]
  %v1115 = vld [vmem:[%s736 + $0x138] sm:$0xff]
  %v1116 = vld [vmem:[%s736 + $0x140] sm:$0xff]
  %v1117 = vld [vmem:[%s736 + $0x148] sm:$0xff]
  %v1118 = vld [vmem:[%s736 + $0x150] sm:$0xff]
  %v1119 = vld [vmem:[%s736 + $0x158] sm:$0xff]
  %v1120 = vld [vmem:[%s736 + $0x160] sm:$0xff]
  %v1121 = vld [vmem:[%s736 + $0x168] sm:$0xff]
  %v1122 = vld [vmem:[%s736 + $0x170] sm:$0xff]
  %v1123 = vld [vmem:[%s736 + $0x178] sm:$0xff]
  %v1124 = vld [vmem:[%s736 + $0x180] sm:$0xff]
  %v1125 = vld [vmem:[%s736 + $0x188] sm:$0xff]
  %v1126 = vld [vmem:[%s736 + $0x190] sm:$0xff]
  %v1127 = vld [vmem:[%s736 + $0x198] sm:$0xff]
  %v1128 = vld [vmem:[%s736 + $0x1a0] sm:$0xff]
  %v1129 = vld [vmem:[%s736 + $0x1a8] sm:$0xff]
  %v1130 = vld [vmem:[%s736 + $0x1b0] sm:$0xff]
  %v1131 = vld [vmem:[%s736 + $0x1b8] sm:$0xff]
  %v1132 = vld [vmem:[%s736 + $0x1c0] sm:$0xff]
  %v1133 = vld [vmem:[%s736 + $0x1c8] sm:$0xff]
  %v1134 = vld [vmem:[%s736 + $0x1d0] sm:$0xff]
  %v1135 = vld [vmem:[%s736 + $0x1d8] sm:$0xff]
  %v1136 = vld [vmem:[%s736 + $0x1e0] sm:$0xff]
  %v1137 = vld [vmem:[%s736 + $0x1e8] sm:$0xff]
  %v1138 = vld [vmem:[%s736 + $0x1f0] sm:$0xff]
  %v1139 = vld [vmem:[%s736 + $0x1f8] sm:$0xff]
  %v1140 = vmul.f32 %v948, %v948
  %v1141 = vmul.f32 %v949, %v949
  %v1142 = vmul.f32 %v950, %v950
  %v1143 = vmul.f32 %v951, %v951
  %v1144 = vmul.f32 %v952, %v952
  %v1145 = vmul.f32 %v953, %v953
  %v1146 = vmul.f32 %v954, %v954
  %v1147 = vmul.f32 %v955, %v955
  %v1148 = vmul.f32 %v956, %v956
  %v1149 = vmul.f32 %v957, %v957
  %v1150 = vmul.f32 %v958, %v958
  %v1151 = vmul.f32 %v959, %v959
  %v1152 = vmul.f32 %v960, %v960
  %v1153 = vmul.f32 %v961, %v961
  %v1154 = vmul.f32 %v962, %v962
  %v1155 = vmul.f32 %v963, %v963
  %v1156 = vmul.f32 %v964, %v964
  %v1157 = vmul.f32 %v965, %v965
  %v1158 = vmul.f32 %v966, %v966
  %v1159 = vmul.f32 %v967, %v967
  %v1160 = vmul.f32 %v968, %v968
  %v1161 = vmul.f32 %v969, %v969
  %v1162 = vmul.f32 %v970, %v970
  %v1163 = vmul.f32 %v971, %v971
  %v1164 = vmul.f32 %v972, %v972
  %v1165 = vmul.f32 %v973, %v973
  %v1166 = vmul.f32 %v974, %v974
  %v1167 = vmul.f32 %v975, %v975
  %v1168 = vmul.f32 %v976, %v976
  %v1169 = vmul.f32 %v977, %v977
  %v1170 = vmul.f32 %v978, %v978
  %v1171 = vmul.f32 %v979, %v979
  %v1172 = vmul.f32 %v980, %v980
  %v1173 = vmul.f32 %v981, %v981
  %v1174 = vmul.f32 %v982, %v982
  %v1175 = vmul.f32 %v983, %v983
  %v1176 = vmul.f32 %v984, %v984
  %v1177 = vmul.f32 %v985, %v985
  %v1178 = vmul.f32 %v986, %v986
  %v1179 = vmul.f32 %v987, %v987
  %v1180 = vmul.f32 %v988, %v988
  %v1181 = vmul.f32 %v989, %v989
  %v1182 = vmul.f32 %v990, %v990
  %v1183 = vmul.f32 %v991, %v991
  %v1184 = vmul.f32 %v992, %v992
  %v1185 = vmul.f32 %v993, %v993
  %v1186 = vmul.f32 %v994, %v994
  %v1187 = vmul.f32 %v995, %v995
  %v1188 = vmul.f32 %v996, %v996
  %v1189 = vmul.f32 %v997, %v997
  %v1190 = vmul.f32 %v998, %v998
  %v1191 = vmul.f32 %v999, %v999
  %v1192 = vmul.f32 %v1000, %v1000
  %v1193 = vmul.f32 %v1001, %v1001
  %v1194 = vmul.f32 %v1002, %v1002
  %v1195 = vmul.f32 %v1003, %v1003
  %v1196 = vmul.f32 %v1004, %v1004
  %v1197 = vmul.f32 %v1005, %v1005
  %v1198 = vmul.f32 %v1006, %v1006
  %v1199 = vmul.f32 %v1007, %v1007
  %v1200 = vmul.f32 %v1008, %v1008
  %v1201 = vmul.f32 %v1009, %v1009
  %v1202 = vmul.f32 %v1010, %v1010
  %v1203 = vmul.f32 %v1011, %v1011
  %v1204 = vsel %vm200, %v1140, 0.0
  %1205 = vadd.xlane.f32.xlu0 %v1204
  %v1206 = vpop.xlane.xlu0 %1205
  %v1207 = vsel %vm200, %v1141, 0.0
  %1208 = vadd.xlane.f32.xlu0 %v1207
  %v1209 = vpop.xlane.xlu0 %1208
  %v1210 = vsel %vm200, %v1142, 0.0
  %1211 = vadd.xlane.f32.xlu0 %v1210
  %v1212 = vpop.xlane.xlu0 %1211
  %v1213 = vsel %vm200, %v1143, 0.0
  %1214 = vadd.xlane.f32.xlu0 %v1213
  %v1215 = vpop.xlane.xlu0 %1214
  %v1216 = vsel %vm200, %v1144, 0.0
  %1217 = vadd.xlane.f32.xlu0 %v1216
  %v1218 = vpop.xlane.xlu0 %1217
  %v1219 = vsel %vm200, %v1145, 0.0
  %1220 = vadd.xlane.f32.xlu0 %v1219
  %v1221 = vpop.xlane.xlu0 %1220
  %v1222 = vsel %vm200, %v1146, 0.0
  %1223 = vadd.xlane.f32.xlu0 %v1222
  %v1224 = vpop.xlane.xlu0 %1223
  %v1225 = vsel %vm200, %v1147, 0.0
  %1226 = vadd.xlane.f32.xlu0 %v1225
  %v1227 = vpop.xlane.xlu0 %1226
  %v1228 = vsel %vm200, %v1148, 0.0
  %1229 = vadd.xlane.f32.xlu0 %v1228
  %v1230 = vpop.xlane.xlu0 %1229
  %v1231 = vsel %vm200, %v1149, 0.0
  %1232 = vadd.xlane.f32.xlu0 %v1231
  %v1233 = vpop.xlane.xlu0 %1232
  %v1234 = vsel %vm200, %v1150, 0.0
  %1235 = vadd.xlane.f32.xlu0 %v1234
  %v1236 = vpop.xlane.xlu0 %1235
  %v1237 = vsel %vm200, %v1151, 0.0
  %1238 = vadd.xlane.f32.xlu0 %v1237
  %v1239 = vpop.xlane.xlu0 %1238
  %v1240 = vsel %vm200, %v1152, 0.0
  %1241 = vadd.xlane.f32.xlu0 %v1240
  %v1242 = vpop.xlane.xlu0 %1241
  %v1243 = vsel %vm200, %v1153, 0.0
  %1244 = vadd.xlane.f32.xlu0 %v1243
  %v1245 = vpop.xlane.xlu0 %1244
  %v1246 = vsel %vm200, %v1154, 0.0
  %1247 = vadd.xlane.f32.xlu0 %v1246
  %v1248 = vpop.xlane.xlu0 %1247
  %v1249 = vsel %vm200, %v1155, 0.0
  %1250 = vadd.xlane.f32.xlu0 %v1249
  %v1251 = vpop.xlane.xlu0 %1250
  %v1252 = vsel %vm200, %v1156, 0.0
  %1253 = vadd.xlane.f32.xlu0 %v1252
  %v1254 = vpop.xlane.xlu0 %1253
  %v1255 = vsel %vm200, %v1157, 0.0
  %1256 = vadd.xlane.f32.xlu0 %v1255
  %v1257 = vpop.xlane.xlu0 %1256
  %v1258 = vsel %vm200, %v1158, 0.0
  %1259 = vadd.xlane.f32.xlu0 %v1258
  %v1260 = vpop.xlane.xlu0 %1259
  %v1261 = vsel %vm200, %v1159, 0.0
  %1262 = vadd.xlane.f32.xlu0 %v1261
  %v1263 = vpop.xlane.xlu0 %1262
  %v1264 = vsel %vm200, %v1160, 0.0
  %1265 = vadd.xlane.f32.xlu0 %v1264
  %v1266 = vpop.xlane.xlu0 %1265
  %v1267 = vsel %vm200, %v1161, 0.0
  %1268 = vadd.xlane.f32.xlu0 %v1267
  %v1269 = vpop.xlane.xlu0 %1268
  %v1270 = vsel %vm200, %v1162, 0.0
  %1271 = vadd.xlane.f32.xlu0 %v1270
  %v1272 = vpop.xlane.xlu0 %1271
  %v1273 = vsel %vm200, %v1163, 0.0
  %1274 = vadd.xlane.f32.xlu0 %v1273
  %v1275 = vpop.xlane.xlu0 %1274
  %v1276 = vsel %vm200, %v1164, 0.0
  %1277 = vadd.xlane.f32.xlu0 %v1276
  %v1278 = vpop.xlane.xlu0 %1277
  %v1279 = vsel %vm200, %v1165, 0.0
  %1280 = vadd.xlane.f32.xlu0 %v1279
  %v1281 = vpop.xlane.xlu0 %1280
  %v1282 = vsel %vm200, %v1166, 0.0
  %1283 = vadd.xlane.f32.xlu0 %v1282
  %v1284 = vpop.xlane.xlu0 %1283
  %v1285 = vsel %vm200, %v1167, 0.0
  %1286 = vadd.xlane.f32.xlu0 %v1285
  %v1287 = vpop.xlane.xlu0 %1286
  %v1288 = vsel %vm200, %v1168, 0.0
  %1289 = vadd.xlane.f32.xlu0 %v1288
  %v1290 = vpop.xlane.xlu0 %1289
  %v1291 = vsel %vm200, %v1169, 0.0
  %1292 = vadd.xlane.f32.xlu0 %v1291
  %v1293 = vpop.xlane.xlu0 %1292
  %v1294 = vsel %vm200, %v1170, 0.0
  %1295 = vadd.xlane.f32.xlu0 %v1294
  %v1296 = vpop.xlane.xlu0 %1295
  %v1297 = vsel %vm200, %v1171, 0.0
  %1298 = vadd.xlane.f32.xlu0 %v1297
  %v1299 = vpop.xlane.xlu0 %1298
  %v1300 = vsel %vm200, %v1172, 0.0
  %1301 = vadd.xlane.f32.xlu0 %v1300
  %v1302 = vpop.xlane.xlu0 %1301
  %v1303 = vsel %vm200, %v1173, 0.0
  %1304 = vadd.xlane.f32.xlu0 %v1303
  %v1305 = vpop.xlane.xlu0 %1304
  %v1306 = vsel %vm200, %v1174, 0.0
  %1307 = vadd.xlane.f32.xlu0 %v1306
  %v1308 = vpop.xlane.xlu0 %1307
  %v1309 = vsel %vm200, %v1175, 0.0
  %1310 = vadd.xlane.f32.xlu0 %v1309
  %v1311 = vpop.xlane.xlu0 %1310
  %v1312 = vsel %vm200, %v1176, 0.0
  %1313 = vadd.xlane.f32.xlu0 %v1312
  %v1314 = vpop.xlane.xlu0 %1313
  %v1315 = vsel %vm200, %v1177, 0.0
  %1316 = vadd.xlane.f32.xlu0 %v1315
  %v1317 = vpop.xlane.xlu0 %1316
  %v1318 = vsel %vm200, %v1178, 0.0
  %1319 = vadd.xlane.f32.xlu0 %v1318
  %v1320 = vpop.xlane.xlu0 %1319
  %v1321 = vsel %vm200, %v1179, 0.0
  %1322 = vadd.xlane.f32.xlu0 %v1321
  %v1323 = vpop.xlane.xlu0 %1322
  %v1324 = vsel %vm200, %v1180, 0.0
  %1325 = vadd.xlane.f32.xlu0 %v1324
  %v1326 = vpop.xlane.xlu0 %1325
  %v1327 = vsel %vm200, %v1181, 0.0
  %1328 = vadd.xlane.f32.xlu0 %v1327
  %v1329 = vpop.xlane.xlu0 %1328
  %v1330 = vsel %vm200, %v1182, 0.0
  %1331 = vadd.xlane.f32.xlu0 %v1330
  %v1332 = vpop.xlane.xlu0 %1331
  %v1333 = vsel %vm200, %v1183, 0.0
  %1334 = vadd.xlane.f32.xlu0 %v1333
  %v1335 = vpop.xlane.xlu0 %1334
  %v1336 = vsel %vm200, %v1184, 0.0
  %1337 = vadd.xlane.f32.xlu0 %v1336
  %v1338 = vpop.xlane.xlu0 %1337
  %v1339 = vsel %vm200, %v1185, 0.0
  %1340 = vadd.xlane.f32.xlu0 %v1339
  %v1341 = vpop.xlane.xlu0 %1340
  %v1342 = vsel %vm200, %v1186, 0.0
  %1343 = vadd.xlane.f32.xlu0 %v1342
  %v1344 = vpop.xlane.xlu0 %1343
  %v1345 = vsel %vm200, %v1187, 0.0
  %1346 = vadd.xlane.f32.xlu0 %v1345
  %v1347 = vpop.xlane.xlu0 %1346
  %v1348 = vsel %vm200, %v1188, 0.0
  %1349 = vadd.xlane.f32.xlu0 %v1348
  %v1350 = vpop.xlane.xlu0 %1349
  %v1351 = vsel %vm200, %v1189, 0.0
  %1352 = vadd.xlane.f32.xlu0 %v1351
  %v1353 = vpop.xlane.xlu0 %1352
  %v1354 = vsel %vm200, %v1190, 0.0
  %1355 = vadd.xlane.f32.xlu0 %v1354
  %v1356 = vpop.xlane.xlu0 %1355
  %v1357 = vsel %vm200, %v1191, 0.0
  %1358 = vadd.xlane.f32.xlu0 %v1357
  %v1359 = vpop.xlane.xlu0 %1358
  %v1360 = vsel %vm200, %v1192, 0.0
  %1361 = vadd.xlane.f32.xlu0 %v1360
  %v1362 = vpop.xlane.xlu0 %1361
  %v1363 = vsel %vm200, %v1193, 0.0
  %1364 = vadd.xlane.f32.xlu0 %v1363
  %v1365 = vpop.xlane.xlu0 %1364
  %v1366 = vsel %vm200, %v1194, 0.0
  %1367 = vadd.xlane.f32.xlu0 %v1366
  %v1368 = vpop.xlane.xlu0 %1367
  %v1369 = vsel %vm200, %v1195, 0.0
  %1370 = vadd.xlane.f32.xlu0 %v1369
  %v1371 = vpop.xlane.xlu0 %1370
  %v1372 = vsel %vm200, %v1196, 0.0
  %1373 = vadd.xlane.f32.xlu0 %v1372
  %v1374 = vpop.xlane.xlu0 %1373
  %v1375 = vsel %vm200, %v1197, 0.0
  %1376 = vadd.xlane.f32.xlu0 %v1375
  %v1377 = vpop.xlane.xlu0 %1376
  %v1378 = vsel %vm200, %v1198, 0.0
  %1379 = vadd.xlane.f32.xlu0 %v1378
  %v1380 = vpop.xlane.xlu0 %1379
  %v1381 = vsel %vm200, %v1199, 0.0
  %1382 = vadd.xlane.f32.xlu0 %v1381
  %v1383 = vpop.xlane.xlu0 %1382
  %v1384 = vsel %vm200, %v1200, 0.0
  %1385 = vadd.xlane.f32.xlu0 %v1384
  %v1386 = vpop.xlane.xlu0 %1385
  %v1387 = vsel %vm200, %v1201, 0.0
  %1388 = vadd.xlane.f32.xlu0 %v1387
  %v1389 = vpop.xlane.xlu0 %1388
  %v1390 = vsel %vm200, %v1202, 0.0
  %1391 = vadd.xlane.f32.xlu0 %v1390
  %v1392 = vpop.xlane.xlu0 %1391
  %v1393 = vsel %vm200, %v1203, 0.0
  %1394 = vadd.xlane.f32.xlu0 %v1393
  %v1395 = vpop.xlane.xlu0 %1394
  %v1396 = vmax.f32 %v1206, 1e-24
  %v1397 = vmax.f32 %v1209, 1e-24
  %v1398 = vmax.f32 %v1212, 1e-24
  %v1399 = vmax.f32 %v1215, 1e-24
  %v1400 = vmax.f32 %v1218, 1e-24
  %v1401 = vmax.f32 %v1221, 1e-24
  %v1402 = vmax.f32 %v1224, 1e-24
  %v1403 = vmax.f32 %v1227, 1e-24
  %v1404 = vmax.f32 %v1230, 1e-24
  %v1405 = vmax.f32 %v1233, 1e-24
  %v1406 = vmax.f32 %v1236, 1e-24
  %v1407 = vmax.f32 %v1239, 1e-24
  %v1408 = vmax.f32 %v1242, 1e-24
  %v1409 = vmax.f32 %v1245, 1e-24
  %v1410 = vmax.f32 %v1248, 1e-24
  %v1411 = vmax.f32 %v1251, 1e-24
  %v1412 = vmax.f32 %v1254, 1e-24
  %v1413 = vmax.f32 %v1257, 1e-24
  %v1414 = vmax.f32 %v1260, 1e-24
  %v1415 = vmax.f32 %v1263, 1e-24
  %v1416 = vmax.f32 %v1266, 1e-24
  %v1417 = vmax.f32 %v1269, 1e-24
  %v1418 = vmax.f32 %v1272, 1e-24
  %v1419 = vmax.f32 %v1275, 1e-24
  %v1420 = vmax.f32 %v1278, 1e-24
  %v1421 = vmax.f32 %v1281, 1e-24
  %v1422 = vmax.f32 %v1284, 1e-24
  %v1423 = vmax.f32 %v1287, 1e-24
  %v1424 = vmax.f32 %v1290, 1e-24
  %v1425 = vmax.f32 %v1293, 1e-24
  %v1426 = vmax.f32 %v1296, 1e-24
  %v1427 = vmax.f32 %v1299, 1e-24
  %v1428 = vmax.f32 %v1302, 1e-24
  %v1429 = vmax.f32 %v1305, 1e-24
  %v1430 = vmax.f32 %v1308, 1e-24
  %v1431 = vmax.f32 %v1311, 1e-24
  %v1432 = vmax.f32 %v1314, 1e-24
  %v1433 = vmax.f32 %v1317, 1e-24
  %v1434 = vmax.f32 %v1320, 1e-24
  %v1435 = vmax.f32 %v1323, 1e-24
  %v1436 = vmax.f32 %v1326, 1e-24
  %v1437 = vmax.f32 %v1329, 1e-24
  %v1438 = vmax.f32 %v1332, 1e-24
  %v1439 = vmax.f32 %v1335, 1e-24
  %v1440 = vmax.f32 %v1338, 1e-24
  %v1441 = vmax.f32 %v1341, 1e-24
  %v1442 = vmax.f32 %v1344, 1e-24
  %v1443 = vmax.f32 %v1347, 1e-24
  %v1444 = vmax.f32 %v1350, 1e-24
  %v1445 = vmax.f32 %v1353, 1e-24
  %v1446 = vmax.f32 %v1356, 1e-24
  %v1447 = vmax.f32 %v1359, 1e-24
  %v1448 = vmax.f32 %v1362, 1e-24
  %v1449 = vmax.f32 %v1365, 1e-24
  %v1450 = vmax.f32 %v1368, 1e-24
  %v1451 = vmax.f32 %v1371, 1e-24
  %v1452 = vmax.f32 %v1374, 1e-24
  %v1453 = vmax.f32 %v1377, 1e-24
  %v1454 = vmax.f32 %v1380, 1e-24
  %v1455 = vmax.f32 %v1383, 1e-24
  %v1456 = vmax.f32 %v1386, 1e-24
  %v1457 = vmax.f32 %v1389, 1e-24
  %v1458 = vmax.f32 %v1392, 1e-24
  %v1459 = vmax.f32 %v1395, 1e-24
  %v1460 = vrsqrt.pop %v1396
  %v1461 = vrsqrt.pop %v1397
  %v1462 = vrsqrt.pop %v1398
  %v1463 = vrsqrt.pop %v1399
  %v1464 = vrsqrt.pop %v1400
  %v1465 = vrsqrt.pop %v1401
  %v1466 = vrsqrt.pop %v1402
  %v1467 = vrsqrt.pop %v1403
  %v1468 = vrsqrt.pop %v1404
  %v1469 = vrsqrt.pop %v1405
  %v1470 = vrsqrt.pop %v1406
  %v1471 = vrsqrt.pop %v1407
  %v1472 = vrsqrt.pop %v1408
  %v1473 = vrsqrt.pop %v1409
  %v1474 = vrsqrt.pop %v1410
  %v1475 = vrsqrt.pop %v1411
  %v1476 = vrsqrt.pop %v1412
  %v1477 = vrsqrt.pop %v1413
  %v1478 = vrsqrt.pop %v1414
  %v1479 = vrsqrt.pop %v1415
  %v1480 = vrsqrt.pop %v1416
  %v1481 = vrsqrt.pop %v1417
  %v1482 = vrsqrt.pop %v1418
  %v1483 = vrsqrt.pop %v1419
  %v1484 = vrsqrt.pop %v1420
  %v1485 = vrsqrt.pop %v1421
  %v1486 = vrsqrt.pop %v1422
  %v1487 = vrsqrt.pop %v1423
  %v1488 = vrsqrt.pop %v1424
  %v1489 = vrsqrt.pop %v1425
  %v1490 = vrsqrt.pop %v1426
  %v1491 = vrsqrt.pop %v1427
  %v1492 = vrsqrt.pop %v1428
  %v1493 = vrsqrt.pop %v1429
  %v1494 = vrsqrt.pop %v1430
  %v1495 = vrsqrt.pop %v1431
  %v1496 = vrsqrt.pop %v1432
  %v1497 = vrsqrt.pop %v1433
  %v1498 = vrsqrt.pop %v1434
  %v1499 = vrsqrt.pop %v1435
  %v1500 = vrsqrt.pop %v1436
  %v1501 = vrsqrt.pop %v1437
  %v1502 = vrsqrt.pop %v1438
  %v1503 = vrsqrt.pop %v1439
  %v1504 = vrsqrt.pop %v1440
  %v1505 = vrsqrt.pop %v1441
  %v1506 = vrsqrt.pop %v1442
  %v1507 = vrsqrt.pop %v1443
  %v1508 = vrsqrt.pop %v1444
  %v1509 = vrsqrt.pop %v1445
  %v1510 = vrsqrt.pop %v1446
  %v1511 = vrsqrt.pop %v1447
  %v1512 = vrsqrt.pop %v1448
  %v1513 = vrsqrt.pop %v1449
  %v1514 = vrsqrt.pop %v1450
  %v1515 = vrsqrt.pop %v1451
  %v1516 = vrsqrt.pop %v1452
  %v1517 = vrsqrt.pop %v1453
  %v1518 = vrsqrt.pop %v1454
  %v1519 = vrsqrt.pop %v1455
  %v1520 = vrsqrt.pop %v1456
  %v1521 = vrsqrt.pop %v1457
  %v1522 = vrsqrt.pop %v1458
  %v1523 = vrsqrt.pop %v1459
  %v1524 = vmul.f32 %v948, %v1460
  %v1525 = vmul.f32 %v949, %v1461
  %v1526 = vmul.f32 %v950, %v1462
  %v1527 = vmul.f32 %v951, %v1463
  %v1528 = vmul.f32 %v952, %v1464
  %v1529 = vmul.f32 %v953, %v1465
  %v1530 = vmul.f32 %v954, %v1466
  %v1531 = vmul.f32 %v955, %v1467
  %v1532 = vmul.f32 %v956, %v1468
  %v1533 = vmul.f32 %v957, %v1469
  %v1534 = vmul.f32 %v958, %v1470
  %v1535 = vmul.f32 %v959, %v1471
  %v1536 = vmul.f32 %v960, %v1472
  %v1537 = vmul.f32 %v961, %v1473
  %v1538 = vmul.f32 %v962, %v1474
  %v1539 = vmul.f32 %v963, %v1475
  %v1540 = vmul.f32 %v964, %v1476
  %v1541 = vmul.f32 %v965, %v1477
  %v1542 = vmul.f32 %v966, %v1478
  %v1543 = vmul.f32 %v967, %v1479
  %v1544 = vmul.f32 %v968, %v1480
  %v1545 = vmul.f32 %v969, %v1481
  %v1546 = vmul.f32 %v970, %v1482
  %v1547 = vmul.f32 %v971, %v1483
  %v1548 = vmul.f32 %v972, %v1484
  %v1549 = vmul.f32 %v973, %v1485
  %v1550 = vmul.f32 %v974, %v1486
  %v1551 = vmul.f32 %v975, %v1487
  %v1552 = vmul.f32 %v976, %v1488
  %v1553 = vmul.f32 %v977, %v1489
  %v1554 = vmul.f32 %v978, %v1490
  %v1555 = vmul.f32 %v979, %v1491
  %v1556 = vmul.f32 %v980, %v1492
  %v1557 = vmul.f32 %v981, %v1493
  %v1558 = vmul.f32 %v982, %v1494
  %v1559 = vmul.f32 %v983, %v1495
  %v1560 = vmul.f32 %v984, %v1496
  %v1561 = vmul.f32 %v985, %v1497
  %v1562 = vmul.f32 %v986, %v1498
  %v1563 = vmul.f32 %v987, %v1499
  %v1564 = vmul.f32 %v988, %v1500
  %v1565 = vmul.f32 %v989, %v1501
  %v1566 = vmul.f32 %v990, %v1502
  %v1567 = vmul.f32 %v991, %v1503
  %v1568 = vmul.f32 %v992, %v1504
  %v1569 = vmul.f32 %v993, %v1505
  %v1570 = vmul.f32 %v994, %v1506
  %v1571 = vmul.f32 %v995, %v1507
  %v1572 = vmul.f32 %v996, %v1508
  %v1573 = vmul.f32 %v997, %v1509
  %v1574 = vmul.f32 %v998, %v1510
  %v1575 = vmul.f32 %v999, %v1511
  %v1576 = vmul.f32 %v1000, %v1512
  %v1577 = vmul.f32 %v1001, %v1513
  %v1578 = vmul.f32 %v1002, %v1514
  %v1579 = vmul.f32 %v1003, %v1515
  %v1580 = vmul.f32 %v1004, %v1516
  %v1581 = vmul.f32 %v1005, %v1517
  %v1582 = vmul.f32 %v1006, %v1518
  %v1583 = vmul.f32 %v1007, %v1519
  %v1584 = vmul.f32 %v1008, %v1520
  %v1585 = vmul.f32 %v1009, %v1521
  %v1586 = vmul.f32 %v1010, %v1522
  %v1587 = vmul.f32 %v1011, %v1523
  %v1588 = vmul.f32 %v1012, %v1012
  %v1589 = vmul.f32 %v1013, %v1013
  %v1590 = vmul.f32 %v1014, %v1014
  %v1591 = vmul.f32 %v1015, %v1015
  %v1592 = vmul.f32 %v1016, %v1016
  %v1593 = vmul.f32 %v1017, %v1017
  %v1594 = vmul.f32 %v1018, %v1018
  %v1595 = vmul.f32 %v1019, %v1019
  %v1596 = vmul.f32 %v1020, %v1020
  %v1597 = vmul.f32 %v1021, %v1021
  %v1598 = vmul.f32 %v1022, %v1022
  %v1599 = vmul.f32 %v1023, %v1023
  %v1600 = vmul.f32 %v1024, %v1024
  %v1601 = vmul.f32 %v1025, %v1025
  %v1602 = vmul.f32 %v1026, %v1026
  %v1603 = vmul.f32 %v1027, %v1027
  %v1604 = vmul.f32 %v1028, %v1028
  %v1605 = vmul.f32 %v1029, %v1029
  %v1606 = vmul.f32 %v1030, %v1030
  %v1607 = vmul.f32 %v1031, %v1031
  %v1608 = vmul.f32 %v1032, %v1032
  %v1609 = vmul.f32 %v1033, %v1033
  %v1610 = vmul.f32 %v1034, %v1034
  %v1611 = vmul.f32 %v1035, %v1035
  %v1612 = vmul.f32 %v1036, %v1036
  %v1613 = vmul.f32 %v1037, %v1037
  %v1614 = vmul.f32 %v1038, %v1038
  %v1615 = vmul.f32 %v1039, %v1039
  %v1616 = vmul.f32 %v1040, %v1040
  %v1617 = vmul.f32 %v1041, %v1041
  %v1618 = vmul.f32 %v1042, %v1042
  %v1619 = vmul.f32 %v1043, %v1043
  %v1620 = vmul.f32 %v1044, %v1044
  %v1621 = vmul.f32 %v1045, %v1045
  %v1622 = vmul.f32 %v1046, %v1046
  %v1623 = vmul.f32 %v1047, %v1047
  %v1624 = vmul.f32 %v1048, %v1048
  %v1625 = vmul.f32 %v1049, %v1049
  %v1626 = vmul.f32 %v1050, %v1050
  %v1627 = vmul.f32 %v1051, %v1051
  %v1628 = vmul.f32 %v1052, %v1052
  %v1629 = vmul.f32 %v1053, %v1053
  %v1630 = vmul.f32 %v1054, %v1054
  %v1631 = vmul.f32 %v1055, %v1055
  %v1632 = vmul.f32 %v1056, %v1056
  %v1633 = vmul.f32 %v1057, %v1057
  %v1634 = vmul.f32 %v1058, %v1058
  %v1635 = vmul.f32 %v1059, %v1059
  %v1636 = vmul.f32 %v1060, %v1060
  %v1637 = vmul.f32 %v1061, %v1061
  %v1638 = vmul.f32 %v1062, %v1062
  %v1639 = vmul.f32 %v1063, %v1063
  %v1640 = vmul.f32 %v1064, %v1064
  %v1641 = vmul.f32 %v1065, %v1065
  %v1642 = vmul.f32 %v1066, %v1066
  %v1643 = vmul.f32 %v1067, %v1067
  %v1644 = vmul.f32 %v1068, %v1068
  %v1645 = vmul.f32 %v1069, %v1069
  %v1646 = vmul.f32 %v1070, %v1070
  %v1647 = vmul.f32 %v1071, %v1071
  %v1648 = vmul.f32 %v1072, %v1072
  %v1649 = vmul.f32 %v1073, %v1073
  %v1650 = vmul.f32 %v1074, %v1074
  %v1651 = vmul.f32 %v1075, %v1075
  %v1652 = vsel %vm200, %v1588, 0.0
  %1653 = vadd.xlane.f32.xlu0 %v1652
  %v1654 = vpop.xlane.xlu0 %1653
  %v1655 = vsel %vm200, %v1589, 0.0
  %1656 = vadd.xlane.f32.xlu0 %v1655
  %v1657 = vpop.xlane.xlu0 %1656
  %v1658 = vsel %vm200, %v1590, 0.0
  %1659 = vadd.xlane.f32.xlu0 %v1658
  %v1660 = vpop.xlane.xlu0 %1659
  %v1661 = vsel %vm200, %v1591, 0.0
  %1662 = vadd.xlane.f32.xlu0 %v1661
  %v1663 = vpop.xlane.xlu0 %1662
  %v1664 = vsel %vm200, %v1592, 0.0
  %1665 = vadd.xlane.f32.xlu0 %v1664
  %v1666 = vpop.xlane.xlu0 %1665
  %v1667 = vsel %vm200, %v1593, 0.0
  %1668 = vadd.xlane.f32.xlu0 %v1667
  %v1669 = vpop.xlane.xlu0 %1668
  %v1670 = vsel %vm200, %v1594, 0.0
  %1671 = vadd.xlane.f32.xlu0 %v1670
  %v1672 = vpop.xlane.xlu0 %1671
  %v1673 = vsel %vm200, %v1595, 0.0
  %1674 = vadd.xlane.f32.xlu0 %v1673
  %v1675 = vpop.xlane.xlu0 %1674
  %v1676 = vsel %vm200, %v1596, 0.0
  %1677 = vadd.xlane.f32.xlu0 %v1676
  %v1678 = vpop.xlane.xlu0 %1677
  %v1679 = vsel %vm200, %v1597, 0.0
  %1680 = vadd.xlane.f32.xlu0 %v1679
  %v1681 = vpop.xlane.xlu0 %1680
  %v1682 = vsel %vm200, %v1598, 0.0
  %1683 = vadd.xlane.f32.xlu0 %v1682
  %v1684 = vpop.xlane.xlu0 %1683
  %v1685 = vsel %vm200, %v1599, 0.0
  %1686 = vadd.xlane.f32.xlu0 %v1685
  %v1687 = vpop.xlane.xlu0 %1686
  %v1688 = vsel %vm200, %v1600, 0.0
  %1689 = vadd.xlane.f32.xlu0 %v1688
  %v1690 = vpop.xlane.xlu0 %1689
  %v1691 = vsel %vm200, %v1601, 0.0
  %1692 = vadd.xlane.f32.xlu0 %v1691
  %v1693 = vpop.xlane.xlu0 %1692
  %v1694 = vsel %vm200, %v1602, 0.0
  %1695 = vadd.xlane.f32.xlu0 %v1694
  %v1696 = vpop.xlane.xlu0 %1695
  %v1697 = vsel %vm200, %v1603, 0.0
  %1698 = vadd.xlane.f32.xlu0 %v1697
  %v1699 = vpop.xlane.xlu0 %1698
  %v1700 = vsel %vm200, %v1604, 0.0
  %1701 = vadd.xlane.f32.xlu0 %v1700
  %v1702 = vpop.xlane.xlu0 %1701
  %v1703 = vsel %vm200, %v1605, 0.0
  %1704 = vadd.xlane.f32.xlu0 %v1703
  %v1705 = vpop.xlane.xlu0 %1704
  %v1706 = vsel %vm200, %v1606, 0.0
  %1707 = vadd.xlane.f32.xlu0 %v1706
  %v1708 = vpop.xlane.xlu0 %1707
  %v1709 = vsel %vm200, %v1607, 0.0
  %1710 = vadd.xlane.f32.xlu0 %v1709
  %v1711 = vpop.xlane.xlu0 %1710
  %v1712 = vsel %vm200, %v1608, 0.0
  %1713 = vadd.xlane.f32.xlu0 %v1712
  %v1714 = vpop.xlane.xlu0 %1713
  %v1715 = vsel %vm200, %v1609, 0.0
  %1716 = vadd.xlane.f32.xlu0 %v1715
  %v1717 = vpop.xlane.xlu0 %1716
  %v1718 = vsel %vm200, %v1610, 0.0
  %1719 = vadd.xlane.f32.xlu0 %v1718
  %v1720 = vpop.xlane.xlu0 %1719
  %v1721 = vsel %vm200, %v1611, 0.0
  %1722 = vadd.xlane.f32.xlu0 %v1721
  %v1723 = vpop.xlane.xlu0 %1722
  %v1724 = vsel %vm200, %v1612, 0.0
  %1725 = vadd.xlane.f32.xlu0 %v1724
  %v1726 = vpop.xlane.xlu0 %1725
  %v1727 = vsel %vm200, %v1613, 0.0
  %1728 = vadd.xlane.f32.xlu0 %v1727
  %v1729 = vpop.xlane.xlu0 %1728
  %v1730 = vsel %vm200, %v1614, 0.0
  %1731 = vadd.xlane.f32.xlu0 %v1730
  %v1732 = vpop.xlane.xlu0 %1731
  %v1733 = vsel %vm200, %v1615, 0.0
  %1734 = vadd.xlane.f32.xlu0 %v1733
  %v1735 = vpop.xlane.xlu0 %1734
  %v1736 = vsel %vm200, %v1616, 0.0
  %1737 = vadd.xlane.f32.xlu0 %v1736
  %v1738 = vpop.xlane.xlu0 %1737
  %v1739 = vsel %vm200, %v1617, 0.0
  %1740 = vadd.xlane.f32.xlu0 %v1739
  %v1741 = vpop.xlane.xlu0 %1740
  %v1742 = vsel %vm200, %v1618, 0.0
  %1743 = vadd.xlane.f32.xlu0 %v1742
  %v1744 = vpop.xlane.xlu0 %1743
  %v1745 = vsel %vm200, %v1619, 0.0
  %1746 = vadd.xlane.f32.xlu0 %v1745
  %v1747 = vpop.xlane.xlu0 %1746
  %v1748 = vsel %vm200, %v1620, 0.0
  %1749 = vadd.xlane.f32.xlu0 %v1748
  %v1750 = vpop.xlane.xlu0 %1749
  %v1751 = vsel %vm200, %v1621, 0.0
  %1752 = vadd.xlane.f32.xlu0 %v1751
  %v1753 = vpop.xlane.xlu0 %1752
  %v1754 = vsel %vm200, %v1622, 0.0
  %1755 = vadd.xlane.f32.xlu0 %v1754
  %v1756 = vpop.xlane.xlu0 %1755
  %v1757 = vsel %vm200, %v1623, 0.0
  %1758 = vadd.xlane.f32.xlu0 %v1757
  %v1759 = vpop.xlane.xlu0 %1758
  %v1760 = vsel %vm200, %v1624, 0.0
  %1761 = vadd.xlane.f32.xlu0 %v1760
  %v1762 = vpop.xlane.xlu0 %1761
  %v1763 = vsel %vm200, %v1625, 0.0
  %1764 = vadd.xlane.f32.xlu0 %v1763
  %v1765 = vpop.xlane.xlu0 %1764
  %v1766 = vsel %vm200, %v1626, 0.0
  %1767 = vadd.xlane.f32.xlu0 %v1766
  %v1768 = vpop.xlane.xlu0 %1767
  %v1769 = vsel %vm200, %v1627, 0.0
  %1770 = vadd.xlane.f32.xlu0 %v1769
  %v1771 = vpop.xlane.xlu0 %1770
  %v1772 = vsel %vm200, %v1628, 0.0
  %1773 = vadd.xlane.f32.xlu0 %v1772
  %v1774 = vpop.xlane.xlu0 %1773
  %v1775 = vsel %vm200, %v1629, 0.0
  %1776 = vadd.xlane.f32.xlu0 %v1775
  %v1777 = vpop.xlane.xlu0 %1776
  %v1778 = vsel %vm200, %v1630, 0.0
  %1779 = vadd.xlane.f32.xlu0 %v1778
  %v1780 = vpop.xlane.xlu0 %1779
  %v1781 = vsel %vm200, %v1631, 0.0
  %1782 = vadd.xlane.f32.xlu0 %v1781
  %v1783 = vpop.xlane.xlu0 %1782
  %v1784 = vsel %vm200, %v1632, 0.0
  %1785 = vadd.xlane.f32.xlu0 %v1784
  %v1786 = vpop.xlane.xlu0 %1785
  %v1787 = vsel %vm200, %v1633, 0.0
  %1788 = vadd.xlane.f32.xlu0 %v1787
  %v1789 = vpop.xlane.xlu0 %1788
  %v1790 = vsel %vm200, %v1634, 0.0
  %1791 = vadd.xlane.f32.xlu0 %v1790
  %v1792 = vpop.xlane.xlu0 %1791
  %v1793 = vsel %vm200, %v1635, 0.0
  %1794 = vadd.xlane.f32.xlu0 %v1793
  %v1795 = vpop.xlane.xlu0 %1794
  %v1796 = vsel %vm200, %v1636, 0.0
  %1797 = vadd.xlane.f32.xlu0 %v1796
  %v1798 = vpop.xlane.xlu0 %1797
  %v1799 = vsel %vm200, %v1637, 0.0
  %1800 = vadd.xlane.f32.xlu0 %v1799
  %v1801 = vpop.xlane.xlu0 %1800
  %v1802 = vsel %vm200, %v1638, 0.0
  %1803 = vadd.xlane.f32.xlu0 %v1802
  %v1804 = vpop.xlane.xlu0 %1803
  %v1805 = vsel %vm200, %v1639, 0.0
  %1806 = vadd.xlane.f32.xlu0 %v1805
  %v1807 = vpop.xlane.xlu0 %1806
  %v1808 = vsel %vm200, %v1640, 0.0
  %1809 = vadd.xlane.f32.xlu0 %v1808
  %v1810 = vpop.xlane.xlu0 %1809
  %v1811 = vsel %vm200, %v1641, 0.0
  %1812 = vadd.xlane.f32.xlu0 %v1811
  %v1813 = vpop.xlane.xlu0 %1812
  %v1814 = vsel %vm200, %v1642, 0.0
  %1815 = vadd.xlane.f32.xlu0 %v1814
  %v1816 = vpop.xlane.xlu0 %1815
  %v1817 = vsel %vm200, %v1643, 0.0
  %1818 = vadd.xlane.f32.xlu0 %v1817
  %v1819 = vpop.xlane.xlu0 %1818
  %v1820 = vsel %vm200, %v1644, 0.0
  %1821 = vadd.xlane.f32.xlu0 %v1820
  %v1822 = vpop.xlane.xlu0 %1821
  %v1823 = vsel %vm200, %v1645, 0.0
  %1824 = vadd.xlane.f32.xlu0 %v1823
  %v1825 = vpop.xlane.xlu0 %1824
  %v1826 = vsel %vm200, %v1646, 0.0
  %1827 = vadd.xlane.f32.xlu0 %v1826
  %v1828 = vpop.xlane.xlu0 %1827
  %v1829 = vsel %vm200, %v1647, 0.0
  %1830 = vadd.xlane.f32.xlu0 %v1829
  %v1831 = vpop.xlane.xlu0 %1830
  %v1832 = vsel %vm200, %v1648, 0.0
  %1833 = vadd.xlane.f32.xlu0 %v1832
  %v1834 = vpop.xlane.xlu0 %1833
  %v1835 = vsel %vm200, %v1649, 0.0
  %1836 = vadd.xlane.f32.xlu0 %v1835
  %v1837 = vpop.xlane.xlu0 %1836
  %v1838 = vsel %vm200, %v1650, 0.0
  %1839 = vadd.xlane.f32.xlu0 %v1838
  %v1840 = vpop.xlane.xlu0 %1839
  %v1841 = vsel %vm200, %v1651, 0.0
  %1842 = vadd.xlane.f32.xlu0 %v1841
  %v1843 = vpop.xlane.xlu0 %1842
  %v1844 = vmax.f32 %v1654, 1e-24
  %v1845 = vmax.f32 %v1657, 1e-24
  %v1846 = vmax.f32 %v1660, 1e-24
  %v1847 = vmax.f32 %v1663, 1e-24
  %v1848 = vmax.f32 %v1666, 1e-24
  %v1849 = vmax.f32 %v1669, 1e-24
  %v1850 = vmax.f32 %v1672, 1e-24
  %v1851 = vmax.f32 %v1675, 1e-24
  %v1852 = vmax.f32 %v1678, 1e-24
  %v1853 = vmax.f32 %v1681, 1e-24
  %v1854 = vmax.f32 %v1684, 1e-24
  %v1855 = vmax.f32 %v1687, 1e-24
  %v1856 = vmax.f32 %v1690, 1e-24
  %v1857 = vmax.f32 %v1693, 1e-24
  %v1858 = vmax.f32 %v1696, 1e-24
  %v1859 = vmax.f32 %v1699, 1e-24
  %v1860 = vmax.f32 %v1702, 1e-24
  %v1861 = vmax.f32 %v1705, 1e-24
  %v1862 = vmax.f32 %v1708, 1e-24
  %v1863 = vmax.f32 %v1711, 1e-24
  %v1864 = vmax.f32 %v1714, 1e-24
  %v1865 = vmax.f32 %v1717, 1e-24
  %v1866 = vmax.f32 %v1720, 1e-24
  %v1867 = vmax.f32 %v1723, 1e-24
  %v1868 = vmax.f32 %v1726, 1e-24
  %v1869 = vmax.f32 %v1729, 1e-24
  %v1870 = vmax.f32 %v1732, 1e-24
  %v1871 = vmax.f32 %v1735, 1e-24
  %v1872 = vmax.f32 %v1738, 1e-24
  %v1873 = vmax.f32 %v1741, 1e-24
  %v1874 = vmax.f32 %v1744, 1e-24
  %v1875 = vmax.f32 %v1747, 1e-24
  %v1876 = vmax.f32 %v1750, 1e-24
  %v1877 = vmax.f32 %v1753, 1e-24
  %v1878 = vmax.f32 %v1756, 1e-24
  %v1879 = vmax.f32 %v1759, 1e-24
  %v1880 = vmax.f32 %v1762, 1e-24
  %v1881 = vmax.f32 %v1765, 1e-24
  %v1882 = vmax.f32 %v1768, 1e-24
  %v1883 = vmax.f32 %v1771, 1e-24
  %v1884 = vmax.f32 %v1774, 1e-24
  %v1885 = vmax.f32 %v1777, 1e-24
  %v1886 = vmax.f32 %v1780, 1e-24
  %v1887 = vmax.f32 %v1783, 1e-24
  %v1888 = vmax.f32 %v1786, 1e-24
  %v1889 = vmax.f32 %v1789, 1e-24
  %v1890 = vmax.f32 %v1792, 1e-24
  %v1891 = vmax.f32 %v1795, 1e-24
  %v1892 = vmax.f32 %v1798, 1e-24
  %v1893 = vmax.f32 %v1801, 1e-24
  %v1894 = vmax.f32 %v1804, 1e-24
  %v1895 = vmax.f32 %v1807, 1e-24
  %v1896 = vmax.f32 %v1810, 1e-24
  %v1897 = vmax.f32 %v1813, 1e-24
  %v1898 = vmax.f32 %v1816, 1e-24
  %v1899 = vmax.f32 %v1819, 1e-24
  %v1900 = vmax.f32 %v1822, 1e-24
  %v1901 = vmax.f32 %v1825, 1e-24
  %v1902 = vmax.f32 %v1828, 1e-24
  %v1903 = vmax.f32 %v1831, 1e-24
  %v1904 = vmax.f32 %v1834, 1e-24
  %v1905 = vmax.f32 %v1837, 1e-24
  %v1906 = vmax.f32 %v1840, 1e-24
  %v1907 = vmax.f32 %v1843, 1e-24
  %v1908 = vrsqrt.pop %v1844
  %v1909 = vrsqrt.pop %v1845
  %v1910 = vrsqrt.pop %v1846
  %v1911 = vrsqrt.pop %v1847
  %v1912 = vrsqrt.pop %v1848
  %v1913 = vrsqrt.pop %v1849
  %v1914 = vrsqrt.pop %v1850
  %v1915 = vrsqrt.pop %v1851
  %v1916 = vrsqrt.pop %v1852
  %v1917 = vrsqrt.pop %v1853
  %v1918 = vrsqrt.pop %v1854
  %v1919 = vrsqrt.pop %v1855
  %v1920 = vrsqrt.pop %v1856
  %v1921 = vrsqrt.pop %v1857
  %v1922 = vrsqrt.pop %v1858
  %v1923 = vrsqrt.pop %v1859
  %v1924 = vrsqrt.pop %v1860
  %v1925 = vrsqrt.pop %v1861
  %v1926 = vrsqrt.pop %v1862
  %v1927 = vrsqrt.pop %v1863
  %v1928 = vrsqrt.pop %v1864
  %v1929 = vrsqrt.pop %v1865
  %v1930 = vrsqrt.pop %v1866
  %v1931 = vrsqrt.pop %v1867
  %v1932 = vrsqrt.pop %v1868
  %v1933 = vrsqrt.pop %v1869
  %v1934 = vrsqrt.pop %v1870
  %v1935 = vrsqrt.pop %v1871
  %v1936 = vrsqrt.pop %v1872
  %v1937 = vrsqrt.pop %v1873
  %v1938 = vrsqrt.pop %v1874
  %v1939 = vrsqrt.pop %v1875
  %v1940 = vrsqrt.pop %v1876
  %v1941 = vrsqrt.pop %v1877
  %v1942 = vrsqrt.pop %v1878
  %v1943 = vrsqrt.pop %v1879
  %v1944 = vrsqrt.pop %v1880
  %v1945 = vrsqrt.pop %v1881
  %v1946 = vrsqrt.pop %v1882
  %v1947 = vrsqrt.pop %v1883
  %v1948 = vrsqrt.pop %v1884
  %v1949 = vrsqrt.pop %v1885
  %v1950 = vrsqrt.pop %v1886
  %v1951 = vrsqrt.pop %v1887
  %v1952 = vrsqrt.pop %v1888
  %v1953 = vrsqrt.pop %v1889
  %v1954 = vrsqrt.pop %v1890
  %v1955 = vrsqrt.pop %v1891
  %v1956 = vrsqrt.pop %v1892
  %v1957 = vrsqrt.pop %v1893
  %v1958 = vrsqrt.pop %v1894
  %v1959 = vrsqrt.pop %v1895
  %v1960 = vrsqrt.pop %v1896
  %v1961 = vrsqrt.pop %v1897
  %v1962 = vrsqrt.pop %v1898
  %v1963 = vrsqrt.pop %v1899
  %v1964 = vrsqrt.pop %v1900
  %v1965 = vrsqrt.pop %v1901
  %v1966 = vrsqrt.pop %v1902
  %v1967 = vrsqrt.pop %v1903
  %v1968 = vrsqrt.pop %v1904
  %v1969 = vrsqrt.pop %v1905
  %v1970 = vrsqrt.pop %v1906
  %v1971 = vrsqrt.pop %v1907
  %v1972 = vmul.f32 %v1012, %v1908
  %v1973 = vmul.f32 %v1013, %v1909
  %v1974 = vmul.f32 %v1014, %v1910
  %v1975 = vmul.f32 %v1015, %v1911
  %v1976 = vmul.f32 %v1016, %v1912
  %v1977 = vmul.f32 %v1017, %v1913
  %v1978 = vmul.f32 %v1018, %v1914
  %v1979 = vmul.f32 %v1019, %v1915
  %v1980 = vmul.f32 %v1020, %v1916
  %v1981 = vmul.f32 %v1021, %v1917
  %v1982 = vmul.f32 %v1022, %v1918
  %v1983 = vmul.f32 %v1023, %v1919
  %v1984 = vmul.f32 %v1024, %v1920
  %v1985 = vmul.f32 %v1025, %v1921
  %v1986 = vmul.f32 %v1026, %v1922
  %v1987 = vmul.f32 %v1027, %v1923
  %v1988 = vmul.f32 %v1028, %v1924
  %v1989 = vmul.f32 %v1029, %v1925
  %v1990 = vmul.f32 %v1030, %v1926
  %v1991 = vmul.f32 %v1031, %v1927
  %v1992 = vmul.f32 %v1032, %v1928
  %v1993 = vmul.f32 %v1033, %v1929
  %v1994 = vmul.f32 %v1034, %v1930
  %v1995 = vmul.f32 %v1035, %v1931
  %v1996 = vmul.f32 %v1036, %v1932
  %v1997 = vmul.f32 %v1037, %v1933
  %v1998 = vmul.f32 %v1038, %v1934
  %v1999 = vmul.f32 %v1039, %v1935
  %v2000 = vmul.f32 %v1040, %v1936
  %v2001 = vmul.f32 %v1041, %v1937
  %v2002 = vmul.f32 %v1042, %v1938
  %v2003 = vmul.f32 %v1043, %v1939
  %v2004 = vmul.f32 %v1044, %v1940
  %v2005 = vmul.f32 %v1045, %v1941
  %v2006 = vmul.f32 %v1046, %v1942
  %v2007 = vmul.f32 %v1047, %v1943
  %v2008 = vmul.f32 %v1048, %v1944
  %v2009 = vmul.f32 %v1049, %v1945
  %v2010 = vmul.f32 %v1050, %v1946
  %v2011 = vmul.f32 %v1051, %v1947
  %v2012 = vmul.f32 %v1052, %v1948
  %v2013 = vmul.f32 %v1053, %v1949
  %v2014 = vmul.f32 %v1054, %v1950
  %v2015 = vmul.f32 %v1055, %v1951
  %v2016 = vmul.f32 %v1056, %v1952
  %v2017 = vmul.f32 %v1057, %v1953
  %v2018 = vmul.f32 %v1058, %v1954
  %v2019 = vmul.f32 %v1059, %v1955
  %v2020 = vmul.f32 %v1060, %v1956
  %v2021 = vmul.f32 %v1061, %v1957
  %v2022 = vmul.f32 %v1062, %v1958
  %v2023 = vmul.f32 %v1063, %v1959
  %v2024 = vmul.f32 %v1064, %v1960
  %v2025 = vmul.f32 %v1065, %v1961
  %v2026 = vmul.f32 %v1066, %v1962
  %v2027 = vmul.f32 %v1067, %v1963
  %v2028 = vmul.f32 %v1068, %v1964
  %v2029 = vmul.f32 %v1069, %v1965
  %v2030 = vmul.f32 %v1070, %v1966
  %v2031 = vmul.f32 %v1071, %v1967
  %v2032 = vmul.f32 %v1072, %v1968
  %v2033 = vmul.f32 %v1073, %v1969
  %v2034 = vmul.f32 %v1074, %v1970
  %v2035 = vmul.f32 %v1075, %v1971
  %v2036 = vld [vmem:[%s6] sm:$0xff]
  %v2037 = vld [vmem:[%s6 + $0x8] sm:$0xff]
  %v2038 = vld [vmem:[%s6 + $0x10] sm:$0xff]
  %v2039 = vld [vmem:[%s6 + $0x18] sm:$0xff]
  %v2044 = vcombine.high %v2036, %v2036
  %v2046 = vunpack.c.l.s4 1966171168
  %v2047 = vunpack.c.0.s8 %v2046
  %v2048 = vlaneseq
  %v2049 = vshrl.u32 %v2048, 7
  %v2050 = vsub.s32 %v2047, %v2049
  %v2051 = vrot.slane %v2036, %v2050
  %v2053 = vunpack.c.l.s4 1966171168
  %v2054 = vunpack.c.0.s8 %v2053
  %v2055 = vlaneseq
  %v2056 = vshrl.u32 %v2055, 7
  %v2057 = vsub.s32 %v2054, %v2056
  %v2058 = vrot.slane %v2044, %v2057
  %v2059 = vcombine.high %v2051, %v2051
  %v2060 = vcombine.high %v2058, %v2058
  %v2062 = vunpack.c.l.s4 1966171168
  %v2063 = vunpack.c.0.s8 %v2062
  %v2064 = vlaneseq
  %v2065 = vshrl.u32 %v2064, 7
  %v2066 = vsub.s32 %v2063, %v2065
  %v2067 = vrot.slane %v2051, %v2066
  %v2069 = vunpack.c.l.s4 1966171168
  %v2070 = vunpack.c.0.s8 %v2069
  %v2071 = vlaneseq
  %v2072 = vshrl.u32 %v2071, 7
  %v2073 = vsub.s32 %v2070, %v2072
  %v2074 = vrot.slane %v2058, %v2073
  %v2076 = vunpack.c.l.s4 1966171168
  %v2077 = vunpack.c.0.s8 %v2076
  %v2078 = vlaneseq
  %v2079 = vshrl.u32 %v2078, 7
  %v2080 = vsub.s32 %v2077, %v2079
  %v2081 = vrot.slane %v2059, %v2080
  %v2083 = vunpack.c.l.s4 1966171168
  %v2084 = vunpack.c.0.s8 %v2083
  %v2085 = vlaneseq
  %v2086 = vshrl.u32 %v2085, 7
  %v2087 = vsub.s32 %v2084, %v2086
  %v2088 = vrot.slane %v2060, %v2087
  %v2089 = vcombine.high %v2067, %v2067
  %v2090 = vcombine.high %v2074, %v2074
  %v2091 = vcombine.high %v2081, %v2081
  %v2092 = vcombine.high %v2088, %v2088
  %v2093 = vcombine.high %v2037, %v2037
  %v2095 = vunpack.c.l.s4 1966171168
  %v2096 = vunpack.c.0.s8 %v2095
  %v2097 = vlaneseq
  %v2098 = vshrl.u32 %v2097, 7
  %v2099 = vsub.s32 %v2096, %v2098
  %v2100 = vrot.slane %v2037, %v2099
  %v2102 = vunpack.c.l.s4 1966171168
  %v2103 = vunpack.c.0.s8 %v2102
  %v2104 = vlaneseq
  %v2105 = vshrl.u32 %v2104, 7
  %v2106 = vsub.s32 %v2103, %v2105
  %v2107 = vrot.slane %v2093, %v2106
  %v2108 = vcombine.high %v2100, %v2100
  %v2109 = vcombine.high %v2107, %v2107
  %v2111 = vunpack.c.l.s4 1966171168
  %v2112 = vunpack.c.0.s8 %v2111
  %v2113 = vlaneseq
  %v2114 = vshrl.u32 %v2113, 7
  %v2115 = vsub.s32 %v2112, %v2114
  %v2116 = vrot.slane %v2100, %v2115
  %v2118 = vunpack.c.l.s4 1966171168
  %v2119 = vunpack.c.0.s8 %v2118
  %v2120 = vlaneseq
  %v2121 = vshrl.u32 %v2120, 7
  %v2122 = vsub.s32 %v2119, %v2121
  %v2123 = vrot.slane %v2107, %v2122
  %v2125 = vunpack.c.l.s4 1966171168
  %v2126 = vunpack.c.0.s8 %v2125
  %v2127 = vlaneseq
  %v2128 = vshrl.u32 %v2127, 7
  %v2129 = vsub.s32 %v2126, %v2128
  %v2130 = vrot.slane %v2108, %v2129
  %v2132 = vunpack.c.l.s4 1966171168
  %v2133 = vunpack.c.0.s8 %v2132
  %v2134 = vlaneseq
  %v2135 = vshrl.u32 %v2134, 7
  %v2136 = vsub.s32 %v2133, %v2135
  %v2137 = vrot.slane %v2109, %v2136
  %v2138 = vcombine.high %v2116, %v2116
  %v2139 = vcombine.high %v2123, %v2123
  %v2140 = vcombine.high %v2130, %v2130
  %v2141 = vcombine.high %v2137, %v2137
  %v2142 = vcombine.high %v2038, %v2038
  %v2144 = vunpack.c.l.s4 1966171168
  %v2145 = vunpack.c.0.s8 %v2144
  %v2146 = vlaneseq
  %v2147 = vshrl.u32 %v2146, 7
  %v2148 = vsub.s32 %v2145, %v2147
  %v2149 = vrot.slane %v2038, %v2148
  %v2151 = vunpack.c.l.s4 1966171168
  %v2152 = vunpack.c.0.s8 %v2151
  %v2153 = vlaneseq
  %v2154 = vshrl.u32 %v2153, 7
  %v2155 = vsub.s32 %v2152, %v2154
  %v2156 = vrot.slane %v2142, %v2155
  %v2157 = vcombine.high %v2149, %v2149
  %v2158 = vcombine.high %v2156, %v2156
  %v2160 = vunpack.c.l.s4 1966171168
  %v2161 = vunpack.c.0.s8 %v2160
  %v2162 = vlaneseq
  %v2163 = vshrl.u32 %v2162, 7
  %v2164 = vsub.s32 %v2161, %v2163
  %v2165 = vrot.slane %v2149, %v2164
  %v2167 = vunpack.c.l.s4 1966171168
  %v2168 = vunpack.c.0.s8 %v2167
  %v2169 = vlaneseq
  %v2170 = vshrl.u32 %v2169, 7
  %v2171 = vsub.s32 %v2168, %v2170
  %v2172 = vrot.slane %v2156, %v2171
  %v2174 = vunpack.c.l.s4 1966171168
  %v2175 = vunpack.c.0.s8 %v2174
  %v2176 = vlaneseq
  %v2177 = vshrl.u32 %v2176, 7
  %v2178 = vsub.s32 %v2175, %v2177
  %v2179 = vrot.slane %v2157, %v2178
  %v2181 = vunpack.c.l.s4 1966171168
  %v2182 = vunpack.c.0.s8 %v2181
  %v2183 = vlaneseq
  %v2184 = vshrl.u32 %v2183, 7
  %v2185 = vsub.s32 %v2182, %v2184
  %v2186 = vrot.slane %v2158, %v2185
  %v2187 = vcombine.high %v2165, %v2165
  %v2188 = vcombine.high %v2172, %v2172
  %v2189 = vcombine.high %v2179, %v2179
  %v2190 = vcombine.high %v2186, %v2186
  %v2191 = vcombine.high %v2039, %v2039
  %v2193 = vunpack.c.l.s4 1966171168
  %v2194 = vunpack.c.0.s8 %v2193
  %v2195 = vlaneseq
  %v2196 = vshrl.u32 %v2195, 7
  %v2197 = vsub.s32 %v2194, %v2196
  %v2198 = vrot.slane %v2039, %v2197
  %v2200 = vunpack.c.l.s4 1966171168
  %v2201 = vunpack.c.0.s8 %v2200
  %v2202 = vlaneseq
  %v2203 = vshrl.u32 %v2202, 7
  %v2204 = vsub.s32 %v2201, %v2203
  %v2205 = vrot.slane %v2191, %v2204
  %v2206 = vcombine.high %v2198, %v2198
  %v2207 = vcombine.high %v2205, %v2205
  %v2209 = vunpack.c.l.s4 1966171168
  %v2210 = vunpack.c.0.s8 %v2209
  %v2211 = vlaneseq
  %v2212 = vshrl.u32 %v2211, 7
  %v2213 = vsub.s32 %v2210, %v2212
  %v2214 = vrot.slane %v2198, %v2213
  %v2216 = vunpack.c.l.s4 1966171168
  %v2217 = vunpack.c.0.s8 %v2216
  %v2218 = vlaneseq
  %v2219 = vshrl.u32 %v2218, 7
  %v2220 = vsub.s32 %v2217, %v2219
  %v2221 = vrot.slane %v2205, %v2220
  %v2223 = vunpack.c.l.s4 1966171168
  %v2224 = vunpack.c.0.s8 %v2223
  %v2225 = vlaneseq
  %v2226 = vshrl.u32 %v2225, 7
  %v2227 = vsub.s32 %v2224, %v2226
  %v2228 = vrot.slane %v2206, %v2227
  %v2230 = vunpack.c.l.s4 1966171168
  %v2231 = vunpack.c.0.s8 %v2230
  %v2232 = vlaneseq
  %v2233 = vshrl.u32 %v2232, 7
  %v2234 = vsub.s32 %v2231, %v2233
  %v2235 = vrot.slane %v2207, %v2234
  %v2236 = vcombine.high %v2214, %v2214
  %v2237 = vcombine.high %v2221, %v2221
  %v2238 = vcombine.high %v2228, %v2228
  %v2239 = vcombine.high %v2235, %v2235
  %v2240 = vlaneseq
  %v2241 = vshrl.u32 %v2240, 7
  %v2242 = vsub.s32 0, %v2241
  %v2243 = vrot.slane %v2067, %v2242
  %v2244 = vlaneseq
  %v2245 = vshrl.u32 %v2244, 7
  %v2246 = vsub.s32 0, %v2245
  %v2247 = vrot.slane %v2081, %v2246
  %v2248 = vlaneseq
  %v2249 = vshrl.u32 %v2248, 7
  %v2250 = vsub.s32 0, %v2249
  %v2251 = vrot.slane %v2089, %v2250
  %v2252 = vlaneseq
  %v2253 = vshrl.u32 %v2252, 7
  %v2254 = vsub.s32 0, %v2253
  %v2255 = vrot.slane %v2091, %v2254
  %v2256 = vlaneseq
  %v2257 = vshrl.u32 %v2256, 7
  %v2258 = vsub.s32 0, %v2257
  %v2259 = vrot.slane %v2074, %v2258
  %v2260 = vlaneseq
  %v2261 = vshrl.u32 %v2260, 7
  %v2262 = vsub.s32 0, %v2261
  %v2263 = vrot.slane %v2088, %v2262
  %v2264 = vlaneseq
  %v2265 = vshrl.u32 %v2264, 7
  %v2266 = vsub.s32 0, %v2265
  %v2267 = vrot.slane %v2090, %v2266
  %v2268 = vlaneseq
  %v2269 = vshrl.u32 %v2268, 7
  %v2270 = vsub.s32 0, %v2269
  %v2271 = vrot.slane %v2092, %v2270
  %v2272 = vlaneseq
  %v2273 = vshrl.u32 %v2272, 7
  %v2274 = vsub.s32 0, %v2273
  %v2275 = vrot.slane %v2116, %v2274
  %v2276 = vlaneseq
  %v2277 = vshrl.u32 %v2276, 7
  %v2278 = vsub.s32 0, %v2277
  %v2279 = vrot.slane %v2130, %v2278
  %v2280 = vlaneseq
  %v2281 = vshrl.u32 %v2280, 7
  %v2282 = vsub.s32 0, %v2281
  %v2283 = vrot.slane %v2138, %v2282
  %v2284 = vlaneseq
  %v2285 = vshrl.u32 %v2284, 7
  %v2286 = vsub.s32 0, %v2285
  %v2287 = vrot.slane %v2140, %v2286
  %v2288 = vlaneseq
  %v2289 = vshrl.u32 %v2288, 7
  %v2290 = vsub.s32 0, %v2289
  %v2291 = vrot.slane %v2123, %v2290
  %v2292 = vlaneseq
  %v2293 = vshrl.u32 %v2292, 7
  %v2294 = vsub.s32 0, %v2293
  %v2295 = vrot.slane %v2137, %v2294
  %v2296 = vlaneseq
  %v2297 = vshrl.u32 %v2296, 7
  %v2298 = vsub.s32 0, %v2297
  %v2299 = vrot.slane %v2139, %v2298
  %v2300 = vlaneseq
  %v2301 = vshrl.u32 %v2300, 7
  %v2302 = vsub.s32 0, %v2301
  %v2303 = vrot.slane %v2141, %v2302
  %v2304 = vlaneseq
  %v2305 = vshrl.u32 %v2304, 7
  %v2306 = vsub.s32 0, %v2305
  %v2307 = vrot.slane %v2165, %v2306
  %v2308 = vlaneseq
  %v2309 = vshrl.u32 %v2308, 7
  %v2310 = vsub.s32 0, %v2309
  %v2311 = vrot.slane %v2179, %v2310
  %v2312 = vlaneseq
  %v2313 = vshrl.u32 %v2312, 7
  %v2314 = vsub.s32 0, %v2313
  %v2315 = vrot.slane %v2187, %v2314
  %v2316 = vlaneseq
  %v2317 = vshrl.u32 %v2316, 7
  %v2318 = vsub.s32 0, %v2317
  %v2319 = vrot.slane %v2189, %v2318
  %v2320 = vlaneseq
  %v2321 = vshrl.u32 %v2320, 7
  %v2322 = vsub.s32 0, %v2321
  %v2323 = vrot.slane %v2172, %v2322
  %v2324 = vlaneseq
  %v2325 = vshrl.u32 %v2324, 7
  %v2326 = vsub.s32 0, %v2325
  %v2327 = vrot.slane %v2186, %v2326
  %v2328 = vlaneseq
  %v2329 = vshrl.u32 %v2328, 7
  %v2330 = vsub.s32 0, %v2329
  %v2331 = vrot.slane %v2188, %v2330
  %v2332 = vlaneseq
  %v2333 = vshrl.u32 %v2332, 7
  %v2334 = vsub.s32 0, %v2333
  %v2335 = vrot.slane %v2190, %v2334
  %v2336 = vlaneseq
  %v2337 = vshrl.u32 %v2336, 7
  %v2338 = vsub.s32 0, %v2337
  %v2339 = vrot.slane %v2214, %v2338
  %v2340 = vlaneseq
  %v2341 = vshrl.u32 %v2340, 7
  %v2342 = vsub.s32 0, %v2341
  %v2343 = vrot.slane %v2228, %v2342
  %v2344 = vlaneseq
  %v2345 = vshrl.u32 %v2344, 7
  %v2346 = vsub.s32 0, %v2345
  %v2347 = vrot.slane %v2236, %v2346
  %v2348 = vlaneseq
  %v2349 = vshrl.u32 %v2348, 7
  %v2350 = vsub.s32 0, %v2349
  %v2351 = vrot.slane %v2238, %v2350
  %v2352 = vlaneseq
  %v2353 = vshrl.u32 %v2352, 7
  %v2354 = vsub.s32 0, %v2353
  %v2355 = vrot.slane %v2221, %v2354
  %v2356 = vlaneseq
  %v2357 = vshrl.u32 %v2356, 7
  %v2358 = vsub.s32 0, %v2357
  %v2359 = vrot.slane %v2235, %v2358
  %v2360 = vlaneseq
  %v2361 = vshrl.u32 %v2360, 7
  %v2362 = vsub.s32 0, %v2361
  %v2363 = vrot.slane %v2237, %v2362
  %v2364 = vlaneseq
  %v2365 = vshrl.u32 %v2364, 7
  %v2366 = vsub.s32 0, %v2365
  %v2367 = vrot.slane %v2239, %v2366
  %2368 = vset.pattern.permute.xlu0 0
  %2369 = vperm.xlu0 %2368, %v2243
  %v2370 = vpop.permute.xlu0 %2369
  %2372 = vset.pattern.permute.xlu0 0
  %2373 = vperm.xlu0 %2372, %v2247
  %v2374 = vpop.permute.xlu0 %2373
  %2376 = vset.pattern.permute.xlu0 0
  %2377 = vperm.xlu0 %2376, %v2251
  %v2378 = vpop.permute.xlu0 %2377
  %2380 = vset.pattern.permute.xlu0 0
  %2381 = vperm.xlu0 %2380, %v2255
  %v2382 = vpop.permute.xlu0 %2381
  %2384 = vset.pattern.permute.xlu0 0
  %2385 = vperm.xlu0 %2384, %v2259
  %v2386 = vpop.permute.xlu0 %2385
  %2388 = vset.pattern.permute.xlu0 0
  %2389 = vperm.xlu0 %2388, %v2263
  %v2390 = vpop.permute.xlu0 %2389
  %2392 = vset.pattern.permute.xlu0 0
  %2393 = vperm.xlu0 %2392, %v2267
  %v2394 = vpop.permute.xlu0 %2393
  %2396 = vset.pattern.permute.xlu0 0
  %2397 = vperm.xlu0 %2396, %v2271
  %v2398 = vpop.permute.xlu0 %2397
  %2400 = vset.pattern.permute.xlu0 0
  %2401 = vperm.xlu0 %2400, %v2275
  %v2402 = vpop.permute.xlu0 %2401
  %2404 = vset.pattern.permute.xlu0 0
  %2405 = vperm.xlu0 %2404, %v2279
  %v2406 = vpop.permute.xlu0 %2405
  %2408 = vset.pattern.permute.xlu0 0
  %2409 = vperm.xlu0 %2408, %v2283
  %v2410 = vpop.permute.xlu0 %2409
  %2412 = vset.pattern.permute.xlu0 0
  %2413 = vperm.xlu0 %2412, %v2287
  %v2414 = vpop.permute.xlu0 %2413
  %2416 = vset.pattern.permute.xlu0 0
  %2417 = vperm.xlu0 %2416, %v2291
  %v2418 = vpop.permute.xlu0 %2417
  %2420 = vset.pattern.permute.xlu0 0
  %2421 = vperm.xlu0 %2420, %v2295
  %v2422 = vpop.permute.xlu0 %2421
  %2424 = vset.pattern.permute.xlu0 0
  %2425 = vperm.xlu0 %2424, %v2299
  %v2426 = vpop.permute.xlu0 %2425
  %2428 = vset.pattern.permute.xlu0 0
  %2429 = vperm.xlu0 %2428, %v2303
  %v2430 = vpop.permute.xlu0 %2429
  %2432 = vset.pattern.permute.xlu0 0
  %2433 = vperm.xlu0 %2432, %v2307
  %v2434 = vpop.permute.xlu0 %2433
  %2436 = vset.pattern.permute.xlu0 0
  %2437 = vperm.xlu0 %2436, %v2311
  %v2438 = vpop.permute.xlu0 %2437
  %2440 = vset.pattern.permute.xlu0 0
  %2441 = vperm.xlu0 %2440, %v2315
  %v2442 = vpop.permute.xlu0 %2441
  %2444 = vset.pattern.permute.xlu0 0
  %2445 = vperm.xlu0 %2444, %v2319
  %v2446 = vpop.permute.xlu0 %2445
  %2448 = vset.pattern.permute.xlu0 0
  %2449 = vperm.xlu0 %2448, %v2323
  %v2450 = vpop.permute.xlu0 %2449
  %2452 = vset.pattern.permute.xlu0 0
  %2453 = vperm.xlu0 %2452, %v2327
  %v2454 = vpop.permute.xlu0 %2453
  %2456 = vset.pattern.permute.xlu0 0
  %2457 = vperm.xlu0 %2456, %v2331
  %v2458 = vpop.permute.xlu0 %2457
  %2460 = vset.pattern.permute.xlu0 0
  %2461 = vperm.xlu0 %2460, %v2335
  %v2462 = vpop.permute.xlu0 %2461
  %2464 = vset.pattern.permute.xlu0 0
  %2465 = vperm.xlu0 %2464, %v2339
  %v2466 = vpop.permute.xlu0 %2465
  %2468 = vset.pattern.permute.xlu0 0
  %2469 = vperm.xlu0 %2468, %v2343
  %v2470 = vpop.permute.xlu0 %2469
  %2472 = vset.pattern.permute.xlu0 0
  %2473 = vperm.xlu0 %2472, %v2347
  %v2474 = vpop.permute.xlu0 %2473
  %2476 = vset.pattern.permute.xlu0 0
  %2477 = vperm.xlu0 %2476, %v2351
  %v2478 = vpop.permute.xlu0 %2477
  %2480 = vset.pattern.permute.xlu0 0
  %2481 = vperm.xlu0 %2480, %v2355
  %v2482 = vpop.permute.xlu0 %2481
  %2484 = vset.pattern.permute.xlu0 0
  %2485 = vperm.xlu0 %2484, %v2359
  %v2486 = vpop.permute.xlu0 %2485
  %2488 = vset.pattern.permute.xlu0 0
  %2489 = vperm.xlu0 %2488, %v2363
  %v2490 = vpop.permute.xlu0 %2489
  %2492 = vset.pattern.permute.xlu0 0
  %2493 = vperm.xlu0 %2492, %v2367
  %v2494 = vpop.permute.xlu0 %2493
  %v2496 = vmul.f32 %v1524, %v2370
  %v2497 = vmul.f32 %v1525, %v2370
  %v2498 = vmul.f32 %v1526, %v2374
  %v2499 = vmul.f32 %v1527, %v2374
  %v2500 = vmul.f32 %v1528, %v2378
  %v2501 = vmul.f32 %v1529, %v2378
  %v2502 = vmul.f32 %v1530, %v2382
  %v2503 = vmul.f32 %v1531, %v2382
  %v2504 = vmul.f32 %v1532, %v2386
  %v2505 = vmul.f32 %v1533, %v2386
  %v2506 = vmul.f32 %v1534, %v2390
  %v2507 = vmul.f32 %v1535, %v2390
  %v2508 = vmul.f32 %v1536, %v2394
  %v2509 = vmul.f32 %v1537, %v2394
  %v2510 = vmul.f32 %v1538, %v2398
  %v2511 = vmul.f32 %v1539, %v2398
  %v2512 = vmul.f32 %v1540, %v2402
  %v2513 = vmul.f32 %v1541, %v2402
  %v2514 = vmul.f32 %v1542, %v2406
  %v2515 = vmul.f32 %v1543, %v2406
  %v2516 = vmul.f32 %v1544, %v2410
  %v2517 = vmul.f32 %v1545, %v2410
  %v2518 = vmul.f32 %v1546, %v2414
  %v2519 = vmul.f32 %v1547, %v2414
  %v2520 = vmul.f32 %v1548, %v2418
  %v2521 = vmul.f32 %v1549, %v2418
  %v2522 = vmul.f32 %v1550, %v2422
  %v2523 = vmul.f32 %v1551, %v2422
  %v2524 = vmul.f32 %v1552, %v2426
  %v2525 = vmul.f32 %v1553, %v2426
  %v2526 = vmul.f32 %v1554, %v2430
  %v2527 = vmul.f32 %v1555, %v2430
  %v2528 = vmul.f32 %v1556, %v2434
  %v2529 = vmul.f32 %v1557, %v2434
  %v2530 = vmul.f32 %v1558, %v2438
  %v2531 = vmul.f32 %v1559, %v2438
  %v2532 = vmul.f32 %v1560, %v2442
  %v2533 = vmul.f32 %v1561, %v2442
  %v2534 = vmul.f32 %v1562, %v2446
  %v2535 = vmul.f32 %v1563, %v2446
  %v2536 = vmul.f32 %v1564, %v2450
  %v2537 = vmul.f32 %v1565, %v2450
  %v2538 = vmul.f32 %v1566, %v2454
  %v2539 = vmul.f32 %v1567, %v2454
  %v2540 = vmul.f32 %v1568, %v2458
  %v2541 = vmul.f32 %v1569, %v2458
  %v2542 = vmul.f32 %v1570, %v2462
  %v2543 = vmul.f32 %v1571, %v2462
  %v2544 = vmul.f32 %v1572, %v2466
  %v2545 = vmul.f32 %v1573, %v2466
  %v2546 = vmul.f32 %v1574, %v2470
  %v2547 = vmul.f32 %v1575, %v2470
  %v2548 = vmul.f32 %v1576, %v2474
  %v2549 = vmul.f32 %v1577, %v2474
  %v2550 = vmul.f32 %v1578, %v2478
  %v2551 = vmul.f32 %v1579, %v2478
  %v2552 = vmul.f32 %v1580, %v2482
  %v2553 = vmul.f32 %v1581, %v2482
  %v2554 = vmul.f32 %v1582, %v2486
  %v2555 = vmul.f32 %v1583, %v2486
  %v2556 = vmul.f32 %v1584, %v2490
  %v2557 = vmul.f32 %v1585, %v2490
  %v2558 = vmul.f32 %v1586, %v2494
  %v2559 = vmul.f32 %v1587, %v2494
  %v2560 = vpack.c.bf16 %v2497, %v2496
  %v2561 = vpack.c.bf16 %v2499, %v2498
  %v2562 = vpack.c.bf16 %v2501, %v2500
  %v2563 = vpack.c.bf16 %v2503, %v2502
  %v2564 = vpack.c.bf16 %v2505, %v2504
  %v2565 = vpack.c.bf16 %v2507, %v2506
  %v2566 = vpack.c.bf16 %v2509, %v2508
  %v2567 = vpack.c.bf16 %v2511, %v2510
  %v2568 = vpack.c.bf16 %v2513, %v2512
  %v2569 = vpack.c.bf16 %v2515, %v2514
  %v2570 = vpack.c.bf16 %v2517, %v2516
  %v2571 = vpack.c.bf16 %v2519, %v2518
  %v2572 = vpack.c.bf16 %v2521, %v2520
  %v2573 = vpack.c.bf16 %v2523, %v2522
  %v2574 = vpack.c.bf16 %v2525, %v2524
  %v2575 = vpack.c.bf16 %v2527, %v2526
  %v2576 = vpack.c.bf16 %v2529, %v2528
  %v2577 = vpack.c.bf16 %v2531, %v2530
  %v2578 = vpack.c.bf16 %v2533, %v2532
  %v2579 = vpack.c.bf16 %v2535, %v2534
  %v2580 = vpack.c.bf16 %v2537, %v2536
  %v2581 = vpack.c.bf16 %v2539, %v2538
  %v2582 = vpack.c.bf16 %v2541, %v2540
  %v2583 = vpack.c.bf16 %v2543, %v2542
  %v2584 = vpack.c.bf16 %v2545, %v2544
  %v2585 = vpack.c.bf16 %v2547, %v2546
  %v2586 = vpack.c.bf16 %v2549, %v2548
  %v2587 = vpack.c.bf16 %v2551, %v2550
  %v2588 = vpack.c.bf16 %v2553, %v2552
  %v2589 = vpack.c.bf16 %v2555, %v2554
  %v2590 = vpack.c.bf16 %v2557, %v2556
  %v2591 = vpack.c.bf16 %v2559, %v2558
  %v2592 = vpack.c.bf16 %v1973, %v1972
  %v2593 = vpack.c.bf16 %v1975, %v1974
  %v2594 = vpack.c.bf16 %v1977, %v1976
  %v2595 = vpack.c.bf16 %v1979, %v1978
  %v2596 = vpack.c.bf16 %v1981, %v1980
  %v2597 = vpack.c.bf16 %v1983, %v1982
  %v2598 = vpack.c.bf16 %v1985, %v1984
  %v2599 = vpack.c.bf16 %v1987, %v1986
  %v2600 = vpack.c.bf16 %v1989, %v1988
  %v2601 = vpack.c.bf16 %v1991, %v1990
  %v2602 = vpack.c.bf16 %v1993, %v1992
  %v2603 = vpack.c.bf16 %v1995, %v1994
  %v2604 = vpack.c.bf16 %v1997, %v1996
  %v2605 = vpack.c.bf16 %v1999, %v1998
  %v2606 = vpack.c.bf16 %v2001, %v2000
  %v2607 = vpack.c.bf16 %v2003, %v2002
  %v2608 = vpack.c.bf16 %v2005, %v2004
  %v2609 = vpack.c.bf16 %v2007, %v2006
  %v2610 = vpack.c.bf16 %v2009, %v2008
  %v2611 = vpack.c.bf16 %v2011, %v2010
  %v2612 = vpack.c.bf16 %v2013, %v2012
  %v2613 = vpack.c.bf16 %v2015, %v2014
  %v2614 = vpack.c.bf16 %v2017, %v2016
  %v2615 = vpack.c.bf16 %v2019, %v2018
  %v2616 = vpack.c.bf16 %v2021, %v2020
  %v2617 = vpack.c.bf16 %v2023, %v2022
  %v2618 = vpack.c.bf16 %v2025, %v2024
  %v2619 = vpack.c.bf16 %v2027, %v2026
  %v2620 = vpack.c.bf16 %v2029, %v2028
  %v2621 = vpack.c.bf16 %v2031, %v2030
  %v2622 = vpack.c.bf16 %v2033, %v2032
  %v2623 = vpack.c.bf16 %v2035, %v2034
  %v2625 = vsel %vm200, %v2560, 0
  %v2628 = vsel %vm200, %v2592, 0
  %2630 = vmatprep.subr.bf16.mxu0 0
  %2631 = vmatpush1.bf16.xpose.msra.mxu0 0
  %2632 = vmatprep.subr.bf16.mxu0 0
  %2633 = vmatpush1.bf16.xpose.msra.mxu0 0
  %2634 = vmatprep.subr.bf16.mxu0 0
  %2635 = vmatpush1.bf16.xpose.msra.mxu0 0
  %2636 = vmatprep.subr.bf16.mxu0 0
  %2637 = vmatpush1.bf16.xpose.msra.mxu0 0
  %2638 = vmatprep.subr.bf16.mxu0 0
  %2639 = vmatpush1.bf16.xpose.msra.mxu0 0
  %2640 = vmatprep.subr.bf16.mxu0 0
  %2641 = vmatpush1.bf16.xpose.msra.mxu0 0
  %2642 = vmatprep.subr.bf16.mxu0 0
  %2643 = vmatpush1.bf16.xpose.msra.mxu0 0
  %2644 = vmatprep.subr.bf16.mxu0 0
  %2645 = vmatpush1.bf16.xpose.msra.mxu0 %v2628
  %2646 = vmatprep.subr.bf16.mxu0 0
  %2647 = vmatpush2.bf16.xpose.msra.mxu0 0
  %2648 = vmatprep.subr.bf16.mxu0 0
  %2649 = vmatpush2.bf16.xpose.msra.mxu0 0
  %2650 = vmatprep.subr.bf16.mxu0 0
  %2651 = vmatpush2.bf16.xpose.msra.mxu0 0
  %2652 = vmatprep.subr.bf16.mxu0 0
  %2653 = vmatpush2.bf16.xpose.msra.mxu0 0
  %2654 = vmatprep.subr.bf16.mxu0 0
  %2655 = vmatpush2.bf16.xpose.msra.mxu0 0
  %2656 = vmatprep.subr.bf16.mxu0 0
  %2657 = vmatpush2.bf16.xpose.msra.mxu0 0
  %2658 = vmatprep.subr.bf16.mxu0 0
  %2659 = vmatpush2.bf16.xpose.msra.mxu0 0
  %2660 = vmatprep.subr.bf16.mxu0 0
  %2661 = vmatpush2.bf16.xpose.msra.mxu0 0
  %2662 = vmatprep.mubr.bf16.mxu0 0
  %2663 = vmatmul.mubr.bf16.gmra.mxu0 %v2625
  %v2664 = vpop.f32.mrf.mxu0
  %v2665 = vadd.f32 0.0, %v2664
  %v2666 = vpop.f32.mrf.mxu0
  %v2667 = vpop.f32.mrf.mxu0
  %v2668 = vadd.f32 0.0, %v2667
  %v2669 = vpop.f32.mrf.mxu0
  %2670 = vdwg.mxu0
  %v2672 = vsel %vm200, %v2561, 0
  %v2675 = vsel %vm200, %v2593, 0
  %2677 = vmatprep.subr.bf16.mxu0 0
  %2678 = vmatpush1.bf16.xpose.msra.mxu0 0
  %2679 = vmatprep.subr.bf16.mxu0 0
  %2680 = vmatpush1.bf16.xpose.msra.mxu0 0
  %2681 = vmatprep.subr.bf16.mxu0 0
  %2682 = vmatpush1.bf16.xpose.msra.mxu0 0
  %2683 = vmatprep.subr.bf16.mxu0 0
  %2684 = vmatpush1.bf16.xpose.msra.mxu0 0
  %2685 = vmatprep.subr.bf16.mxu0 0
  %2686 = vmatpush1.bf16.xpose.msra.mxu0 0
  %2687 = vmatprep.subr.bf16.mxu0 0
  %2688 = vmatpush1.bf16.xpose.msra.mxu0 0
  %2689 = vmatprep.subr.bf16.mxu0 0
  %2690 = vmatpush1.bf16.xpose.msra.mxu0 0
  %2691 = vmatprep.subr.bf16.mxu0 0
  %2692 = vmatpush1.bf16.xpose.msra.mxu0 %v2675
  %2693 = vmatprep.subr.bf16.mxu0 0
  %2694 = vmatpush2.bf16.xpose.msra.mxu0 0
  %2695 = vmatprep.subr.bf16.mxu0 0
  %2696 = vmatpush2.bf16.xpose.msra.mxu0 0
  %2697 = vmatprep.subr.bf16.mxu0 0
  %2698 = vmatpush2.bf16.xpose.msra.mxu0 0
  %2699 = vmatprep.subr.bf16.mxu0 0
  %2700 = vmatpush2.bf16.xpose.msra.mxu0 0
  %2701 = vmatprep.subr.bf16.mxu0 0
  %2702 = vmatpush2.bf16.xpose.msra.mxu0 0
  %2703 = vmatprep.subr.bf16.mxu0 0
  %2704 = vmatpush2.bf16.xpose.msra.mxu0 0
  %2705 = vmatprep.subr.bf16.mxu0 0
  %2706 = vmatpush2.bf16.xpose.msra.mxu0 0
  %2707 = vmatprep.subr.bf16.mxu0 0
  %2708 = vmatpush2.bf16.xpose.msra.mxu0 0
  %2709 = vmatprep.mubr.bf16.mxu0 0
  %2710 = vmatmul.mubr.bf16.gmra.mxu0 %v2672
  %v2711 = vpop.f32.mrf.mxu0
  %v2712 = vadd.f32 0.0, %v2711
  %v2713 = vpop.f32.mrf.mxu0
  %v2714 = vpop.f32.mrf.mxu0
  %v2715 = vadd.f32 0.0, %v2714
  %v2716 = vpop.f32.mrf.mxu0
  %2717 = vdwg.mxu0
  %v2719 = vsel %vm200, %v2562, 0
  %v2722 = vsel %vm200, %v2594, 0
  %2724 = vmatprep.subr.bf16.mxu0 0
  %2725 = vmatpush1.bf16.xpose.msra.mxu0 0
  %2726 = vmatprep.subr.bf16.mxu0 0
  %2727 = vmatpush1.bf16.xpose.msra.mxu0 0
  %2728 = vmatprep.subr.bf16.mxu0 0
  %2729 = vmatpush1.bf16.xpose.msra.mxu0 0
  %2730 = vmatprep.subr.bf16.mxu0 0
  %2731 = vmatpush1.bf16.xpose.msra.mxu0 0
  %2732 = vmatprep.subr.bf16.mxu0 0
  %2733 = vmatpush1.bf16.xpose.msra.mxu0 0
  %2734 = vmatprep.subr.bf16.mxu0 0
  %2735 = vmatpush1.bf16.xpose.msra.mxu0 0
  %2736 = vmatprep.subr.bf16.mxu0 0
  %2737 = vmatpush1.bf16.xpose.msra.mxu0 0
  %2738 = vmatprep.subr.bf16.mxu0 0
  %2739 = vmatpush1.bf16.xpose.msra.mxu0 %v2722
  %2740 = vmatprep.subr.bf16.mxu0 0
  %2741 = vmatpush2.bf16.xpose.msra.mxu0 0
  %2742 = vmatprep.subr.bf16.mxu0 0
  %2743 = vmatpush2.bf16.xpose.msra.mxu0 0
  %2744 = vmatprep.subr.bf16.mxu0 0
  %2745 = vmatpush2.bf16.xpose.msra.mxu0 0
  %2746 = vmatprep.subr.bf16.mxu0 0
  %2747 = vmatpush2.bf16.xpose.msra.mxu0 0
  %2748 = vmatprep.subr.bf16.mxu0 0
  %2749 = vmatpush2.bf16.xpose.msra.mxu0 0
  %2750 = vmatprep.subr.bf16.mxu0 0
  %2751 = vmatpush2.bf16.xpose.msra.mxu0 0
  %2752 = vmatprep.subr.bf16.mxu0 0
  %2753 = vmatpush2.bf16.xpose.msra.mxu0 0
  %2754 = vmatprep.subr.bf16.mxu0 0
  %2755 = vmatpush2.bf16.xpose.msra.mxu0 0
  %2756 = vmatprep.mubr.bf16.mxu0 0
  %2757 = vmatmul.mubr.bf16.gmra.mxu0 %v2719
  %v2758 = vpop.f32.mrf.mxu0
  %v2759 = vadd.f32 0.0, %v2758
  %v2760 = vpop.f32.mrf.mxu0
  %v2761 = vpop.f32.mrf.mxu0
  %v2762 = vadd.f32 0.0, %v2761
  %v2763 = vpop.f32.mrf.mxu0
  %2764 = vdwg.mxu0
  %v2766 = vsel %vm200, %v2563, 0
  %v2769 = vsel %vm200, %v2595, 0
  %2771 = vmatprep.subr.bf16.mxu0 0
  %2772 = vmatpush1.bf16.xpose.msra.mxu0 0
  %2773 = vmatprep.subr.bf16.mxu0 0
  %2774 = vmatpush1.bf16.xpose.msra.mxu0 0
  %2775 = vmatprep.subr.bf16.mxu0 0
  %2776 = vmatpush1.bf16.xpose.msra.mxu0 0
  %2777 = vmatprep.subr.bf16.mxu0 0
  %2778 = vmatpush1.bf16.xpose.msra.mxu0 0
  %2779 = vmatprep.subr.bf16.mxu0 0
  %2780 = vmatpush1.bf16.xpose.msra.mxu0 0
  %2781 = vmatprep.subr.bf16.mxu0 0
  %2782 = vmatpush1.bf16.xpose.msra.mxu0 0
  %2783 = vmatprep.subr.bf16.mxu0 0
  %2784 = vmatpush1.bf16.xpose.msra.mxu0 0
  %2785 = vmatprep.subr.bf16.mxu0 0
  %2786 = vmatpush1.bf16.xpose.msra.mxu0 %v2769
  %2787 = vmatprep.subr.bf16.mxu0 0
  %2788 = vmatpush2.bf16.xpose.msra.mxu0 0
  %2789 = vmatprep.subr.bf16.mxu0 0
  %2790 = vmatpush2.bf16.xpose.msra.mxu0 0
  %2791 = vmatprep.subr.bf16.mxu0 0
  %2792 = vmatpush2.bf16.xpose.msra.mxu0 0
  %2793 = vmatprep.subr.bf16.mxu0 0
  %2794 = vmatpush2.bf16.xpose.msra.mxu0 0
  %2795 = vmatprep.subr.bf16.mxu0 0
  %2796 = vmatpush2.bf16.xpose.msra.mxu0 0
  %2797 = vmatprep.subr.bf16.mxu0 0
  %2798 = vmatpush2.bf16.xpose.msra.mxu0 0
  %2799 = vmatprep.subr.bf16.mxu0 0
  %2800 = vmatpush2.bf16.xpose.msra.mxu0 0
  %2801 = vmatprep.subr.bf16.mxu0 0
  %2802 = vmatpush2.bf16.xpose.msra.mxu0 0
  %2803 = vmatprep.mubr.bf16.mxu0 0
  %2804 = vmatmul.mubr.bf16.gmra.mxu0 %v2766
  %v2805 = vpop.f32.mrf.mxu0
  %v2806 = vadd.f32 0.0, %v2805
  %v2807 = vpop.f32.mrf.mxu0
  %v2808 = vpop.f32.mrf.mxu0
  %v2809 = vadd.f32 0.0, %v2808
  %v2810 = vpop.f32.mrf.mxu0
  %2811 = vdwg.mxu0
  %v2813 = vsel %vm200, %v2564, 0
  %v2816 = vsel %vm200, %v2596, 0
  %2818 = vmatprep.subr.bf16.mxu0 0
  %2819 = vmatpush1.bf16.xpose.msra.mxu0 0
  %2820 = vmatprep.subr.bf16.mxu0 0
  %2821 = vmatpush1.bf16.xpose.msra.mxu0 0
  %2822 = vmatprep.subr.bf16.mxu0 0
  %2823 = vmatpush1.bf16.xpose.msra.mxu0 0
  %2824 = vmatprep.subr.bf16.mxu0 0
  %2825 = vmatpush1.bf16.xpose.msra.mxu0 0
  %2826 = vmatprep.subr.bf16.mxu0 0
  %2827 = vmatpush1.bf16.xpose.msra.mxu0 0
  %2828 = vmatprep.subr.bf16.mxu0 0
  %2829 = vmatpush1.bf16.xpose.msra.mxu0 0
  %2830 = vmatprep.subr.bf16.mxu0 0
  %2831 = vmatpush1.bf16.xpose.msra.mxu0 0
  %2832 = vmatprep.subr.bf16.mxu0 0
  %2833 = vmatpush1.bf16.xpose.msra.mxu0 %v2816
  %2834 = vmatprep.subr.bf16.mxu0 0
  %2835 = vmatpush2.bf16.xpose.msra.mxu0 0
  %2836 = vmatprep.subr.bf16.mxu0 0
  %2837 = vmatpush2.bf16.xpose.msra.mxu0 0
  %2838 = vmatprep.subr.bf16.mxu0 0
  %2839 = vmatpush2.bf16.xpose.msra.mxu0 0
  %2840 = vmatprep.subr.bf16.mxu0 0
  %2841 = vmatpush2.bf16.xpose.msra.mxu0 0
  %2842 = vmatprep.subr.bf16.mxu0 0
  %2843 = vmatpush2.bf16.xpose.msra.mxu0 0
  %2844 = vmatprep.subr.bf16.mxu0 0
  %2845 = vmatpush2.bf16.xpose.msra.mxu0 0
  %2846 = vmatprep.subr.bf16.mxu0 0
  %2847 = vmatpush2.bf16.xpose.msra.mxu0 0
  %2848 = vmatprep.subr.bf16.mxu0 0
  %2849 = vmatpush2.bf16.xpose.msra.mxu0 0
  %2850 = vmatprep.mubr.bf16.mxu0 0
  %2851 = vmatmul.mubr.bf16.gmra.mxu0 %v2813
  %v2852 = vpop.f32.mrf.mxu0
  %v2853 = vadd.f32 0.0, %v2852
  %v2854 = vpop.f32.mrf.mxu0
  %v2855 = vpop.f32.mrf.mxu0
  %v2856 = vadd.f32 0.0, %v2855
  %v2857 = vpop.f32.mrf.mxu0
  %2858 = vdwg.mxu0
  %v2860 = vsel %vm200, %v2565, 0
  %v2863 = vsel %vm200, %v2597, 0
  %2865 = vmatprep.subr.bf16.mxu0 0
  %2866 = vmatpush1.bf16.xpose.msra.mxu0 0
  %2867 = vmatprep.subr.bf16.mxu0 0
  %2868 = vmatpush1.bf16.xpose.msra.mxu0 0
  %2869 = vmatprep.subr.bf16.mxu0 0
  %2870 = vmatpush1.bf16.xpose.msra.mxu0 0
  %2871 = vmatprep.subr.bf16.mxu0 0
  %2872 = vmatpush1.bf16.xpose.msra.mxu0 0
  %2873 = vmatprep.subr.bf16.mxu0 0
  %2874 = vmatpush1.bf16.xpose.msra.mxu0 0
  %2875 = vmatprep.subr.bf16.mxu0 0
  %2876 = vmatpush1.bf16.xpose.msra.mxu0 0
  %2877 = vmatprep.subr.bf16.mxu0 0
  %2878 = vmatpush1.bf16.xpose.msra.mxu0 0
  %2879 = vmatprep.subr.bf16.mxu0 0
  %2880 = vmatpush1.bf16.xpose.msra.mxu0 %v2863
  %2881 = vmatprep.subr.bf16.mxu0 0
  %2882 = vmatpush2.bf16.xpose.msra.mxu0 0
  %2883 = vmatprep.subr.bf16.mxu0 0
  %2884 = vmatpush2.bf16.xpose.msra.mxu0 0
  %2885 = vmatprep.subr.bf16.mxu0 0
  %2886 = vmatpush2.bf16.xpose.msra.mxu0 0
  %2887 = vmatprep.subr.bf16.mxu0 0
  %2888 = vmatpush2.bf16.xpose.msra.mxu0 0
  %2889 = vmatprep.subr.bf16.mxu0 0
  %2890 = vmatpush2.bf16.xpose.msra.mxu0 0
  %2891 = vmatprep.subr.bf16.mxu0 0
  %2892 = vmatpush2.bf16.xpose.msra.mxu0 0
  %2893 = vmatprep.subr.bf16.mxu0 0
  %2894 = vmatpush2.bf16.xpose.msra.mxu0 0
  %2895 = vmatprep.subr.bf16.mxu0 0
  %2896 = vmatpush2.bf16.xpose.msra.mxu0 0
  %2897 = vmatprep.mubr.bf16.mxu0 0
  %2898 = vmatmul.mubr.bf16.gmra.mxu0 %v2860
  %v2899 = vpop.f32.mrf.mxu0
  %v2900 = vadd.f32 0.0, %v2899
  %v2901 = vpop.f32.mrf.mxu0
  %v2902 = vpop.f32.mrf.mxu0
  %v2903 = vadd.f32 0.0, %v2902
  %v2904 = vpop.f32.mrf.mxu0
  %2905 = vdwg.mxu0
  %v2907 = vsel %vm200, %v2566, 0
  %v2910 = vsel %vm200, %v2598, 0
  %2912 = vmatprep.subr.bf16.mxu0 0
  %2913 = vmatpush1.bf16.xpose.msra.mxu0 0
  %2914 = vmatprep.subr.bf16.mxu0 0
  %2915 = vmatpush1.bf16.xpose.msra.mxu0 0
  %2916 = vmatprep.subr.bf16.mxu0 0
  %2917 = vmatpush1.bf16.xpose.msra.mxu0 0
  %2918 = vmatprep.subr.bf16.mxu0 0
  %2919 = vmatpush1.bf16.xpose.msra.mxu0 0
  %2920 = vmatprep.subr.bf16.mxu0 0
  %2921 = vmatpush1.bf16.xpose.msra.mxu0 0
  %2922 = vmatprep.subr.bf16.mxu0 0
  %2923 = vmatpush1.bf16.xpose.msra.mxu0 0
  %2924 = vmatprep.subr.bf16.mxu0 0
  %2925 = vmatpush1.bf16.xpose.msra.mxu0 0
  %2926 = vmatprep.subr.bf16.mxu0 0
  %2927 = vmatpush1.bf16.xpose.msra.mxu0 %v2910
  %2928 = vmatprep.subr.bf16.mxu0 0
  %2929 = vmatpush2.bf16.xpose.msra.mxu0 0
  %2930 = vmatprep.subr.bf16.mxu0 0
  %2931 = vmatpush2.bf16.xpose.msra.mxu0 0
  %2932 = vmatprep.subr.bf16.mxu0 0
  %2933 = vmatpush2.bf16.xpose.msra.mxu0 0
  %2934 = vmatprep.subr.bf16.mxu0 0
  %2935 = vmatpush2.bf16.xpose.msra.mxu0 0
  %2936 = vmatprep.subr.bf16.mxu0 0
  %2937 = vmatpush2.bf16.xpose.msra.mxu0 0
  %2938 = vmatprep.subr.bf16.mxu0 0
  %2939 = vmatpush2.bf16.xpose.msra.mxu0 0
  %2940 = vmatprep.subr.bf16.mxu0 0
  %2941 = vmatpush2.bf16.xpose.msra.mxu0 0
  %2942 = vmatprep.subr.bf16.mxu0 0
  %2943 = vmatpush2.bf16.xpose.msra.mxu0 0
  %2944 = vmatprep.mubr.bf16.mxu0 0
  %2945 = vmatmul.mubr.bf16.gmra.mxu0 %v2907
  %v2946 = vpop.f32.mrf.mxu0
  %v2947 = vadd.f32 0.0, %v2946
  %v2948 = vpop.f32.mrf.mxu0
  %v2949 = vpop.f32.mrf.mxu0
  %v2950 = vadd.f32 0.0, %v2949
  %v2951 = vpop.f32.mrf.mxu0
  %2952 = vdwg.mxu0
  %v2954 = vsel %vm200, %v2567, 0
  %v2957 = vsel %vm200, %v2599, 0
  %2959 = vmatprep.subr.bf16.mxu0 0
  %2960 = vmatpush1.bf16.xpose.msra.mxu0 0
  %2961 = vmatprep.subr.bf16.mxu0 0
  %2962 = vmatpush1.bf16.xpose.msra.mxu0 0
  %2963 = vmatprep.subr.bf16.mxu0 0
  %2964 = vmatpush1.bf16.xpose.msra.mxu0 0
  %2965 = vmatprep.subr.bf16.mxu0 0
  %2966 = vmatpush1.bf16.xpose.msra.mxu0 0
  %2967 = vmatprep.subr.bf16.mxu0 0
  %2968 = vmatpush1.bf16.xpose.msra.mxu0 0
  %2969 = vmatprep.subr.bf16.mxu0 0
  %2970 = vmatpush1.bf16.xpose.msra.mxu0 0
  %2971 = vmatprep.subr.bf16.mxu0 0
  %2972 = vmatpush1.bf16.xpose.msra.mxu0 0
  %2973 = vmatprep.subr.bf16.mxu0 0
  %2974 = vmatpush1.bf16.xpose.msra.mxu0 %v2957
  %2975 = vmatprep.subr.bf16.mxu0 0
  %2976 = vmatpush2.bf16.xpose.msra.mxu0 0
  %2977 = vmatprep.subr.bf16.mxu0 0
  %2978 = vmatpush2.bf16.xpose.msra.mxu0 0
  %2979 = vmatprep.subr.bf16.mxu0 0
  %2980 = vmatpush2.bf16.xpose.msra.mxu0 0
  %2981 = vmatprep.subr.bf16.mxu0 0
  %2982 = vmatpush2.bf16.xpose.msra.mxu0 0
  %2983 = vmatprep.subr.bf16.mxu0 0
  %2984 = vmatpush2.bf16.xpose.msra.mxu0 0
  %2985 = vmatprep.subr.bf16.mxu0 0
  %2986 = vmatpush2.bf16.xpose.msra.mxu0 0
  %2987 = vmatprep.subr.bf16.mxu0 0
  %2988 = vmatpush2.bf16.xpose.msra.mxu0 0
  %2989 = vmatprep.subr.bf16.mxu0 0
  %2990 = vmatpush2.bf16.xpose.msra.mxu0 0
  %2991 = vmatprep.mubr.bf16.mxu0 0
  %2992 = vmatmul.mubr.bf16.gmra.mxu0 %v2954
  %v2993 = vpop.f32.mrf.mxu0
  %v2994 = vadd.f32 0.0, %v2993
  %v2995 = vpop.f32.mrf.mxu0
  %v2996 = vpop.f32.mrf.mxu0
  %v2997 = vadd.f32 0.0, %v2996
  %v2998 = vpop.f32.mrf.mxu0
  %2999 = vdwg.mxu0
  %v3001 = vsel %vm200, %v2568, 0
  %v3004 = vsel %vm200, %v2600, 0
  %3006 = vmatprep.subr.bf16.mxu0 0
  %3007 = vmatpush1.bf16.xpose.msra.mxu0 0
  %3008 = vmatprep.subr.bf16.mxu0 0
  %3009 = vmatpush1.bf16.xpose.msra.mxu0 0
  %3010 = vmatprep.subr.bf16.mxu0 0
  %3011 = vmatpush1.bf16.xpose.msra.mxu0 0
  %3012 = vmatprep.subr.bf16.mxu0 0
  %3013 = vmatpush1.bf16.xpose.msra.mxu0 0
  %3014 = vmatprep.subr.bf16.mxu0 0
  %3015 = vmatpush1.bf16.xpose.msra.mxu0 0
  %3016 = vmatprep.subr.bf16.mxu0 0
  %3017 = vmatpush1.bf16.xpose.msra.mxu0 0
  %3018 = vmatprep.subr.bf16.mxu0 0
  %3019 = vmatpush1.bf16.xpose.msra.mxu0 0
  %3020 = vmatprep.subr.bf16.mxu0 0
  %3021 = vmatpush1.bf16.xpose.msra.mxu0 %v3004
  %3022 = vmatprep.subr.bf16.mxu0 0
  %3023 = vmatpush2.bf16.xpose.msra.mxu0 0
  %3024 = vmatprep.subr.bf16.mxu0 0
  %3025 = vmatpush2.bf16.xpose.msra.mxu0 0
  %3026 = vmatprep.subr.bf16.mxu0 0
  %3027 = vmatpush2.bf16.xpose.msra.mxu0 0
  %3028 = vmatprep.subr.bf16.mxu0 0
  %3029 = vmatpush2.bf16.xpose.msra.mxu0 0
  %3030 = vmatprep.subr.bf16.mxu0 0
  %3031 = vmatpush2.bf16.xpose.msra.mxu0 0
  %3032 = vmatprep.subr.bf16.mxu0 0
  %3033 = vmatpush2.bf16.xpose.msra.mxu0 0
  %3034 = vmatprep.subr.bf16.mxu0 0
  %3035 = vmatpush2.bf16.xpose.msra.mxu0 0
  %3036 = vmatprep.subr.bf16.mxu0 0
  %3037 = vmatpush2.bf16.xpose.msra.mxu0 0
  %3038 = vmatprep.mubr.bf16.mxu0 0
  %3039 = vmatmul.mubr.bf16.gmra.mxu0 %v3001
  %v3040 = vpop.f32.mrf.mxu0
  %v3041 = vadd.f32 0.0, %v3040
  %v3042 = vpop.f32.mrf.mxu0
  %v3043 = vpop.f32.mrf.mxu0
  %v3044 = vadd.f32 0.0, %v3043
  %v3045 = vpop.f32.mrf.mxu0
  %3046 = vdwg.mxu0
  %v3048 = vsel %vm200, %v2569, 0
  %v3051 = vsel %vm200, %v2601, 0
  %3053 = vmatprep.subr.bf16.mxu0 0
  %3054 = vmatpush1.bf16.xpose.msra.mxu0 0
  %3055 = vmatprep.subr.bf16.mxu0 0
  %3056 = vmatpush1.bf16.xpose.msra.mxu0 0
  %3057 = vmatprep.subr.bf16.mxu0 0
  %3058 = vmatpush1.bf16.xpose.msra.mxu0 0
  %3059 = vmatprep.subr.bf16.mxu0 0
  %3060 = vmatpush1.bf16.xpose.msra.mxu0 0
  %3061 = vmatprep.subr.bf16.mxu0 0
  %3062 = vmatpush1.bf16.xpose.msra.mxu0 0
  %3063 = vmatprep.subr.bf16.mxu0 0
  %3064 = vmatpush1.bf16.xpose.msra.mxu0 0
  %3065 = vmatprep.subr.bf16.mxu0 0
  %3066 = vmatpush1.bf16.xpose.msra.mxu0 0
  %3067 = vmatprep.subr.bf16.mxu0 0
  %3068 = vmatpush1.bf16.xpose.msra.mxu0 %v3051
  %3069 = vmatprep.subr.bf16.mxu0 0
  %3070 = vmatpush2.bf16.xpose.msra.mxu0 0
  %3071 = vmatprep.subr.bf16.mxu0 0
  %3072 = vmatpush2.bf16.xpose.msra.mxu0 0
  %3073 = vmatprep.subr.bf16.mxu0 0
  %3074 = vmatpush2.bf16.xpose.msra.mxu0 0
  %3075 = vmatprep.subr.bf16.mxu0 0
  %3076 = vmatpush2.bf16.xpose.msra.mxu0 0
  %3077 = vmatprep.subr.bf16.mxu0 0
  %3078 = vmatpush2.bf16.xpose.msra.mxu0 0
  %3079 = vmatprep.subr.bf16.mxu0 0
  %3080 = vmatpush2.bf16.xpose.msra.mxu0 0
  %3081 = vmatprep.subr.bf16.mxu0 0
  %3082 = vmatpush2.bf16.xpose.msra.mxu0 0
  %3083 = vmatprep.subr.bf16.mxu0 0
  %3084 = vmatpush2.bf16.xpose.msra.mxu0 0
  %3085 = vmatprep.mubr.bf16.mxu0 0
  %3086 = vmatmul.mubr.bf16.gmra.mxu0 %v3048
  %v3087 = vpop.f32.mrf.mxu0
  %v3088 = vadd.f32 0.0, %v3087
  %v3089 = vpop.f32.mrf.mxu0
  %v3090 = vpop.f32.mrf.mxu0
  %v3091 = vadd.f32 0.0, %v3090
  %v3092 = vpop.f32.mrf.mxu0
  %3093 = vdwg.mxu0
  %v3095 = vsel %vm200, %v2570, 0
  %v3098 = vsel %vm200, %v2602, 0
  %3100 = vmatprep.subr.bf16.mxu0 0
  %3101 = vmatpush1.bf16.xpose.msra.mxu0 0
  %3102 = vmatprep.subr.bf16.mxu0 0
  %3103 = vmatpush1.bf16.xpose.msra.mxu0 0
  %3104 = vmatprep.subr.bf16.mxu0 0
  %3105 = vmatpush1.bf16.xpose.msra.mxu0 0
  %3106 = vmatprep.subr.bf16.mxu0 0
  %3107 = vmatpush1.bf16.xpose.msra.mxu0 0
  %3108 = vmatprep.subr.bf16.mxu0 0
  %3109 = vmatpush1.bf16.xpose.msra.mxu0 0
  %3110 = vmatprep.subr.bf16.mxu0 0
  %3111 = vmatpush1.bf16.xpose.msra.mxu0 0
  %3112 = vmatprep.subr.bf16.mxu0 0
  %3113 = vmatpush1.bf16.xpose.msra.mxu0 0
  %3114 = vmatprep.subr.bf16.mxu0 0
  %3115 = vmatpush1.bf16.xpose.msra.mxu0 %v3098
  %3116 = vmatprep.subr.bf16.mxu0 0
  %3117 = vmatpush2.bf16.xpose.msra.mxu0 0
  %3118 = vmatprep.subr.bf16.mxu0 0
  %3119 = vmatpush2.bf16.xpose.msra.mxu0 0
  %3120 = vmatprep.subr.bf16.mxu0 0
  %3121 = vmatpush2.bf16.xpose.msra.mxu0 0
  %3122 = vmatprep.subr.bf16.mxu0 0
  %3123 = vmatpush2.bf16.xpose.msra.mxu0 0
  %3124 = vmatprep.subr.bf16.mxu0 0
  %3125 = vmatpush2.bf16.xpose.msra.mxu0 0
  %3126 = vmatprep.subr.bf16.mxu0 0
  %3127 = vmatpush2.bf16.xpose.msra.mxu0 0
  %3128 = vmatprep.subr.bf16.mxu0 0
  %3129 = vmatpush2.bf16.xpose.msra.mxu0 0
  %3130 = vmatprep.subr.bf16.mxu0 0
  %3131 = vmatpush2.bf16.xpose.msra.mxu0 0
  %3132 = vmatprep.mubr.bf16.mxu0 0
  %3133 = vmatmul.mubr.bf16.gmra.mxu0 %v3095
  %v3134 = vpop.f32.mrf.mxu0
  %v3135 = vadd.f32 0.0, %v3134
  %v3136 = vpop.f32.mrf.mxu0
  %v3137 = vpop.f32.mrf.mxu0
  %v3138 = vadd.f32 0.0, %v3137
  %v3139 = vpop.f32.mrf.mxu0
  %3140 = vdwg.mxu0
  %v3142 = vsel %vm200, %v2571, 0
  %v3145 = vsel %vm200, %v2603, 0
  %3147 = vmatprep.subr.bf16.mxu0 0
  %3148 = vmatpush1.bf16.xpose.msra.mxu0 0
  %3149 = vmatprep.subr.bf16.mxu0 0
  %3150 = vmatpush1.bf16.xpose.msra.mxu0 0
  %3151 = vmatprep.subr.bf16.mxu0 0
  %3152 = vmatpush1.bf16.xpose.msra.mxu0 0
  %3153 = vmatprep.subr.bf16.mxu0 0
  %3154 = vmatpush1.bf16.xpose.msra.mxu0 0
  %3155 = vmatprep.subr.bf16.mxu0 0
  %3156 = vmatpush1.bf16.xpose.msra.mxu0 0
  %3157 = vmatprep.subr.bf16.mxu0 0
  %3158 = vmatpush1.bf16.xpose.msra.mxu0 0
  %3159 = vmatprep.subr.bf16.mxu0 0
  %3160 = vmatpush1.bf16.xpose.msra.mxu0 0
  %3161 = vmatprep.subr.bf16.mxu0 0
  %3162 = vmatpush1.bf16.xpose.msra.mxu0 %v3145
  %3163 = vmatprep.subr.bf16.mxu0 0
  %3164 = vmatpush2.bf16.xpose.msra.mxu0 0
  %3165 = vmatprep.subr.bf16.mxu0 0
  %3166 = vmatpush2.bf16.xpose.msra.mxu0 0
  %3167 = vmatprep.subr.bf16.mxu0 0
  %3168 = vmatpush2.bf16.xpose.msra.mxu0 0
  %3169 = vmatprep.subr.bf16.mxu0 0
  %3170 = vmatpush2.bf16.xpose.msra.mxu0 0
  %3171 = vmatprep.subr.bf16.mxu0 0
  %3172 = vmatpush2.bf16.xpose.msra.mxu0 0
  %3173 = vmatprep.subr.bf16.mxu0 0
  %3174 = vmatpush2.bf16.xpose.msra.mxu0 0
  %3175 = vmatprep.subr.bf16.mxu0 0
  %3176 = vmatpush2.bf16.xpose.msra.mxu0 0
  %3177 = vmatprep.subr.bf16.mxu0 0
  %3178 = vmatpush2.bf16.xpose.msra.mxu0 0
  %3179 = vmatprep.mubr.bf16.mxu0 0
  %3180 = vmatmul.mubr.bf16.gmra.mxu0 %v3142
  %v3181 = vpop.f32.mrf.mxu0
  %v3182 = vadd.f32 0.0, %v3181
  %v3183 = vpop.f32.mrf.mxu0
  %v3184 = vpop.f32.mrf.mxu0
  %v3185 = vadd.f32 0.0, %v3184
  %v3186 = vpop.f32.mrf.mxu0
  %3187 = vdwg.mxu0
  %v3189 = vsel %vm200, %v2572, 0
  %v3192 = vsel %vm200, %v2604, 0
  %3194 = vmatprep.subr.bf16.mxu0 0
  %3195 = vmatpush1.bf16.xpose.msra.mxu0 0
  %3196 = vmatprep.subr.bf16.mxu0 0
  %3197 = vmatpush1.bf16.xpose.msra.mxu0 0
  %3198 = vmatprep.subr.bf16.mxu0 0
  %3199 = vmatpush1.bf16.xpose.msra.mxu0 0
  %3200 = vmatprep.subr.bf16.mxu0 0
  %3201 = vmatpush1.bf16.xpose.msra.mxu0 0
  %3202 = vmatprep.subr.bf16.mxu0 0
  %3203 = vmatpush1.bf16.xpose.msra.mxu0 0
  %3204 = vmatprep.subr.bf16.mxu0 0
  %3205 = vmatpush1.bf16.xpose.msra.mxu0 0
  %3206 = vmatprep.subr.bf16.mxu0 0
  %3207 = vmatpush1.bf16.xpose.msra.mxu0 0
  %3208 = vmatprep.subr.bf16.mxu0 0
  %3209 = vmatpush1.bf16.xpose.msra.mxu0 %v3192
  %3210 = vmatprep.subr.bf16.mxu0 0
  %3211 = vmatpush2.bf16.xpose.msra.mxu0 0
  %3212 = vmatprep.subr.bf16.mxu0 0
  %3213 = vmatpush2.bf16.xpose.msra.mxu0 0
  %3214 = vmatprep.subr.bf16.mxu0 0
  %3215 = vmatpush2.bf16.xpose.msra.mxu0 0
  %3216 = vmatprep.subr.bf16.mxu0 0
  %3217 = vmatpush2.bf16.xpose.msra.mxu0 0
  %3218 = vmatprep.subr.bf16.mxu0 0
  %3219 = vmatpush2.bf16.xpose.msra.mxu0 0
  %3220 = vmatprep.subr.bf16.mxu0 0
  %3221 = vmatpush2.bf16.xpose.msra.mxu0 0
  %3222 = vmatprep.subr.bf16.mxu0 0
  %3223 = vmatpush2.bf16.xpose.msra.mxu0 0
  %3224 = vmatprep.subr.bf16.mxu0 0
  %3225 = vmatpush2.bf16.xpose.msra.mxu0 0
  %3226 = vmatprep.mubr.bf16.mxu0 0
  %3227 = vmatmul.mubr.bf16.gmra.mxu0 %v3189
  %v3228 = vpop.f32.mrf.mxu0
  %v3229 = vadd.f32 0.0, %v3228
  %v3230 = vpop.f32.mrf.mxu0
  %v3231 = vpop.f32.mrf.mxu0
  %v3232 = vadd.f32 0.0, %v3231
  %v3233 = vpop.f32.mrf.mxu0
  %3234 = vdwg.mxu0
  %v3236 = vsel %vm200, %v2573, 0
  %v3239 = vsel %vm200, %v2605, 0
  %3241 = vmatprep.subr.bf16.mxu0 0
  %3242 = vmatpush1.bf16.xpose.msra.mxu0 0
  %3243 = vmatprep.subr.bf16.mxu0 0
  %3244 = vmatpush1.bf16.xpose.msra.mxu0 0
  %3245 = vmatprep.subr.bf16.mxu0 0
  %3246 = vmatpush1.bf16.xpose.msra.mxu0 0
  %3247 = vmatprep.subr.bf16.mxu0 0
  %3248 = vmatpush1.bf16.xpose.msra.mxu0 0
  %3249 = vmatprep.subr.bf16.mxu0 0
  %3250 = vmatpush1.bf16.xpose.msra.mxu0 0
  %3251 = vmatprep.subr.bf16.mxu0 0
  %3252 = vmatpush1.bf16.xpose.msra.mxu0 0
  %3253 = vmatprep.subr.bf16.mxu0 0
  %3254 = vmatpush1.bf16.xpose.msra.mxu0 0
  %3255 = vmatprep.subr.bf16.mxu0 0
  %3256 = vmatpush1.bf16.xpose.msra.mxu0 %v3239
  %3257 = vmatprep.subr.bf16.mxu0 0
  %3258 = vmatpush2.bf16.xpose.msra.mxu0 0
  %3259 = vmatprep.subr.bf16.mxu0 0
  %3260 = vmatpush2.bf16.xpose.msra.mxu0 0
  %3261 = vmatprep.subr.bf16.mxu0 0
  %3262 = vmatpush2.bf16.xpose.msra.mxu0 0
  %3263 = vmatprep.subr.bf16.mxu0 0
  %3264 = vmatpush2.bf16.xpose.msra.mxu0 0
  %3265 = vmatprep.subr.bf16.mxu0 0
  %3266 = vmatpush2.bf16.xpose.msra.mxu0 0
  %3267 = vmatprep.subr.bf16.mxu0 0
  %3268 = vmatpush2.bf16.xpose.msra.mxu0 0
  %3269 = vmatprep.subr.bf16.mxu0 0
  %3270 = vmatpush2.bf16.xpose.msra.mxu0 0
  %3271 = vmatprep.subr.bf16.mxu0 0
  %3272 = vmatpush2.bf16.xpose.msra.mxu0 0
  %3273 = vmatprep.mubr.bf16.mxu0 0
  %3274 = vmatmul.mubr.bf16.gmra.mxu0 %v3236
  %v3275 = vpop.f32.mrf.mxu0
  %v3276 = vadd.f32 0.0, %v3275
  %v3277 = vpop.f32.mrf.mxu0
  %v3278 = vpop.f32.mrf.mxu0
  %v3279 = vadd.f32 0.0, %v3278
  %v3280 = vpop.f32.mrf.mxu0
  %3281 = vdwg.mxu0
  %v3283 = vsel %vm200, %v2574, 0
  %v3286 = vsel %vm200, %v2606, 0
  %3288 = vmatprep.subr.bf16.mxu0 0
  %3289 = vmatpush1.bf16.xpose.msra.mxu0 0
  %3290 = vmatprep.subr.bf16.mxu0 0
  %3291 = vmatpush1.bf16.xpose.msra.mxu0 0
  %3292 = vmatprep.subr.bf16.mxu0 0
  %3293 = vmatpush1.bf16.xpose.msra.mxu0 0
  %3294 = vmatprep.subr.bf16.mxu0 0
  %3295 = vmatpush1.bf16.xpose.msra.mxu0 0
  %3296 = vmatprep.subr.bf16.mxu0 0
  %3297 = vmatpush1.bf16.xpose.msra.mxu0 0
  %3298 = vmatprep.subr.bf16.mxu0 0
  %3299 = vmatpush1.bf16.xpose.msra.mxu0 0
  %3300 = vmatprep.subr.bf16.mxu0 0
  %3301 = vmatpush1.bf16.xpose.msra.mxu0 0
  %3302 = vmatprep.subr.bf16.mxu0 0
  %3303 = vmatpush1.bf16.xpose.msra.mxu0 %v3286
  %3304 = vmatprep.subr.bf16.mxu0 0
  %3305 = vmatpush2.bf16.xpose.msra.mxu0 0
  %3306 = vmatprep.subr.bf16.mxu0 0
  %3307 = vmatpush2.bf16.xpose.msra.mxu0 0
  %3308 = vmatprep.subr.bf16.mxu0 0
  %3309 = vmatpush2.bf16.xpose.msra.mxu0 0
  %3310 = vmatprep.subr.bf16.mxu0 0
  %3311 = vmatpush2.bf16.xpose.msra.mxu0 0
  %3312 = vmatprep.subr.bf16.mxu0 0
  %3313 = vmatpush2.bf16.xpose.msra.mxu0 0
  %3314 = vmatprep.subr.bf16.mxu0 0
  %3315 = vmatpush2.bf16.xpose.msra.mxu0 0
  %3316 = vmatprep.subr.bf16.mxu0 0
  %3317 = vmatpush2.bf16.xpose.msra.mxu0 0
  %3318 = vmatprep.subr.bf16.mxu0 0
  %3319 = vmatpush2.bf16.xpose.msra.mxu0 0
  %3320 = vmatprep.mubr.bf16.mxu0 0
  %3321 = vmatmul.mubr.bf16.gmra.mxu0 %v3283
  %v3322 = vpop.f32.mrf.mxu0
  %v3323 = vadd.f32 0.0, %v3322
  %v3324 = vpop.f32.mrf.mxu0
  %v3325 = vpop.f32.mrf.mxu0
  %v3326 = vadd.f32 0.0, %v3325
  %v3327 = vpop.f32.mrf.mxu0
  %3328 = vdwg.mxu0
  %v3330 = vsel %vm200, %v2575, 0
  %v3333 = vsel %vm200, %v2607, 0
  %3335 = vmatprep.subr.bf16.mxu0 0
  %3336 = vmatpush1.bf16.xpose.msra.mxu0 0
  %3337 = vmatprep.subr.bf16.mxu0 0
  %3338 = vmatpush1.bf16.xpose.msra.mxu0 0
  %3339 = vmatprep.subr.bf16.mxu0 0
  %3340 = vmatpush1.bf16.xpose.msra.mxu0 0
  %3341 = vmatprep.subr.bf16.mxu0 0
  %3342 = vmatpush1.bf16.xpose.msra.mxu0 0
  %3343 = vmatprep.subr.bf16.mxu0 0
  %3344 = vmatpush1.bf16.xpose.msra.mxu0 0
  %3345 = vmatprep.subr.bf16.mxu0 0
  %3346 = vmatpush1.bf16.xpose.msra.mxu0 0
  %3347 = vmatprep.subr.bf16.mxu0 0
  %3348 = vmatpush1.bf16.xpose.msra.mxu0 0
  %3349 = vmatprep.subr.bf16.mxu0 0
  %3350 = vmatpush1.bf16.xpose.msra.mxu0 %v3333
  %3351 = vmatprep.subr.bf16.mxu0 0
  %3352 = vmatpush2.bf16.xpose.msra.mxu0 0
  %3353 = vmatprep.subr.bf16.mxu0 0
  %3354 = vmatpush2.bf16.xpose.msra.mxu0 0
  %3355 = vmatprep.subr.bf16.mxu0 0
  %3356 = vmatpush2.bf16.xpose.msra.mxu0 0
  %3357 = vmatprep.subr.bf16.mxu0 0
  %3358 = vmatpush2.bf16.xpose.msra.mxu0 0
  %3359 = vmatprep.subr.bf16.mxu0 0
  %3360 = vmatpush2.bf16.xpose.msra.mxu0 0
  %3361 = vmatprep.subr.bf16.mxu0 0
  %3362 = vmatpush2.bf16.xpose.msra.mxu0 0
  %3363 = vmatprep.subr.bf16.mxu0 0
  %3364 = vmatpush2.bf16.xpose.msra.mxu0 0
  %3365 = vmatprep.subr.bf16.mxu0 0
  %3366 = vmatpush2.bf16.xpose.msra.mxu0 0
  %3367 = vmatprep.mubr.bf16.mxu0 0
  %3368 = vmatmul.mubr.bf16.gmra.mxu0 %v3330
  %v3369 = vpop.f32.mrf.mxu0
  %v3370 = vadd.f32 0.0, %v3369
  %v3371 = vpop.f32.mrf.mxu0
  %v3372 = vpop.f32.mrf.mxu0
  %v3373 = vadd.f32 0.0, %v3372
  %v3374 = vpop.f32.mrf.mxu0
  %3375 = vdwg.mxu0
  %v3377 = vsel %vm200, %v2576, 0
  %v3380 = vsel %vm200, %v2608, 0
  %3382 = vmatprep.subr.bf16.mxu0 0
  %3383 = vmatpush1.bf16.xpose.msra.mxu0 0
  %3384 = vmatprep.subr.bf16.mxu0 0
  %3385 = vmatpush1.bf16.xpose.msra.mxu0 0
  %3386 = vmatprep.subr.bf16.mxu0 0
  %3387 = vmatpush1.bf16.xpose.msra.mxu0 0
  %3388 = vmatprep.subr.bf16.mxu0 0
  %3389 = vmatpush1.bf16.xpose.msra.mxu0 0
  %3390 = vmatprep.subr.bf16.mxu0 0
  %3391 = vmatpush1.bf16.xpose.msra.mxu0 0
  %3392 = vmatprep.subr.bf16.mxu0 0
  %3393 = vmatpush1.bf16.xpose.msra.mxu0 0
  %3394 = vmatprep.subr.bf16.mxu0 0
  %3395 = vmatpush1.bf16.xpose.msra.mxu0 0
  %3396 = vmatprep.subr.bf16.mxu0 0
  %3397 = vmatpush1.bf16.xpose.msra.mxu0 %v3380
  %3398 = vmatprep.subr.bf16.mxu0 0
  %3399 = vmatpush2.bf16.xpose.msra.mxu0 0
  %3400 = vmatprep.subr.bf16.mxu0 0
  %3401 = vmatpush2.bf16.xpose.msra.mxu0 0
  %3402 = vmatprep.subr.bf16.mxu0 0
  %3403 = vmatpush2.bf16.xpose.msra.mxu0 0
  %3404 = vmatprep.subr.bf16.mxu0 0
  %3405 = vmatpush2.bf16.xpose.msra.mxu0 0
  %3406 = vmatprep.subr.bf16.mxu0 0
  %3407 = vmatpush2.bf16.xpose.msra.mxu0 0
  %3408 = vmatprep.subr.bf16.mxu0 0
  %3409 = vmatpush2.bf16.xpose.msra.mxu0 0
  %3410 = vmatprep.subr.bf16.mxu0 0
  %3411 = vmatpush2.bf16.xpose.msra.mxu0 0
  %3412 = vmatprep.subr.bf16.mxu0 0
  %3413 = vmatpush2.bf16.xpose.msra.mxu0 0
  %3414 = vmatprep.mubr.bf16.mxu0 0
  %3415 = vmatmul.mubr.bf16.gmra.mxu0 %v3377
  %v3416 = vpop.f32.mrf.mxu0
  %v3417 = vadd.f32 0.0, %v3416
  %v3418 = vpop.f32.mrf.mxu0
  %v3419 = vpop.f32.mrf.mxu0
  %v3420 = vadd.f32 0.0, %v3419
  %v3421 = vpop.f32.mrf.mxu0
  %3422 = vdwg.mxu0
  %v3424 = vsel %vm200, %v2577, 0
  %v3427 = vsel %vm200, %v2609, 0
  %3429 = vmatprep.subr.bf16.mxu0 0
  %3430 = vmatpush1.bf16.xpose.msra.mxu0 0
  %3431 = vmatprep.subr.bf16.mxu0 0
  %3432 = vmatpush1.bf16.xpose.msra.mxu0 0
  %3433 = vmatprep.subr.bf16.mxu0 0
  %3434 = vmatpush1.bf16.xpose.msra.mxu0 0
  %3435 = vmatprep.subr.bf16.mxu0 0
  %3436 = vmatpush1.bf16.xpose.msra.mxu0 0
  %3437 = vmatprep.subr.bf16.mxu0 0
  %3438 = vmatpush1.bf16.xpose.msra.mxu0 0
  %3439 = vmatprep.subr.bf16.mxu0 0
  %3440 = vmatpush1.bf16.xpose.msra.mxu0 0
  %3441 = vmatprep.subr.bf16.mxu0 0
  %3442 = vmatpush1.bf16.xpose.msra.mxu0 0
  %3443 = vmatprep.subr.bf16.mxu0 0
  %3444 = vmatpush1.bf16.xpose.msra.mxu0 %v3427
  %3445 = vmatprep.subr.bf16.mxu0 0
  %3446 = vmatpush2.bf16.xpose.msra.mxu0 0
  %3447 = vmatprep.subr.bf16.mxu0 0
  %3448 = vmatpush2.bf16.xpose.msra.mxu0 0
  %3449 = vmatprep.subr.bf16.mxu0 0
  %3450 = vmatpush2.bf16.xpose.msra.mxu0 0
  %3451 = vmatprep.subr.bf16.mxu0 0
  %3452 = vmatpush2.bf16.xpose.msra.mxu0 0
  %3453 = vmatprep.subr.bf16.mxu0 0
  %3454 = vmatpush2.bf16.xpose.msra.mxu0 0
  %3455 = vmatprep.subr.bf16.mxu0 0
  %3456 = vmatpush2.bf16.xpose.msra.mxu0 0
  %3457 = vmatprep.subr.bf16.mxu0 0
  %3458 = vmatpush2.bf16.xpose.msra.mxu0 0
  %3459 = vmatprep.subr.bf16.mxu0 0
  %3460 = vmatpush2.bf16.xpose.msra.mxu0 0
  %3461 = vmatprep.mubr.bf16.mxu0 0
  %3462 = vmatmul.mubr.bf16.gmra.mxu0 %v3424
  %v3463 = vpop.f32.mrf.mxu0
  %v3464 = vadd.f32 0.0, %v3463
  %v3465 = vpop.f32.mrf.mxu0
  %v3466 = vpop.f32.mrf.mxu0
  %v3467 = vadd.f32 0.0, %v3466
  %v3468 = vpop.f32.mrf.mxu0
  %3469 = vdwg.mxu0
  %v3471 = vsel %vm200, %v2578, 0
  %v3474 = vsel %vm200, %v2610, 0
  %3476 = vmatprep.subr.bf16.mxu0 0
  %3477 = vmatpush1.bf16.xpose.msra.mxu0 0
  %3478 = vmatprep.subr.bf16.mxu0 0
  %3479 = vmatpush1.bf16.xpose.msra.mxu0 0
  %3480 = vmatprep.subr.bf16.mxu0 0
  %3481 = vmatpush1.bf16.xpose.msra.mxu0 0
  %3482 = vmatprep.subr.bf16.mxu0 0
  %3483 = vmatpush1.bf16.xpose.msra.mxu0 0
  %3484 = vmatprep.subr.bf16.mxu0 0
  %3485 = vmatpush1.bf16.xpose.msra.mxu0 0
  %3486 = vmatprep.subr.bf16.mxu0 0
  %3487 = vmatpush1.bf16.xpose.msra.mxu0 0
  %3488 = vmatprep.subr.bf16.mxu0 0
  %3489 = vmatpush1.bf16.xpose.msra.mxu0 0
  %3490 = vmatprep.subr.bf16.mxu0 0
  %3491 = vmatpush1.bf16.xpose.msra.mxu0 %v3474
  %3492 = vmatprep.subr.bf16.mxu0 0
  %3493 = vmatpush2.bf16.xpose.msra.mxu0 0
  %3494 = vmatprep.subr.bf16.mxu0 0
  %3495 = vmatpush2.bf16.xpose.msra.mxu0 0
  %3496 = vmatprep.subr.bf16.mxu0 0
  %3497 = vmatpush2.bf16.xpose.msra.mxu0 0
  %3498 = vmatprep.subr.bf16.mxu0 0
  %3499 = vmatpush2.bf16.xpose.msra.mxu0 0
  %3500 = vmatprep.subr.bf16.mxu0 0
  %3501 = vmatpush2.bf16.xpose.msra.mxu0 0
  %3502 = vmatprep.subr.bf16.mxu0 0
  %3503 = vmatpush2.bf16.xpose.msra.mxu0 0
  %3504 = vmatprep.subr.bf16.mxu0 0
  %3505 = vmatpush2.bf16.xpose.msra.mxu0 0
  %3506 = vmatprep.subr.bf16.mxu0 0
  %3507 = vmatpush2.bf16.xpose.msra.mxu0 0
  %3508 = vmatprep.mubr.bf16.mxu0 0
  %3509 = vmatmul.mubr.bf16.gmra.mxu0 %v3471
  %v3510 = vpop.f32.mrf.mxu0
  %v3511 = vadd.f32 0.0, %v3510
  %v3512 = vpop.f32.mrf.mxu0
  %v3513 = vpop.f32.mrf.mxu0
  %v3514 = vadd.f32 0.0, %v3513
  %v3515 = vpop.f32.mrf.mxu0
  %3516 = vdwg.mxu0
  %v3518 = vsel %vm200, %v2579, 0
  %v3521 = vsel %vm200, %v2611, 0
  %3523 = vmatprep.subr.bf16.mxu0 0
  %3524 = vmatpush1.bf16.xpose.msra.mxu0 0
  %3525 = vmatprep.subr.bf16.mxu0 0
  %3526 = vmatpush1.bf16.xpose.msra.mxu0 0
  %3527 = vmatprep.subr.bf16.mxu0 0
  %3528 = vmatpush1.bf16.xpose.msra.mxu0 0
  %3529 = vmatprep.subr.bf16.mxu0 0
  %3530 = vmatpush1.bf16.xpose.msra.mxu0 0
  %3531 = vmatprep.subr.bf16.mxu0 0
  %3532 = vmatpush1.bf16.xpose.msra.mxu0 0
  %3533 = vmatprep.subr.bf16.mxu0 0
  %3534 = vmatpush1.bf16.xpose.msra.mxu0 0
  %3535 = vmatprep.subr.bf16.mxu0 0
  %3536 = vmatpush1.bf16.xpose.msra.mxu0 0
  %3537 = vmatprep.subr.bf16.mxu0 0
  %3538 = vmatpush1.bf16.xpose.msra.mxu0 %v3521
  %3539 = vmatprep.subr.bf16.mxu0 0
  %3540 = vmatpush2.bf16.xpose.msra.mxu0 0
  %3541 = vmatprep.subr.bf16.mxu0 0
  %3542 = vmatpush2.bf16.xpose.msra.mxu0 0
  %3543 = vmatprep.subr.bf16.mxu0 0
  %3544 = vmatpush2.bf16.xpose.msra.mxu0 0
  %3545 = vmatprep.subr.bf16.mxu0 0
  %3546 = vmatpush2.bf16.xpose.msra.mxu0 0
  %3547 = vmatprep.subr.bf16.mxu0 0
  %3548 = vmatpush2.bf16.xpose.msra.mxu0 0
  %3549 = vmatprep.subr.bf16.mxu0 0
  %3550 = vmatpush2.bf16.xpose.msra.mxu0 0
  %3551 = vmatprep.subr.bf16.mxu0 0
  %3552 = vmatpush2.bf16.xpose.msra.mxu0 0
  %3553 = vmatprep.subr.bf16.mxu0 0
  %3554 = vmatpush2.bf16.xpose.msra.mxu0 0
  %3555 = vmatprep.mubr.bf16.mxu0 0
  %3556 = vmatmul.mubr.bf16.gmra.mxu0 %v3518
  %v3557 = vpop.f32.mrf.mxu0
  %v3558 = vadd.f32 0.0, %v3557
  %v3559 = vpop.f32.mrf.mxu0
  %v3560 = vpop.f32.mrf.mxu0
  %v3561 = vadd.f32 0.0, %v3560
  %v3562 = vpop.f32.mrf.mxu0
  %3563 = vdwg.mxu0
  %v3565 = vsel %vm200, %v2580, 0
  %v3568 = vsel %vm200, %v2612, 0
  %3570 = vmatprep.subr.bf16.mxu0 0
  %3571 = vmatpush1.bf16.xpose.msra.mxu0 0
  %3572 = vmatprep.subr.bf16.mxu0 0
  %3573 = vmatpush1.bf16.xpose.msra.mxu0 0
  %3574 = vmatprep.subr.bf16.mxu0 0
  %3575 = vmatpush1.bf16.xpose.msra.mxu0 0
  %3576 = vmatprep.subr.bf16.mxu0 0
  %3577 = vmatpush1.bf16.xpose.msra.mxu0 0
  %3578 = vmatprep.subr.bf16.mxu0 0
  %3579 = vmatpush1.bf16.xpose.msra.mxu0 0
  %3580 = vmatprep.subr.bf16.mxu0 0
  %3581 = vmatpush1.bf16.xpose.msra.mxu0 0
  %3582 = vmatprep.subr.bf16.mxu0 0
  %3583 = vmatpush1.bf16.xpose.msra.mxu0 0
  %3584 = vmatprep.subr.bf16.mxu0 0
  %3585 = vmatpush1.bf16.xpose.msra.mxu0 %v3568
  %3586 = vmatprep.subr.bf16.mxu0 0
  %3587 = vmatpush2.bf16.xpose.msra.mxu0 0
  %3588 = vmatprep.subr.bf16.mxu0 0
  %3589 = vmatpush2.bf16.xpose.msra.mxu0 0
  %3590 = vmatprep.subr.bf16.mxu0 0
  %3591 = vmatpush2.bf16.xpose.msra.mxu0 0
  %3592 = vmatprep.subr.bf16.mxu0 0
  %3593 = vmatpush2.bf16.xpose.msra.mxu0 0
  %3594 = vmatprep.subr.bf16.mxu0 0
  %3595 = vmatpush2.bf16.xpose.msra.mxu0 0
  %3596 = vmatprep.subr.bf16.mxu0 0
  %3597 = vmatpush2.bf16.xpose.msra.mxu0 0
  %3598 = vmatprep.subr.bf16.mxu0 0
  %3599 = vmatpush2.bf16.xpose.msra.mxu0 0
  %3600 = vmatprep.subr.bf16.mxu0 0
  %3601 = vmatpush2.bf16.xpose.msra.mxu0 0
  %3602 = vmatprep.mubr.bf16.mxu0 0
  %3603 = vmatmul.mubr.bf16.gmra.mxu0 %v3565
  %v3604 = vpop.f32.mrf.mxu0
  %v3605 = vadd.f32 0.0, %v3604
  %v3606 = vpop.f32.mrf.mxu0
  %v3607 = vpop.f32.mrf.mxu0
  %v3608 = vadd.f32 0.0, %v3607
  %v3609 = vpop.f32.mrf.mxu0
  %3610 = vdwg.mxu0
  %v3612 = vsel %vm200, %v2581, 0
  %v3615 = vsel %vm200, %v2613, 0
  %3617 = vmatprep.subr.bf16.mxu0 0
  %3618 = vmatpush1.bf16.xpose.msra.mxu0 0
  %3619 = vmatprep.subr.bf16.mxu0 0
  %3620 = vmatpush1.bf16.xpose.msra.mxu0 0
  %3621 = vmatprep.subr.bf16.mxu0 0
  %3622 = vmatpush1.bf16.xpose.msra.mxu0 0
  %3623 = vmatprep.subr.bf16.mxu0 0
  %3624 = vmatpush1.bf16.xpose.msra.mxu0 0
  %3625 = vmatprep.subr.bf16.mxu0 0
  %3626 = vmatpush1.bf16.xpose.msra.mxu0 0
  %3627 = vmatprep.subr.bf16.mxu0 0
  %3628 = vmatpush1.bf16.xpose.msra.mxu0 0
  %3629 = vmatprep.subr.bf16.mxu0 0
  %3630 = vmatpush1.bf16.xpose.msra.mxu0 0
  %3631 = vmatprep.subr.bf16.mxu0 0
  %3632 = vmatpush1.bf16.xpose.msra.mxu0 %v3615
  %3633 = vmatprep.subr.bf16.mxu0 0
  %3634 = vmatpush2.bf16.xpose.msra.mxu0 0
  %3635 = vmatprep.subr.bf16.mxu0 0
  %3636 = vmatpush2.bf16.xpose.msra.mxu0 0
  %3637 = vmatprep.subr.bf16.mxu0 0
  %3638 = vmatpush2.bf16.xpose.msra.mxu0 0
  %3639 = vmatprep.subr.bf16.mxu0 0
  %3640 = vmatpush2.bf16.xpose.msra.mxu0 0
  %3641 = vmatprep.subr.bf16.mxu0 0
  %3642 = vmatpush2.bf16.xpose.msra.mxu0 0
  %3643 = vmatprep.subr.bf16.mxu0 0
  %3644 = vmatpush2.bf16.xpose.msra.mxu0 0
  %3645 = vmatprep.subr.bf16.mxu0 0
  %3646 = vmatpush2.bf16.xpose.msra.mxu0 0
  %3647 = vmatprep.subr.bf16.mxu0 0
  %3648 = vmatpush2.bf16.xpose.msra.mxu0 0
  %3649 = vmatprep.mubr.bf16.mxu0 0
  %3650 = vmatmul.mubr.bf16.gmra.mxu0 %v3612
  %v3651 = vpop.f32.mrf.mxu0
  %v3652 = vadd.f32 0.0, %v3651
  %v3653 = vpop.f32.mrf.mxu0
  %v3654 = vpop.f32.mrf.mxu0
  %v3655 = vadd.f32 0.0, %v3654
  %v3656 = vpop.f32.mrf.mxu0
  %3657 = vdwg.mxu0
  %v3659 = vsel %vm200, %v2582, 0
  %v3662 = vsel %vm200, %v2614, 0
  %3664 = vmatprep.subr.bf16.mxu0 0
  %3665 = vmatpush1.bf16.xpose.msra.mxu0 0
  %3666 = vmatprep.subr.bf16.mxu0 0
  %3667 = vmatpush1.bf16.xpose.msra.mxu0 0
  %3668 = vmatprep.subr.bf16.mxu0 0
  %3669 = vmatpush1.bf16.xpose.msra.mxu0 0
  %3670 = vmatprep.subr.bf16.mxu0 0
  %3671 = vmatpush1.bf16.xpose.msra.mxu0 0
  %3672 = vmatprep.subr.bf16.mxu0 0
  %3673 = vmatpush1.bf16.xpose.msra.mxu0 0
  %3674 = vmatprep.subr.bf16.mxu0 0
  %3675 = vmatpush1.bf16.xpose.msra.mxu0 0
  %3676 = vmatprep.subr.bf16.mxu0 0
  %3677 = vmatpush1.bf16.xpose.msra.mxu0 0
  %3678 = vmatprep.subr.bf16.mxu0 0
  %3679 = vmatpush1.bf16.xpose.msra.mxu0 %v3662
  %3680 = vmatprep.subr.bf16.mxu0 0
  %3681 = vmatpush2.bf16.xpose.msra.mxu0 0
  %3682 = vmatprep.subr.bf16.mxu0 0
  %3683 = vmatpush2.bf16.xpose.msra.mxu0 0
  %3684 = vmatprep.subr.bf16.mxu0 0
  %3685 = vmatpush2.bf16.xpose.msra.mxu0 0
  %3686 = vmatprep.subr.bf16.mxu0 0
  %3687 = vmatpush2.bf16.xpose.msra.mxu0 0
  %3688 = vmatprep.subr.bf16.mxu0 0
  %3689 = vmatpush2.bf16.xpose.msra.mxu0 0
  %3690 = vmatprep.subr.bf16.mxu0 0
  %3691 = vmatpush2.bf16.xpose.msra.mxu0 0
  %3692 = vmatprep.subr.bf16.mxu0 0
  %3693 = vmatpush2.bf16.xpose.msra.mxu0 0
  %3694 = vmatprep.subr.bf16.mxu0 0
  %3695 = vmatpush2.bf16.xpose.msra.mxu0 0
  %3696 = vmatprep.mubr.bf16.mxu0 0
  %3697 = vmatmul.mubr.bf16.gmra.mxu0 %v3659
  %v3698 = vpop.f32.mrf.mxu0
  %v3699 = vadd.f32 0.0, %v3698
  %v3700 = vpop.f32.mrf.mxu0
  %v3701 = vpop.f32.mrf.mxu0
  %v3702 = vadd.f32 0.0, %v3701
  %v3703 = vpop.f32.mrf.mxu0
  %3704 = vdwg.mxu0
  %v3706 = vsel %vm200, %v2583, 0
  %v3709 = vsel %vm200, %v2615, 0
  %3711 = vmatprep.subr.bf16.mxu0 0
  %3712 = vmatpush1.bf16.xpose.msra.mxu0 0
  %3713 = vmatprep.subr.bf16.mxu0 0
  %3714 = vmatpush1.bf16.xpose.msra.mxu0 0
  %3715 = vmatprep.subr.bf16.mxu0 0
  %3716 = vmatpush1.bf16.xpose.msra.mxu0 0
  %3717 = vmatprep.subr.bf16.mxu0 0
  %3718 = vmatpush1.bf16.xpose.msra.mxu0 0
  %3719 = vmatprep.subr.bf16.mxu0 0
  %3720 = vmatpush1.bf16.xpose.msra.mxu0 0
  %3721 = vmatprep.subr.bf16.mxu0 0
  %3722 = vmatpush1.bf16.xpose.msra.mxu0 0
  %3723 = vmatprep.subr.bf16.mxu0 0
  %3724 = vmatpush1.bf16.xpose.msra.mxu0 0
  %3725 = vmatprep.subr.bf16.mxu0 0
  %3726 = vmatpush1.bf16.xpose.msra.mxu0 %v3709
  %3727 = vmatprep.subr.bf16.mxu0 0
  %3728 = vmatpush2.bf16.xpose.msra.mxu0 0
  %3729 = vmatprep.subr.bf16.mxu0 0
  %3730 = vmatpush2.bf16.xpose.msra.mxu0 0
  %3731 = vmatprep.subr.bf16.mxu0 0
  %3732 = vmatpush2.bf16.xpose.msra.mxu0 0
  %3733 = vmatprep.subr.bf16.mxu0 0
  %3734 = vmatpush2.bf16.xpose.msra.mxu0 0
  %3735 = vmatprep.subr.bf16.mxu0 0
  %3736 = vmatpush2.bf16.xpose.msra.mxu0 0
  %3737 = vmatprep.subr.bf16.mxu0 0
  %3738 = vmatpush2.bf16.xpose.msra.mxu0 0
  %3739 = vmatprep.subr.bf16.mxu0 0
  %3740 = vmatpush2.bf16.xpose.msra.mxu0 0
  %3741 = vmatprep.subr.bf16.mxu0 0
  %3742 = vmatpush2.bf16.xpose.msra.mxu0 0
  %3743 = vmatprep.mubr.bf16.mxu0 0
  %3744 = vmatmul.mubr.bf16.gmra.mxu0 %v3706
  %v3745 = vpop.f32.mrf.mxu0
  %v3746 = vadd.f32 0.0, %v3745
  %v3747 = vpop.f32.mrf.mxu0
  %v3748 = vpop.f32.mrf.mxu0
  %v3749 = vadd.f32 0.0, %v3748
  %v3750 = vpop.f32.mrf.mxu0
  %3751 = vdwg.mxu0
  %v3753 = vsel %vm200, %v2584, 0
  %v3756 = vsel %vm200, %v2616, 0
  %3758 = vmatprep.subr.bf16.mxu0 0
  %3759 = vmatpush1.bf16.xpose.msra.mxu0 0
  %3760 = vmatprep.subr.bf16.mxu0 0
  %3761 = vmatpush1.bf16.xpose.msra.mxu0 0
  %3762 = vmatprep.subr.bf16.mxu0 0
  %3763 = vmatpush1.bf16.xpose.msra.mxu0 0
  %3764 = vmatprep.subr.bf16.mxu0 0
  %3765 = vmatpush1.bf16.xpose.msra.mxu0 0
  %3766 = vmatprep.subr.bf16.mxu0 0
  %3767 = vmatpush1.bf16.xpose.msra.mxu0 0
  %3768 = vmatprep.subr.bf16.mxu0 0
  %3769 = vmatpush1.bf16.xpose.msra.mxu0 0
  %3770 = vmatprep.subr.bf16.mxu0 0
  %3771 = vmatpush1.bf16.xpose.msra.mxu0 0
  %3772 = vmatprep.subr.bf16.mxu0 0
  %3773 = vmatpush1.bf16.xpose.msra.mxu0 %v3756
  %3774 = vmatprep.subr.bf16.mxu0 0
  %3775 = vmatpush2.bf16.xpose.msra.mxu0 0
  %3776 = vmatprep.subr.bf16.mxu0 0
  %3777 = vmatpush2.bf16.xpose.msra.mxu0 0
  %3778 = vmatprep.subr.bf16.mxu0 0
  %3779 = vmatpush2.bf16.xpose.msra.mxu0 0
  %3780 = vmatprep.subr.bf16.mxu0 0
  %3781 = vmatpush2.bf16.xpose.msra.mxu0 0
  %3782 = vmatprep.subr.bf16.mxu0 0
  %3783 = vmatpush2.bf16.xpose.msra.mxu0 0
  %3784 = vmatprep.subr.bf16.mxu0 0
  %3785 = vmatpush2.bf16.xpose.msra.mxu0 0
  %3786 = vmatprep.subr.bf16.mxu0 0
  %3787 = vmatpush2.bf16.xpose.msra.mxu0 0
  %3788 = vmatprep.subr.bf16.mxu0 0
  %3789 = vmatpush2.bf16.xpose.msra.mxu0 0
  %3790 = vmatprep.mubr.bf16.mxu0 0
  %3791 = vmatmul.mubr.bf16.gmra.mxu0 %v3753
  %v3792 = vpop.f32.mrf.mxu0
  %v3793 = vadd.f32 0.0, %v3792
  %v3794 = vpop.f32.mrf.mxu0
  %v3795 = vpop.f32.mrf.mxu0
  %v3796 = vadd.f32 0.0, %v3795
  %v3797 = vpop.f32.mrf.mxu0
  %3798 = vdwg.mxu0
  %v3800 = vsel %vm200, %v2585, 0
  %v3803 = vsel %vm200, %v2617, 0
  %3805 = vmatprep.subr.bf16.mxu0 0
  %3806 = vmatpush1.bf16.xpose.msra.mxu0 0
  %3807 = vmatprep.subr.bf16.mxu0 0
  %3808 = vmatpush1.bf16.xpose.msra.mxu0 0
  %3809 = vmatprep.subr.bf16.mxu0 0
  %3810 = vmatpush1.bf16.xpose.msra.mxu0 0
  %3811 = vmatprep.subr.bf16.mxu0 0
  %3812 = vmatpush1.bf16.xpose.msra.mxu0 0
  %3813 = vmatprep.subr.bf16.mxu0 0
  %3814 = vmatpush1.bf16.xpose.msra.mxu0 0
  %3815 = vmatprep.subr.bf16.mxu0 0
  %3816 = vmatpush1.bf16.xpose.msra.mxu0 0
  %3817 = vmatprep.subr.bf16.mxu0 0
  %3818 = vmatpush1.bf16.xpose.msra.mxu0 0
  %3819 = vmatprep.subr.bf16.mxu0 0
  %3820 = vmatpush1.bf16.xpose.msra.mxu0 %v3803
  %3821 = vmatprep.subr.bf16.mxu0 0
  %3822 = vmatpush2.bf16.xpose.msra.mxu0 0
  %3823 = vmatprep.subr.bf16.mxu0 0
  %3824 = vmatpush2.bf16.xpose.msra.mxu0 0
  %3825 = vmatprep.subr.bf16.mxu0 0
  %3826 = vmatpush2.bf16.xpose.msra.mxu0 0
  %3827 = vmatprep.subr.bf16.mxu0 0
  %3828 = vmatpush2.bf16.xpose.msra.mxu0 0
  %3829 = vmatprep.subr.bf16.mxu0 0
  %3830 = vmatpush2.bf16.xpose.msra.mxu0 0
  %3831 = vmatprep.subr.bf16.mxu0 0
  %3832 = vmatpush2.bf16.xpose.msra.mxu0 0
  %3833 = vmatprep.subr.bf16.mxu0 0
  %3834 = vmatpush2.bf16.xpose.msra.mxu0 0
  %3835 = vmatprep.subr.bf16.mxu0 0
  %3836 = vmatpush2.bf16.xpose.msra.mxu0 0
  %3837 = vmatprep.mubr.bf16.mxu0 0
  %3838 = vmatmul.mubr.bf16.gmra.mxu0 %v3800
  %v3839 = vpop.f32.mrf.mxu0
  %v3840 = vadd.f32 0.0, %v3839
  %v3841 = vpop.f32.mrf.mxu0
  %v3842 = vpop.f32.mrf.mxu0
  %v3843 = vadd.f32 0.0, %v3842
  %v3844 = vpop.f32.mrf.mxu0
  %3845 = vdwg.mxu0
  %v3847 = vsel %vm200, %v2586, 0
  %v3850 = vsel %vm200, %v2618, 0
  %3852 = vmatprep.subr.bf16.mxu0 0
  %3853 = vmatpush1.bf16.xpose.msra.mxu0 0
  %3854 = vmatprep.subr.bf16.mxu0 0
  %3855 = vmatpush1.bf16.xpose.msra.mxu0 0
  %3856 = vmatprep.subr.bf16.mxu0 0
  %3857 = vmatpush1.bf16.xpose.msra.mxu0 0
  %3858 = vmatprep.subr.bf16.mxu0 0
  %3859 = vmatpush1.bf16.xpose.msra.mxu0 0
  %3860 = vmatprep.subr.bf16.mxu0 0
  %3861 = vmatpush1.bf16.xpose.msra.mxu0 0
  %3862 = vmatprep.subr.bf16.mxu0 0
  %3863 = vmatpush1.bf16.xpose.msra.mxu0 0
  %3864 = vmatprep.subr.bf16.mxu0 0
  %3865 = vmatpush1.bf16.xpose.msra.mxu0 0
  %3866 = vmatprep.subr.bf16.mxu0 0
  %3867 = vmatpush1.bf16.xpose.msra.mxu0 %v3850
  %3868 = vmatprep.subr.bf16.mxu0 0
  %3869 = vmatpush2.bf16.xpose.msra.mxu0 0
  %3870 = vmatprep.subr.bf16.mxu0 0
  %3871 = vmatpush2.bf16.xpose.msra.mxu0 0
  %3872 = vmatprep.subr.bf16.mxu0 0
  %3873 = vmatpush2.bf16.xpose.msra.mxu0 0
  %3874 = vmatprep.subr.bf16.mxu0 0
  %3875 = vmatpush2.bf16.xpose.msra.mxu0 0
  %3876 = vmatprep.subr.bf16.mxu0 0
  %3877 = vmatpush2.bf16.xpose.msra.mxu0 0
  %3878 = vmatprep.subr.bf16.mxu0 0
  %3879 = vmatpush2.bf16.xpose.msra.mxu0 0
  %3880 = vmatprep.subr.bf16.mxu0 0
  %3881 = vmatpush2.bf16.xpose.msra.mxu0 0
  %3882 = vmatprep.subr.bf16.mxu0 0
  %3883 = vmatpush2.bf16.xpose.msra.mxu0 0
  %3884 = vmatprep.mubr.bf16.mxu0 0
  %3885 = vmatmul.mubr.bf16.gmra.mxu0 %v3847
  %v3886 = vpop.f32.mrf.mxu0
  %v3887 = vadd.f32 0.0, %v3886
  %v3888 = vpop.f32.mrf.mxu0
  %v3889 = vpop.f32.mrf.mxu0
  %v3890 = vadd.f32 0.0, %v3889
  %v3891 = vpop.f32.mrf.mxu0
  %3892 = vdwg.mxu0
  %v3894 = vsel %vm200, %v2587, 0
  %v3897 = vsel %vm200, %v2619, 0
  %3899 = vmatprep.subr.bf16.mxu0 0
  %3900 = vmatpush1.bf16.xpose.msra.mxu0 0
  %3901 = vmatprep.subr.bf16.mxu0 0
  %3902 = vmatpush1.bf16.xpose.msra.mxu0 0
  %3903 = vmatprep.subr.bf16.mxu0 0
  %3904 = vmatpush1.bf16.xpose.msra.mxu0 0
  %3905 = vmatprep.subr.bf16.mxu0 0
  %3906 = vmatpush1.bf16.xpose.msra.mxu0 0
  %3907 = vmatprep.subr.bf16.mxu0 0
  %3908 = vmatpush1.bf16.xpose.msra.mxu0 0
  %3909 = vmatprep.subr.bf16.mxu0 0
  %3910 = vmatpush1.bf16.xpose.msra.mxu0 0
  %3911 = vmatprep.subr.bf16.mxu0 0
  %3912 = vmatpush1.bf16.xpose.msra.mxu0 0
  %3913 = vmatprep.subr.bf16.mxu0 0
  %3914 = vmatpush1.bf16.xpose.msra.mxu0 %v3897
  %3915 = vmatprep.subr.bf16.mxu0 0
  %3916 = vmatpush2.bf16.xpose.msra.mxu0 0
  %3917 = vmatprep.subr.bf16.mxu0 0
  %3918 = vmatpush2.bf16.xpose.msra.mxu0 0
  %3919 = vmatprep.subr.bf16.mxu0 0
  %3920 = vmatpush2.bf16.xpose.msra.mxu0 0
  %3921 = vmatprep.subr.bf16.mxu0 0
  %3922 = vmatpush2.bf16.xpose.msra.mxu0 0
  %3923 = vmatprep.subr.bf16.mxu0 0
  %3924 = vmatpush2.bf16.xpose.msra.mxu0 0
  %3925 = vmatprep.subr.bf16.mxu0 0
  %3926 = vmatpush2.bf16.xpose.msra.mxu0 0
  %3927 = vmatprep.subr.bf16.mxu0 0
  %3928 = vmatpush2.bf16.xpose.msra.mxu0 0
  %3929 = vmatprep.subr.bf16.mxu0 0
  %3930 = vmatpush2.bf16.xpose.msra.mxu0 0
  %3931 = vmatprep.mubr.bf16.mxu0 0
  %3932 = vmatmul.mubr.bf16.gmra.mxu0 %v3894
  %v3933 = vpop.f32.mrf.mxu0
  %v3934 = vadd.f32 0.0, %v3933
  %v3935 = vpop.f32.mrf.mxu0
  %v3936 = vpop.f32.mrf.mxu0
  %v3937 = vadd.f32 0.0, %v3936
  %v3938 = vpop.f32.mrf.mxu0
  %3939 = vdwg.mxu0
  %v3941 = vsel %vm200, %v2588, 0
  %v3944 = vsel %vm200, %v2620, 0
  %3946 = vmatprep.subr.bf16.mxu0 0
  %3947 = vmatpush1.bf16.xpose.msra.mxu0 0
  %3948 = vmatprep.subr.bf16.mxu0 0
  %3949 = vmatpush1.bf16.xpose.msra.mxu0 0
  %3950 = vmatprep.subr.bf16.mxu0 0
  %3951 = vmatpush1.bf16.xpose.msra.mxu0 0
  %3952 = vmatprep.subr.bf16.mxu0 0
  %3953 = vmatpush1.bf16.xpose.msra.mxu0 0
  %3954 = vmatprep.subr.bf16.mxu0 0
  %3955 = vmatpush1.bf16.xpose.msra.mxu0 0
  %3956 = vmatprep.subr.bf16.mxu0 0
  %3957 = vmatpush1.bf16.xpose.msra.mxu0 0
  %3958 = vmatprep.subr.bf16.mxu0 0
  %3959 = vmatpush1.bf16.xpose.msra.mxu0 0
  %3960 = vmatprep.subr.bf16.mxu0 0
  %3961 = vmatpush1.bf16.xpose.msra.mxu0 %v3944
  %3962 = vmatprep.subr.bf16.mxu0 0
  %3963 = vmatpush2.bf16.xpose.msra.mxu0 0
  %3964 = vmatprep.subr.bf16.mxu0 0
  %3965 = vmatpush2.bf16.xpose.msra.mxu0 0
  %3966 = vmatprep.subr.bf16.mxu0 0
  %3967 = vmatpush2.bf16.xpose.msra.mxu0 0
  %3968 = vmatprep.subr.bf16.mxu0 0
  %3969 = vmatpush2.bf16.xpose.msra.mxu0 0
  %3970 = vmatprep.subr.bf16.mxu0 0
  %3971 = vmatpush2.bf16.xpose.msra.mxu0 0
  %3972 = vmatprep.subr.bf16.mxu0 0
  %3973 = vmatpush2.bf16.xpose.msra.mxu0 0
  %3974 = vmatprep.subr.bf16.mxu0 0
  %3975 = vmatpush2.bf16.xpose.msra.mxu0 0
  %3976 = vmatprep.subr.bf16.mxu0 0
  %3977 = vmatpush2.bf16.xpose.msra.mxu0 0
  %3978 = vmatprep.mubr.bf16.mxu0 0
  %3979 = vmatmul.mubr.bf16.gmra.mxu0 %v3941
  %v3980 = vpop.f32.mrf.mxu0
  %v3981 = vadd.f32 0.0, %v3980
  %v3982 = vpop.f32.mrf.mxu0
  %v3983 = vpop.f32.mrf.mxu0
  %v3984 = vadd.f32 0.0, %v3983
  %v3985 = vpop.f32.mrf.mxu0
  %3986 = vdwg.mxu0
  %v3988 = vsel %vm200, %v2589, 0
  %v3991 = vsel %vm200, %v2621, 0
  %3993 = vmatprep.subr.bf16.mxu0 0
  %3994 = vmatpush1.bf16.xpose.msra.mxu0 0
  %3995 = vmatprep.subr.bf16.mxu0 0
  %3996 = vmatpush1.bf16.xpose.msra.mxu0 0
  %3997 = vmatprep.subr.bf16.mxu0 0
  %3998 = vmatpush1.bf16.xpose.msra.mxu0 0
  %3999 = vmatprep.subr.bf16.mxu0 0
  %4000 = vmatpush1.bf16.xpose.msra.mxu0 0
  %4001 = vmatprep.subr.bf16.mxu0 0
  %4002 = vmatpush1.bf16.xpose.msra.mxu0 0
  %4003 = vmatprep.subr.bf16.mxu0 0
  %4004 = vmatpush1.bf16.xpose.msra.mxu0 0
  %4005 = vmatprep.subr.bf16.mxu0 0
  %4006 = vmatpush1.bf16.xpose.msra.mxu0 0
  %4007 = vmatprep.subr.bf16.mxu0 0
  %4008 = vmatpush1.bf16.xpose.msra.mxu0 %v3991
  %4009 = vmatprep.subr.bf16.mxu0 0
  %4010 = vmatpush2.bf16.xpose.msra.mxu0 0
  %4011 = vmatprep.subr.bf16.mxu0 0
  %4012 = vmatpush2.bf16.xpose.msra.mxu0 0
  %4013 = vmatprep.subr.bf16.mxu0 0
  %4014 = vmatpush2.bf16.xpose.msra.mxu0 0
  %4015 = vmatprep.subr.bf16.mxu0 0
  %4016 = vmatpush2.bf16.xpose.msra.mxu0 0
  %4017 = vmatprep.subr.bf16.mxu0 0
  %4018 = vmatpush2.bf16.xpose.msra.mxu0 0
  %4019 = vmatprep.subr.bf16.mxu0 0
  %4020 = vmatpush2.bf16.xpose.msra.mxu0 0
  %4021 = vmatprep.subr.bf16.mxu0 0
  %4022 = vmatpush2.bf16.xpose.msra.mxu0 0
  %4023 = vmatprep.subr.bf16.mxu0 0
  %4024 = vmatpush2.bf16.xpose.msra.mxu0 0
  %4025 = vmatprep.mubr.bf16.mxu0 0
  %4026 = vmatmul.mubr.bf16.gmra.mxu0 %v3988
  %v4027 = vpop.f32.mrf.mxu0
  %v4028 = vadd.f32 0.0, %v4027
  %v4029 = vpop.f32.mrf.mxu0
  %v4030 = vpop.f32.mrf.mxu0
  %v4031 = vadd.f32 0.0, %v4030
  %v4032 = vpop.f32.mrf.mxu0
  %4033 = vdwg.mxu0
  %v4035 = vsel %vm200, %v2590, 0
  %v4038 = vsel %vm200, %v2622, 0
  %4040 = vmatprep.subr.bf16.mxu0 0
  %4041 = vmatpush1.bf16.xpose.msra.mxu0 0
  %4042 = vmatprep.subr.bf16.mxu0 0
  %4043 = vmatpush1.bf16.xpose.msra.mxu0 0
  %4044 = vmatprep.subr.bf16.mxu0 0
  %4045 = vmatpush1.bf16.xpose.msra.mxu0 0
  %4046 = vmatprep.subr.bf16.mxu0 0
  %4047 = vmatpush1.bf16.xpose.msra.mxu0 0
  %4048 = vmatprep.subr.bf16.mxu0 0
  %4049 = vmatpush1.bf16.xpose.msra.mxu0 0
  %4050 = vmatprep.subr.bf16.mxu0 0
  %4051 = vmatpush1.bf16.xpose.msra.mxu0 0
  %4052 = vmatprep.subr.bf16.mxu0 0
  %4053 = vmatpush1.bf16.xpose.msra.mxu0 0
  %4054 = vmatprep.subr.bf16.mxu0 0
  %4055 = vmatpush1.bf16.xpose.msra.mxu0 %v4038
  %4056 = vmatprep.subr.bf16.mxu0 0
  %4057 = vmatpush2.bf16.xpose.msra.mxu0 0
  %4058 = vmatprep.subr.bf16.mxu0 0
  %4059 = vmatpush2.bf16.xpose.msra.mxu0 0
  %4060 = vmatprep.subr.bf16.mxu0 0
  %4061 = vmatpush2.bf16.xpose.msra.mxu0 0
  %4062 = vmatprep.subr.bf16.mxu0 0
  %4063 = vmatpush2.bf16.xpose.msra.mxu0 0
  %4064 = vmatprep.subr.bf16.mxu0 0
  %4065 = vmatpush2.bf16.xpose.msra.mxu0 0
  %4066 = vmatprep.subr.bf16.mxu0 0
  %4067 = vmatpush2.bf16.xpose.msra.mxu0 0
  %4068 = vmatprep.subr.bf16.mxu0 0
  %4069 = vmatpush2.bf16.xpose.msra.mxu0 0
  %4070 = vmatprep.subr.bf16.mxu0 0
  %4071 = vmatpush2.bf16.xpose.msra.mxu0 0
  %4072 = vmatprep.mubr.bf16.mxu0 0
  %4073 = vmatmul.mubr.bf16.gmra.mxu0 %v4035
  %v4074 = vpop.f32.mrf.mxu0
  %v4075 = vadd.f32 0.0, %v4074
  %v4076 = vpop.f32.mrf.mxu0
  %v4077 = vpop.f32.mrf.mxu0
  %v4078 = vadd.f32 0.0, %v4077
  %v4079 = vpop.f32.mrf.mxu0
  %4080 = vdwg.mxu0
  %v4082 = vsel %vm200, %v2591, 0
  %v4085 = vsel %vm200, %v2623, 0
  %4087 = vmatprep.subr.bf16.mxu0 0
  %4088 = vmatpush1.bf16.xpose.msra.mxu0 0
  %4089 = vmatprep.subr.bf16.mxu0 0
  %4090 = vmatpush1.bf16.xpose.msra.mxu0 0
  %4091 = vmatprep.subr.bf16.mxu0 0
  %4092 = vmatpush1.bf16.xpose.msra.mxu0 0
  %4093 = vmatprep.subr.bf16.mxu0 0
  %4094 = vmatpush1.bf16.xpose.msra.mxu0 0
  %4095 = vmatprep.subr.bf16.mxu0 0
  %4096 = vmatpush1.bf16.xpose.msra.mxu0 0
  %4097 = vmatprep.subr.bf16.mxu0 0
  %4098 = vmatpush1.bf16.xpose.msra.mxu0 0
  %4099 = vmatprep.subr.bf16.mxu0 0
  %4100 = vmatpush1.bf16.xpose.msra.mxu0 0
  %4101 = vmatprep.subr.bf16.mxu0 0
  %4102 = vmatpush1.bf16.xpose.msra.mxu0 %v4085
  %4103 = vmatprep.subr.bf16.mxu0 0
  %4104 = vmatpush2.bf16.xpose.msra.mxu0 0
  %4105 = vmatprep.subr.bf16.mxu0 0
  %4106 = vmatpush2.bf16.xpose.msra.mxu0 0
  %4107 = vmatprep.subr.bf16.mxu0 0
  %4108 = vmatpush2.bf16.xpose.msra.mxu0 0
  %4109 = vmatprep.subr.bf16.mxu0 0
  %4110 = vmatpush2.bf16.xpose.msra.mxu0 0
  %4111 = vmatprep.subr.bf16.mxu0 0
  %4112 = vmatpush2.bf16.xpose.msra.mxu0 0
  %4113 = vmatprep.subr.bf16.mxu0 0
  %4114 = vmatpush2.bf16.xpose.msra.mxu0 0
  %4115 = vmatprep.subr.bf16.mxu0 0
  %4116 = vmatpush2.bf16.xpose.msra.mxu0 0
  %4117 = vmatprep.subr.bf16.mxu0 0
  %4118 = vmatpush2.bf16.xpose.msra.mxu0 0
  %4119 = vmatprep.mubr.bf16.mxu0 0
  %4120 = vmatmul.mubr.bf16.gmra.mxu0 %v4082
  %v4121 = vpop.f32.mrf.mxu0
  %v4122 = vadd.f32 0.0, %v4121
  %v4123 = vpop.f32.mrf.mxu0
  %v4124 = vpop.f32.mrf.mxu0
  %v4125 = vadd.f32 0.0, %v4124
  %v4126 = vpop.f32.mrf.mxu0
  %4127 = vdwg.mxu0
  %v4128 = vld [vmem:[%s7] sm:$0xff]
  %v4129 = vld [vmem:[%s7 + $0x8] sm:$0xff]
  %v4130 = vld [vmem:[%s7 + $0x10] sm:$0xff]
  %v4131 = vld [vmem:[%s7 + $0x18] sm:$0xff]
  %v4132 = vld [vmem:[%s7 + $0x20] sm:$0xff]
  %v4133 = vld [vmem:[%s7 + $0x28] sm:$0xff]
  %v4134 = vld [vmem:[%s7 + $0x30] sm:$0xff]
  %v4135 = vld [vmem:[%s7 + $0x38] sm:$0xff]
  %v4136 = vadd.f32 %v2665, %v4128
  %v4137 = vadd.f32 %v2668, %v4129
  %v4138 = vadd.f32 %v2712, %v4128
  %v4139 = vadd.f32 %v2715, %v4129
  %v4140 = vadd.f32 %v2759, %v4128
  %v4141 = vadd.f32 %v2762, %v4129
  %v4142 = vadd.f32 %v2806, %v4128
  %v4143 = vadd.f32 %v2809, %v4129
  %v4144 = vadd.f32 %v2853, %v4128
  %v4145 = vadd.f32 %v2856, %v4129
  %v4146 = vadd.f32 %v2900, %v4128
  %v4147 = vadd.f32 %v2903, %v4129
  %v4148 = vadd.f32 %v2947, %v4128
  %v4149 = vadd.f32 %v2950, %v4129
  %v4150 = vadd.f32 %v2994, %v4128
  %v4151 = vadd.f32 %v2997, %v4129
  %v4152 = vadd.f32 %v3041, %v4130
  %v4153 = vadd.f32 %v3044, %v4131
  %v4154 = vadd.f32 %v3088, %v4130
  %v4155 = vadd.f32 %v3091, %v4131
  %v4156 = vadd.f32 %v3135, %v4130
  %v4157 = vadd.f32 %v3138, %v4131
  %v4158 = vadd.f32 %v3182, %v4130
  %v4159 = vadd.f32 %v3185, %v4131
  %v4160 = vadd.f32 %v3229, %v4130
  %v4161 = vadd.f32 %v3232, %v4131
  %v4162 = vadd.f32 %v3276, %v4130
  %v4163 = vadd.f32 %v3279, %v4131
  %v4164 = vadd.f32 %v3323, %v4130
  %v4165 = vadd.f32 %v3326, %v4131
  %v4166 = vadd.f32 %v3370, %v4130
  %v4167 = vadd.f32 %v3373, %v4131
  %v4168 = vadd.f32 %v3417, %v4132
  %v4169 = vadd.f32 %v3420, %v4133
  %v4170 = vadd.f32 %v3464, %v4132
  %v4171 = vadd.f32 %v3467, %v4133
  %v4172 = vadd.f32 %v3511, %v4132
  %v4173 = vadd.f32 %v3514, %v4133
  %v4174 = vadd.f32 %v3558, %v4132
  %v4175 = vadd.f32 %v3561, %v4133
  %v4176 = vadd.f32 %v3605, %v4132
  %v4177 = vadd.f32 %v3608, %v4133
  %v4178 = vadd.f32 %v3652, %v4132
  %v4179 = vadd.f32 %v3655, %v4133
  %v4180 = vadd.f32 %v3699, %v4132
  %v4181 = vadd.f32 %v3702, %v4133
  %v4182 = vadd.f32 %v3746, %v4132
  %v4183 = vadd.f32 %v3749, %v4133
  %v4184 = vadd.f32 %v3793, %v4134
  %v4185 = vadd.f32 %v3796, %v4135
  %v4186 = vadd.f32 %v3840, %v4134
  %v4187 = vadd.f32 %v3843, %v4135
  %v4188 = vadd.f32 %v3887, %v4134
  %v4189 = vadd.f32 %v3890, %v4135
  %v4190 = vadd.f32 %v3934, %v4134
  %v4191 = vadd.f32 %v3937, %v4135
  %v4192 = vadd.f32 %v3981, %v4134
  %v4193 = vadd.f32 %v3984, %v4135
  %v4194 = vadd.f32 %v4028, %v4134
  %v4195 = vadd.f32 %v4031, %v4135
  %v4196 = vadd.f32 %v4075, %v4134
  %v4197 = vadd.f32 %v4078, %v4135
  %v4198 = vadd.f32 %v4122, %v4134
  %v4199 = vadd.f32 %v4125, %v4135
  %v4200 = vld [vmem:[%s8] sm:$0xff]
  %v4201 = vld [vmem:[%s8 + $0x8] sm:$0xff]
  %v4202 = vld [vmem:[%s8 + $0x10] sm:$0xff]
  %v4203 = vld [vmem:[%s8 + $0x18] sm:$0xff]
  %v4204 = vld [vmem:[%s8 + $0x20] sm:$0xff]
  %v4205 = vld [vmem:[%s8 + $0x28] sm:$0xff]
  %v4206 = vld [vmem:[%s8 + $0x30] sm:$0xff]
  %v4207 = vld [vmem:[%s8 + $0x38] sm:$0xff]
  %v4208 = vadd.f32 %v4136, %v4200
  %v4209 = vadd.f32 %v4137, %v4201
  %v4210 = vadd.f32 %v4138, %v4202
  %v4211 = vadd.f32 %v4139, %v4203
  %v4212 = vadd.f32 %v4140, %v4204
  %v4213 = vadd.f32 %v4141, %v4205
  %v4214 = vadd.f32 %v4142, %v4206
  %v4215 = vadd.f32 %v4143, %v4207
  %v4216 = vadd.f32 %v4144, %v4200
  %v4217 = vadd.f32 %v4145, %v4201
  %v4218 = vadd.f32 %v4146, %v4202
  %v4219 = vadd.f32 %v4147, %v4203
  %v4220 = vadd.f32 %v4148, %v4204
  %v4221 = vadd.f32 %v4149, %v4205
  %v4222 = vadd.f32 %v4150, %v4206
  %v4223 = vadd.f32 %v4151, %v4207
  %v4224 = vadd.f32 %v4152, %v4200
  %v4225 = vadd.f32 %v4153, %v4201
  %v4226 = vadd.f32 %v4154, %v4202
  %v4227 = vadd.f32 %v4155, %v4203
  %v4228 = vadd.f32 %v4156, %v4204
  %v4229 = vadd.f32 %v4157, %v4205
  %v4230 = vadd.f32 %v4158, %v4206
  %v4231 = vadd.f32 %v4159, %v4207
  %v4232 = vadd.f32 %v4160, %v4200
  %v4233 = vadd.f32 %v4161, %v4201
  %v4234 = vadd.f32 %v4162, %v4202
  %v4235 = vadd.f32 %v4163, %v4203
  %v4236 = vadd.f32 %v4164, %v4204
  %v4237 = vadd.f32 %v4165, %v4205
  %v4238 = vadd.f32 %v4166, %v4206
  %v4239 = vadd.f32 %v4167, %v4207
  %v4240 = vadd.f32 %v4168, %v4200
  %v4241 = vadd.f32 %v4169, %v4201
  %v4242 = vadd.f32 %v4170, %v4202
  %v4243 = vadd.f32 %v4171, %v4203
  %v4244 = vadd.f32 %v4172, %v4204
  %v4245 = vadd.f32 %v4173, %v4205
  %v4246 = vadd.f32 %v4174, %v4206
  %v4247 = vadd.f32 %v4175, %v4207
  %v4248 = vadd.f32 %v4176, %v4200
  %v4249 = vadd.f32 %v4177, %v4201
  %v4250 = vadd.f32 %v4178, %v4202
  %v4251 = vadd.f32 %v4179, %v4203
  %v4252 = vadd.f32 %v4180, %v4204
  %v4253 = vadd.f32 %v4181, %v4205
  %v4254 = vadd.f32 %v4182, %v4206
  %v4255 = vadd.f32 %v4183, %v4207
  %v4256 = vadd.f32 %v4184, %v4200
  %v4257 = vadd.f32 %v4185, %v4201
  %v4258 = vadd.f32 %v4186, %v4202
  %v4259 = vadd.f32 %v4187, %v4203
  %v4260 = vadd.f32 %v4188, %v4204
  %v4261 = vadd.f32 %v4189, %v4205
  %v4262 = vadd.f32 %v4190, %v4206
  %v4263 = vadd.f32 %v4191, %v4207
  %v4264 = vadd.f32 %v4192, %v4200
  %v4265 = vadd.f32 %v4193, %v4201
  %v4266 = vadd.f32 %v4194, %v4202
  %v4267 = vadd.f32 %v4195, %v4203
  %v4268 = vadd.f32 %v4196, %v4204
  %v4269 = vadd.f32 %v4197, %v4205
  %v4270 = vadd.f32 %v4198, %v4206
  %v4271 = vadd.f32 %v4199, %v4207
  %vm4272 = vcmask 130048
  %v4273 = vsel %vm4272, %v4208, -inf
  %4274 = vmax.xlane.f32.xlu0 %v4273
  %v4275 = vpop.xlane.xlu0 %4274
  %v4276 = vsel %vm4272, %v4209, -inf
  %4277 = vmax.xlane.f32.xlu0 %v4276
  %v4278 = vpop.xlane.xlu0 %4277
  %v4279 = vsel %vm4272, %v4210, -inf
  %4280 = vmax.xlane.f32.xlu0 %v4279
  %v4281 = vpop.xlane.xlu0 %4280
  %v4282 = vsel %vm4272, %v4211, -inf
  %4283 = vmax.xlane.f32.xlu0 %v4282
  %v4284 = vpop.xlane.xlu0 %4283
  %v4285 = vsel %vm4272, %v4212, -inf
  %4286 = vmax.xlane.f32.xlu0 %v4285
  %v4287 = vpop.xlane.xlu0 %4286
  %v4288 = vsel %vm4272, %v4213, -inf
  %4289 = vmax.xlane.f32.xlu0 %v4288
  %v4290 = vpop.xlane.xlu0 %4289
  %v4291 = vsel %vm4272, %v4214, -inf
  %4292 = vmax.xlane.f32.xlu0 %v4291
  %v4293 = vpop.xlane.xlu0 %4292
  %v4294 = vsel %vm4272, %v4215, -inf
  %4295 = vmax.xlane.f32.xlu0 %v4294
  %v4296 = vpop.xlane.xlu0 %4295
  %v4297 = vsel %vm4272, %v4216, -inf
  %4298 = vmax.xlane.f32.xlu0 %v4297
  %v4299 = vpop.xlane.xlu0 %4298
  %v4300 = vsel %vm4272, %v4217, -inf
  %4301 = vmax.xlane.f32.xlu0 %v4300
  %v4302 = vpop.xlane.xlu0 %4301
  %v4303 = vsel %vm4272, %v4218, -inf
  %4304 = vmax.xlane.f32.xlu0 %v4303
  %v4305 = vpop.xlane.xlu0 %4304
  %v4306 = vsel %vm4272, %v4219, -inf
  %4307 = vmax.xlane.f32.xlu0 %v4306
  %v4308 = vpop.xlane.xlu0 %4307
  %v4309 = vsel %vm4272, %v4220, -inf
  %4310 = vmax.xlane.f32.xlu0 %v4309
  %v4311 = vpop.xlane.xlu0 %4310
  %v4312 = vsel %vm4272, %v4221, -inf
  %4313 = vmax.xlane.f32.xlu0 %v4312
  %v4314 = vpop.xlane.xlu0 %4313
  %v4315 = vsel %vm4272, %v4222, -inf
  %4316 = vmax.xlane.f32.xlu0 %v4315
  %v4317 = vpop.xlane.xlu0 %4316
  %v4318 = vsel %vm4272, %v4223, -inf
  %4319 = vmax.xlane.f32.xlu0 %v4318
  %v4320 = vpop.xlane.xlu0 %4319
  %v4321 = vsel %vm4272, %v4224, -inf
  %4322 = vmax.xlane.f32.xlu0 %v4321
  %v4323 = vpop.xlane.xlu0 %4322
  %v4324 = vsel %vm4272, %v4225, -inf
  %4325 = vmax.xlane.f32.xlu0 %v4324
  %v4326 = vpop.xlane.xlu0 %4325
  %v4327 = vsel %vm4272, %v4226, -inf
  %4328 = vmax.xlane.f32.xlu0 %v4327
  %v4329 = vpop.xlane.xlu0 %4328
  %v4330 = vsel %vm4272, %v4227, -inf
  %4331 = vmax.xlane.f32.xlu0 %v4330
  %v4332 = vpop.xlane.xlu0 %4331
  %v4333 = vsel %vm4272, %v4228, -inf
  %4334 = vmax.xlane.f32.xlu0 %v4333
  %v4335 = vpop.xlane.xlu0 %4334
  %v4336 = vsel %vm4272, %v4229, -inf
  %4337 = vmax.xlane.f32.xlu0 %v4336
  %v4338 = vpop.xlane.xlu0 %4337
  %v4339 = vsel %vm4272, %v4230, -inf
  %4340 = vmax.xlane.f32.xlu0 %v4339
  %v4341 = vpop.xlane.xlu0 %4340
  %v4342 = vsel %vm4272, %v4231, -inf
  %4343 = vmax.xlane.f32.xlu0 %v4342
  %v4344 = vpop.xlane.xlu0 %4343
  %v4345 = vsel %vm4272, %v4232, -inf
  %4346 = vmax.xlane.f32.xlu0 %v4345
  %v4347 = vpop.xlane.xlu0 %4346
  %v4348 = vsel %vm4272, %v4233, -inf
  %4349 = vmax.xlane.f32.xlu0 %v4348
  %v4350 = vpop.xlane.xlu0 %4349
  %v4351 = vsel %vm4272, %v4234, -inf
  %4352 = vmax.xlane.f32.xlu0 %v4351
  %v4353 = vpop.xlane.xlu0 %4352
  %v4354 = vsel %vm4272, %v4235, -inf
  %4355 = vmax.xlane.f32.xlu0 %v4354
  %v4356 = vpop.xlane.xlu0 %4355
  %v4357 = vsel %vm4272, %v4236, -inf
  %4358 = vmax.xlane.f32.xlu0 %v4357
  %v4359 = vpop.xlane.xlu0 %4358
  %v4360 = vsel %vm4272, %v4237, -inf
  %4361 = vmax.xlane.f32.xlu0 %v4360
  %v4362 = vpop.xlane.xlu0 %4361
  %v4363 = vsel %vm4272, %v4238, -inf
  %4364 = vmax.xlane.f32.xlu0 %v4363
  %v4365 = vpop.xlane.xlu0 %4364
  %v4366 = vsel %vm4272, %v4239, -inf
  %4367 = vmax.xlane.f32.xlu0 %v4366
  %v4368 = vpop.xlane.xlu0 %4367
  %v4369 = vsel %vm4272, %v4240, -inf
  %4370 = vmax.xlane.f32.xlu0 %v4369
  %v4371 = vpop.xlane.xlu0 %4370
  %v4372 = vsel %vm4272, %v4241, -inf
  %4373 = vmax.xlane.f32.xlu0 %v4372
  %v4374 = vpop.xlane.xlu0 %4373
  %v4375 = vsel %vm4272, %v4242, -inf
  %4376 = vmax.xlane.f32.xlu0 %v4375
  %v4377 = vpop.xlane.xlu0 %4376
  %v4378 = vsel %vm4272, %v4243, -inf
  %4379 = vmax.xlane.f32.xlu0 %v4378
  %v4380 = vpop.xlane.xlu0 %4379
  %v4381 = vsel %vm4272, %v4244, -inf
  %4382 = vmax.xlane.f32.xlu0 %v4381
  %v4383 = vpop.xlane.xlu0 %4382
  %v4384 = vsel %vm4272, %v4245, -inf
  %4385 = vmax.xlane.f32.xlu0 %v4384
  %v4386 = vpop.xlane.xlu0 %4385
  %v4387 = vsel %vm4272, %v4246, -inf
  %4388 = vmax.xlane.f32.xlu0 %v4387
  %v4389 = vpop.xlane.xlu0 %4388
  %v4390 = vsel %vm4272, %v4247, -inf
  %4391 = vmax.xlane.f32.xlu0 %v4390
  %v4392 = vpop.xlane.xlu0 %4391
  %v4393 = vsel %vm4272, %v4248, -inf
  %4394 = vmax.xlane.f32.xlu0 %v4393
  %v4395 = vpop.xlane.xlu0 %4394
  %v4396 = vsel %vm4272, %v4249, -inf
  %4397 = vmax.xlane.f32.xlu0 %v4396
  %v4398 = vpop.xlane.xlu0 %4397
  %v4399 = vsel %vm4272, %v4250, -inf
  %4400 = vmax.xlane.f32.xlu0 %v4399
  %v4401 = vpop.xlane.xlu0 %4400
  %v4402 = vsel %vm4272, %v4251, -inf
  %4403 = vmax.xlane.f32.xlu0 %v4402
  %v4404 = vpop.xlane.xlu0 %4403
  %v4405 = vsel %vm4272, %v4252, -inf
  %4406 = vmax.xlane.f32.xlu0 %v4405
  %v4407 = vpop.xlane.xlu0 %4406
  %v4408 = vsel %vm4272, %v4253, -inf
  %4409 = vmax.xlane.f32.xlu0 %v4408
  %v4410 = vpop.xlane.xlu0 %4409
  %v4411 = vsel %vm4272, %v4254, -inf
  %4412 = vmax.xlane.f32.xlu0 %v4411
  %v4413 = vpop.xlane.xlu0 %4412
  %v4414 = vsel %vm4272, %v4255, -inf
  %4415 = vmax.xlane.f32.xlu0 %v4414
  %v4416 = vpop.xlane.xlu0 %4415
  %v4417 = vsel %vm4272, %v4256, -inf
  %4418 = vmax.xlane.f32.xlu0 %v4417
  %v4419 = vpop.xlane.xlu0 %4418
  %v4420 = vsel %vm4272, %v4257, -inf
  %4421 = vmax.xlane.f32.xlu0 %v4420
  %v4422 = vpop.xlane.xlu0 %4421
  %v4423 = vsel %vm4272, %v4258, -inf
  %4424 = vmax.xlane.f32.xlu0 %v4423
  %v4425 = vpop.xlane.xlu0 %4424
  %v4426 = vsel %vm4272, %v4259, -inf
  %4427 = vmax.xlane.f32.xlu0 %v4426
  %v4428 = vpop.xlane.xlu0 %4427
  %v4429 = vsel %vm4272, %v4260, -inf
  %4430 = vmax.xlane.f32.xlu0 %v4429
  %v4431 = vpop.xlane.xlu0 %4430
  %v4432 = vsel %vm4272, %v4261, -inf
  %4433 = vmax.xlane.f32.xlu0 %v4432
  %v4434 = vpop.xlane.xlu0 %4433
  %v4435 = vsel %vm4272, %v4262, -inf
  %4436 = vmax.xlane.f32.xlu0 %v4435
  %v4437 = vpop.xlane.xlu0 %4436
  %v4438 = vsel %vm4272, %v4263, -inf
  %4439 = vmax.xlane.f32.xlu0 %v4438
  %v4440 = vpop.xlane.xlu0 %4439
  %v4441 = vsel %vm4272, %v4264, -inf
  %4442 = vmax.xlane.f32.xlu0 %v4441
  %v4443 = vpop.xlane.xlu0 %4442
  %v4444 = vsel %vm4272, %v4265, -inf
  %4445 = vmax.xlane.f32.xlu0 %v4444
  %v4446 = vpop.xlane.xlu0 %4445
  %v4447 = vsel %vm4272, %v4266, -inf
  %4448 = vmax.xlane.f32.xlu0 %v4447
  %v4449 = vpop.xlane.xlu0 %4448
  %v4450 = vsel %vm4272, %v4267, -inf
  %4451 = vmax.xlane.f32.xlu0 %v4450
  %v4452 = vpop.xlane.xlu0 %4451
  %v4453 = vsel %vm4272, %v4268, -inf
  %4454 = vmax.xlane.f32.xlu0 %v4453
  %v4455 = vpop.xlane.xlu0 %4454
  %v4456 = vsel %vm4272, %v4269, -inf
  %4457 = vmax.xlane.f32.xlu0 %v4456
  %v4458 = vpop.xlane.xlu0 %4457
  %v4459 = vsel %vm4272, %v4270, -inf
  %4460 = vmax.xlane.f32.xlu0 %v4459
  %v4461 = vpop.xlane.xlu0 %4460
  %v4462 = vsel %vm4272, %v4271, -inf
  %4463 = vmax.xlane.f32.xlu0 %v4462
  %v4464 = vpop.xlane.xlu0 %4463
  %v4465 = vsub.f32 %v4208, %v4275
  %v4466 = vsub.f32 %v4209, %v4278
  %v4467 = vsub.f32 %v4210, %v4281
  %v4468 = vsub.f32 %v4211, %v4284
  %v4469 = vsub.f32 %v4212, %v4287
  %v4470 = vsub.f32 %v4213, %v4290
  %v4471 = vsub.f32 %v4214, %v4293
  %v4472 = vsub.f32 %v4215, %v4296
  %v4473 = vsub.f32 %v4216, %v4299
  %v4474 = vsub.f32 %v4217, %v4302
  %v4475 = vsub.f32 %v4218, %v4305
  %v4476 = vsub.f32 %v4219, %v4308
  %v4477 = vsub.f32 %v4220, %v4311
  %v4478 = vsub.f32 %v4221, %v4314
  %v4479 = vsub.f32 %v4222, %v4317
  %v4480 = vsub.f32 %v4223, %v4320
  %v4481 = vsub.f32 %v4224, %v4323
  %v4482 = vsub.f32 %v4225, %v4326
  %v4483 = vsub.f32 %v4226, %v4329
  %v4484 = vsub.f32 %v4227, %v4332
  %v4485 = vsub.f32 %v4228, %v4335
  %v4486 = vsub.f32 %v4229, %v4338
  %v4487 = vsub.f32 %v4230, %v4341
  %v4488 = vsub.f32 %v4231, %v4344
  %v4489 = vsub.f32 %v4232, %v4347
  %v4490 = vsub.f32 %v4233, %v4350
  %v4491 = vsub.f32 %v4234, %v4353
  %v4492 = vsub.f32 %v4235, %v4356
  %v4493 = vsub.f32 %v4236, %v4359
  %v4494 = vsub.f32 %v4237, %v4362
  %v4495 = vsub.f32 %v4238, %v4365
  %v4496 = vsub.f32 %v4239, %v4368
  %v4497 = vsub.f32 %v4240, %v4371
  %v4498 = vsub.f32 %v4241, %v4374
  %v4499 = vsub.f32 %v4242, %v4377
  %v4500 = vsub.f32 %v4243, %v4380
  %v4501 = vsub.f32 %v4244, %v4383
  %v4502 = vsub.f32 %v4245, %v4386
  %v4503 = vsub.f32 %v4246, %v4389
  %v4504 = vsub.f32 %v4247, %v4392
  %v4505 = vsub.f32 %v4248, %v4395
  %v4506 = vsub.f32 %v4249, %v4398
  %v4507 = vsub.f32 %v4250, %v4401
  %v4508 = vsub.f32 %v4251, %v4404
  %v4509 = vsub.f32 %v4252, %v4407
  %v4510 = vsub.f32 %v4253, %v4410
  %v4511 = vsub.f32 %v4254, %v4413
  %v4512 = vsub.f32 %v4255, %v4416
  %v4513 = vsub.f32 %v4256, %v4419
  %v4514 = vsub.f32 %v4257, %v4422
  %v4515 = vsub.f32 %v4258, %v4425
  %v4516 = vsub.f32 %v4259, %v4428
  %v4517 = vsub.f32 %v4260, %v4431
  %v4518 = vsub.f32 %v4261, %v4434
  %v4519 = vsub.f32 %v4262, %v4437
  %v4520 = vsub.f32 %v4263, %v4440
  %v4521 = vsub.f32 %v4264, %v4443
  %v4522 = vsub.f32 %v4265, %v4446
  %v4523 = vsub.f32 %v4266, %v4449
  %v4524 = vsub.f32 %v4267, %v4452
  %v4525 = vsub.f32 %v4268, %v4455
  %v4526 = vsub.f32 %v4269, %v4458
  %v4527 = vsub.f32 %v4270, %v4461
  %v4528 = vsub.f32 %v4271, %v4464
  %v4529 = vmul.f32 %v4465, 1.442695
  %v4530 = vpow.pop %v4529
  %v4531 = vmul.f32 %v4466, 1.442695
  %v4532 = vpow.pop %v4531
  %v4533 = vmul.f32 %v4467, 1.442695
  %v4534 = vpow.pop %v4533
  %v4535 = vmul.f32 %v4468, 1.442695
  %v4536 = vpow.pop %v4535
  %v4537 = vmul.f32 %v4469, 1.442695
  %v4538 = vpow.pop %v4537
  %v4539 = vmul.f32 %v4470, 1.442695
  %v4540 = vpow.pop %v4539
  %v4541 = vmul.f32 %v4471, 1.442695
  %v4542 = vpow.pop %v4541
  %v4543 = vmul.f32 %v4472, 1.442695
  %v4544 = vpow.pop %v4543
  %v4545 = vmul.f32 %v4473, 1.442695
  %v4546 = vpow.pop %v4545
  %v4547 = vmul.f32 %v4474, 1.442695
  %v4548 = vpow.pop %v4547
  %v4549 = vmul.f32 %v4475, 1.442695
  %v4550 = vpow.pop %v4549
  %v4551 = vmul.f32 %v4476, 1.442695
  %v4552 = vpow.pop %v4551
  %v4553 = vmul.f32 %v4477, 1.442695
  %v4554 = vpow.pop %v4553
  %v4555 = vmul.f32 %v4478, 1.442695
  %v4556 = vpow.pop %v4555
  %v4557 = vmul.f32 %v4479, 1.442695
  %v4558 = vpow.pop %v4557
  %v4559 = vmul.f32 %v4480, 1.442695
  %v4560 = vpow.pop %v4559
  %v4561 = vmul.f32 %v4481, 1.442695
  %v4562 = vpow.pop %v4561
  %v4563 = vmul.f32 %v4482, 1.442695
  %v4564 = vpow.pop %v4563
  %v4565 = vmul.f32 %v4483, 1.442695
  %v4566 = vpow.pop %v4565
  %v4567 = vmul.f32 %v4484, 1.442695
  %v4568 = vpow.pop %v4567
  %v4569 = vmul.f32 %v4485, 1.442695
  %v4570 = vpow.pop %v4569
  %v4571 = vmul.f32 %v4486, 1.442695
  %v4572 = vpow.pop %v4571
  %v4573 = vmul.f32 %v4487, 1.442695
  %v4574 = vpow.pop %v4573
  %v4575 = vmul.f32 %v4488, 1.442695
  %v4576 = vpow.pop %v4575
  %v4577 = vmul.f32 %v4489, 1.442695
  %v4578 = vpow.pop %v4577
  %v4579 = vmul.f32 %v4490, 1.442695
  %v4580 = vpow.pop %v4579
  %v4581 = vmul.f32 %v4491, 1.442695
  %v4582 = vpow.pop %v4581
  %v4583 = vmul.f32 %v4492, 1.442695
  %v4584 = vpow.pop %v4583
  %v4585 = vmul.f32 %v4493, 1.442695
  %v4586 = vpow.pop %v4585
  %v4587 = vmul.f32 %v4494, 1.442695
  %v4588 = vpow.pop %v4587
  %v4589 = vmul.f32 %v4495, 1.442695
  %v4590 = vpow.pop %v4589
  %v4591 = vmul.f32 %v4496, 1.442695
  %v4592 = vpow.pop %v4591
  %v4593 = vmul.f32 %v4497, 1.442695
  %v4594 = vpow.pop %v4593
  %v4595 = vmul.f32 %v4498, 1.442695
  %v4596 = vpow.pop %v4595
  %v4597 = vmul.f32 %v4499, 1.442695
  %v4598 = vpow.pop %v4597
  %v4599 = vmul.f32 %v4500, 1.442695
  %v4600 = vpow.pop %v4599
  %v4601 = vmul.f32 %v4501, 1.442695
  %v4602 = vpow.pop %v4601
  %v4603 = vmul.f32 %v4502, 1.442695
  %v4604 = vpow.pop %v4603
  %v4605 = vmul.f32 %v4503, 1.442695
  %v4606 = vpow.pop %v4605
  %v4607 = vmul.f32 %v4504, 1.442695
  %v4608 = vpow.pop %v4607
  %v4609 = vmul.f32 %v4505, 1.442695
  %v4610 = vpow.pop %v4609
  %v4611 = vmul.f32 %v4506, 1.442695
  %v4612 = vpow.pop %v4611
  %v4613 = vmul.f32 %v4507, 1.442695
  %v4614 = vpow.pop %v4613
  %v4615 = vmul.f32 %v4508, 1.442695
  %v4616 = vpow.pop %v4615
  %v4617 = vmul.f32 %v4509, 1.442695
  %v4618 = vpow.pop %v4617
  %v4619 = vmul.f32 %v4510, 1.442695
  %v4620 = vpow.pop %v4619
  %v4621 = vmul.f32 %v4511, 1.442695
  %v4622 = vpow.pop %v4621
  %v4623 = vmul.f32 %v4512, 1.442695
  %v4624 = vpow.pop %v4623
  %v4625 = vmul.f32 %v4513, 1.442695
  %v4626 = vpow.pop %v4625
  %v4627 = vmul.f32 %v4514, 1.442695
  %v4628 = vpow.pop %v4627
  %v4629 = vmul.f32 %v4515, 1.442695
  %v4630 = vpow.pop %v4629
  %v4631 = vmul.f32 %v4516, 1.442695
  %v4632 = vpow.pop %v4631
  %v4633 = vmul.f32 %v4517, 1.442695
  %v4634 = vpow.pop %v4633
  %v4635 = vmul.f32 %v4518, 1.442695
  %v4636 = vpow.pop %v4635
  %v4637 = vmul.f32 %v4519, 1.442695
  %v4638 = vpow.pop %v4637
  %v4639 = vmul.f32 %v4520, 1.442695
  %v4640 = vpow.pop %v4639
  %v4641 = vmul.f32 %v4521, 1.442695
  %v4642 = vpow.pop %v4641
  %v4643 = vmul.f32 %v4522, 1.442695
  %v4644 = vpow.pop %v4643
  %v4645 = vmul.f32 %v4523, 1.442695
  %v4646 = vpow.pop %v4645
  %v4647 = vmul.f32 %v4524, 1.442695
  %v4648 = vpow.pop %v4647
  %v4649 = vmul.f32 %v4525, 1.442695
  %v4650 = vpow.pop %v4649
  %v4651 = vmul.f32 %v4526, 1.442695
  %v4652 = vpow.pop %v4651
  %v4653 = vmul.f32 %v4527, 1.442695
  %v4654 = vpow.pop %v4653
  %v4655 = vmul.f32 %v4528, 1.442695
  %v4656 = vpow.pop %v4655
  %v4657 = vsel %vm4272, %v4530, 0.0
  %4658 = vadd.xlane.f32.xlu0 %v4657
  %v4659 = vpop.xlane.xlu0 %4658
  %v4660 = vsel %vm4272, %v4532, 0.0
  %4661 = vadd.xlane.f32.xlu0 %v4660
  %v4662 = vpop.xlane.xlu0 %4661
  %v4663 = vsel %vm4272, %v4534, 0.0
  %4664 = vadd.xlane.f32.xlu0 %v4663
  %v4665 = vpop.xlane.xlu0 %4664
  %v4666 = vsel %vm4272, %v4536, 0.0
  %4667 = vadd.xlane.f32.xlu0 %v4666
  %v4668 = vpop.xlane.xlu0 %4667
  %v4669 = vsel %vm4272, %v4538, 0.0
  %4670 = vadd.xlane.f32.xlu0 %v4669
  %v4671 = vpop.xlane.xlu0 %4670
  %v4672 = vsel %vm4272, %v4540, 0.0
  %4673 = vadd.xlane.f32.xlu0 %v4672
  %v4674 = vpop.xlane.xlu0 %4673
  %v4675 = vsel %vm4272, %v4542, 0.0
  %4676 = vadd.xlane.f32.xlu0 %v4675
  %v4677 = vpop.xlane.xlu0 %4676
  %v4678 = vsel %vm4272, %v4544, 0.0
  %4679 = vadd.xlane.f32.xlu0 %v4678
  %v4680 = vpop.xlane.xlu0 %4679
  %v4681 = vsel %vm4272, %v4546, 0.0
  %4682 = vadd.xlane.f32.xlu0 %v4681
  %v4683 = vpop.xlane.xlu0 %4682
  %v4684 = vsel %vm4272, %v4548, 0.0
  %4685 = vadd.xlane.f32.xlu0 %v4684
  %v4686 = vpop.xlane.xlu0 %4685
  %v4687 = vsel %vm4272, %v4550, 0.0
  %4688 = vadd.xlane.f32.xlu0 %v4687
  %v4689 = vpop.xlane.xlu0 %4688
  %v4690 = vsel %vm4272, %v4552, 0.0
  %4691 = vadd.xlane.f32.xlu0 %v4690
  %v4692 = vpop.xlane.xlu0 %4691
  %v4693 = vsel %vm4272, %v4554, 0.0
  %4694 = vadd.xlane.f32.xlu0 %v4693
  %v4695 = vpop.xlane.xlu0 %4694
  %v4696 = vsel %vm4272, %v4556, 0.0
  %4697 = vadd.xlane.f32.xlu0 %v4696
  %v4698 = vpop.xlane.xlu0 %4697
  %v4699 = vsel %vm4272, %v4558, 0.0
  %4700 = vadd.xlane.f32.xlu0 %v4699
  %v4701 = vpop.xlane.xlu0 %4700
  %v4702 = vsel %vm4272, %v4560, 0.0
  %4703 = vadd.xlane.f32.xlu0 %v4702
  %v4704 = vpop.xlane.xlu0 %4703
  %v4705 = vsel %vm4272, %v4562, 0.0
  %4706 = vadd.xlane.f32.xlu0 %v4705
  %v4707 = vpop.xlane.xlu0 %4706
  %v4708 = vsel %vm4272, %v4564, 0.0
  %4709 = vadd.xlane.f32.xlu0 %v4708
  %v4710 = vpop.xlane.xlu0 %4709
  %v4711 = vsel %vm4272, %v4566, 0.0
  %4712 = vadd.xlane.f32.xlu0 %v4711
  %v4713 = vpop.xlane.xlu0 %4712
  %v4714 = vsel %vm4272, %v4568, 0.0
  %4715 = vadd.xlane.f32.xlu0 %v4714
  %v4716 = vpop.xlane.xlu0 %4715
  %v4717 = vsel %vm4272, %v4570, 0.0
  %4718 = vadd.xlane.f32.xlu0 %v4717
  %v4719 = vpop.xlane.xlu0 %4718
  %v4720 = vsel %vm4272, %v4572, 0.0
  %4721 = vadd.xlane.f32.xlu0 %v4720
  %v4722 = vpop.xlane.xlu0 %4721
  %v4723 = vsel %vm4272, %v4574, 0.0
  %4724 = vadd.xlane.f32.xlu0 %v4723
  %v4725 = vpop.xlane.xlu0 %4724
  %v4726 = vsel %vm4272, %v4576, 0.0
  %4727 = vadd.xlane.f32.xlu0 %v4726
  %v4728 = vpop.xlane.xlu0 %4727
  %v4729 = vsel %vm4272, %v4578, 0.0
  %4730 = vadd.xlane.f32.xlu0 %v4729
  %v4731 = vpop.xlane.xlu0 %4730
  %v4732 = vsel %vm4272, %v4580, 0.0
  %4733 = vadd.xlane.f32.xlu0 %v4732
  %v4734 = vpop.xlane.xlu0 %4733
  %v4735 = vsel %vm4272, %v4582, 0.0
  %4736 = vadd.xlane.f32.xlu0 %v4735
  %v4737 = vpop.xlane.xlu0 %4736
  %v4738 = vsel %vm4272, %v4584, 0.0
  %4739 = vadd.xlane.f32.xlu0 %v4738
  %v4740 = vpop.xlane.xlu0 %4739
  %v4741 = vsel %vm4272, %v4586, 0.0
  %4742 = vadd.xlane.f32.xlu0 %v4741
  %v4743 = vpop.xlane.xlu0 %4742
  %v4744 = vsel %vm4272, %v4588, 0.0
  %4745 = vadd.xlane.f32.xlu0 %v4744
  %v4746 = vpop.xlane.xlu0 %4745
  %v4747 = vsel %vm4272, %v4590, 0.0
  %4748 = vadd.xlane.f32.xlu0 %v4747
  %v4749 = vpop.xlane.xlu0 %4748
  %v4750 = vsel %vm4272, %v4592, 0.0
  %4751 = vadd.xlane.f32.xlu0 %v4750
  %v4752 = vpop.xlane.xlu0 %4751
  %v4753 = vsel %vm4272, %v4594, 0.0
  %4754 = vadd.xlane.f32.xlu0 %v4753
  %v4755 = vpop.xlane.xlu0 %4754
  %v4756 = vsel %vm4272, %v4596, 0.0
  %4757 = vadd.xlane.f32.xlu0 %v4756
  %v4758 = vpop.xlane.xlu0 %4757
  %v4759 = vsel %vm4272, %v4598, 0.0
  %4760 = vadd.xlane.f32.xlu0 %v4759
  %v4761 = vpop.xlane.xlu0 %4760
  %v4762 = vsel %vm4272, %v4600, 0.0
  %4763 = vadd.xlane.f32.xlu0 %v4762
  %v4764 = vpop.xlane.xlu0 %4763
  %v4765 = vsel %vm4272, %v4602, 0.0
  %4766 = vadd.xlane.f32.xlu0 %v4765
  %v4767 = vpop.xlane.xlu0 %4766
  %v4768 = vsel %vm4272, %v4604, 0.0
  %4769 = vadd.xlane.f32.xlu0 %v4768
  %v4770 = vpop.xlane.xlu0 %4769
  %v4771 = vsel %vm4272, %v4606, 0.0
  %4772 = vadd.xlane.f32.xlu0 %v4771
  %v4773 = vpop.xlane.xlu0 %4772
  %v4774 = vsel %vm4272, %v4608, 0.0
  %4775 = vadd.xlane.f32.xlu0 %v4774
  %v4776 = vpop.xlane.xlu0 %4775
  %v4777 = vsel %vm4272, %v4610, 0.0
  %4778 = vadd.xlane.f32.xlu0 %v4777
  %v4779 = vpop.xlane.xlu0 %4778
  %v4780 = vsel %vm4272, %v4612, 0.0
  %4781 = vadd.xlane.f32.xlu0 %v4780
  %v4782 = vpop.xlane.xlu0 %4781
  %v4783 = vsel %vm4272, %v4614, 0.0
  %4784 = vadd.xlane.f32.xlu0 %v4783
  %v4785 = vpop.xlane.xlu0 %4784
  %v4786 = vsel %vm4272, %v4616, 0.0
  %4787 = vadd.xlane.f32.xlu0 %v4786
  %v4788 = vpop.xlane.xlu0 %4787
  %v4789 = vsel %vm4272, %v4618, 0.0
  %4790 = vadd.xlane.f32.xlu0 %v4789
  %v4791 = vpop.xlane.xlu0 %4790
  %v4792 = vsel %vm4272, %v4620, 0.0
  %4793 = vadd.xlane.f32.xlu0 %v4792
  %v4794 = vpop.xlane.xlu0 %4793
  %v4795 = vsel %vm4272, %v4622, 0.0
  %4796 = vadd.xlane.f32.xlu0 %v4795
  %v4797 = vpop.xlane.xlu0 %4796
  %v4798 = vsel %vm4272, %v4624, 0.0
  %4799 = vadd.xlane.f32.xlu0 %v4798
  %v4800 = vpop.xlane.xlu0 %4799
  %v4801 = vsel %vm4272, %v4626, 0.0
  %4802 = vadd.xlane.f32.xlu0 %v4801
  %v4803 = vpop.xlane.xlu0 %4802
  %v4804 = vsel %vm4272, %v4628, 0.0
  %4805 = vadd.xlane.f32.xlu0 %v4804
  %v4806 = vpop.xlane.xlu0 %4805
  %v4807 = vsel %vm4272, %v4630, 0.0
  %4808 = vadd.xlane.f32.xlu0 %v4807
  %v4809 = vpop.xlane.xlu0 %4808
  %v4810 = vsel %vm4272, %v4632, 0.0
  %4811 = vadd.xlane.f32.xlu0 %v4810
  %v4812 = vpop.xlane.xlu0 %4811
  %v4813 = vsel %vm4272, %v4634, 0.0
  %4814 = vadd.xlane.f32.xlu0 %v4813
  %v4815 = vpop.xlane.xlu0 %4814
  %v4816 = vsel %vm4272, %v4636, 0.0
  %4817 = vadd.xlane.f32.xlu0 %v4816
  %v4818 = vpop.xlane.xlu0 %4817
  %v4819 = vsel %vm4272, %v4638, 0.0
  %4820 = vadd.xlane.f32.xlu0 %v4819
  %v4821 = vpop.xlane.xlu0 %4820
  %v4822 = vsel %vm4272, %v4640, 0.0
  %4823 = vadd.xlane.f32.xlu0 %v4822
  %v4824 = vpop.xlane.xlu0 %4823
  %v4825 = vsel %vm4272, %v4642, 0.0
  %4826 = vadd.xlane.f32.xlu0 %v4825
  %v4827 = vpop.xlane.xlu0 %4826
  %v4828 = vsel %vm4272, %v4644, 0.0
  %4829 = vadd.xlane.f32.xlu0 %v4828
  %v4830 = vpop.xlane.xlu0 %4829
  %v4831 = vsel %vm4272, %v4646, 0.0
  %4832 = vadd.xlane.f32.xlu0 %v4831
  %v4833 = vpop.xlane.xlu0 %4832
  %v4834 = vsel %vm4272, %v4648, 0.0
  %4835 = vadd.xlane.f32.xlu0 %v4834
  %v4836 = vpop.xlane.xlu0 %4835
  %v4837 = vsel %vm4272, %v4650, 0.0
  %4838 = vadd.xlane.f32.xlu0 %v4837
  %v4839 = vpop.xlane.xlu0 %4838
  %v4840 = vsel %vm4272, %v4652, 0.0
  %4841 = vadd.xlane.f32.xlu0 %v4840
  %v4842 = vpop.xlane.xlu0 %4841
  %v4843 = vsel %vm4272, %v4654, 0.0
  %4844 = vadd.xlane.f32.xlu0 %v4843
  %v4845 = vpop.xlane.xlu0 %4844
  %v4846 = vsel %vm4272, %v4656, 0.0
  %4847 = vadd.xlane.f32.xlu0 %v4846
  %v4848 = vpop.xlane.xlu0 %4847
  %v4849 = vrcp.pop %v4659
  %v4850 = vrcp.pop %v4662
  %v4851 = vrcp.pop %v4665
  %v4852 = vrcp.pop %v4668
  %v4853 = vrcp.pop %v4671
  %v4854 = vrcp.pop %v4674
  %v4855 = vrcp.pop %v4677
  %v4856 = vrcp.pop %v4680
  %v4857 = vrcp.pop %v4683
  %v4858 = vrcp.pop %v4686
  %v4859 = vrcp.pop %v4689
  %v4860 = vrcp.pop %v4692
  %v4861 = vrcp.pop %v4695
  %v4862 = vrcp.pop %v4698
  %v4863 = vrcp.pop %v4701
  %v4864 = vrcp.pop %v4704
  %v4865 = vrcp.pop %v4707
  %v4866 = vrcp.pop %v4710
  %v4867 = vrcp.pop %v4713
  %v4868 = vrcp.pop %v4716
  %v4869 = vrcp.pop %v4719
  %v4870 = vrcp.pop %v4722
  %v4871 = vrcp.pop %v4725
  %v4872 = vrcp.pop %v4728
  %v4873 = vrcp.pop %v4731
  %v4874 = vrcp.pop %v4734
  %v4875 = vrcp.pop %v4737
  %v4876 = vrcp.pop %v4740
  %v4877 = vrcp.pop %v4743
  %v4878 = vrcp.pop %v4746
  %v4879 = vrcp.pop %v4749
  %v4880 = vrcp.pop %v4752
  %v4881 = vrcp.pop %v4755
  %v4882 = vrcp.pop %v4758
  %v4883 = vrcp.pop %v4761
  %v4884 = vrcp.pop %v4764
  %v4885 = vrcp.pop %v4767
  %v4886 = vrcp.pop %v4770
  %v4887 = vrcp.pop %v4773
  %v4888 = vrcp.pop %v4776
  %v4889 = vrcp.pop %v4779
  %v4890 = vrcp.pop %v4782
  %v4891 = vrcp.pop %v4785
  %v4892 = vrcp.pop %v4788
  %v4893 = vrcp.pop %v4791
  %v4894 = vrcp.pop %v4794
  %v4895 = vrcp.pop %v4797
  %v4896 = vrcp.pop %v4800
  %v4897 = vrcp.pop %v4803
  %v4898 = vrcp.pop %v4806
  %v4899 = vrcp.pop %v4809
  %v4900 = vrcp.pop %v4812
  %v4901 = vrcp.pop %v4815
  %v4902 = vrcp.pop %v4818
  %v4903 = vrcp.pop %v4821
  %v4904 = vrcp.pop %v4824
  %v4905 = vrcp.pop %v4827
  %v4906 = vrcp.pop %v4830
  %v4907 = vrcp.pop %v4833
  %v4908 = vrcp.pop %v4836
  %v4909 = vrcp.pop %v4839
  %v4910 = vrcp.pop %v4842
  %v4911 = vrcp.pop %v4845
  %v4912 = vrcp.pop %v4848
  %v4913 = vmul.f32 %v4530, %v4849
  %v4914 = vmul.f32 %v4532, %v4850
  %v4915 = vmul.f32 %v4534, %v4851
  %v4916 = vmul.f32 %v4536, %v4852
  %v4917 = vmul.f32 %v4538, %v4853
  %v4918 = vmul.f32 %v4540, %v4854
  %v4919 = vmul.f32 %v4542, %v4855
  %v4920 = vmul.f32 %v4544, %v4856
  %v4921 = vmul.f32 %v4546, %v4857
  %v4922 = vmul.f32 %v4548, %v4858
  %v4923 = vmul.f32 %v4550, %v4859
  %v4924 = vmul.f32 %v4552, %v4860
  %v4925 = vmul.f32 %v4554, %v4861
  %v4926 = vmul.f32 %v4556, %v4862
  %v4927 = vmul.f32 %v4558, %v4863
  %v4928 = vmul.f32 %v4560, %v4864
  %v4929 = vmul.f32 %v4562, %v4865
  %v4930 = vmul.f32 %v4564, %v4866
  %v4931 = vmul.f32 %v4566, %v4867
  %v4932 = vmul.f32 %v4568, %v4868
  %v4933 = vmul.f32 %v4570, %v4869
  %v4934 = vmul.f32 %v4572, %v4870
  %v4935 = vmul.f32 %v4574, %v4871
  %v4936 = vmul.f32 %v4576, %v4872
  %v4937 = vmul.f32 %v4578, %v4873
  %v4938 = vmul.f32 %v4580, %v4874
  %v4939 = vmul.f32 %v4582, %v4875
  %v4940 = vmul.f32 %v4584, %v4876
  %v4941 = vmul.f32 %v4586, %v4877
  %v4942 = vmul.f32 %v4588, %v4878
  %v4943 = vmul.f32 %v4590, %v4879
  %v4944 = vmul.f32 %v4592, %v4880
  %v4945 = vmul.f32 %v4594, %v4881
  %v4946 = vmul.f32 %v4596, %v4882
  %v4947 = vmul.f32 %v4598, %v4883
  %v4948 = vmul.f32 %v4600, %v4884
  %v4949 = vmul.f32 %v4602, %v4885
  %v4950 = vmul.f32 %v4604, %v4886
  %v4951 = vmul.f32 %v4606, %v4887
  %v4952 = vmul.f32 %v4608, %v4888
  %v4953 = vmul.f32 %v4610, %v4889
  %v4954 = vmul.f32 %v4612, %v4890
  %v4955 = vmul.f32 %v4614, %v4891
  %v4956 = vmul.f32 %v4616, %v4892
  %v4957 = vmul.f32 %v4618, %v4893
  %v4958 = vmul.f32 %v4620, %v4894
  %v4959 = vmul.f32 %v4622, %v4895
  %v4960 = vmul.f32 %v4624, %v4896
  %v4961 = vmul.f32 %v4626, %v4897
  %v4962 = vmul.f32 %v4628, %v4898
  %v4963 = vmul.f32 %v4630, %v4899
  %v4964 = vmul.f32 %v4632, %v4900
  %v4965 = vmul.f32 %v4634, %v4901
  %v4966 = vmul.f32 %v4636, %v4902
  %v4967 = vmul.f32 %v4638, %v4903
  %v4968 = vmul.f32 %v4640, %v4904
  %v4969 = vmul.f32 %v4642, %v4905
  %v4970 = vmul.f32 %v4644, %v4906
  %v4971 = vmul.f32 %v4646, %v4907
  %v4972 = vmul.f32 %v4648, %v4908
  %v4973 = vmul.f32 %v4650, %v4909
  %v4974 = vmul.f32 %v4652, %v4910
  %v4975 = vmul.f32 %v4654, %v4911
  %v4976 = vmul.f32 %v4656, %v4912
  %v4977 = vpack.c.bf16 %v4914, %v4913
  %v4978 = vpack.c.bf16 %v4916, %v4915
  %v4979 = vpack.c.bf16 %v4918, %v4917
  %v4980 = vpack.c.bf16 %v4920, %v4919
  %v4981 = vpack.c.bf16 %v4922, %v4921
  %v4982 = vpack.c.bf16 %v4924, %v4923
  %v4983 = vpack.c.bf16 %v4926, %v4925
  %v4984 = vpack.c.bf16 %v4928, %v4927
  %v4985 = vpack.c.bf16 %v4930, %v4929
  %v4986 = vpack.c.bf16 %v4932, %v4931
  %v4987 = vpack.c.bf16 %v4934, %v4933
  %v4988 = vpack.c.bf16 %v4936, %v4935
  %v4989 = vpack.c.bf16 %v4938, %v4937
  %v4990 = vpack.c.bf16 %v4940, %v4939
  %v4991 = vpack.c.bf16 %v4942, %v4941
  %v4992 = vpack.c.bf16 %v4944, %v4943
  %v4993 = vpack.c.bf16 %v4946, %v4945
  %v4994 = vpack.c.bf16 %v4948, %v4947
  %v4995 = vpack.c.bf16 %v4950, %v4949
  %v4996 = vpack.c.bf16 %v4952, %v4951
  %v4997 = vpack.c.bf16 %v4954, %v4953
  %v4998 = vpack.c.bf16 %v4956, %v4955
  %v4999 = vpack.c.bf16 %v4958, %v4957
  %v5000 = vpack.c.bf16 %v4960, %v4959
  %v5001 = vpack.c.bf16 %v4962, %v4961
  %v5002 = vpack.c.bf16 %v4964, %v4963
  %v5003 = vpack.c.bf16 %v4966, %v4965
  %v5004 = vpack.c.bf16 %v4968, %v4967
  %v5005 = vpack.c.bf16 %v4970, %v4969
  %v5006 = vpack.c.bf16 %v4972, %v4971
  %v5007 = vpack.c.bf16 %v4974, %v4973
  %v5008 = vpack.c.bf16 %v4976, %v4975
  %v5009 = vpack.c.bf16 %v1077, %v1076
  %v5010 = vpack.c.bf16 %v1079, %v1078
  %v5011 = vpack.c.bf16 %v1081, %v1080
  %v5012 = vpack.c.bf16 %v1083, %v1082
  %v5013 = vpack.c.bf16 %v1085, %v1084
  %v5014 = vpack.c.bf16 %v1087, %v1086
  %v5015 = vpack.c.bf16 %v1089, %v1088
  %v5016 = vpack.c.bf16 %v1091, %v1090
  %v5017 = vpack.c.bf16 %v1093, %v1092
  %v5018 = vpack.c.bf16 %v1095, %v1094
  %v5019 = vpack.c.bf16 %v1097, %v1096
  %v5020 = vpack.c.bf16 %v1099, %v1098
  %v5021 = vpack.c.bf16 %v1101, %v1100
  %v5022 = vpack.c.bf16 %v1103, %v1102
  %v5023 = vpack.c.bf16 %v1105, %v1104
  %v5024 = vpack.c.bf16 %v1107, %v1106
  %v5025 = vpack.c.bf16 %v1109, %v1108
  %v5026 = vpack.c.bf16 %v1111, %v1110
  %v5027 = vpack.c.bf16 %v1113, %v1112
  %v5028 = vpack.c.bf16 %v1115, %v1114
  %v5029 = vpack.c.bf16 %v1117, %v1116
  %v5030 = vpack.c.bf16 %v1119, %v1118
  %v5031 = vpack.c.bf16 %v1121, %v1120
  %v5032 = vpack.c.bf16 %v1123, %v1122
  %v5033 = vpack.c.bf16 %v1125, %v1124
  %v5034 = vpack.c.bf16 %v1127, %v1126
  %v5035 = vpack.c.bf16 %v1129, %v1128
  %v5036 = vpack.c.bf16 %v1131, %v1130
  %v5037 = vpack.c.bf16 %v1133, %v1132
  %v5038 = vpack.c.bf16 %v1135, %v1134
  %v5039 = vpack.c.bf16 %v1137, %v1136
  %v5040 = vpack.c.bf16 %v1139, %v1138
  %v5042 = vsel %vm4272, %v4977, 0
  %5044 = vmatprep.subr.bf16.mxu0 0
  %5045 = vmatpush1.bf16.msra.mxu0 0
  %5046 = vmatprep.subr.bf16.mxu0 0
  %5047 = vmatpush1.bf16.msra.mxu0 0
  %5048 = vmatprep.subr.bf16.mxu0 0
  %5049 = vmatpush1.bf16.msra.mxu0 0
  %5050 = vmatprep.subr.bf16.mxu0 0
  %5051 = vmatpush1.bf16.msra.mxu0 0
  %5052 = vmatprep.subr.bf16.mxu0 0
  %5053 = vmatpush1.bf16.msra.mxu0 0
  %5054 = vmatprep.subr.bf16.mxu0 0
  %5055 = vmatpush1.bf16.msra.mxu0 0
  %5056 = vmatprep.subr.bf16.mxu0 0
  %5057 = vmatpush1.bf16.msra.mxu0 0
  %5058 = vmatprep.subr.bf16.mxu0 0
  %5059 = vmatpush1.bf16.msra.mxu0 %v5009
  %5060 = vmatprep.subr.bf16.mxu0 0
  %5061 = vmatpush2.bf16.msra.mxu0 0
  %5062 = vmatprep.subr.bf16.mxu0 0
  %5063 = vmatpush2.bf16.msra.mxu0 0
  %5064 = vmatprep.subr.bf16.mxu0 0
  %5065 = vmatpush2.bf16.msra.mxu0 0
  %5066 = vmatprep.subr.bf16.mxu0 0
  %5067 = vmatpush2.bf16.msra.mxu0 0
  %5068 = vmatprep.subr.bf16.mxu0 0
  %5069 = vmatpush2.bf16.msra.mxu0 0
  %5070 = vmatprep.subr.bf16.mxu0 0
  %5071 = vmatpush2.bf16.msra.mxu0 0
  %5072 = vmatprep.subr.bf16.mxu0 0
  %5073 = vmatpush2.bf16.msra.mxu0 0
  %5074 = vmatprep.subr.bf16.mxu0 0
  %5075 = vmatpush2.bf16.msra.mxu0 0
  %5076 = vmatprep.mubr.bf16.mxu0 0
  %5077 = vmatmul.mubr.bf16.gmra.mxu0 %v5042
  %v5078 = vpop.f32.mrf.mxu0
  %v5079 = vadd.f32 0.0, %v5078
  %v5080 = vpop.f32.mrf.mxu0
  %v5081 = vpop.f32.mrf.mxu0
  %v5082 = vadd.f32 0.0, %v5081
  %v5083 = vpop.f32.mrf.mxu0
  %5084 = vdwg.mxu0
  %v5086 = vsel %vm4272, %v4978, 0
  %5088 = vmatprep.subr.bf16.mxu0 0
  %5089 = vmatpush1.bf16.msra.mxu0 0
  %5090 = vmatprep.subr.bf16.mxu0 0
  %5091 = vmatpush1.bf16.msra.mxu0 0
  %5092 = vmatprep.subr.bf16.mxu0 0
  %5093 = vmatpush1.bf16.msra.mxu0 0
  %5094 = vmatprep.subr.bf16.mxu0 0
  %5095 = vmatpush1.bf16.msra.mxu0 0
  %5096 = vmatprep.subr.bf16.mxu0 0
  %5097 = vmatpush1.bf16.msra.mxu0 0
  %5098 = vmatprep.subr.bf16.mxu0 0
  %5099 = vmatpush1.bf16.msra.mxu0 0
  %5100 = vmatprep.subr.bf16.mxu0 0
  %5101 = vmatpush1.bf16.msra.mxu0 0
  %5102 = vmatprep.subr.bf16.mxu0 0
  %5103 = vmatpush1.bf16.msra.mxu0 %v5010
  %5104 = vmatprep.subr.bf16.mxu0 0
  %5105 = vmatpush2.bf16.msra.mxu0 0
  %5106 = vmatprep.subr.bf16.mxu0 0
  %5107 = vmatpush2.bf16.msra.mxu0 0
  %5108 = vmatprep.subr.bf16.mxu0 0
  %5109 = vmatpush2.bf16.msra.mxu0 0
  %5110 = vmatprep.subr.bf16.mxu0 0
  %5111 = vmatpush2.bf16.msra.mxu0 0
  %5112 = vmatprep.subr.bf16.mxu0 0
  %5113 = vmatpush2.bf16.msra.mxu0 0
  %5114 = vmatprep.subr.bf16.mxu0 0
  %5115 = vmatpush2.bf16.msra.mxu0 0
  %5116 = vmatprep.subr.bf16.mxu0 0
  %5117 = vmatpush2.bf16.msra.mxu0 0
  %5118 = vmatprep.subr.bf16.mxu0 0
  %5119 = vmatpush2.bf16.msra.mxu0 0
  %5120 = vmatprep.mubr.bf16.mxu0 0
  %5121 = vmatmul.mubr.bf16.gmra.mxu0 %v5086
  %v5122 = vpop.f32.mrf.mxu0
  %v5123 = vadd.f32 0.0, %v5122
  %v5124 = vpop.f32.mrf.mxu0
  %v5125 = vpop.f32.mrf.mxu0
  %v5126 = vadd.f32 0.0, %v5125
  %v5127 = vpop.f32.mrf.mxu0
  %5128 = vdwg.mxu0
  %v5130 = vsel %vm4272, %v4979, 0
  %5132 = vmatprep.subr.bf16.mxu0 0
  %5133 = vmatpush1.bf16.msra.mxu0 0
  %5134 = vmatprep.subr.bf16.mxu0 0
  %5135 = vmatpush1.bf16.msra.mxu0 0
  %5136 = vmatprep.subr.bf16.mxu0 0
  %5137 = vmatpush1.bf16.msra.mxu0 0
  %5138 = vmatprep.subr.bf16.mxu0 0
  %5139 = vmatpush1.bf16.msra.mxu0 0
  %5140 = vmatprep.subr.bf16.mxu0 0
  %5141 = vmatpush1.bf16.msra.mxu0 0
  %5142 = vmatprep.subr.bf16.mxu0 0
  %5143 = vmatpush1.bf16.msra.mxu0 0
  %5144 = vmatprep.subr.bf16.mxu0 0
  %5145 = vmatpush1.bf16.msra.mxu0 0
  %5146 = vmatprep.subr.bf16.mxu0 0
  %5147 = vmatpush1.bf16.msra.mxu0 %v5011
  %5148 = vmatprep.subr.bf16.mxu0 0
  %5149 = vmatpush2.bf16.msra.mxu0 0
  %5150 = vmatprep.subr.bf16.mxu0 0
  %5151 = vmatpush2.bf16.msra.mxu0 0
  %5152 = vmatprep.subr.bf16.mxu0 0
  %5153 = vmatpush2.bf16.msra.mxu0 0
  %5154 = vmatprep.subr.bf16.mxu0 0
  %5155 = vmatpush2.bf16.msra.mxu0 0
  %5156 = vmatprep.subr.bf16.mxu0 0
  %5157 = vmatpush2.bf16.msra.mxu0 0
  %5158 = vmatprep.subr.bf16.mxu0 0
  %5159 = vmatpush2.bf16.msra.mxu0 0
  %5160 = vmatprep.subr.bf16.mxu0 0
  %5161 = vmatpush2.bf16.msra.mxu0 0
  %5162 = vmatprep.subr.bf16.mxu0 0
  %5163 = vmatpush2.bf16.msra.mxu0 0
  %5164 = vmatprep.mubr.bf16.mxu0 0
  %5165 = vmatmul.mubr.bf16.gmra.mxu0 %v5130
  %v5166 = vpop.f32.mrf.mxu0
  %v5167 = vadd.f32 0.0, %v5166
  %v5168 = vpop.f32.mrf.mxu0
  %v5169 = vpop.f32.mrf.mxu0
  %v5170 = vadd.f32 0.0, %v5169
  %v5171 = vpop.f32.mrf.mxu0
  %5172 = vdwg.mxu0
  %v5174 = vsel %vm4272, %v4980, 0
  %5176 = vmatprep.subr.bf16.mxu0 0
  %5177 = vmatpush1.bf16.msra.mxu0 0
  %5178 = vmatprep.subr.bf16.mxu0 0
  %5179 = vmatpush1.bf16.msra.mxu0 0
  %5180 = vmatprep.subr.bf16.mxu0 0
  %5181 = vmatpush1.bf16.msra.mxu0 0
  %5182 = vmatprep.subr.bf16.mxu0 0
  %5183 = vmatpush1.bf16.msra.mxu0 0
  %5184 = vmatprep.subr.bf16.mxu0 0
  %5185 = vmatpush1.bf16.msra.mxu0 0
  %5186 = vmatprep.subr.bf16.mxu0 0
  %5187 = vmatpush1.bf16.msra.mxu0 0
  %5188 = vmatprep.subr.bf16.mxu0 0
  %5189 = vmatpush1.bf16.msra.mxu0 0
  %5190 = vmatprep.subr.bf16.mxu0 0
  %5191 = vmatpush1.bf16.msra.mxu0 %v5012
  %5192 = vmatprep.subr.bf16.mxu0 0
  %5193 = vmatpush2.bf16.msra.mxu0 0
  %5194 = vmatprep.subr.bf16.mxu0 0
  %5195 = vmatpush2.bf16.msra.mxu0 0
  %5196 = vmatprep.subr.bf16.mxu0 0
  %5197 = vmatpush2.bf16.msra.mxu0 0
  %5198 = vmatprep.subr.bf16.mxu0 0
  %5199 = vmatpush2.bf16.msra.mxu0 0
  %5200 = vmatprep.subr.bf16.mxu0 0
  %5201 = vmatpush2.bf16.msra.mxu0 0
  %5202 = vmatprep.subr.bf16.mxu0 0
  %5203 = vmatpush2.bf16.msra.mxu0 0
  %5204 = vmatprep.subr.bf16.mxu0 0
  %5205 = vmatpush2.bf16.msra.mxu0 0
  %5206 = vmatprep.subr.bf16.mxu0 0
  %5207 = vmatpush2.bf16.msra.mxu0 0
  %5208 = vmatprep.mubr.bf16.mxu0 0
  %5209 = vmatmul.mubr.bf16.gmra.mxu0 %v5174
  %v5210 = vpop.f32.mrf.mxu0
  %v5211 = vadd.f32 0.0, %v5210
  %v5212 = vpop.f32.mrf.mxu0
  %v5213 = vpop.f32.mrf.mxu0
  %v5214 = vadd.f32 0.0, %v5213
  %v5215 = vpop.f32.mrf.mxu0
  %5216 = vdwg.mxu0
  %v5218 = vsel %vm4272, %v4981, 0
  %5220 = vmatprep.subr.bf16.mxu0 0
  %5221 = vmatpush1.bf16.msra.mxu0 0
  %5222 = vmatprep.subr.bf16.mxu0 0
  %5223 = vmatpush1.bf16.msra.mxu0 0
  %5224 = vmatprep.subr.bf16.mxu0 0
  %5225 = vmatpush1.bf16.msra.mxu0 0
  %5226 = vmatprep.subr.bf16.mxu0 0
  %5227 = vmatpush1.bf16.msra.mxu0 0
  %5228 = vmatprep.subr.bf16.mxu0 0
  %5229 = vmatpush1.bf16.msra.mxu0 0
  %5230 = vmatprep.subr.bf16.mxu0 0
  %5231 = vmatpush1.bf16.msra.mxu0 0
  %5232 = vmatprep.subr.bf16.mxu0 0
  %5233 = vmatpush1.bf16.msra.mxu0 0
  %5234 = vmatprep.subr.bf16.mxu0 0
  %5235 = vmatpush1.bf16.msra.mxu0 %v5013
  %5236 = vmatprep.subr.bf16.mxu0 0
  %5237 = vmatpush2.bf16.msra.mxu0 0
  %5238 = vmatprep.subr.bf16.mxu0 0
  %5239 = vmatpush2.bf16.msra.mxu0 0
  %5240 = vmatprep.subr.bf16.mxu0 0
  %5241 = vmatpush2.bf16.msra.mxu0 0
  %5242 = vmatprep.subr.bf16.mxu0 0
  %5243 = vmatpush2.bf16.msra.mxu0 0
  %5244 = vmatprep.subr.bf16.mxu0 0
  %5245 = vmatpush2.bf16.msra.mxu0 0
  %5246 = vmatprep.subr.bf16.mxu0 0
  %5247 = vmatpush2.bf16.msra.mxu0 0
  %5248 = vmatprep.subr.bf16.mxu0 0
  %5249 = vmatpush2.bf16.msra.mxu0 0
  %5250 = vmatprep.subr.bf16.mxu0 0
  %5251 = vmatpush2.bf16.msra.mxu0 0
  %5252 = vmatprep.mubr.bf16.mxu0 0
  %5253 = vmatmul.mubr.bf16.gmra.mxu0 %v5218
  %v5254 = vpop.f32.mrf.mxu0
  %v5255 = vadd.f32 0.0, %v5254
  %v5256 = vpop.f32.mrf.mxu0
  %v5257 = vpop.f32.mrf.mxu0
  %v5258 = vadd.f32 0.0, %v5257
  %v5259 = vpop.f32.mrf.mxu0
  %5260 = vdwg.mxu0
  %v5262 = vsel %vm4272, %v4982, 0
  %5264 = vmatprep.subr.bf16.mxu0 0
  %5265 = vmatpush1.bf16.msra.mxu0 0
  %5266 = vmatprep.subr.bf16.mxu0 0
  %5267 = vmatpush1.bf16.msra.mxu0 0
  %5268 = vmatprep.subr.bf16.mxu0 0
  %5269 = vmatpush1.bf16.msra.mxu0 0
  %5270 = vmatprep.subr.bf16.mxu0 0
  %5271 = vmatpush1.bf16.msra.mxu0 0
  %5272 = vmatprep.subr.bf16.mxu0 0
  %5273 = vmatpush1.bf16.msra.mxu0 0
  %5274 = vmatprep.subr.bf16.mxu0 0
  %5275 = vmatpush1.bf16.msra.mxu0 0
  %5276 = vmatprep.subr.bf16.mxu0 0
  %5277 = vmatpush1.bf16.msra.mxu0 0
  %5278 = vmatprep.subr.bf16.mxu0 0
  %5279 = vmatpush1.bf16.msra.mxu0 %v5014
  %5280 = vmatprep.subr.bf16.mxu0 0
  %5281 = vmatpush2.bf16.msra.mxu0 0
  %5282 = vmatprep.subr.bf16.mxu0 0
  %5283 = vmatpush2.bf16.msra.mxu0 0
  %5284 = vmatprep.subr.bf16.mxu0 0
  %5285 = vmatpush2.bf16.msra.mxu0 0
  %5286 = vmatprep.subr.bf16.mxu0 0
  %5287 = vmatpush2.bf16.msra.mxu0 0
  %5288 = vmatprep.subr.bf16.mxu0 0
  %5289 = vmatpush2.bf16.msra.mxu0 0
  %5290 = vmatprep.subr.bf16.mxu0 0
  %5291 = vmatpush2.bf16.msra.mxu0 0
  %5292 = vmatprep.subr.bf16.mxu0 0
  %5293 = vmatpush2.bf16.msra.mxu0 0
  %5294 = vmatprep.subr.bf16.mxu0 0
  %5295 = vmatpush2.bf16.msra.mxu0 0
  %5296 = vmatprep.mubr.bf16.mxu0 0
  %5297 = vmatmul.mubr.bf16.gmra.mxu0 %v5262
  %v5298 = vpop.f32.mrf.mxu0
  %v5299 = vadd.f32 0.0, %v5298
  %v5300 = vpop.f32.mrf.mxu0
  %v5301 = vpop.f32.mrf.mxu0
  %v5302 = vadd.f32 0.0, %v5301
  %v5303 = vpop.f32.mrf.mxu0
  %5304 = vdwg.mxu0
  %v5306 = vsel %vm4272, %v4983, 0
  %5308 = vmatprep.subr.bf16.mxu0 0
  %5309 = vmatpush1.bf16.msra.mxu0 0
  %5310 = vmatprep.subr.bf16.mxu0 0
  %5311 = vmatpush1.bf16.msra.mxu0 0
  %5312 = vmatprep.subr.bf16.mxu0 0
  %5313 = vmatpush1.bf16.msra.mxu0 0
  %5314 = vmatprep.subr.bf16.mxu0 0
  %5315 = vmatpush1.bf16.msra.mxu0 0
  %5316 = vmatprep.subr.bf16.mxu0 0
  %5317 = vmatpush1.bf16.msra.mxu0 0
  %5318 = vmatprep.subr.bf16.mxu0 0
  %5319 = vmatpush1.bf16.msra.mxu0 0
  %5320 = vmatprep.subr.bf16.mxu0 0
  %5321 = vmatpush1.bf16.msra.mxu0 0
  %5322 = vmatprep.subr.bf16.mxu0 0
  %5323 = vmatpush1.bf16.msra.mxu0 %v5015
  %5324 = vmatprep.subr.bf16.mxu0 0
  %5325 = vmatpush2.bf16.msra.mxu0 0
  %5326 = vmatprep.subr.bf16.mxu0 0
  %5327 = vmatpush2.bf16.msra.mxu0 0
  %5328 = vmatprep.subr.bf16.mxu0 0
  %5329 = vmatpush2.bf16.msra.mxu0 0
  %5330 = vmatprep.subr.bf16.mxu0 0
  %5331 = vmatpush2.bf16.msra.mxu0 0
  %5332 = vmatprep.subr.bf16.mxu0 0
  %5333 = vmatpush2.bf16.msra.mxu0 0
  %5334 = vmatprep.subr.bf16.mxu0 0
  %5335 = vmatpush2.bf16.msra.mxu0 0
  %5336 = vmatprep.subr.bf16.mxu0 0
  %5337 = vmatpush2.bf16.msra.mxu0 0
  %5338 = vmatprep.subr.bf16.mxu0 0
  %5339 = vmatpush2.bf16.msra.mxu0 0
  %5340 = vmatprep.mubr.bf16.mxu0 0
  %5341 = vmatmul.mubr.bf16.gmra.mxu0 %v5306
  %v5342 = vpop.f32.mrf.mxu0
  %v5343 = vadd.f32 0.0, %v5342
  %v5344 = vpop.f32.mrf.mxu0
  %v5345 = vpop.f32.mrf.mxu0
  %v5346 = vadd.f32 0.0, %v5345
  %v5347 = vpop.f32.mrf.mxu0
  %5348 = vdwg.mxu0
  %v5350 = vsel %vm4272, %v4984, 0
  %5352 = vmatprep.subr.bf16.mxu0 0
  %5353 = vmatpush1.bf16.msra.mxu0 0
  %5354 = vmatprep.subr.bf16.mxu0 0
  %5355 = vmatpush1.bf16.msra.mxu0 0
  %5356 = vmatprep.subr.bf16.mxu0 0
  %5357 = vmatpush1.bf16.msra.mxu0 0
  %5358 = vmatprep.subr.bf16.mxu0 0
  %5359 = vmatpush1.bf16.msra.mxu0 0
  %5360 = vmatprep.subr.bf16.mxu0 0
  %5361 = vmatpush1.bf16.msra.mxu0 0
  %5362 = vmatprep.subr.bf16.mxu0 0
  %5363 = vmatpush1.bf16.msra.mxu0 0
  %5364 = vmatprep.subr.bf16.mxu0 0
  %5365 = vmatpush1.bf16.msra.mxu0 0
  %5366 = vmatprep.subr.bf16.mxu0 0
  %5367 = vmatpush1.bf16.msra.mxu0 %v5016
  %5368 = vmatprep.subr.bf16.mxu0 0
  %5369 = vmatpush2.bf16.msra.mxu0 0
  %5370 = vmatprep.subr.bf16.mxu0 0
  %5371 = vmatpush2.bf16.msra.mxu0 0
  %5372 = vmatprep.subr.bf16.mxu0 0
  %5373 = vmatpush2.bf16.msra.mxu0 0
  %5374 = vmatprep.subr.bf16.mxu0 0
  %5375 = vmatpush2.bf16.msra.mxu0 0
  %5376 = vmatprep.subr.bf16.mxu0 0
  %5377 = vmatpush2.bf16.msra.mxu0 0
  %5378 = vmatprep.subr.bf16.mxu0 0
  %5379 = vmatpush2.bf16.msra.mxu0 0
  %5380 = vmatprep.subr.bf16.mxu0 0
  %5381 = vmatpush2.bf16.msra.mxu0 0
  %5382 = vmatprep.subr.bf16.mxu0 0
  %5383 = vmatpush2.bf16.msra.mxu0 0
  %5384 = vmatprep.mubr.bf16.mxu0 0
  %5385 = vmatmul.mubr.bf16.gmra.mxu0 %v5350
  %v5386 = vpop.f32.mrf.mxu0
  %v5387 = vadd.f32 0.0, %v5386
  %v5388 = vpop.f32.mrf.mxu0
  %v5389 = vpop.f32.mrf.mxu0
  %v5390 = vadd.f32 0.0, %v5389
  %v5391 = vpop.f32.mrf.mxu0
  %5392 = vdwg.mxu0
  %v5394 = vsel %vm4272, %v4985, 0
  %5396 = vmatprep.subr.bf16.mxu0 0
  %5397 = vmatpush1.bf16.msra.mxu0 0
  %5398 = vmatprep.subr.bf16.mxu0 0
  %5399 = vmatpush1.bf16.msra.mxu0 0
  %5400 = vmatprep.subr.bf16.mxu0 0
  %5401 = vmatpush1.bf16.msra.mxu0 0
  %5402 = vmatprep.subr.bf16.mxu0 0
  %5403 = vmatpush1.bf16.msra.mxu0 0
  %5404 = vmatprep.subr.bf16.mxu0 0
  %5405 = vmatpush1.bf16.msra.mxu0 0
  %5406 = vmatprep.subr.bf16.mxu0 0
  %5407 = vmatpush1.bf16.msra.mxu0 0
  %5408 = vmatprep.subr.bf16.mxu0 0
  %5409 = vmatpush1.bf16.msra.mxu0 0
  %5410 = vmatprep.subr.bf16.mxu0 0
  %5411 = vmatpush1.bf16.msra.mxu0 %v5017
  %5412 = vmatprep.subr.bf16.mxu0 0
  %5413 = vmatpush2.bf16.msra.mxu0 0
  %5414 = vmatprep.subr.bf16.mxu0 0
  %5415 = vmatpush2.bf16.msra.mxu0 0
  %5416 = vmatprep.subr.bf16.mxu0 0
  %5417 = vmatpush2.bf16.msra.mxu0 0
  %5418 = vmatprep.subr.bf16.mxu0 0
  %5419 = vmatpush2.bf16.msra.mxu0 0
  %5420 = vmatprep.subr.bf16.mxu0 0
  %5421 = vmatpush2.bf16.msra.mxu0 0
  %5422 = vmatprep.subr.bf16.mxu0 0
  %5423 = vmatpush2.bf16.msra.mxu0 0
  %5424 = vmatprep.subr.bf16.mxu0 0
  %5425 = vmatpush2.bf16.msra.mxu0 0
  %5426 = vmatprep.subr.bf16.mxu0 0
  %5427 = vmatpush2.bf16.msra.mxu0 0
  %5428 = vmatprep.mubr.bf16.mxu0 0
  %5429 = vmatmul.mubr.bf16.gmra.mxu0 %v5394
  %v5430 = vpop.f32.mrf.mxu0
  %v5431 = vadd.f32 0.0, %v5430
  %v5432 = vpop.f32.mrf.mxu0
  %v5433 = vpop.f32.mrf.mxu0
  %v5434 = vadd.f32 0.0, %v5433
  %v5435 = vpop.f32.mrf.mxu0
  %5436 = vdwg.mxu0
  %v5438 = vsel %vm4272, %v4986, 0
  %5440 = vmatprep.subr.bf16.mxu0 0
  %5441 = vmatpush1.bf16.msra.mxu0 0
  %5442 = vmatprep.subr.bf16.mxu0 0
  %5443 = vmatpush1.bf16.msra.mxu0 0
  %5444 = vmatprep.subr.bf16.mxu0 0
  %5445 = vmatpush1.bf16.msra.mxu0 0
  %5446 = vmatprep.subr.bf16.mxu0 0
  %5447 = vmatpush1.bf16.msra.mxu0 0
  %5448 = vmatprep.subr.bf16.mxu0 0
  %5449 = vmatpush1.bf16.msra.mxu0 0
  %5450 = vmatprep.subr.bf16.mxu0 0
  %5451 = vmatpush1.bf16.msra.mxu0 0
  %5452 = vmatprep.subr.bf16.mxu0 0
  %5453 = vmatpush1.bf16.msra.mxu0 0
  %5454 = vmatprep.subr.bf16.mxu0 0
  %5455 = vmatpush1.bf16.msra.mxu0 %v5018
  %5456 = vmatprep.subr.bf16.mxu0 0
  %5457 = vmatpush2.bf16.msra.mxu0 0
  %5458 = vmatprep.subr.bf16.mxu0 0
  %5459 = vmatpush2.bf16.msra.mxu0 0
  %5460 = vmatprep.subr.bf16.mxu0 0
  %5461 = vmatpush2.bf16.msra.mxu0 0
  %5462 = vmatprep.subr.bf16.mxu0 0
  %5463 = vmatpush2.bf16.msra.mxu0 0
  %5464 = vmatprep.subr.bf16.mxu0 0
  %5465 = vmatpush2.bf16.msra.mxu0 0
  %5466 = vmatprep.subr.bf16.mxu0 0
  %5467 = vmatpush2.bf16.msra.mxu0 0
  %5468 = vmatprep.subr.bf16.mxu0 0
  %5469 = vmatpush2.bf16.msra.mxu0 0
  %5470 = vmatprep.subr.bf16.mxu0 0
  %5471 = vmatpush2.bf16.msra.mxu0 0
  %5472 = vmatprep.mubr.bf16.mxu0 0
  %5473 = vmatmul.mubr.bf16.gmra.mxu0 %v5438
  %v5474 = vpop.f32.mrf.mxu0
  %v5475 = vadd.f32 0.0, %v5474
  %v5476 = vpop.f32.mrf.mxu0
  %v5477 = vpop.f32.mrf.mxu0
  %v5478 = vadd.f32 0.0, %v5477
  %v5479 = vpop.f32.mrf.mxu0
  %5480 = vdwg.mxu0
  %v5482 = vsel %vm4272, %v4987, 0
  %5484 = vmatprep.subr.bf16.mxu0 0
  %5485 = vmatpush1.bf16.msra.mxu0 0
  %5486 = vmatprep.subr.bf16.mxu0 0
  %5487 = vmatpush1.bf16.msra.mxu0 0
  %5488 = vmatprep.subr.bf16.mxu0 0
  %5489 = vmatpush1.bf16.msra.mxu0 0
  %5490 = vmatprep.subr.bf16.mxu0 0
  %5491 = vmatpush1.bf16.msra.mxu0 0
  %5492 = vmatprep.subr.bf16.mxu0 0
  %5493 = vmatpush1.bf16.msra.mxu0 0
  %5494 = vmatprep.subr.bf16.mxu0 0
  %5495 = vmatpush1.bf16.msra.mxu0 0
  %5496 = vmatprep.subr.bf16.mxu0 0
  %5497 = vmatpush1.bf16.msra.mxu0 0
  %5498 = vmatprep.subr.bf16.mxu0 0
  %5499 = vmatpush1.bf16.msra.mxu0 %v5019
  %5500 = vmatprep.subr.bf16.mxu0 0
  %5501 = vmatpush2.bf16.msra.mxu0 0
  %5502 = vmatprep.subr.bf16.mxu0 0
  %5503 = vmatpush2.bf16.msra.mxu0 0
  %5504 = vmatprep.subr.bf16.mxu0 0
  %5505 = vmatpush2.bf16.msra.mxu0 0
  %5506 = vmatprep.subr.bf16.mxu0 0
  %5507 = vmatpush2.bf16.msra.mxu0 0
  %5508 = vmatprep.subr.bf16.mxu0 0
  %5509 = vmatpush2.bf16.msra.mxu0 0
  %5510 = vmatprep.subr.bf16.mxu0 0
  %5511 = vmatpush2.bf16.msra.mxu0 0
  %5512 = vmatprep.subr.bf16.mxu0 0
  %5513 = vmatpush2.bf16.msra.mxu0 0
  %5514 = vmatprep.subr.bf16.mxu0 0
  %5515 = vmatpush2.bf16.msra.mxu0 0
  %5516 = vmatprep.mubr.bf16.mxu0 0
  %5517 = vmatmul.mubr.bf16.gmra.mxu0 %v5482
  %v5518 = vpop.f32.mrf.mxu0
  %v5519 = vadd.f32 0.0, %v5518
  %v5520 = vpop.f32.mrf.mxu0
  %v5521 = vpop.f32.mrf.mxu0
  %v5522 = vadd.f32 0.0, %v5521
  %v5523 = vpop.f32.mrf.mxu0
  %5524 = vdwg.mxu0
  %v5526 = vsel %vm4272, %v4988, 0
  %5528 = vmatprep.subr.bf16.mxu0 0
  %5529 = vmatpush1.bf16.msra.mxu0 0
  %5530 = vmatprep.subr.bf16.mxu0 0
  %5531 = vmatpush1.bf16.msra.mxu0 0
  %5532 = vmatprep.subr.bf16.mxu0 0
  %5533 = vmatpush1.bf16.msra.mxu0 0
  %5534 = vmatprep.subr.bf16.mxu0 0
  %5535 = vmatpush1.bf16.msra.mxu0 0
  %5536 = vmatprep.subr.bf16.mxu0 0
  %5537 = vmatpush1.bf16.msra.mxu0 0
  %5538 = vmatprep.subr.bf16.mxu0 0
  %5539 = vmatpush1.bf16.msra.mxu0 0
  %5540 = vmatprep.subr.bf16.mxu0 0
  %5541 = vmatpush1.bf16.msra.mxu0 0
  %5542 = vmatprep.subr.bf16.mxu0 0
  %5543 = vmatpush1.bf16.msra.mxu0 %v5020
  %5544 = vmatprep.subr.bf16.mxu0 0
  %5545 = vmatpush2.bf16.msra.mxu0 0
  %5546 = vmatprep.subr.bf16.mxu0 0
  %5547 = vmatpush2.bf16.msra.mxu0 0
  %5548 = vmatprep.subr.bf16.mxu0 0
  %5549 = vmatpush2.bf16.msra.mxu0 0
  %5550 = vmatprep.subr.bf16.mxu0 0
  %5551 = vmatpush2.bf16.msra.mxu0 0
  %5552 = vmatprep.subr.bf16.mxu0 0
  %5553 = vmatpush2.bf16.msra.mxu0 0
  %5554 = vmatprep.subr.bf16.mxu0 0
  %5555 = vmatpush2.bf16.msra.mxu0 0
  %5556 = vmatprep.subr.bf16.mxu0 0
  %5557 = vmatpush2.bf16.msra.mxu0 0
  %5558 = vmatprep.subr.bf16.mxu0 0
  %5559 = vmatpush2.bf16.msra.mxu0 0
  %5560 = vmatprep.mubr.bf16.mxu0 0
  %5561 = vmatmul.mubr.bf16.gmra.mxu0 %v5526
  %v5562 = vpop.f32.mrf.mxu0
  %v5563 = vadd.f32 0.0, %v5562
  %v5564 = vpop.f32.mrf.mxu0
  %v5565 = vpop.f32.mrf.mxu0
  %v5566 = vadd.f32 0.0, %v5565
  %v5567 = vpop.f32.mrf.mxu0
  %5568 = vdwg.mxu0
  %v5570 = vsel %vm4272, %v4989, 0
  %5572 = vmatprep.subr.bf16.mxu0 0
  %5573 = vmatpush1.bf16.msra.mxu0 0
  %5574 = vmatprep.subr.bf16.mxu0 0
  %5575 = vmatpush1.bf16.msra.mxu0 0
  %5576 = vmatprep.subr.bf16.mxu0 0
  %5577 = vmatpush1.bf16.msra.mxu0 0
  %5578 = vmatprep.subr.bf16.mxu0 0
  %5579 = vmatpush1.bf16.msra.mxu0 0
  %5580 = vmatprep.subr.bf16.mxu0 0
  %5581 = vmatpush1.bf16.msra.mxu0 0
  %5582 = vmatprep.subr.bf16.mxu0 0
  %5583 = vmatpush1.bf16.msra.mxu0 0
  %5584 = vmatprep.subr.bf16.mxu0 0
  %5585 = vmatpush1.bf16.msra.mxu0 0
  %5586 = vmatprep.subr.bf16.mxu0 0
  %5587 = vmatpush1.bf16.msra.mxu0 %v5021
  %5588 = vmatprep.subr.bf16.mxu0 0
  %5589 = vmatpush2.bf16.msra.mxu0 0
  %5590 = vmatprep.subr.bf16.mxu0 0
  %5591 = vmatpush2.bf16.msra.mxu0 0
  %5592 = vmatprep.subr.bf16.mxu0 0
  %5593 = vmatpush2.bf16.msra.mxu0 0
  %5594 = vmatprep.subr.bf16.mxu0 0
  %5595 = vmatpush2.bf16.msra.mxu0 0
  %5596 = vmatprep.subr.bf16.mxu0 0
  %5597 = vmatpush2.bf16.msra.mxu0 0
  %5598 = vmatprep.subr.bf16.mxu0 0
  %5599 = vmatpush2.bf16.msra.mxu0 0
  %5600 = vmatprep.subr.bf16.mxu0 0
  %5601 = vmatpush2.bf16.msra.mxu0 0
  %5602 = vmatprep.subr.bf16.mxu0 0
  %5603 = vmatpush2.bf16.msra.mxu0 0
  %5604 = vmatprep.mubr.bf16.mxu0 0
  %5605 = vmatmul.mubr.bf16.gmra.mxu0 %v5570
  %v5606 = vpop.f32.mrf.mxu0
  %v5607 = vadd.f32 0.0, %v5606
  %v5608 = vpop.f32.mrf.mxu0
  %v5609 = vpop.f32.mrf.mxu0
  %v5610 = vadd.f32 0.0, %v5609
  %v5611 = vpop.f32.mrf.mxu0
  %5612 = vdwg.mxu0
  %v5614 = vsel %vm4272, %v4990, 0
  %5616 = vmatprep.subr.bf16.mxu0 0
  %5617 = vmatpush1.bf16.msra.mxu0 0
  %5618 = vmatprep.subr.bf16.mxu0 0
  %5619 = vmatpush1.bf16.msra.mxu0 0
  %5620 = vmatprep.subr.bf16.mxu0 0
  %5621 = vmatpush1.bf16.msra.mxu0 0
  %5622 = vmatprep.subr.bf16.mxu0 0
  %5623 = vmatpush1.bf16.msra.mxu0 0
  %5624 = vmatprep.subr.bf16.mxu0 0
  %5625 = vmatpush1.bf16.msra.mxu0 0
  %5626 = vmatprep.subr.bf16.mxu0 0
  %5627 = vmatpush1.bf16.msra.mxu0 0
  %5628 = vmatprep.subr.bf16.mxu0 0
  %5629 = vmatpush1.bf16.msra.mxu0 0
  %5630 = vmatprep.subr.bf16.mxu0 0
  %5631 = vmatpush1.bf16.msra.mxu0 %v5022
  %5632 = vmatprep.subr.bf16.mxu0 0
  %5633 = vmatpush2.bf16.msra.mxu0 0
  %5634 = vmatprep.subr.bf16.mxu0 0
  %5635 = vmatpush2.bf16.msra.mxu0 0
  %5636 = vmatprep.subr.bf16.mxu0 0
  %5637 = vmatpush2.bf16.msra.mxu0 0
  %5638 = vmatprep.subr.bf16.mxu0 0
  %5639 = vmatpush2.bf16.msra.mxu0 0
  %5640 = vmatprep.subr.bf16.mxu0 0
  %5641 = vmatpush2.bf16.msra.mxu0 0
  %5642 = vmatprep.subr.bf16.mxu0 0
  %5643 = vmatpush2.bf16.msra.mxu0 0
  %5644 = vmatprep.subr.bf16.mxu0 0
  %5645 = vmatpush2.bf16.msra.mxu0 0
  %5646 = vmatprep.subr.bf16.mxu0 0
  %5647 = vmatpush2.bf16.msra.mxu0 0
  %5648 = vmatprep.mubr.bf16.mxu0 0
  %5649 = vmatmul.mubr.bf16.gmra.mxu0 %v5614
  %v5650 = vpop.f32.mrf.mxu0
  %v5651 = vadd.f32 0.0, %v5650
  %v5652 = vpop.f32.mrf.mxu0
  %v5653 = vpop.f32.mrf.mxu0
  %v5654 = vadd.f32 0.0, %v5653
  %v5655 = vpop.f32.mrf.mxu0
  %5656 = vdwg.mxu0
  %v5658 = vsel %vm4272, %v4991, 0
  %5660 = vmatprep.subr.bf16.mxu0 0
  %5661 = vmatpush1.bf16.msra.mxu0 0
  %5662 = vmatprep.subr.bf16.mxu0 0
  %5663 = vmatpush1.bf16.msra.mxu0 0
  %5664 = vmatprep.subr.bf16.mxu0 0
  %5665 = vmatpush1.bf16.msra.mxu0 0
  %5666 = vmatprep.subr.bf16.mxu0 0
  %5667 = vmatpush1.bf16.msra.mxu0 0
  %5668 = vmatprep.subr.bf16.mxu0 0
  %5669 = vmatpush1.bf16.msra.mxu0 0
  %5670 = vmatprep.subr.bf16.mxu0 0
  %5671 = vmatpush1.bf16.msra.mxu0 0
  %5672 = vmatprep.subr.bf16.mxu0 0
  %5673 = vmatpush1.bf16.msra.mxu0 0
  %5674 = vmatprep.subr.bf16.mxu0 0
  %5675 = vmatpush1.bf16.msra.mxu0 %v5023
  %5676 = vmatprep.subr.bf16.mxu0 0
  %5677 = vmatpush2.bf16.msra.mxu0 0
  %5678 = vmatprep.subr.bf16.mxu0 0
  %5679 = vmatpush2.bf16.msra.mxu0 0
  %5680 = vmatprep.subr.bf16.mxu0 0
  %5681 = vmatpush2.bf16.msra.mxu0 0
  %5682 = vmatprep.subr.bf16.mxu0 0
  %5683 = vmatpush2.bf16.msra.mxu0 0
  %5684 = vmatprep.subr.bf16.mxu0 0
  %5685 = vmatpush2.bf16.msra.mxu0 0
  %5686 = vmatprep.subr.bf16.mxu0 0
  %5687 = vmatpush2.bf16.msra.mxu0 0
  %5688 = vmatprep.subr.bf16.mxu0 0
  %5689 = vmatpush2.bf16.msra.mxu0 0
  %5690 = vmatprep.subr.bf16.mxu0 0
  %5691 = vmatpush2.bf16.msra.mxu0 0
  %5692 = vmatprep.mubr.bf16.mxu0 0
  %5693 = vmatmul.mubr.bf16.gmra.mxu0 %v5658
  %v5694 = vpop.f32.mrf.mxu0
  %v5695 = vadd.f32 0.0, %v5694
  %v5696 = vpop.f32.mrf.mxu0
  %v5697 = vpop.f32.mrf.mxu0
  %v5698 = vadd.f32 0.0, %v5697
  %v5699 = vpop.f32.mrf.mxu0
  %5700 = vdwg.mxu0
  %v5702 = vsel %vm4272, %v4992, 0
  %5704 = vmatprep.subr.bf16.mxu0 0
  %5705 = vmatpush1.bf16.msra.mxu0 0
  %5706 = vmatprep.subr.bf16.mxu0 0
  %5707 = vmatpush1.bf16.msra.mxu0 0
  %5708 = vmatprep.subr.bf16.mxu0 0
  %5709 = vmatpush1.bf16.msra.mxu0 0
  %5710 = vmatprep.subr.bf16.mxu0 0
  %5711 = vmatpush1.bf16.msra.mxu0 0
  %5712 = vmatprep.subr.bf16.mxu0 0
  %5713 = vmatpush1.bf16.msra.mxu0 0
  %5714 = vmatprep.subr.bf16.mxu0 0
  %5715 = vmatpush1.bf16.msra.mxu0 0
  %5716 = vmatprep.subr.bf16.mxu0 0
  %5717 = vmatpush1.bf16.msra.mxu0 0
  %5718 = vmatprep.subr.bf16.mxu0 0
  %5719 = vmatpush1.bf16.msra.mxu0 %v5024
  %5720 = vmatprep.subr.bf16.mxu0 0
  %5721 = vmatpush2.bf16.msra.mxu0 0
  %5722 = vmatprep.subr.bf16.mxu0 0
  %5723 = vmatpush2.bf16.msra.mxu0 0
  %5724 = vmatprep.subr.bf16.mxu0 0
  %5725 = vmatpush2.bf16.msra.mxu0 0
  %5726 = vmatprep.subr.bf16.mxu0 0
  %5727 = vmatpush2.bf16.msra.mxu0 0
  %5728 = vmatprep.subr.bf16.mxu0 0
  %5729 = vmatpush2.bf16.msra.mxu0 0
  %5730 = vmatprep.subr.bf16.mxu0 0
  %5731 = vmatpush2.bf16.msra.mxu0 0
  %5732 = vmatprep.subr.bf16.mxu0 0
  %5733 = vmatpush2.bf16.msra.mxu0 0
  %5734 = vmatprep.subr.bf16.mxu0 0
  %5735 = vmatpush2.bf16.msra.mxu0 0
  %5736 = vmatprep.mubr.bf16.mxu0 0
  %5737 = vmatmul.mubr.bf16.gmra.mxu0 %v5702
  %v5738 = vpop.f32.mrf.mxu0
  %v5739 = vadd.f32 0.0, %v5738
  %v5740 = vpop.f32.mrf.mxu0
  %v5741 = vpop.f32.mrf.mxu0
  %v5742 = vadd.f32 0.0, %v5741
  %v5743 = vpop.f32.mrf.mxu0
  %5744 = vdwg.mxu0
  %v5746 = vsel %vm4272, %v4993, 0
  %5748 = vmatprep.subr.bf16.mxu0 0
  %5749 = vmatpush1.bf16.msra.mxu0 0
  %5750 = vmatprep.subr.bf16.mxu0 0
  %5751 = vmatpush1.bf16.msra.mxu0 0
  %5752 = vmatprep.subr.bf16.mxu0 0
  %5753 = vmatpush1.bf16.msra.mxu0 0
  %5754 = vmatprep.subr.bf16.mxu0 0
  %5755 = vmatpush1.bf16.msra.mxu0 0
  %5756 = vmatprep.subr.bf16.mxu0 0
  %5757 = vmatpush1.bf16.msra.mxu0 0
  %5758 = vmatprep.subr.bf16.mxu0 0
  %5759 = vmatpush1.bf16.msra.mxu0 0
  %5760 = vmatprep.subr.bf16.mxu0 0
  %5761 = vmatpush1.bf16.msra.mxu0 0
  %5762 = vmatprep.subr.bf16.mxu0 0
  %5763 = vmatpush1.bf16.msra.mxu0 %v5025
  %5764 = vmatprep.subr.bf16.mxu0 0
  %5765 = vmatpush2.bf16.msra.mxu0 0
  %5766 = vmatprep.subr.bf16.mxu0 0
  %5767 = vmatpush2.bf16.msra.mxu0 0
  %5768 = vmatprep.subr.bf16.mxu0 0
  %5769 = vmatpush2.bf16.msra.mxu0 0
  %5770 = vmatprep.subr.bf16.mxu0 0
  %5771 = vmatpush2.bf16.msra.mxu0 0
  %5772 = vmatprep.subr.bf16.mxu0 0
  %5773 = vmatpush2.bf16.msra.mxu0 0
  %5774 = vmatprep.subr.bf16.mxu0 0
  %5775 = vmatpush2.bf16.msra.mxu0 0
  %5776 = vmatprep.subr.bf16.mxu0 0
  %5777 = vmatpush2.bf16.msra.mxu0 0
  %5778 = vmatprep.subr.bf16.mxu0 0
  %5779 = vmatpush2.bf16.msra.mxu0 0
  %5780 = vmatprep.mubr.bf16.mxu0 0
  %5781 = vmatmul.mubr.bf16.gmra.mxu0 %v5746
  %v5782 = vpop.f32.mrf.mxu0
  %v5783 = vadd.f32 0.0, %v5782
  %v5784 = vpop.f32.mrf.mxu0
  %v5785 = vpop.f32.mrf.mxu0
  %v5786 = vadd.f32 0.0, %v5785
  %v5787 = vpop.f32.mrf.mxu0
  %5788 = vdwg.mxu0
  %v5790 = vsel %vm4272, %v4994, 0
  %5792 = vmatprep.subr.bf16.mxu0 0
  %5793 = vmatpush1.bf16.msra.mxu0 0
  %5794 = vmatprep.subr.bf16.mxu0 0
  %5795 = vmatpush1.bf16.msra.mxu0 0
  %5796 = vmatprep.subr.bf16.mxu0 0
  %5797 = vmatpush1.bf16.msra.mxu0 0
  %5798 = vmatprep.subr.bf16.mxu0 0
  %5799 = vmatpush1.bf16.msra.mxu0 0
  %5800 = vmatprep.subr.bf16.mxu0 0
  %5801 = vmatpush1.bf16.msra.mxu0 0
  %5802 = vmatprep.subr.bf16.mxu0 0
  %5803 = vmatpush1.bf16.msra.mxu0 0
  %5804 = vmatprep.subr.bf16.mxu0 0
  %5805 = vmatpush1.bf16.msra.mxu0 0
  %5806 = vmatprep.subr.bf16.mxu0 0
  %5807 = vmatpush1.bf16.msra.mxu0 %v5026
  %5808 = vmatprep.subr.bf16.mxu0 0
  %5809 = vmatpush2.bf16.msra.mxu0 0
  %5810 = vmatprep.subr.bf16.mxu0 0
  %5811 = vmatpush2.bf16.msra.mxu0 0
  %5812 = vmatprep.subr.bf16.mxu0 0
  %5813 = vmatpush2.bf16.msra.mxu0 0
  %5814 = vmatprep.subr.bf16.mxu0 0
  %5815 = vmatpush2.bf16.msra.mxu0 0
  %5816 = vmatprep.subr.bf16.mxu0 0
  %5817 = vmatpush2.bf16.msra.mxu0 0
  %5818 = vmatprep.subr.bf16.mxu0 0
  %5819 = vmatpush2.bf16.msra.mxu0 0
  %5820 = vmatprep.subr.bf16.mxu0 0
  %5821 = vmatpush2.bf16.msra.mxu0 0
  %5822 = vmatprep.subr.bf16.mxu0 0
  %5823 = vmatpush2.bf16.msra.mxu0 0
  %5824 = vmatprep.mubr.bf16.mxu0 0
  %5825 = vmatmul.mubr.bf16.gmra.mxu0 %v5790
  %v5826 = vpop.f32.mrf.mxu0
  %v5827 = vadd.f32 0.0, %v5826
  %v5828 = vpop.f32.mrf.mxu0
  %v5829 = vpop.f32.mrf.mxu0
  %v5830 = vadd.f32 0.0, %v5829
  %v5831 = vpop.f32.mrf.mxu0
  %5832 = vdwg.mxu0
  %v5834 = vsel %vm4272, %v4995, 0
  %5836 = vmatprep.subr.bf16.mxu0 0
  %5837 = vmatpush1.bf16.msra.mxu0 0
  %5838 = vmatprep.subr.bf16.mxu0 0
  %5839 = vmatpush1.bf16.msra.mxu0 0
  %5840 = vmatprep.subr.bf16.mxu0 0
  %5841 = vmatpush1.bf16.msra.mxu0 0
  %5842 = vmatprep.subr.bf16.mxu0 0
  %5843 = vmatpush1.bf16.msra.mxu0 0
  %5844 = vmatprep.subr.bf16.mxu0 0
  %5845 = vmatpush1.bf16.msra.mxu0 0
  %5846 = vmatprep.subr.bf16.mxu0 0
  %5847 = vmatpush1.bf16.msra.mxu0 0
  %5848 = vmatprep.subr.bf16.mxu0 0
  %5849 = vmatpush1.bf16.msra.mxu0 0
  %5850 = vmatprep.subr.bf16.mxu0 0
  %5851 = vmatpush1.bf16.msra.mxu0 %v5027
  %5852 = vmatprep.subr.bf16.mxu0 0
  %5853 = vmatpush2.bf16.msra.mxu0 0
  %5854 = vmatprep.subr.bf16.mxu0 0
  %5855 = vmatpush2.bf16.msra.mxu0 0
  %5856 = vmatprep.subr.bf16.mxu0 0
  %5857 = vmatpush2.bf16.msra.mxu0 0
  %5858 = vmatprep.subr.bf16.mxu0 0
  %5859 = vmatpush2.bf16.msra.mxu0 0
  %5860 = vmatprep.subr.bf16.mxu0 0
  %5861 = vmatpush2.bf16.msra.mxu0 0
  %5862 = vmatprep.subr.bf16.mxu0 0
  %5863 = vmatpush2.bf16.msra.mxu0 0
  %5864 = vmatprep.subr.bf16.mxu0 0
  %5865 = vmatpush2.bf16.msra.mxu0 0
  %5866 = vmatprep.subr.bf16.mxu0 0
  %5867 = vmatpush2.bf16.msra.mxu0 0
  %5868 = vmatprep.mubr.bf16.mxu0 0
  %5869 = vmatmul.mubr.bf16.gmra.mxu0 %v5834
  %v5870 = vpop.f32.mrf.mxu0
  %v5871 = vadd.f32 0.0, %v5870
  %v5872 = vpop.f32.mrf.mxu0
  %v5873 = vpop.f32.mrf.mxu0
  %v5874 = vadd.f32 0.0, %v5873
  %v5875 = vpop.f32.mrf.mxu0
  %5876 = vdwg.mxu0
  %v5878 = vsel %vm4272, %v4996, 0
  %5880 = vmatprep.subr.bf16.mxu0 0
  %5881 = vmatpush1.bf16.msra.mxu0 0
  %5882 = vmatprep.subr.bf16.mxu0 0
  %5883 = vmatpush1.bf16.msra.mxu0 0
  %5884 = vmatprep.subr.bf16.mxu0 0
  %5885 = vmatpush1.bf16.msra.mxu0 0
  %5886 = vmatprep.subr.bf16.mxu0 0
  %5887 = vmatpush1.bf16.msra.mxu0 0
  %5888 = vmatprep.subr.bf16.mxu0 0
  %5889 = vmatpush1.bf16.msra.mxu0 0
  %5890 = vmatprep.subr.bf16.mxu0 0
  %5891 = vmatpush1.bf16.msra.mxu0 0
  %5892 = vmatprep.subr.bf16.mxu0 0
  %5893 = vmatpush1.bf16.msra.mxu0 0
  %5894 = vmatprep.subr.bf16.mxu0 0
  %5895 = vmatpush1.bf16.msra.mxu0 %v5028
  %5896 = vmatprep.subr.bf16.mxu0 0
  %5897 = vmatpush2.bf16.msra.mxu0 0
  %5898 = vmatprep.subr.bf16.mxu0 0
  %5899 = vmatpush2.bf16.msra.mxu0 0
  %5900 = vmatprep.subr.bf16.mxu0 0
  %5901 = vmatpush2.bf16.msra.mxu0 0
  %5902 = vmatprep.subr.bf16.mxu0 0
  %5903 = vmatpush2.bf16.msra.mxu0 0
  %5904 = vmatprep.subr.bf16.mxu0 0
  %5905 = vmatpush2.bf16.msra.mxu0 0
  %5906 = vmatprep.subr.bf16.mxu0 0
  %5907 = vmatpush2.bf16.msra.mxu0 0
  %5908 = vmatprep.subr.bf16.mxu0 0
  %5909 = vmatpush2.bf16.msra.mxu0 0
  %5910 = vmatprep.subr.bf16.mxu0 0
  %5911 = vmatpush2.bf16.msra.mxu0 0
  %5912 = vmatprep.mubr.bf16.mxu0 0
  %5913 = vmatmul.mubr.bf16.gmra.mxu0 %v5878
  %v5914 = vpop.f32.mrf.mxu0
  %v5915 = vadd.f32 0.0, %v5914
  %v5916 = vpop.f32.mrf.mxu0
  %v5917 = vpop.f32.mrf.mxu0
  %v5918 = vadd.f32 0.0, %v5917
  %v5919 = vpop.f32.mrf.mxu0
  %5920 = vdwg.mxu0
  %v5922 = vsel %vm4272, %v4997, 0
  %5924 = vmatprep.subr.bf16.mxu0 0
  %5925 = vmatpush1.bf16.msra.mxu0 0
  %5926 = vmatprep.subr.bf16.mxu0 0
  %5927 = vmatpush1.bf16.msra.mxu0 0
  %5928 = vmatprep.subr.bf16.mxu0 0
  %5929 = vmatpush1.bf16.msra.mxu0 0
  %5930 = vmatprep.subr.bf16.mxu0 0
  %5931 = vmatpush1.bf16.msra.mxu0 0
  %5932 = vmatprep.subr.bf16.mxu0 0
  %5933 = vmatpush1.bf16.msra.mxu0 0
  %5934 = vmatprep.subr.bf16.mxu0 0
  %5935 = vmatpush1.bf16.msra.mxu0 0
  %5936 = vmatprep.subr.bf16.mxu0 0
  %5937 = vmatpush1.bf16.msra.mxu0 0
  %5938 = vmatprep.subr.bf16.mxu0 0
  %5939 = vmatpush1.bf16.msra.mxu0 %v5029
  %5940 = vmatprep.subr.bf16.mxu0 0
  %5941 = vmatpush2.bf16.msra.mxu0 0
  %5942 = vmatprep.subr.bf16.mxu0 0
  %5943 = vmatpush2.bf16.msra.mxu0 0
  %5944 = vmatprep.subr.bf16.mxu0 0
  %5945 = vmatpush2.bf16.msra.mxu0 0
  %5946 = vmatprep.subr.bf16.mxu0 0
  %5947 = vmatpush2.bf16.msra.mxu0 0
  %5948 = vmatprep.subr.bf16.mxu0 0
  %5949 = vmatpush2.bf16.msra.mxu0 0
  %5950 = vmatprep.subr.bf16.mxu0 0
  %5951 = vmatpush2.bf16.msra.mxu0 0
  %5952 = vmatprep.subr.bf16.mxu0 0
  %5953 = vmatpush2.bf16.msra.mxu0 0
  %5954 = vmatprep.subr.bf16.mxu0 0
  %5955 = vmatpush2.bf16.msra.mxu0 0
  %5956 = vmatprep.mubr.bf16.mxu0 0
  %5957 = vmatmul.mubr.bf16.gmra.mxu0 %v5922
  %v5958 = vpop.f32.mrf.mxu0
  %v5959 = vadd.f32 0.0, %v5958
  %v5960 = vpop.f32.mrf.mxu0
  %v5961 = vpop.f32.mrf.mxu0
  %v5962 = vadd.f32 0.0, %v5961
  %v5963 = vpop.f32.mrf.mxu0
  %5964 = vdwg.mxu0
  %v5966 = vsel %vm4272, %v4998, 0
  %5968 = vmatprep.subr.bf16.mxu0 0
  %5969 = vmatpush1.bf16.msra.mxu0 0
  %5970 = vmatprep.subr.bf16.mxu0 0
  %5971 = vmatpush1.bf16.msra.mxu0 0
  %5972 = vmatprep.subr.bf16.mxu0 0
  %5973 = vmatpush1.bf16.msra.mxu0 0
  %5974 = vmatprep.subr.bf16.mxu0 0
  %5975 = vmatpush1.bf16.msra.mxu0 0
  %5976 = vmatprep.subr.bf16.mxu0 0
  %5977 = vmatpush1.bf16.msra.mxu0 0
  %5978 = vmatprep.subr.bf16.mxu0 0
  %5979 = vmatpush1.bf16.msra.mxu0 0
  %5980 = vmatprep.subr.bf16.mxu0 0
  %5981 = vmatpush1.bf16.msra.mxu0 0
  %5982 = vmatprep.subr.bf16.mxu0 0
  %5983 = vmatpush1.bf16.msra.mxu0 %v5030
  %5984 = vmatprep.subr.bf16.mxu0 0
  %5985 = vmatpush2.bf16.msra.mxu0 0
  %5986 = vmatprep.subr.bf16.mxu0 0
  %5987 = vmatpush2.bf16.msra.mxu0 0
  %5988 = vmatprep.subr.bf16.mxu0 0
  %5989 = vmatpush2.bf16.msra.mxu0 0
  %5990 = vmatprep.subr.bf16.mxu0 0
  %5991 = vmatpush2.bf16.msra.mxu0 0
  %5992 = vmatprep.subr.bf16.mxu0 0
  %5993 = vmatpush2.bf16.msra.mxu0 0
  %5994 = vmatprep.subr.bf16.mxu0 0
  %5995 = vmatpush2.bf16.msra.mxu0 0
  %5996 = vmatprep.subr.bf16.mxu0 0
  %5997 = vmatpush2.bf16.msra.mxu0 0
  %5998 = vmatprep.subr.bf16.mxu0 0
  %5999 = vmatpush2.bf16.msra.mxu0 0
  %6000 = vmatprep.mubr.bf16.mxu0 0
  %6001 = vmatmul.mubr.bf16.gmra.mxu0 %v5966
  %v6002 = vpop.f32.mrf.mxu0
  %v6003 = vadd.f32 0.0, %v6002
  %v6004 = vpop.f32.mrf.mxu0
  %v6005 = vpop.f32.mrf.mxu0
  %v6006 = vadd.f32 0.0, %v6005
  %v6007 = vpop.f32.mrf.mxu0
  %6008 = vdwg.mxu0
  %v6010 = vsel %vm4272, %v4999, 0
  %6012 = vmatprep.subr.bf16.mxu0 0
  %6013 = vmatpush1.bf16.msra.mxu0 0
  %6014 = vmatprep.subr.bf16.mxu0 0
  %6015 = vmatpush1.bf16.msra.mxu0 0
  %6016 = vmatprep.subr.bf16.mxu0 0
  %6017 = vmatpush1.bf16.msra.mxu0 0
  %6018 = vmatprep.subr.bf16.mxu0 0
  %6019 = vmatpush1.bf16.msra.mxu0 0
  %6020 = vmatprep.subr.bf16.mxu0 0
  %6021 = vmatpush1.bf16.msra.mxu0 0
  %6022 = vmatprep.subr.bf16.mxu0 0
  %6023 = vmatpush1.bf16.msra.mxu0 0
  %6024 = vmatprep.subr.bf16.mxu0 0
  %6025 = vmatpush1.bf16.msra.mxu0 0
  %6026 = vmatprep.subr.bf16.mxu0 0
  %6027 = vmatpush1.bf16.msra.mxu0 %v5031
  %6028 = vmatprep.subr.bf16.mxu0 0
  %6029 = vmatpush2.bf16.msra.mxu0 0
  %6030 = vmatprep.subr.bf16.mxu0 0
  %6031 = vmatpush2.bf16.msra.mxu0 0
  %6032 = vmatprep.subr.bf16.mxu0 0
  %6033 = vmatpush2.bf16.msra.mxu0 0
  %6034 = vmatprep.subr.bf16.mxu0 0
  %6035 = vmatpush2.bf16.msra.mxu0 0
  %6036 = vmatprep.subr.bf16.mxu0 0
  %6037 = vmatpush2.bf16.msra.mxu0 0
  %6038 = vmatprep.subr.bf16.mxu0 0
  %6039 = vmatpush2.bf16.msra.mxu0 0
  %6040 = vmatprep.subr.bf16.mxu0 0
  %6041 = vmatpush2.bf16.msra.mxu0 0
  %6042 = vmatprep.subr.bf16.mxu0 0
  %6043 = vmatpush2.bf16.msra.mxu0 0
  %6044 = vmatprep.mubr.bf16.mxu0 0
  %6045 = vmatmul.mubr.bf16.gmra.mxu0 %v6010
  %v6046 = vpop.f32.mrf.mxu0
  %v6047 = vadd.f32 0.0, %v6046
  %v6048 = vpop.f32.mrf.mxu0
  %v6049 = vpop.f32.mrf.mxu0
  %v6050 = vadd.f32 0.0, %v6049
  %v6051 = vpop.f32.mrf.mxu0
  %6052 = vdwg.mxu0
  %v6054 = vsel %vm4272, %v5000, 0
  %6056 = vmatprep.subr.bf16.mxu0 0
  %6057 = vmatpush1.bf16.msra.mxu0 0
  %6058 = vmatprep.subr.bf16.mxu0 0
  %6059 = vmatpush1.bf16.msra.mxu0 0
  %6060 = vmatprep.subr.bf16.mxu0 0
  %6061 = vmatpush1.bf16.msra.mxu0 0
  %6062 = vmatprep.subr.bf16.mxu0 0
  %6063 = vmatpush1.bf16.msra.mxu0 0
  %6064 = vmatprep.subr.bf16.mxu0 0
  %6065 = vmatpush1.bf16.msra.mxu0 0
  %6066 = vmatprep.subr.bf16.mxu0 0
  %6067 = vmatpush1.bf16.msra.mxu0 0
  %6068 = vmatprep.subr.bf16.mxu0 0
  %6069 = vmatpush1.bf16.msra.mxu0 0
  %6070 = vmatprep.subr.bf16.mxu0 0
  %6071 = vmatpush1.bf16.msra.mxu0 %v5032
  %6072 = vmatprep.subr.bf16.mxu0 0
  %6073 = vmatpush2.bf16.msra.mxu0 0
  %6074 = vmatprep.subr.bf16.mxu0 0
  %6075 = vmatpush2.bf16.msra.mxu0 0
  %6076 = vmatprep.subr.bf16.mxu0 0
  %6077 = vmatpush2.bf16.msra.mxu0 0
  %6078 = vmatprep.subr.bf16.mxu0 0
  %6079 = vmatpush2.bf16.msra.mxu0 0
  %6080 = vmatprep.subr.bf16.mxu0 0
  %6081 = vmatpush2.bf16.msra.mxu0 0
  %6082 = vmatprep.subr.bf16.mxu0 0
  %6083 = vmatpush2.bf16.msra.mxu0 0
  %6084 = vmatprep.subr.bf16.mxu0 0
  %6085 = vmatpush2.bf16.msra.mxu0 0
  %6086 = vmatprep.subr.bf16.mxu0 0
  %6087 = vmatpush2.bf16.msra.mxu0 0
  %6088 = vmatprep.mubr.bf16.mxu0 0
  %6089 = vmatmul.mubr.bf16.gmra.mxu0 %v6054
  %v6090 = vpop.f32.mrf.mxu0
  %v6091 = vadd.f32 0.0, %v6090
  %v6092 = vpop.f32.mrf.mxu0
  %v6093 = vpop.f32.mrf.mxu0
  %v6094 = vadd.f32 0.0, %v6093
  %v6095 = vpop.f32.mrf.mxu0
  %6096 = vdwg.mxu0
  %v6098 = vsel %vm4272, %v5001, 0
  %6100 = vmatprep.subr.bf16.mxu0 0
  %6101 = vmatpush1.bf16.msra.mxu0 0
  %6102 = vmatprep.subr.bf16.mxu0 0
  %6103 = vmatpush1.bf16.msra.mxu0 0
  %6104 = vmatprep.subr.bf16.mxu0 0
  %6105 = vmatpush1.bf16.msra.mxu0 0
  %6106 = vmatprep.subr.bf16.mxu0 0
  %6107 = vmatpush1.bf16.msra.mxu0 0
  %6108 = vmatprep.subr.bf16.mxu0 0
  %6109 = vmatpush1.bf16.msra.mxu0 0
  %6110 = vmatprep.subr.bf16.mxu0 0
  %6111 = vmatpush1.bf16.msra.mxu0 0
  %6112 = vmatprep.subr.bf16.mxu0 0
  %6113 = vmatpush1.bf16.msra.mxu0 0
  %6114 = vmatprep.subr.bf16.mxu0 0
  %6115 = vmatpush1.bf16.msra.mxu0 %v5033
  %6116 = vmatprep.subr.bf16.mxu0 0
  %6117 = vmatpush2.bf16.msra.mxu0 0
  %6118 = vmatprep.subr.bf16.mxu0 0
  %6119 = vmatpush2.bf16.msra.mxu0 0
  %6120 = vmatprep.subr.bf16.mxu0 0
  %6121 = vmatpush2.bf16.msra.mxu0 0
  %6122 = vmatprep.subr.bf16.mxu0 0
  %6123 = vmatpush2.bf16.msra.mxu0 0
  %6124 = vmatprep.subr.bf16.mxu0 0
  %6125 = vmatpush2.bf16.msra.mxu0 0
  %6126 = vmatprep.subr.bf16.mxu0 0
  %6127 = vmatpush2.bf16.msra.mxu0 0
  %6128 = vmatprep.subr.bf16.mxu0 0
  %6129 = vmatpush2.bf16.msra.mxu0 0
  %6130 = vmatprep.subr.bf16.mxu0 0
  %6131 = vmatpush2.bf16.msra.mxu0 0
  %6132 = vmatprep.mubr.bf16.mxu0 0
  %6133 = vmatmul.mubr.bf16.gmra.mxu0 %v6098
  %v6134 = vpop.f32.mrf.mxu0
  %v6135 = vadd.f32 0.0, %v6134
  %v6136 = vpop.f32.mrf.mxu0
  %v6137 = vpop.f32.mrf.mxu0
  %v6138 = vadd.f32 0.0, %v6137
  %v6139 = vpop.f32.mrf.mxu0
  %6140 = vdwg.mxu0
  %v6142 = vsel %vm4272, %v5002, 0
  %6144 = vmatprep.subr.bf16.mxu0 0
  %6145 = vmatpush1.bf16.msra.mxu0 0
  %6146 = vmatprep.subr.bf16.mxu0 0
  %6147 = vmatpush1.bf16.msra.mxu0 0
  %6148 = vmatprep.subr.bf16.mxu0 0
  %6149 = vmatpush1.bf16.msra.mxu0 0
  %6150 = vmatprep.subr.bf16.mxu0 0
  %6151 = vmatpush1.bf16.msra.mxu0 0
  %6152 = vmatprep.subr.bf16.mxu0 0
  %6153 = vmatpush1.bf16.msra.mxu0 0
  %6154 = vmatprep.subr.bf16.mxu0 0
  %6155 = vmatpush1.bf16.msra.mxu0 0
  %6156 = vmatprep.subr.bf16.mxu0 0
  %6157 = vmatpush1.bf16.msra.mxu0 0
  %6158 = vmatprep.subr.bf16.mxu0 0
  %6159 = vmatpush1.bf16.msra.mxu0 %v5034
  %6160 = vmatprep.subr.bf16.mxu0 0
  %6161 = vmatpush2.bf16.msra.mxu0 0
  %6162 = vmatprep.subr.bf16.mxu0 0
  %6163 = vmatpush2.bf16.msra.mxu0 0
  %6164 = vmatprep.subr.bf16.mxu0 0
  %6165 = vmatpush2.bf16.msra.mxu0 0
  %6166 = vmatprep.subr.bf16.mxu0 0
  %6167 = vmatpush2.bf16.msra.mxu0 0
  %6168 = vmatprep.subr.bf16.mxu0 0
  %6169 = vmatpush2.bf16.msra.mxu0 0
  %6170 = vmatprep.subr.bf16.mxu0 0
  %6171 = vmatpush2.bf16.msra.mxu0 0
  %6172 = vmatprep.subr.bf16.mxu0 0
  %6173 = vmatpush2.bf16.msra.mxu0 0
  %6174 = vmatprep.subr.bf16.mxu0 0
  %6175 = vmatpush2.bf16.msra.mxu0 0
  %6176 = vmatprep.mubr.bf16.mxu0 0
  %6177 = vmatmul.mubr.bf16.gmra.mxu0 %v6142
  %v6178 = vpop.f32.mrf.mxu0
  %v6179 = vadd.f32 0.0, %v6178
  %v6180 = vpop.f32.mrf.mxu0
  %v6181 = vpop.f32.mrf.mxu0
  %v6182 = vadd.f32 0.0, %v6181
  %v6183 = vpop.f32.mrf.mxu0
  %6184 = vdwg.mxu0
  %v6186 = vsel %vm4272, %v5003, 0
  %6188 = vmatprep.subr.bf16.mxu0 0
  %6189 = vmatpush1.bf16.msra.mxu0 0
  %6190 = vmatprep.subr.bf16.mxu0 0
  %6191 = vmatpush1.bf16.msra.mxu0 0
  %6192 = vmatprep.subr.bf16.mxu0 0
  %6193 = vmatpush1.bf16.msra.mxu0 0
  %6194 = vmatprep.subr.bf16.mxu0 0
  %6195 = vmatpush1.bf16.msra.mxu0 0
  %6196 = vmatprep.subr.bf16.mxu0 0
  %6197 = vmatpush1.bf16.msra.mxu0 0
  %6198 = vmatprep.subr.bf16.mxu0 0
  %6199 = vmatpush1.bf16.msra.mxu0 0
  %6200 = vmatprep.subr.bf16.mxu0 0
  %6201 = vmatpush1.bf16.msra.mxu0 0
  %6202 = vmatprep.subr.bf16.mxu0 0
  %6203 = vmatpush1.bf16.msra.mxu0 %v5035
  %6204 = vmatprep.subr.bf16.mxu0 0
  %6205 = vmatpush2.bf16.msra.mxu0 0
  %6206 = vmatprep.subr.bf16.mxu0 0
  %6207 = vmatpush2.bf16.msra.mxu0 0
  %6208 = vmatprep.subr.bf16.mxu0 0
  %6209 = vmatpush2.bf16.msra.mxu0 0
  %6210 = vmatprep.subr.bf16.mxu0 0
  %6211 = vmatpush2.bf16.msra.mxu0 0
  %6212 = vmatprep.subr.bf16.mxu0 0
  %6213 = vmatpush2.bf16.msra.mxu0 0
  %6214 = vmatprep.subr.bf16.mxu0 0
  %6215 = vmatpush2.bf16.msra.mxu0 0
  %6216 = vmatprep.subr.bf16.mxu0 0
  %6217 = vmatpush2.bf16.msra.mxu0 0
  %6218 = vmatprep.subr.bf16.mxu0 0
  %6219 = vmatpush2.bf16.msra.mxu0 0
  %6220 = vmatprep.mubr.bf16.mxu0 0
  %6221 = vmatmul.mubr.bf16.gmra.mxu0 %v6186
  %v6222 = vpop.f32.mrf.mxu0
  %v6223 = vadd.f32 0.0, %v6222
  %v6224 = vpop.f32.mrf.mxu0
  %v6225 = vpop.f32.mrf.mxu0
  %v6226 = vadd.f32 0.0, %v6225
  %v6227 = vpop.f32.mrf.mxu0
  %6228 = vdwg.mxu0
  %v6230 = vsel %vm4272, %v5004, 0
  %6232 = vmatprep.subr.bf16.mxu0 0
  %6233 = vmatpush1.bf16.msra.mxu0 0
  %6234 = vmatprep.subr.bf16.mxu0 0
  %6235 = vmatpush1.bf16.msra.mxu0 0
  %6236 = vmatprep.subr.bf16.mxu0 0
  %6237 = vmatpush1.bf16.msra.mxu0 0
  %6238 = vmatprep.subr.bf16.mxu0 0
  %6239 = vmatpush1.bf16.msra.mxu0 0
  %6240 = vmatprep.subr.bf16.mxu0 0
  %6241 = vmatpush1.bf16.msra.mxu0 0
  %6242 = vmatprep.subr.bf16.mxu0 0
  %6243 = vmatpush1.bf16.msra.mxu0 0
  %6244 = vmatprep.subr.bf16.mxu0 0
  %6245 = vmatpush1.bf16.msra.mxu0 0
  %6246 = vmatprep.subr.bf16.mxu0 0
  %6247 = vmatpush1.bf16.msra.mxu0 %v5036
  %6248 = vmatprep.subr.bf16.mxu0 0
  %6249 = vmatpush2.bf16.msra.mxu0 0
  %6250 = vmatprep.subr.bf16.mxu0 0
  %6251 = vmatpush2.bf16.msra.mxu0 0
  %6252 = vmatprep.subr.bf16.mxu0 0
  %6253 = vmatpush2.bf16.msra.mxu0 0
  %6254 = vmatprep.subr.bf16.mxu0 0
  %6255 = vmatpush2.bf16.msra.mxu0 0
  %6256 = vmatprep.subr.bf16.mxu0 0
  %6257 = vmatpush2.bf16.msra.mxu0 0
  %6258 = vmatprep.subr.bf16.mxu0 0
  %6259 = vmatpush2.bf16.msra.mxu0 0
  %6260 = vmatprep.subr.bf16.mxu0 0
  %6261 = vmatpush2.bf16.msra.mxu0 0
  %6262 = vmatprep.subr.bf16.mxu0 0
  %6263 = vmatpush2.bf16.msra.mxu0 0
  %6264 = vmatprep.mubr.bf16.mxu0 0
  %6265 = vmatmul.mubr.bf16.gmra.mxu0 %v6230
  %v6266 = vpop.f32.mrf.mxu0
  %v6267 = vadd.f32 0.0, %v6266
  %v6268 = vpop.f32.mrf.mxu0
  %v6269 = vpop.f32.mrf.mxu0
  %v6270 = vadd.f32 0.0, %v6269
  %v6271 = vpop.f32.mrf.mxu0
  %6272 = vdwg.mxu0
  %v6274 = vsel %vm4272, %v5005, 0
  %6276 = vmatprep.subr.bf16.mxu0 0
  %6277 = vmatpush1.bf16.msra.mxu0 0
  %6278 = vmatprep.subr.bf16.mxu0 0
  %6279 = vmatpush1.bf16.msra.mxu0 0
  %6280 = vmatprep.subr.bf16.mxu0 0
  %6281 = vmatpush1.bf16.msra.mxu0 0
  %6282 = vmatprep.subr.bf16.mxu0 0
  %6283 = vmatpush1.bf16.msra.mxu0 0
  %6284 = vmatprep.subr.bf16.mxu0 0
  %6285 = vmatpush1.bf16.msra.mxu0 0
  %6286 = vmatprep.subr.bf16.mxu0 0
  %6287 = vmatpush1.bf16.msra.mxu0 0
  %6288 = vmatprep.subr.bf16.mxu0 0
  %6289 = vmatpush1.bf16.msra.mxu0 0
  %6290 = vmatprep.subr.bf16.mxu0 0
  %6291 = vmatpush1.bf16.msra.mxu0 %v5037
  %6292 = vmatprep.subr.bf16.mxu0 0
  %6293 = vmatpush2.bf16.msra.mxu0 0
  %6294 = vmatprep.subr.bf16.mxu0 0
  %6295 = vmatpush2.bf16.msra.mxu0 0
  %6296 = vmatprep.subr.bf16.mxu0 0
  %6297 = vmatpush2.bf16.msra.mxu0 0
  %6298 = vmatprep.subr.bf16.mxu0 0
  %6299 = vmatpush2.bf16.msra.mxu0 0
  %6300 = vmatprep.subr.bf16.mxu0 0
  %6301 = vmatpush2.bf16.msra.mxu0 0
  %6302 = vmatprep.subr.bf16.mxu0 0
  %6303 = vmatpush2.bf16.msra.mxu0 0
  %6304 = vmatprep.subr.bf16.mxu0 0
  %6305 = vmatpush2.bf16.msra.mxu0 0
  %6306 = vmatprep.subr.bf16.mxu0 0
  %6307 = vmatpush2.bf16.msra.mxu0 0
  %6308 = vmatprep.mubr.bf16.mxu0 0
  %6309 = vmatmul.mubr.bf16.gmra.mxu0 %v6274
  %v6310 = vpop.f32.mrf.mxu0
  %v6311 = vadd.f32 0.0, %v6310
  %v6312 = vpop.f32.mrf.mxu0
  %v6313 = vpop.f32.mrf.mxu0
  %v6314 = vadd.f32 0.0, %v6313
  %v6315 = vpop.f32.mrf.mxu0
  %6316 = vdwg.mxu0
  %v6318 = vsel %vm4272, %v5006, 0
  %6320 = vmatprep.subr.bf16.mxu0 0
  %6321 = vmatpush1.bf16.msra.mxu0 0
  %6322 = vmatprep.subr.bf16.mxu0 0
  %6323 = vmatpush1.bf16.msra.mxu0 0
  %6324 = vmatprep.subr.bf16.mxu0 0
  %6325 = vmatpush1.bf16.msra.mxu0 0
  %6326 = vmatprep.subr.bf16.mxu0 0
  %6327 = vmatpush1.bf16.msra.mxu0 0
  %6328 = vmatprep.subr.bf16.mxu0 0
  %6329 = vmatpush1.bf16.msra.mxu0 0
  %6330 = vmatprep.subr.bf16.mxu0 0
  %6331 = vmatpush1.bf16.msra.mxu0 0
  %6332 = vmatprep.subr.bf16.mxu0 0
  %6333 = vmatpush1.bf16.msra.mxu0 0
  %6334 = vmatprep.subr.bf16.mxu0 0
  %6335 = vmatpush1.bf16.msra.mxu0 %v5038
  %6336 = vmatprep.subr.bf16.mxu0 0
  %6337 = vmatpush2.bf16.msra.mxu0 0
  %6338 = vmatprep.subr.bf16.mxu0 0
  %6339 = vmatpush2.bf16.msra.mxu0 0
  %6340 = vmatprep.subr.bf16.mxu0 0
  %6341 = vmatpush2.bf16.msra.mxu0 0
  %6342 = vmatprep.subr.bf16.mxu0 0
  %6343 = vmatpush2.bf16.msra.mxu0 0
  %6344 = vmatprep.subr.bf16.mxu0 0
  %6345 = vmatpush2.bf16.msra.mxu0 0
  %6346 = vmatprep.subr.bf16.mxu0 0
  %6347 = vmatpush2.bf16.msra.mxu0 0
  %6348 = vmatprep.subr.bf16.mxu0 0
  %6349 = vmatpush2.bf16.msra.mxu0 0
  %6350 = vmatprep.subr.bf16.mxu0 0
  %6351 = vmatpush2.bf16.msra.mxu0 0
  %6352 = vmatprep.mubr.bf16.mxu0 0
  %6353 = vmatmul.mubr.bf16.gmra.mxu0 %v6318
  %v6354 = vpop.f32.mrf.mxu0
  %v6355 = vadd.f32 0.0, %v6354
  %v6356 = vpop.f32.mrf.mxu0
  %v6357 = vpop.f32.mrf.mxu0
  %v6358 = vadd.f32 0.0, %v6357
  %v6359 = vpop.f32.mrf.mxu0
  %6360 = vdwg.mxu0
  %v6362 = vsel %vm4272, %v5007, 0
  %6364 = vmatprep.subr.bf16.mxu0 0
  %6365 = vmatpush1.bf16.msra.mxu0 0
  %6366 = vmatprep.subr.bf16.mxu0 0
  %6367 = vmatpush1.bf16.msra.mxu0 0
  %6368 = vmatprep.subr.bf16.mxu0 0
  %6369 = vmatpush1.bf16.msra.mxu0 0
  %6370 = vmatprep.subr.bf16.mxu0 0
  %6371 = vmatpush1.bf16.msra.mxu0 0
  %6372 = vmatprep.subr.bf16.mxu0 0
  %6373 = vmatpush1.bf16.msra.mxu0 0
  %6374 = vmatprep.subr.bf16.mxu0 0
  %6375 = vmatpush1.bf16.msra.mxu0 0
  %6376 = vmatprep.subr.bf16.mxu0 0
  %6377 = vmatpush1.bf16.msra.mxu0 0
  %6378 = vmatprep.subr.bf16.mxu0 0
  %6379 = vmatpush1.bf16.msra.mxu0 %v5039
  %6380 = vmatprep.subr.bf16.mxu0 0
  %6381 = vmatpush2.bf16.msra.mxu0 0
  %6382 = vmatprep.subr.bf16.mxu0 0
  %6383 = vmatpush2.bf16.msra.mxu0 0
  %6384 = vmatprep.subr.bf16.mxu0 0
  %6385 = vmatpush2.bf16.msra.mxu0 0
  %6386 = vmatprep.subr.bf16.mxu0 0
  %6387 = vmatpush2.bf16.msra.mxu0 0
  %6388 = vmatprep.subr.bf16.mxu0 0
  %6389 = vmatpush2.bf16.msra.mxu0 0
  %6390 = vmatprep.subr.bf16.mxu0 0
  %6391 = vmatpush2.bf16.msra.mxu0 0
  %6392 = vmatprep.subr.bf16.mxu0 0
  %6393 = vmatpush2.bf16.msra.mxu0 0
  %6394 = vmatprep.subr.bf16.mxu0 0
  %6395 = vmatpush2.bf16.msra.mxu0 0
  %6396 = vmatprep.mubr.bf16.mxu0 0
  %6397 = vmatmul.mubr.bf16.gmra.mxu0 %v6362
  %v6398 = vpop.f32.mrf.mxu0
  %v6399 = vadd.f32 0.0, %v6398
  %v6400 = vpop.f32.mrf.mxu0
  %v6401 = vpop.f32.mrf.mxu0
  %v6402 = vadd.f32 0.0, %v6401
  %v6403 = vpop.f32.mrf.mxu0
  %6404 = vdwg.mxu0
  %v6406 = vsel %vm4272, %v5008, 0
  %6408 = vmatprep.subr.bf16.mxu0 0
  %6409 = vmatpush1.bf16.msra.mxu0 0
  %6410 = vmatprep.subr.bf16.mxu0 0
  %6411 = vmatpush1.bf16.msra.mxu0 0
  %6412 = vmatprep.subr.bf16.mxu0 0
  %6413 = vmatpush1.bf16.msra.mxu0 0
  %6414 = vmatprep.subr.bf16.mxu0 0
  %6415 = vmatpush1.bf16.msra.mxu0 0
  %6416 = vmatprep.subr.bf16.mxu0 0
  %6417 = vmatpush1.bf16.msra.mxu0 0
  %6418 = vmatprep.subr.bf16.mxu0 0
  %6419 = vmatpush1.bf16.msra.mxu0 0
  %6420 = vmatprep.subr.bf16.mxu0 0
  %6421 = vmatpush1.bf16.msra.mxu0 0
  %6422 = vmatprep.subr.bf16.mxu0 0
  %6423 = vmatpush1.bf16.msra.mxu0 %v5040
  %6424 = vmatprep.subr.bf16.mxu0 0
  %6425 = vmatpush2.bf16.msra.mxu0 0
  %6426 = vmatprep.subr.bf16.mxu0 0
  %6427 = vmatpush2.bf16.msra.mxu0 0
  %6428 = vmatprep.subr.bf16.mxu0 0
  %6429 = vmatpush2.bf16.msra.mxu0 0
  %6430 = vmatprep.subr.bf16.mxu0 0
  %6431 = vmatpush2.bf16.msra.mxu0 0
  %6432 = vmatprep.subr.bf16.mxu0 0
  %6433 = vmatpush2.bf16.msra.mxu0 0
  %6434 = vmatprep.subr.bf16.mxu0 0
  %6435 = vmatpush2.bf16.msra.mxu0 0
  %6436 = vmatprep.subr.bf16.mxu0 0
  %6437 = vmatpush2.bf16.msra.mxu0 0
  %6438 = vmatprep.subr.bf16.mxu0 0
  %6439 = vmatpush2.bf16.msra.mxu0 0
  %6440 = vmatprep.mubr.bf16.mxu0 0
  %6441 = vmatmul.mubr.bf16.gmra.mxu0 %v6406
  %v6442 = vpop.f32.mrf.mxu0
  %v6443 = vadd.f32 0.0, %v6442
  %v6444 = vpop.f32.mrf.mxu0
  %v6445 = vpop.f32.mrf.mxu0
  %v6446 = vadd.f32 0.0, %v6445
  %v6447 = vpop.f32.mrf.mxu0
  %6448 = vdwg.mxu0
  %6449 = vst.msk [vmem:[#allocation3] sm:$0xff] %vm200, %v5079
  %6450 = vst.msk [vmem:[#allocation3 + $0x8] sm:$0xff] %vm200, %v5082
  %6451 = vst.msk [vmem:[#allocation3 + $0x10] sm:$0xff] %vm200, %v5123
  %6452 = vst.msk [vmem:[#allocation3 + $0x18] sm:$0xff] %vm200, %v5126
  %6453 = vst.msk [vmem:[#allocation3 + $0x20] sm:$0xff] %vm200, %v5167
  %6454 = vst.msk [vmem:[#allocation3 + $0x28] sm:$0xff] %vm200, %v5170
  %6455 = vst.msk [vmem:[#allocation3 + $0x30] sm:$0xff] %vm200, %v5211
  %6456 = vst.msk [vmem:[#allocation3 + $0x38] sm:$0xff] %vm200, %v5214
  %6457 = vst.msk [vmem:[#allocation3 + $0x40] sm:$0xff] %vm200, %v5255
  %6458 = vst.msk [vmem:[#allocation3 + $0x48] sm:$0xff] %vm200, %v5258
  %6459 = vst.msk [vmem:[#allocation3 + $0x50] sm:$0xff] %vm200, %v5299
  %6460 = vst.msk [vmem:[#allocation3 + $0x58] sm:$0xff] %vm200, %v5302
  %6461 = vst.msk [vmem:[#allocation3 + $0x60] sm:$0xff] %vm200, %v5343
  %6462 = vst.msk [vmem:[#allocation3 + $0x68] sm:$0xff] %vm200, %v5346
  %6463 = vst.msk [vmem:[#allocation3 + $0x70] sm:$0xff] %vm200, %v5387
  %6464 = vst.msk [vmem:[#allocation3 + $0x78] sm:$0xff] %vm200, %v5390
  %6481 = vrot.lane.b32.xlu0 %v5431, 8
  %v6482 = vpop.permute.xlu0 %6481
  %6483 = vrot.lane.b32.xlu0 %v5434, 8
  %v6484 = vpop.permute.xlu0 %6483
  %6485 = vrot.lane.b32.xlu0 %v5475, 8
  %v6486 = vpop.permute.xlu0 %6485
  %6487 = vrot.lane.b32.xlu0 %v5478, 8
  %v6488 = vpop.permute.xlu0 %6487
  %6489 = vrot.lane.b32.xlu0 %v5519, 8
  %v6490 = vpop.permute.xlu0 %6489
  %6491 = vrot.lane.b32.xlu0 %v5522, 8
  %v6492 = vpop.permute.xlu0 %6491
  %6493 = vrot.lane.b32.xlu0 %v5563, 8
  %v6494 = vpop.permute.xlu0 %6493
  %6495 = vrot.lane.b32.xlu0 %v5566, 8
  %v6496 = vpop.permute.xlu0 %6495
  %6497 = vrot.lane.b32.xlu0 %v5607, 8
  %v6498 = vpop.permute.xlu0 %6497
  %6499 = vrot.lane.b32.xlu0 %v5610, 8
  %v6500 = vpop.permute.xlu0 %6499
  %6501 = vrot.lane.b32.xlu0 %v5651, 8
  %v6502 = vpop.permute.xlu0 %6501
  %6503 = vrot.lane.b32.xlu0 %v5654, 8
  %v6504 = vpop.permute.xlu0 %6503
  %6505 = vrot.lane.b32.xlu0 %v5695, 8
  %v6506 = vpop.permute.xlu0 %6505
  %6507 = vrot.lane.b32.xlu0 %v5698, 8
  %v6508 = vpop.permute.xlu0 %6507
  %6509 = vrot.lane.b32.xlu0 %v5739, 8
  %v6510 = vpop.permute.xlu0 %6509
  %6511 = vrot.lane.b32.xlu0 %v5742, 8
  %v6512 = vpop.permute.xlu0 %6511
  %vm6529 = vcmask 130112
  %6530 = vst.msk [vmem:[#allocation3] sm:$0xff] %vm6529, %v6482
  %6531 = vst.msk [vmem:[#allocation3 + $0x8] sm:$0xff] %vm6529, %v6484
  %6532 = vst.msk [vmem:[#allocation3 + $0x10] sm:$0xff] %vm6529, %v6486
  %6533 = vst.msk [vmem:[#allocation3 + $0x18] sm:$0xff] %vm6529, %v6488
  %6534 = vst.msk [vmem:[#allocation3 + $0x20] sm:$0xff] %vm6529, %v6490
  %6535 = vst.msk [vmem:[#allocation3 + $0x28] sm:$0xff] %vm6529, %v6492
  %6536 = vst.msk [vmem:[#allocation3 + $0x30] sm:$0xff] %vm6529, %v6494
  %6537 = vst.msk [vmem:[#allocation3 + $0x38] sm:$0xff] %vm6529, %v6496
  %6538 = vst.msk [vmem:[#allocation3 + $0x40] sm:$0xff] %vm6529, %v6498
  %6539 = vst.msk [vmem:[#allocation3 + $0x48] sm:$0xff] %vm6529, %v6500
  %6540 = vst.msk [vmem:[#allocation3 + $0x50] sm:$0xff] %vm6529, %v6502
  %6541 = vst.msk [vmem:[#allocation3 + $0x58] sm:$0xff] %vm6529, %v6504
  %6542 = vst.msk [vmem:[#allocation3 + $0x60] sm:$0xff] %vm6529, %v6506
  %6543 = vst.msk [vmem:[#allocation3 + $0x68] sm:$0xff] %vm6529, %v6508
  %6544 = vst.msk [vmem:[#allocation3 + $0x70] sm:$0xff] %vm6529, %v6510
  %6545 = vst.msk [vmem:[#allocation3 + $0x78] sm:$0xff] %vm6529, %v6512
  %6562 = vrot.lane.b32.xlu0 %v5783, 16
  %v6563 = vpop.permute.xlu0 %6562
  %6564 = vrot.lane.b32.xlu0 %v5786, 16
  %v6565 = vpop.permute.xlu0 %6564
  %6566 = vrot.lane.b32.xlu0 %v5827, 16
  %v6567 = vpop.permute.xlu0 %6566
  %6568 = vrot.lane.b32.xlu0 %v5830, 16
  %v6569 = vpop.permute.xlu0 %6568
  %6570 = vrot.lane.b32.xlu0 %v5871, 16
  %v6571 = vpop.permute.xlu0 %6570
  %6572 = vrot.lane.b32.xlu0 %v5874, 16
  %v6573 = vpop.permute.xlu0 %6572
  %6574 = vrot.lane.b32.xlu0 %v5915, 16
  %v6575 = vpop.permute.xlu0 %6574
  %6576 = vrot.lane.b32.xlu0 %v5918, 16
  %v6577 = vpop.permute.xlu0 %6576
  %6578 = vrot.lane.b32.xlu0 %v5959, 16
  %v6579 = vpop.permute.xlu0 %6578
  %6580 = vrot.lane.b32.xlu0 %v5962, 16
  %v6581 = vpop.permute.xlu0 %6580
  %6582 = vrot.lane.b32.xlu0 %v6003, 16
  %v6583 = vpop.permute.xlu0 %6582
  %6584 = vrot.lane.b32.xlu0 %v6006, 16
  %v6585 = vpop.permute.xlu0 %6584
  %6586 = vrot.lane.b32.xlu0 %v6047, 16
  %v6587 = vpop.permute.xlu0 %6586
  %6588 = vrot.lane.b32.xlu0 %v6050, 16
  %v6589 = vpop.permute.xlu0 %6588
  %6590 = vrot.lane.b32.xlu0 %v6091, 16
  %v6591 = vpop.permute.xlu0 %6590
  %6592 = vrot.lane.b32.xlu0 %v6094, 16
  %v6593 = vpop.permute.xlu0 %6592
  %vm6610 = vcmask 195712
  %6611 = vst.msk [vmem:[#allocation3] sm:$0xff] %vm6610, %v6563
  %6612 = vst.msk [vmem:[#allocation3 + $0x8] sm:$0xff] %vm6610, %v6565
  %6613 = vst.msk [vmem:[#allocation3 + $0x10] sm:$0xff] %vm6610, %v6567
  %6614 = vst.msk [vmem:[#allocation3 + $0x18] sm:$0xff] %vm6610, %v6569
  %6615 = vst.msk [vmem:[#allocation3 + $0x20] sm:$0xff] %vm6610, %v6571
  %6616 = vst.msk [vmem:[#allocation3 + $0x28] sm:$0xff] %vm6610, %v6573
  %6617 = vst.msk [vmem:[#allocation3 + $0x30] sm:$0xff] %vm6610, %v6575
  %6618 = vst.msk [vmem:[#allocation3 + $0x38] sm:$0xff] %vm6610, %v6577
  %6619 = vst.msk [vmem:[#allocation3 + $0x40] sm:$0xff] %vm6610, %v6579
  %6620 = vst.msk [vmem:[#allocation3 + $0x48] sm:$0xff] %vm6610, %v6581
  %6621 = vst.msk [vmem:[#allocation3 + $0x50] sm:$0xff] %vm6610, %v6583
  %6622 = vst.msk [vmem:[#allocation3 + $0x58] sm:$0xff] %vm6610, %v6585
  %6623 = vst.msk [vmem:[#allocation3 + $0x60] sm:$0xff] %vm6610, %v6587
  %6624 = vst.msk [vmem:[#allocation3 + $0x68] sm:$0xff] %vm6610, %v6589
  %6625 = vst.msk [vmem:[#allocation3 + $0x70] sm:$0xff] %vm6610, %v6591
  %6626 = vst.msk [vmem:[#allocation3 + $0x78] sm:$0xff] %vm6610, %v6593
  %6643 = vrot.lane.b32.xlu0 %v6135, 24
  %v6644 = vpop.permute.xlu0 %6643
  %6645 = vrot.lane.b32.xlu0 %v6138, 24
  %v6646 = vpop.permute.xlu0 %6645
  %6647 = vrot.lane.b32.xlu0 %v6179, 24
  %v6648 = vpop.permute.xlu0 %6647
  %6649 = vrot.lane.b32.xlu0 %v6182, 24
  %v6650 = vpop.permute.xlu0 %6649
  %6651 = vrot.lane.b32.xlu0 %v6223, 24
  %v6652 = vpop.permute.xlu0 %6651
  %6653 = vrot.lane.b32.xlu0 %v6226, 24
  %v6654 = vpop.permute.xlu0 %6653
  %6655 = vrot.lane.b32.xlu0 %v6267, 24
  %v6656 = vpop.permute.xlu0 %6655
  %6657 = vrot.lane.b32.xlu0 %v6270, 24
  %v6658 = vpop.permute.xlu0 %6657
  %6659 = vrot.lane.b32.xlu0 %v6311, 24
  %v6660 = vpop.permute.xlu0 %6659
  %6661 = vrot.lane.b32.xlu0 %v6314, 24
  %v6662 = vpop.permute.xlu0 %6661
  %6663 = vrot.lane.b32.xlu0 %v6355, 24
  %v6664 = vpop.permute.xlu0 %6663
  %6665 = vrot.lane.b32.xlu0 %v6358, 24
  %v6666 = vpop.permute.xlu0 %6665
  %6667 = vrot.lane.b32.xlu0 %v6399, 24
  %v6668 = vpop.permute.xlu0 %6667
  %6669 = vrot.lane.b32.xlu0 %v6402, 24
  %v6670 = vpop.permute.xlu0 %6669
  %6671 = vrot.lane.b32.xlu0 %v6443, 24
  %v6672 = vpop.permute.xlu0 %6671
  %6673 = vrot.lane.b32.xlu0 %v6446, 24
  %v6674 = vpop.permute.xlu0 %6673
  %vm6691 = vcmask 261312
  %6692 = vst.msk [vmem:[#allocation3] sm:$0xff] %vm6691, %v6644
  %6693 = vst.msk [vmem:[#allocation3 + $0x8] sm:$0xff] %vm6691, %v6646
  %6694 = vst.msk [vmem:[#allocation3 + $0x10] sm:$0xff] %vm6691, %v6648
  %6695 = vst.msk [vmem:[#allocation3 + $0x18] sm:$0xff] %vm6691, %v6650
  %6696 = vst.msk [vmem:[#allocation3 + $0x20] sm:$0xff] %vm6691, %v6652
  %6697 = vst.msk [vmem:[#allocation3 + $0x28] sm:$0xff] %vm6691, %v6654
  %6698 = vst.msk [vmem:[#allocation3 + $0x30] sm:$0xff] %vm6691, %v6656
  %6699 = vst.msk [vmem:[#allocation3 + $0x38] sm:$0xff] %vm6691, %v6658
  %6700 = vst.msk [vmem:[#allocation3 + $0x40] sm:$0xff] %vm6691, %v6660
  %6701 = vst.msk [vmem:[#allocation3 + $0x48] sm:$0xff] %vm6691, %v6662
  %6702 = vst.msk [vmem:[#allocation3 + $0x50] sm:$0xff] %vm6691, %v6664
  %6703 = vst.msk [vmem:[#allocation3 + $0x58] sm:$0xff] %vm6691, %v6666
  %6704 = vst.msk [vmem:[#allocation3 + $0x60] sm:$0xff] %vm6691, %v6668
  %6705 = vst.msk [vmem:[#allocation3 + $0x68] sm:$0xff] %vm6691, %v6670
  %6706 = vst.msk [vmem:[#allocation3 + $0x70] sm:$0xff] %vm6691, %v6672
  %6707 = vst.msk [vmem:[#allocation3 + $0x78] sm:$0xff] %vm6691, %v6674
  %v6708 = vld [vmem:[#allocation3] sm:$0xff]
  %v6709 = vld [vmem:[#allocation3 + $0x8] sm:$0xff]
  %v6710 = vld [vmem:[#allocation3 + $0x10] sm:$0xff]
  %v6711 = vld [vmem:[#allocation3 + $0x18] sm:$0xff]
  %v6712 = vld [vmem:[#allocation3 + $0x20] sm:$0xff]
  %v6713 = vld [vmem:[#allocation3 + $0x28] sm:$0xff]
  %v6714 = vld [vmem:[#allocation3 + $0x30] sm:$0xff]
  %v6715 = vld [vmem:[#allocation3 + $0x38] sm:$0xff]
  %v6716 = vld [vmem:[#allocation3 + $0x40] sm:$0xff]
  %v6717 = vld [vmem:[#allocation3 + $0x48] sm:$0xff]
  %v6718 = vld [vmem:[#allocation3 + $0x50] sm:$0xff]
  %v6719 = vld [vmem:[#allocation3 + $0x58] sm:$0xff]
  %v6720 = vld [vmem:[#allocation3 + $0x60] sm:$0xff]
  %v6721 = vld [vmem:[#allocation3 + $0x68] sm:$0xff]
  %v6722 = vld [vmem:[#allocation3 + $0x70] sm:$0xff]
  %v6723 = vld [vmem:[#allocation3 + $0x78] sm:$0xff]
  %v6724 = vpack.c.bf16 %v6709, %v6708
  %v6725 = vpack.c.bf16 %v6711, %v6710
  %v6726 = vpack.c.bf16 %v6713, %v6712
  %v6727 = vpack.c.bf16 %v6715, %v6714
  %v6728 = vpack.c.bf16 %v6717, %v6716
  %v6729 = vpack.c.bf16 %v6719, %v6718
  %v6730 = vpack.c.bf16 %v6721, %v6720
  %v6731 = vpack.c.bf16 %v6723, %v6722
  %v6732 = vld [vmem:[%s2] sm:$0xf]
  %v6733 = vld [vmem:[%s2 + $0x4] sm:$0xf]
  %v6734 = vld [vmem:[%s2 + $0x8] sm:$0xf]
  %v6735 = vld [vmem:[%s2 + $0xc] sm:$0xf]
  %v6736 = vlaneseq
  %v6737 = vshrl.u32 %v6736, 7
  %v6738 = vsub.s32 2, %v6737
  %v6739 = vrot.slane %v49, %v6738
  %v6744 = vunpack.c.l.b16 %v6732
  %v6745 = vunpack.c.l.b16 %v6733
  %v6746 = vunpack.c.l.b16 %v6734
  %v6747 = vunpack.c.l.b16 %v6735
  %v6748 = vpack.c.b16 %v6745, %v6744
  %v6749 = vpack.c.b16 %v6747, %v6746
  %v6753 = vsel %vm78, %v6724, 0
  %v6756 = vsel %vm78, %v6725, 0
  %v6759 = vsel %vm78, %v6726, 0
  %v6762 = vsel %vm78, %v6727, 0
  %v6765 = vsel %vm78, %v6728, 0
  %v6768 = vsel %vm78, %v6729, 0
  %v6771 = vsel %vm78, %v6730, 0
  %v6774 = vsel %vm78, %v6731, 0
  %6776 = vmatprep.subr.bf16.mxu0 0
  %6777 = vmatpush1.bf16.msra.mxu0 0
  %6778 = vmatprep.subr.bf16.mxu0 0
  %6779 = vmatpush1.bf16.msra.mxu0 0
  %6780 = vmatprep.subr.bf16.mxu0 0
  %6781 = vmatpush1.bf16.msra.mxu0 0
  %6782 = vmatprep.subr.bf16.mxu0 0
  %6783 = vmatpush1.bf16.msra.mxu0 0
  %6784 = vmatprep.subr.bf16.mxu0 0
  %6785 = vmatpush1.bf16.msra.mxu0 0
  %6786 = vmatprep.subr.bf16.mxu0 0
  %6787 = vmatpush1.bf16.msra.mxu0 0
  %6788 = vmatprep.subr.bf16.mxu0 0
  %6789 = vmatpush1.bf16.msra.mxu0 %v6749
  %6790 = vmatprep.subr.bf16.mxu0 0
  %6791 = vmatpush1.bf16.msra.mxu0 %v6748
  %6792 = vmatprep.subr.bf16.mxu0 0
  %6793 = vmatpush2.bf16.msra.mxu0 0
  %6794 = vmatprep.subr.bf16.mxu0 0
  %6795 = vmatpush2.bf16.msra.mxu0 0
  %6796 = vmatprep.subr.bf16.mxu0 0
  %6797 = vmatpush2.bf16.msra.mxu0 0
  %6798 = vmatprep.subr.bf16.mxu0 0
  %6799 = vmatpush2.bf16.msra.mxu0 0
  %6800 = vmatprep.subr.bf16.mxu0 0
  %6801 = vmatpush2.bf16.msra.mxu0 0
  %6802 = vmatprep.subr.bf16.mxu0 0
  %6803 = vmatpush2.bf16.msra.mxu0 0
  %6804 = vmatprep.subr.bf16.mxu0 0
  %6805 = vmatpush2.bf16.msra.mxu0 0
  %6806 = vmatprep.subr.bf16.mxu0 0
  %6807 = vmatpush2.bf16.msra.mxu0 0
  %6808 = vmatprep.mubr.bf16.mxu0 0
  %6809 = vmatmul.mubr.bf16.gmra.mxu0 %v6753
  %v6810 = vpop.f32.mrf.mxu0
  %v6811 = vadd.f32 %v6739, %v6810
  %v6812 = vpop.f32.mrf.mxu0
  %v6813 = vpop.f32.mrf.mxu0
  %v6814 = vadd.f32 %v6739, %v6813
  %v6815 = vpop.f32.mrf.mxu0
  %6816 = vmatprep.mubr.bf16.mxu0 0
  %6817 = vmatmul.mubr.bf16.gmra.mxu0 %v6756
  %v6818 = vpop.f32.mrf.mxu0
  %v6819 = vadd.f32 %v6739, %v6818
  %v6820 = vpop.f32.mrf.mxu0
  %v6821 = vpop.f32.mrf.mxu0
  %v6822 = vadd.f32 %v6739, %v6821
  %v6823 = vpop.f32.mrf.mxu0
  %6824 = vmatprep.mubr.bf16.mxu0 0
  %6825 = vmatmul.mubr.bf16.gmra.mxu0 %v6759
  %v6826 = vpop.f32.mrf.mxu0
  %v6827 = vadd.f32 %v6739, %v6826
  %v6828 = vpop.f32.mrf.mxu0
  %v6829 = vpop.f32.mrf.mxu0
  %v6830 = vadd.f32 %v6739, %v6829
  %v6831 = vpop.f32.mrf.mxu0
  %6832 = vmatprep.mubr.bf16.mxu0 0
  %6833 = vmatmul.mubr.bf16.gmra.mxu0 %v6762
  %v6834 = vpop.f32.mrf.mxu0
  %v6835 = vadd.f32 %v6739, %v6834
  %v6836 = vpop.f32.mrf.mxu0
  %v6837 = vpop.f32.mrf.mxu0
  %v6838 = vadd.f32 %v6739, %v6837
  %v6839 = vpop.f32.mrf.mxu0
  %6840 = vmatprep.mubr.bf16.mxu0 0
  %6841 = vmatmul.mubr.bf16.gmra.mxu0 %v6765
  %v6842 = vpop.f32.mrf.mxu0
  %v6843 = vadd.f32 %v6739, %v6842
  %v6844 = vpop.f32.mrf.mxu0
  %v6845 = vpop.f32.mrf.mxu0
  %v6846 = vadd.f32 %v6739, %v6845
  %v6847 = vpop.f32.mrf.mxu0
  %6848 = vmatprep.mubr.bf16.mxu0 0
  %6849 = vmatmul.mubr.bf16.gmra.mxu0 %v6768
  %v6850 = vpop.f32.mrf.mxu0
  %v6851 = vadd.f32 %v6739, %v6850
  %v6852 = vpop.f32.mrf.mxu0
  %v6853 = vpop.f32.mrf.mxu0
  %v6854 = vadd.f32 %v6739, %v6853
  %v6855 = vpop.f32.mrf.mxu0
  %6856 = vmatprep.mubr.bf16.mxu0 0
  %6857 = vmatmul.mubr.bf16.gmra.mxu0 %v6771
  %v6858 = vpop.f32.mrf.mxu0
  %v6859 = vadd.f32 %v6739, %v6858
  %v6860 = vpop.f32.mrf.mxu0
  %v6861 = vpop.f32.mrf.mxu0
  %v6862 = vadd.f32 %v6739, %v6861
  %v6863 = vpop.f32.mrf.mxu0
  %6864 = vmatprep.mubr.bf16.mxu0 0
  %6865 = vmatmul.mubr.bf16.gmra.mxu0 %v6774
  %v6866 = vpop.f32.mrf.mxu0
  %v6867 = vadd.f32 %v6739, %v6866
  %v6868 = vpop.f32.mrf.mxu0
  %v6869 = vpop.f32.mrf.mxu0
  %v6870 = vadd.f32 %v6739, %v6869
  %v6871 = vpop.f32.mrf.mxu0
  %6872 = vdwg.mxu0
  %v6873 = vsel %vm78, %v6811, 0.0
  %6874 = vadd.xlane.f32.xlu0 %v6873
  %v6875 = vpop.xlane.xlu0 %6874
  %v6876 = vsel %vm78, %v6814, 0.0
  %6877 = vadd.xlane.f32.xlu0 %v6876
  %v6878 = vpop.xlane.xlu0 %6877
  %v6879 = vsel %vm78, %v6819, 0.0
  %6880 = vadd.xlane.f32.xlu0 %v6879
  %v6881 = vpop.xlane.xlu0 %6880
  %v6882 = vsel %vm78, %v6822, 0.0
  %6883 = vadd.xlane.f32.xlu0 %v6882
  %v6884 = vpop.xlane.xlu0 %6883
  %v6885 = vsel %vm78, %v6827, 0.0
  %6886 = vadd.xlane.f32.xlu0 %v6885
  %v6887 = vpop.xlane.xlu0 %6886
  %v6888 = vsel %vm78, %v6830, 0.0
  %6889 = vadd.xlane.f32.xlu0 %v6888
  %v6890 = vpop.xlane.xlu0 %6889
  %v6891 = vsel %vm78, %v6835, 0.0
  %6892 = vadd.xlane.f32.xlu0 %v6891
  %v6893 = vpop.xlane.xlu0 %6892
  %v6894 = vsel %vm78, %v6838, 0.0
  %6895 = vadd.xlane.f32.xlu0 %v6894
  %v6896 = vpop.xlane.xlu0 %6895
  %v6897 = vsel %vm78, %v6843, 0.0
  %6898 = vadd.xlane.f32.xlu0 %v6897
  %v6899 = vpop.xlane.xlu0 %6898
  %v6900 = vsel %vm78, %v6846, 0.0
  %6901 = vadd.xlane.f32.xlu0 %v6900
  %v6902 = vpop.xlane.xlu0 %6901
  %v6903 = vsel %vm78, %v6851, 0.0
  %6904 = vadd.xlane.f32.xlu0 %v6903
  %v6905 = vpop.xlane.xlu0 %6904
  %v6906 = vsel %vm78, %v6854, 0.0
  %6907 = vadd.xlane.f32.xlu0 %v6906
  %v6908 = vpop.xlane.xlu0 %6907
  %v6909 = vsel %vm78, %v6859, 0.0
  %6910 = vadd.xlane.f32.xlu0 %v6909
  %v6911 = vpop.xlane.xlu0 %6910
  %v6912 = vsel %vm78, %v6862, 0.0
  %6913 = vadd.xlane.f32.xlu0 %v6912
  %v6914 = vpop.xlane.xlu0 %6913
  %v6915 = vsel %vm78, %v6867, 0.0
  %6916 = vadd.xlane.f32.xlu0 %v6915
  %v6917 = vpop.xlane.xlu0 %6916
  %v6918 = vsel %vm78, %v6870, 0.0
  %6919 = vadd.xlane.f32.xlu0 %v6918
  %v6920 = vpop.xlane.xlu0 %6919
  %v6921 = vrcp.pop 32.0
  %v6922 = vmul.f32 %v6875, %v6921
  %v6923 = vmul.f32 %v6878, %v6921
  %v6924 = vmul.f32 %v6881, %v6921
  %v6925 = vmul.f32 %v6884, %v6921
  %v6926 = vmul.f32 %v6887, %v6921
  %v6927 = vmul.f32 %v6890, %v6921
  %v6928 = vmul.f32 %v6893, %v6921
  %v6929 = vmul.f32 %v6896, %v6921
  %v6930 = vmul.f32 %v6899, %v6921
  %v6931 = vmul.f32 %v6902, %v6921
  %v6932 = vmul.f32 %v6905, %v6921
  %v6933 = vmul.f32 %v6908, %v6921
  %v6934 = vmul.f32 %v6911, %v6921
  %v6935 = vmul.f32 %v6914, %v6921
  %v6936 = vmul.f32 %v6917, %v6921
  %v6937 = vmul.f32 %v6920, %v6921
  %v6938 = vsub.f32 %v6811, %v6922
  %v6939 = vsub.f32 %v6814, %v6923
  %v6940 = vsub.f32 %v6819, %v6924
  %v6941 = vsub.f32 %v6822, %v6925
  %v6942 = vsub.f32 %v6827, %v6926
  %v6943 = vsub.f32 %v6830, %v6927
  %v6944 = vsub.f32 %v6835, %v6928
  %v6945 = vsub.f32 %v6838, %v6929
  %v6946 = vsub.f32 %v6843, %v6930
  %v6947 = vsub.f32 %v6846, %v6931
  %v6948 = vsub.f32 %v6851, %v6932
  %v6949 = vsub.f32 %v6854, %v6933
  %v6950 = vsub.f32 %v6859, %v6934
  %v6951 = vsub.f32 %v6862, %v6935
  %v6952 = vsub.f32 %v6867, %v6936
  %v6953 = vsub.f32 %v6870, %v6937
  %v6954 = vmul.f32 %v6938, %v6938
  %v6955 = vmul.f32 %v6939, %v6939
  %v6956 = vmul.f32 %v6940, %v6940
  %v6957 = vmul.f32 %v6941, %v6941
  %v6958 = vmul.f32 %v6942, %v6942
  %v6959 = vmul.f32 %v6943, %v6943
  %v6960 = vmul.f32 %v6944, %v6944
  %v6961 = vmul.f32 %v6945, %v6945
  %v6962 = vmul.f32 %v6946, %v6946
  %v6963 = vmul.f32 %v6947, %v6947
  %v6964 = vmul.f32 %v6948, %v6948
  %v6965 = vmul.f32 %v6949, %v6949
  %v6966 = vmul.f32 %v6950, %v6950
  %v6967 = vmul.f32 %v6951, %v6951
  %v6968 = vmul.f32 %v6952, %v6952
  %v6969 = vmul.f32 %v6953, %v6953
  %v6970 = vsel %vm78, %v6954, 0.0
  %6971 = vadd.xlane.f32.xlu0 %v6970
  %v6972 = vpop.xlane.xlu0 %6971
  %v6973 = vsel %vm78, %v6955, 0.0
  %6974 = vadd.xlane.f32.xlu0 %v6973
  %v6975 = vpop.xlane.xlu0 %6974
  %v6976 = vsel %vm78, %v6956, 0.0
  %6977 = vadd.xlane.f32.xlu0 %v6976
  %v6978 = vpop.xlane.xlu0 %6977
  %v6979 = vsel %vm78, %v6957, 0.0
  %6980 = vadd.xlane.f32.xlu0 %v6979
  %v6981 = vpop.xlane.xlu0 %6980
  %v6982 = vsel %vm78, %v6958, 0.0
  %6983 = vadd.xlane.f32.xlu0 %v6982
  %v6984 = vpop.xlane.xlu0 %6983
  %v6985 = vsel %vm78, %v6959, 0.0
  %6986 = vadd.xlane.f32.xlu0 %v6985
  %v6987 = vpop.xlane.xlu0 %6986
  %v6988 = vsel %vm78, %v6960, 0.0
  %6989 = vadd.xlane.f32.xlu0 %v6988
  %v6990 = vpop.xlane.xlu0 %6989
  %v6991 = vsel %vm78, %v6961, 0.0
  %6992 = vadd.xlane.f32.xlu0 %v6991
  %v6993 = vpop.xlane.xlu0 %6992
  %v6994 = vsel %vm78, %v6962, 0.0
  %6995 = vadd.xlane.f32.xlu0 %v6994
  %v6996 = vpop.xlane.xlu0 %6995
  %v6997 = vsel %vm78, %v6963, 0.0
  %6998 = vadd.xlane.f32.xlu0 %v6997
  %v6999 = vpop.xlane.xlu0 %6998
  %v7000 = vsel %vm78, %v6964, 0.0
  %7001 = vadd.xlane.f32.xlu0 %v7000
  %v7002 = vpop.xlane.xlu0 %7001
  %v7003 = vsel %vm78, %v6965, 0.0
  %7004 = vadd.xlane.f32.xlu0 %v7003
  %v7005 = vpop.xlane.xlu0 %7004
  %v7006 = vsel %vm78, %v6966, 0.0
  %7007 = vadd.xlane.f32.xlu0 %v7006
  %v7008 = vpop.xlane.xlu0 %7007
  %v7009 = vsel %vm78, %v6967, 0.0
  %7010 = vadd.xlane.f32.xlu0 %v7009
  %v7011 = vpop.xlane.xlu0 %7010
  %v7012 = vsel %vm78, %v6968, 0.0
  %7013 = vadd.xlane.f32.xlu0 %v7012
  %v7014 = vpop.xlane.xlu0 %7013
  %v7015 = vsel %vm78, %v6969, 0.0
  %7016 = vadd.xlane.f32.xlu0 %v7015
  %v7017 = vpop.xlane.xlu0 %7016
  %v7018 = vmul.f32 %v6972, %v6921
  %v7019 = vmul.f32 %v6975, %v6921
  %v7020 = vmul.f32 %v6978, %v6921
  %v7021 = vmul.f32 %v6981, %v6921
  %v7022 = vmul.f32 %v6984, %v6921
  %v7023 = vmul.f32 %v6987, %v6921
  %v7024 = vmul.f32 %v6990, %v6921
  %v7025 = vmul.f32 %v6993, %v6921
  %v7026 = vmul.f32 %v6996, %v6921
  %v7027 = vmul.f32 %v6999, %v6921
  %v7028 = vmul.f32 %v7002, %v6921
  %v7029 = vmul.f32 %v7005, %v6921
  %v7030 = vmul.f32 %v7008, %v6921
  %v7031 = vmul.f32 %v7011, %v6921
  %v7032 = vmul.f32 %v7014, %v6921
  %v7033 = vmul.f32 %v7017, %v6921
  %v7034 = vadd.f32 %v7018, 1e-05
  %v7035 = vadd.f32 %v7019, 1e-05
  %v7036 = vadd.f32 %v7020, 1e-05
  %v7037 = vadd.f32 %v7021, 1e-05
  %v7038 = vadd.f32 %v7022, 1e-05
  %v7039 = vadd.f32 %v7023, 1e-05
  %v7040 = vadd.f32 %v7024, 1e-05
  %v7041 = vadd.f32 %v7025, 1e-05
  %v7042 = vadd.f32 %v7026, 1e-05
  %v7043 = vadd.f32 %v7027, 1e-05
  %v7044 = vadd.f32 %v7028, 1e-05
  %v7045 = vadd.f32 %v7029, 1e-05
  %v7046 = vadd.f32 %v7030, 1e-05
  %v7047 = vadd.f32 %v7031, 1e-05
  %v7048 = vadd.f32 %v7032, 1e-05
  %v7049 = vadd.f32 %v7033, 1e-05
  %v7050 = vrsqrt.pop %v7034
  %v7051 = vrsqrt.pop %v7035
  %v7052 = vrsqrt.pop %v7036
  %v7053 = vrsqrt.pop %v7037
  %v7054 = vrsqrt.pop %v7038
  %v7055 = vrsqrt.pop %v7039
  %v7056 = vrsqrt.pop %v7040
  %v7057 = vrsqrt.pop %v7041
  %v7058 = vrsqrt.pop %v7042
  %v7059 = vrsqrt.pop %v7043
  %v7060 = vrsqrt.pop %v7044
  %v7061 = vrsqrt.pop %v7045
  %v7062 = vrsqrt.pop %v7046
  %v7063 = vrsqrt.pop %v7047
  %v7064 = vrsqrt.pop %v7048
  %v7065 = vrsqrt.pop %v7049
  %v7066 = vmul.f32 %v6938, %v7050
  %v7067 = vmul.f32 %v6939, %v7051
  %v7068 = vmul.f32 %v6940, %v7052
  %v7069 = vmul.f32 %v6941, %v7053
  %v7070 = vmul.f32 %v6942, %v7054
  %v7071 = vmul.f32 %v6943, %v7055
  %v7072 = vmul.f32 %v6944, %v7056
  %v7073 = vmul.f32 %v6945, %v7057
  %v7074 = vmul.f32 %v6946, %v7058
  %v7075 = vmul.f32 %v6947, %v7059
  %v7076 = vmul.f32 %v6948, %v7060
  %v7077 = vmul.f32 %v6949, %v7061
  %v7078 = vmul.f32 %v6950, %v7062
  %v7079 = vmul.f32 %v6951, %v7063
  %v7080 = vmul.f32 %v6952, %v7064
  %v7081 = vmul.f32 %v6953, %v7065
  %v7082 = vlaneseq
  %v7083 = vshrl.u32 %v7082, 7
  %v7084 = vsub.s32 3, %v7083
  %v7085 = vrot.slane %v49, %v7084
  %v7086 = vmul.f32 %v7066, %v7085
  %v7087 = vmul.f32 %v7067, %v7085
  %v7088 = vmul.f32 %v7068, %v7085
  %v7089 = vmul.f32 %v7069, %v7085
  %v7090 = vmul.f32 %v7070, %v7085
  %v7091 = vmul.f32 %v7071, %v7085
  %v7092 = vmul.f32 %v7072, %v7085
  %v7093 = vmul.f32 %v7073, %v7085
  %v7094 = vmul.f32 %v7074, %v7085
  %v7095 = vmul.f32 %v7075, %v7085
  %v7096 = vmul.f32 %v7076, %v7085
  %v7097 = vmul.f32 %v7077, %v7085
  %v7098 = vmul.f32 %v7078, %v7085
  %v7099 = vmul.f32 %v7079, %v7085
  %v7100 = vmul.f32 %v7080, %v7085
  %v7101 = vmul.f32 %v7081, %v7085
  %v7102 = vlaneseq
  %v7103 = vshrl.u32 %v7102, 7
  %v7104 = vsub.s32 4, %v7103
  %v7105 = vrot.slane %v49, %v7104
  %v7106 = vadd.f32 %v7086, %v7105
  %v7107 = vadd.f32 %v7087, %v7105
  %v7108 = vadd.f32 %v7088, %v7105
  %v7109 = vadd.f32 %v7089, %v7105
  %v7110 = vadd.f32 %v7090, %v7105
  %v7111 = vadd.f32 %v7091, %v7105
  %v7112 = vadd.f32 %v7092, %v7105
  %v7113 = vadd.f32 %v7093, %v7105
  %v7114 = vadd.f32 %v7094, %v7105
  %v7115 = vadd.f32 %v7095, %v7105
  %v7116 = vadd.f32 %v7096, %v7105
  %v7117 = vadd.f32 %v7097, %v7105
  %v7118 = vadd.f32 %v7098, %v7105
  %v7119 = vadd.f32 %v7099, %v7105
  %v7120 = vadd.f32 %v7100, %v7105
  %v7121 = vadd.f32 %v7101, %v7105
  %v7122 = vadd.f32 %v33, %v7106
  %v7123 = vadd.f32 %v34, %v7107
  %v7124 = vadd.f32 %v35, %v7108
  %v7125 = vadd.f32 %v36, %v7109
  %v7126 = vadd.f32 %v37, %v7110
  %v7127 = vadd.f32 %v38, %v7111
  %v7128 = vadd.f32 %v39, %v7112
  %v7129 = vadd.f32 %v40, %v7113
  %v7130 = vadd.f32 %v41, %v7114
  %v7131 = vadd.f32 %v42, %v7115
  %v7132 = vadd.f32 %v43, %v7116
  %v7133 = vadd.f32 %v44, %v7117
  %v7134 = vadd.f32 %v45, %v7118
  %v7135 = vadd.f32 %v46, %v7119
  %v7136 = vadd.f32 %v47, %v7120
  %v7137 = vadd.f32 %v48, %v7121
  %v7138 = vpack.c.bf16 %v7123, %v7122
  %v7139 = vpack.c.bf16 %v7125, %v7124
  %v7140 = vpack.c.bf16 %v7127, %v7126
  %v7141 = vpack.c.bf16 %v7129, %v7128
  %v7142 = vpack.c.bf16 %v7131, %v7130
  %v7143 = vpack.c.bf16 %v7133, %v7132
  %v7144 = vpack.c.bf16 %v7135, %v7134
  %v7145 = vpack.c.bf16 %v7137, %v7136
  %v7146 = vld [vmem:[%s3] sm:$0xf]
  %v7147 = vld [vmem:[%s3 + $0x4] sm:$0xf]
  %v7148 = vld [vmem:[%s3 + $0x8] sm:$0xf]
  %v7149 = vld [vmem:[%s3 + $0xc] sm:$0xf]
  %v7150 = vlaneseq
  %v7151 = vshrl.u32 %v7150, 7
  %v7152 = vsub.s32 1, %v7151
  %v7153 = vrot.slane %v49, %v7152
  %v7158 = vunpack.c.l.b16 %v7146
  %v7159 = vunpack.c.l.b16 %v7147
  %v7160 = vunpack.c.l.b16 %v7148
  %v7161 = vunpack.c.l.b16 %v7149
  %v7162 = vpack.c.b16 %v7159, %v7158
  %v7163 = vpack.c.b16 %v7161, %v7160
  %v7167 = vsel %vm78, %v7138, 0
  %v7170 = vsel %vm78, %v7139, 0
  %v7173 = vsel %vm78, %v7140, 0
  %v7176 = vsel %vm78, %v7141, 0
  %v7179 = vsel %vm78, %v7142, 0
  %v7182 = vsel %vm78, %v7143, 0
  %v7185 = vsel %vm78, %v7144, 0
  %v7188 = vsel %vm78, %v7145, 0
  %7190 = vmatprep.subr.bf16.mxu0 0
  %7191 = vmatpush1.bf16.msra.mxu0 0
  %7192 = vmatprep.subr.bf16.mxu0 0
  %7193 = vmatpush1.bf16.msra.mxu0 0
  %7194 = vmatprep.subr.bf16.mxu0 0
  %7195 = vmatpush1.bf16.msra.mxu0 0
  %7196 = vmatprep.subr.bf16.mxu0 0
  %7197 = vmatpush1.bf16.msra.mxu0 0
  %7198 = vmatprep.subr.bf16.mxu0 0
  %7199 = vmatpush1.bf16.msra.mxu0 0
  %7200 = vmatprep.subr.bf16.mxu0 0
  %7201 = vmatpush1.bf16.msra.mxu0 0
  %7202 = vmatprep.subr.bf16.mxu0 0
  %7203 = vmatpush1.bf16.msra.mxu0 %v7163
  %7204 = vmatprep.subr.bf16.mxu0 0
  %7205 = vmatpush1.bf16.msra.mxu0 %v7162
  %7206 = vmatprep.subr.bf16.mxu0 0
  %7207 = vmatpush2.bf16.msra.mxu0 0
  %7208 = vmatprep.subr.bf16.mxu0 0
  %7209 = vmatpush2.bf16.msra.mxu0 0
  %7210 = vmatprep.subr.bf16.mxu0 0
  %7211 = vmatpush2.bf16.msra.mxu0 0
  %7212 = vmatprep.subr.bf16.mxu0 0
  %7213 = vmatpush2.bf16.msra.mxu0 0
  %7214 = vmatprep.subr.bf16.mxu0 0
  %7215 = vmatpush2.bf16.msra.mxu0 0
  %7216 = vmatprep.subr.bf16.mxu0 0
  %7217 = vmatpush2.bf16.msra.mxu0 0
  %7218 = vmatprep.subr.bf16.mxu0 0
  %7219 = vmatpush2.bf16.msra.mxu0 0
  %7220 = vmatprep.subr.bf16.mxu0 0
  %7221 = vmatpush2.bf16.msra.mxu0 0
  %7222 = vmatprep.mubr.bf16.mxu0 0
  %7223 = vmatmul.mubr.bf16.gmra.mxu0 %v7167
  %v7224 = vpop.f32.mrf.mxu0
  %v7225 = vadd.f32 %v7153, %v7224
  %v7226 = vpop.f32.mrf.mxu0
  %v7227 = vpop.f32.mrf.mxu0
  %v7228 = vadd.f32 %v7153, %v7227
  %v7229 = vpop.f32.mrf.mxu0
  %7230 = vmatprep.mubr.bf16.mxu0 0
  %7231 = vmatmul.mubr.bf16.gmra.mxu0 %v7170
  %v7232 = vpop.f32.mrf.mxu0
  %v7233 = vadd.f32 %v7153, %v7232
  %v7234 = vpop.f32.mrf.mxu0
  %v7235 = vpop.f32.mrf.mxu0
  %v7236 = vadd.f32 %v7153, %v7235
  %v7237 = vpop.f32.mrf.mxu0
  %7238 = vmatprep.mubr.bf16.mxu0 0
  %7239 = vmatmul.mubr.bf16.gmra.mxu0 %v7173
  %v7240 = vpop.f32.mrf.mxu0
  %v7241 = vadd.f32 %v7153, %v7240
  %v7242 = vpop.f32.mrf.mxu0
  %v7243 = vpop.f32.mrf.mxu0
  %v7244 = vadd.f32 %v7153, %v7243
  %v7245 = vpop.f32.mrf.mxu0
  %7246 = vmatprep.mubr.bf16.mxu0 0
  %7247 = vmatmul.mubr.bf16.gmra.mxu0 %v7176
  %v7248 = vpop.f32.mrf.mxu0
  %v7249 = vadd.f32 %v7153, %v7248
  %v7250 = vpop.f32.mrf.mxu0
  %v7251 = vpop.f32.mrf.mxu0
  %v7252 = vadd.f32 %v7153, %v7251
  %v7253 = vpop.f32.mrf.mxu0
  %7254 = vmatprep.mubr.bf16.mxu0 0
  %7255 = vmatmul.mubr.bf16.gmra.mxu0 %v7179
  %v7256 = vpop.f32.mrf.mxu0
  %v7257 = vadd.f32 %v7153, %v7256
  %v7258 = vpop.f32.mrf.mxu0
  %v7259 = vpop.f32.mrf.mxu0
  %v7260 = vadd.f32 %v7153, %v7259
  %v7261 = vpop.f32.mrf.mxu0
  %7262 = vmatprep.mubr.bf16.mxu0 0
  %7263 = vmatmul.mubr.bf16.gmra.mxu0 %v7182
  %v7264 = vpop.f32.mrf.mxu0
  %v7265 = vadd.f32 %v7153, %v7264
  %v7266 = vpop.f32.mrf.mxu0
  %v7267 = vpop.f32.mrf.mxu0
  %v7268 = vadd.f32 %v7153, %v7267
  %v7269 = vpop.f32.mrf.mxu0
  %7270 = vmatprep.mubr.bf16.mxu0 0
  %7271 = vmatmul.mubr.bf16.gmra.mxu0 %v7185
  %v7272 = vpop.f32.mrf.mxu0
  %v7273 = vadd.f32 %v7153, %v7272
  %v7274 = vpop.f32.mrf.mxu0
  %v7275 = vpop.f32.mrf.mxu0
  %v7276 = vadd.f32 %v7153, %v7275
  %v7277 = vpop.f32.mrf.mxu0
  %7278 = vmatprep.mubr.bf16.mxu0 0
  %7279 = vmatmul.mubr.bf16.gmra.mxu0 %v7188
  %v7280 = vpop.f32.mrf.mxu0
  %v7281 = vadd.f32 %v7153, %v7280
  %v7282 = vpop.f32.mrf.mxu0
  %v7283 = vpop.f32.mrf.mxu0
  %v7284 = vadd.f32 %v7153, %v7283
  %v7285 = vpop.f32.mrf.mxu0
  %7286 = vdwg.mxu0
  %v7287 = vmul.f32 %v7225, 0.70710677
  %v7288 = vmul.f32 %v7228, 0.70710677
  %v7289 = vmul.f32 %v7233, 0.70710677
  %v7290 = vmul.f32 %v7236, 0.70710677
  %v7291 = vmul.f32 %v7241, 0.70710677
  %v7292 = vmul.f32 %v7244, 0.70710677
  %v7293 = vmul.f32 %v7249, 0.70710677
  %v7294 = vmul.f32 %v7252, 0.70710677
  %v7295 = vmul.f32 %v7257, 0.70710677
  %v7296 = vmul.f32 %v7260, 0.70710677
  %v7297 = vmul.f32 %v7265, 0.70710677
  %v7298 = vmul.f32 %v7268, 0.70710677
  %v7299 = vmul.f32 %v7273, 0.70710677
  %v7300 = vmul.f32 %v7276, 0.70710677
  %v7301 = vmul.f32 %v7281, 0.70710677
  %v7302 = vmul.f32 %v7284, 0.70710677
  %v7303 = vand.u32 2147483647, %v7287
  %v7304 = vand.u32 2147483647, %v7288
  %v7305 = vand.u32 2147483647, %v7289
  %v7306 = vand.u32 2147483647, %v7290
  %v7307 = vand.u32 2147483647, %v7291
  %v7308 = vand.u32 2147483647, %v7292
  %v7309 = vand.u32 2147483647, %v7293
  %v7310 = vand.u32 2147483647, %v7294
  %v7311 = vand.u32 2147483647, %v7295
  %v7312 = vand.u32 2147483647, %v7296
  %v7313 = vand.u32 2147483647, %v7297
  %v7314 = vand.u32 2147483647, %v7298
  %v7315 = vand.u32 2147483647, %v7299
  %v7316 = vand.u32 2147483647, %v7300
  %v7317 = vand.u32 2147483647, %v7301
  %v7318 = vand.u32 2147483647, %v7302
  %v7319 = vmul.f32 %v7303, 0.3275911
  %v7320 = vmul.f32 %v7304, 0.3275911
  %v7321 = vmul.f32 %v7305, 0.3275911
  %v7322 = vmul.f32 %v7306, 0.3275911
  %v7323 = vmul.f32 %v7307, 0.3275911
  %v7324 = vmul.f32 %v7308, 0.3275911
  %v7325 = vmul.f32 %v7309, 0.3275911
  %v7326 = vmul.f32 %v7310, 0.3275911
  %v7327 = vmul.f32 %v7311, 0.3275911
  %v7328 = vmul.f32 %v7312, 0.3275911
  %v7329 = vmul.f32 %v7313, 0.3275911
  %v7330 = vmul.f32 %v7314, 0.3275911
  %v7331 = vmul.f32 %v7315, 0.3275911
  %v7332 = vmul.f32 %v7316, 0.3275911
  %v7333 = vmul.f32 %v7317, 0.3275911
  %v7334 = vmul.f32 %v7318, 0.3275911
  %v7335 = vadd.f32 %v7319, 1.0
  %v7336 = vadd.f32 %v7320, 1.0
  %v7337 = vadd.f32 %v7321, 1.0
  %v7338 = vadd.f32 %v7322, 1.0
  %v7339 = vadd.f32 %v7323, 1.0
  %v7340 = vadd.f32 %v7324, 1.0
  %v7341 = vadd.f32 %v7325, 1.0
  %v7342 = vadd.f32 %v7326, 1.0
  %v7343 = vadd.f32 %v7327, 1.0
  %v7344 = vadd.f32 %v7328, 1.0
  %v7345 = vadd.f32 %v7329, 1.0
  %v7346 = vadd.f32 %v7330, 1.0
  %v7347 = vadd.f32 %v7331, 1.0
  %v7348 = vadd.f32 %v7332, 1.0
  %v7349 = vadd.f32 %v7333, 1.0
  %v7350 = vadd.f32 %v7334, 1.0
  %v7351 = vrcp.pop %v7335
  %v7352 = vmul.f32 1.0, %v7351
  %v7353 = vrcp.pop %v7336
  %v7354 = vmul.f32 1.0, %v7353
  %v7355 = vrcp.pop %v7337
  %v7356 = vmul.f32 1.0, %v7355
  %v7357 = vrcp.pop %v7338
  %v7358 = vmul.f32 1.0, %v7357
  %v7359 = vrcp.pop %v7339
  %v7360 = vmul.f32 1.0, %v7359
  %v7361 = vrcp.pop %v7340
  %v7362 = vmul.f32 1.0, %v7361
  %v7363 = vrcp.pop %v7341
  %v7364 = vmul.f32 1.0, %v7363
  %v7365 = vrcp.pop %v7342
  %v7366 = vmul.f32 1.0, %v7365
  %v7367 = vrcp.pop %v7343
  %v7368 = vmul.f32 1.0, %v7367
  %v7369 = vrcp.pop %v7344
  %v7370 = vmul.f32 1.0, %v7369
  %v7371 = vrcp.pop %v7345
  %v7372 = vmul.f32 1.0, %v7371
  %v7373 = vrcp.pop %v7346
  %v7374 = vmul.f32 1.0, %v7373
  %v7375 = vrcp.pop %v7347
  %v7376 = vmul.f32 1.0, %v7375
  %v7377 = vrcp.pop %v7348
  %v7378 = vmul.f32 1.0, %v7377
  %v7379 = vrcp.pop %v7349
  %v7380 = vmul.f32 1.0, %v7379
  %v7381 = vrcp.pop %v7350
  %v7382 = vmul.f32 1.0, %v7381
  %v7383 = vmul.f32 %v7352, 1.0614054
  %v7384 = vmul.f32 %v7354, 1.0614054
  %v7385 = vmul.f32 %v7356, 1.0614054
  %v7386 = vmul.f32 %v7358, 1.0614054
  %v7387 = vmul.f32 %v7360, 1.0614054
  %v7388 = vmul.f32 %v7362, 1.0614054
  %v7389 = vmul.f32 %v7364, 1.0614054
  %v7390 = vmul.f32 %v7366, 1.0614054
  %v7391 = vmul.f32 %v7368, 1.0614054
  %v7392 = vmul.f32 %v7370, 1.0614054
  %v7393 = vmul.f32 %v7372, 1.0614054
  %v7394 = vmul.f32 %v7374, 1.0614054
  %v7395 = vmul.f32 %v7376, 1.0614054
  %v7396 = vmul.f32 %v7378, 1.0614054
  %v7397 = vmul.f32 %v7380, 1.0614054
  %v7398 = vmul.f32 %v7382, 1.0614054
  %v7399 = vsub.f32 %v7383, 1.4531521
  %v7400 = vsub.f32 %v7384, 1.4531521
  %v7401 = vsub.f32 %v7385, 1.4531521
  %v7402 = vsub.f32 %v7386, 1.4531521
  %v7403 = vsub.f32 %v7387, 1.4531521
  %v7404 = vsub.f32 %v7388, 1.4531521
  %v7405 = vsub.f32 %v7389, 1.4531521
  %v7406 = vsub.f32 %v7390, 1.4531521
  %v7407 = vsub.f32 %v7391, 1.4531521
  %v7408 = vsub.f32 %v7392, 1.4531521
  %v7409 = vsub.f32 %v7393, 1.4531521
  %v7410 = vsub.f32 %v7394, 1.4531521
  %v7411 = vsub.f32 %v7395, 1.4531521
  %v7412 = vsub.f32 %v7396, 1.4531521
  %v7413 = vsub.f32 %v7397, 1.4531521
  %v7414 = vsub.f32 %v7398, 1.4531521
  %v7415 = vmul.f32 %v7399, %v7352
  %v7416 = vmul.f32 %v7400, %v7354
  %v7417 = vmul.f32 %v7401, %v7356
  %v7418 = vmul.f32 %v7402, %v7358
  %v7419 = vmul.f32 %v7403, %v7360
  %v7420 = vmul.f32 %v7404, %v7362
  %v7421 = vmul.f32 %v7405, %v7364
  %v7422 = vmul.f32 %v7406, %v7366
  %v7423 = vmul.f32 %v7407, %v7368
  %v7424 = vmul.f32 %v7408, %v7370
  %v7425 = vmul.f32 %v7409, %v7372
  %v7426 = vmul.f32 %v7410, %v7374
  %v7427 = vmul.f32 %v7411, %v7376
  %v7428 = vmul.f32 %v7412, %v7378
  %v7429 = vmul.f32 %v7413, %v7380
  %v7430 = vmul.f32 %v7414, %v7382
  %v7431 = vadd.f32 %v7415, 1.4214138
  %v7432 = vadd.f32 %v7416, 1.4214138
  %v7433 = vadd.f32 %v7417, 1.4214138
  %v7434 = vadd.f32 %v7418, 1.4214138
  %v7435 = vadd.f32 %v7419, 1.4214138
  %v7436 = vadd.f32 %v7420, 1.4214138
  %v7437 = vadd.f32 %v7421, 1.4214138
  %v7438 = vadd.f32 %v7422, 1.4214138
  %v7439 = vadd.f32 %v7423, 1.4214138
  %v7440 = vadd.f32 %v7424, 1.4214138
  %v7441 = vadd.f32 %v7425, 1.4214138
  %v7442 = vadd.f32 %v7426, 1.4214138
  %v7443 = vadd.f32 %v7427, 1.4214138
  %v7444 = vadd.f32 %v7428, 1.4214138
  %v7445 = vadd.f32 %v7429, 1.4214138
  %v7446 = vadd.f32 %v7430, 1.4214138
  %v7447 = vmul.f32 %v7431, %v7352
  %v7448 = vmul.f32 %v7432, %v7354
  %v7449 = vmul.f32 %v7433, %v7356
  %v7450 = vmul.f32 %v7434, %v7358
  %v7451 = vmul.f32 %v7435, %v7360
  %v7452 = vmul.f32 %v7436, %v7362
  %v7453 = vmul.f32 %v7437, %v7364
  %v7454 = vmul.f32 %v7438, %v7366
  %v7455 = vmul.f32 %v7439, %v7368
  %v7456 = vmul.f32 %v7440, %v7370
  %v7457 = vmul.f32 %v7441, %v7372
  %v7458 = vmul.f32 %v7442, %v7374
  %v7459 = vmul.f32 %v7443, %v7376
  %v7460 = vmul.f32 %v7444, %v7378
  %v7461 = vmul.f32 %v7445, %v7380
  %v7462 = vmul.f32 %v7446, %v7382
  %v7463 = vsub.f32 %v7447, 0.28449672
  %v7464 = vsub.f32 %v7448, 0.28449672
  %v7465 = vsub.f32 %v7449, 0.28449672
  %v7466 = vsub.f32 %v7450, 0.28449672
  %v7467 = vsub.f32 %v7451, 0.28449672
  %v7468 = vsub.f32 %v7452, 0.28449672
  %v7469 = vsub.f32 %v7453, 0.28449672
  %v7470 = vsub.f32 %v7454, 0.28449672
  %v7471 = vsub.f32 %v7455, 0.28449672
  %v7472 = vsub.f32 %v7456, 0.28449672
  %v7473 = vsub.f32 %v7457, 0.28449672
  %v7474 = vsub.f32 %v7458, 0.28449672
  %v7475 = vsub.f32 %v7459, 0.28449672
  %v7476 = vsub.f32 %v7460, 0.28449672
  %v7477 = vsub.f32 %v7461, 0.28449672
  %v7478 = vsub.f32 %v7462, 0.28449672
  %v7479 = vmul.f32 %v7463, %v7352
  %v7480 = vmul.f32 %v7464, %v7354
  %v7481 = vmul.f32 %v7465, %v7356
  %v7482 = vmul.f32 %v7466, %v7358
  %v7483 = vmul.f32 %v7467, %v7360
  %v7484 = vmul.f32 %v7468, %v7362
  %v7485 = vmul.f32 %v7469, %v7364
  %v7486 = vmul.f32 %v7470, %v7366
  %v7487 = vmul.f32 %v7471, %v7368
  %v7488 = vmul.f32 %v7472, %v7370
  %v7489 = vmul.f32 %v7473, %v7372
  %v7490 = vmul.f32 %v7474, %v7374
  %v7491 = vmul.f32 %v7475, %v7376
  %v7492 = vmul.f32 %v7476, %v7378
  %v7493 = vmul.f32 %v7477, %v7380
  %v7494 = vmul.f32 %v7478, %v7382
  %v7495 = vadd.f32 %v7479, 0.2548296
  %v7496 = vadd.f32 %v7480, 0.2548296
  %v7497 = vadd.f32 %v7481, 0.2548296
  %v7498 = vadd.f32 %v7482, 0.2548296
  %v7499 = vadd.f32 %v7483, 0.2548296
  %v7500 = vadd.f32 %v7484, 0.2548296
  %v7501 = vadd.f32 %v7485, 0.2548296
  %v7502 = vadd.f32 %v7486, 0.2548296
  %v7503 = vadd.f32 %v7487, 0.2548296
  %v7504 = vadd.f32 %v7488, 0.2548296
  %v7505 = vadd.f32 %v7489, 0.2548296
  %v7506 = vadd.f32 %v7490, 0.2548296
  %v7507 = vadd.f32 %v7491, 0.2548296
  %v7508 = vadd.f32 %v7492, 0.2548296
  %v7509 = vadd.f32 %v7493, 0.2548296
  %v7510 = vadd.f32 %v7494, 0.2548296
  %v7511 = vmul.f32 %v7495, %v7352
  %v7512 = vmul.f32 %v7496, %v7354
  %v7513 = vmul.f32 %v7497, %v7356
  %v7514 = vmul.f32 %v7498, %v7358
  %v7515 = vmul.f32 %v7499, %v7360
  %v7516 = vmul.f32 %v7500, %v7362
  %v7517 = vmul.f32 %v7501, %v7364
  %v7518 = vmul.f32 %v7502, %v7366
  %v7519 = vmul.f32 %v7503, %v7368
  %v7520 = vmul.f32 %v7504, %v7370
  %v7521 = vmul.f32 %v7505, %v7372
  %v7522 = vmul.f32 %v7506, %v7374
  %v7523 = vmul.f32 %v7507, %v7376
  %v7524 = vmul.f32 %v7508, %v7378
  %v7525 = vmul.f32 %v7509, %v7380
  %v7526 = vmul.f32 %v7510, %v7382
  %v7527 = vsub.f32 0.0, %v7303
  %v7528 = vsub.f32 0.0, %v7304
  %v7529 = vsub.f32 0.0, %v7305
  %v7530 = vsub.f32 0.0, %v7306
  %v7531 = vsub.f32 0.0, %v7307
  %v7532 = vsub.f32 0.0, %v7308
  %v7533 = vsub.f32 0.0, %v7309
  %v7534 = vsub.f32 0.0, %v7310
  %v7535 = vsub.f32 0.0, %v7311
  %v7536 = vsub.f32 0.0, %v7312
  %v7537 = vsub.f32 0.0, %v7313
  %v7538 = vsub.f32 0.0, %v7314
  %v7539 = vsub.f32 0.0, %v7315
  %v7540 = vsub.f32 0.0, %v7316
  %v7541 = vsub.f32 0.0, %v7317
  %v7542 = vsub.f32 0.0, %v7318
  %v7543 = vmul.f32 %v7527, %v7303
  %v7544 = vmul.f32 %v7528, %v7304
  %v7545 = vmul.f32 %v7529, %v7305
  %v7546 = vmul.f32 %v7530, %v7306
  %v7547 = vmul.f32 %v7531, %v7307
  %v7548 = vmul.f32 %v7532, %v7308
  %v7549 = vmul.f32 %v7533, %v7309
  %v7550 = vmul.f32 %v7534, %v7310
  %v7551 = vmul.f32 %v7535, %v7311
  %v7552 = vmul.f32 %v7536, %v7312
  %v7553 = vmul.f32 %v7537, %v7313
  %v7554 = vmul.f32 %v7538, %v7314
  %v7555 = vmul.f32 %v7539, %v7315
  %v7556 = vmul.f32 %v7540, %v7316
  %v7557 = vmul.f32 %v7541, %v7317
  %v7558 = vmul.f32 %v7542, %v7318
  %v7559 = vmul.f32 %v7543, 1.442695
  %v7560 = vpow.pop %v7559
  %v7561 = vmul.f32 %v7544, 1.442695
  %v7562 = vpow.pop %v7561
  %v7563 = vmul.f32 %v7545, 1.442695
  %v7564 = vpow.pop %v7563
  %v7565 = vmul.f32 %v7546, 1.442695
  %v7566 = vpow.pop %v7565
  %v7567 = vmul.f32 %v7547, 1.442695
  %v7568 = vpow.pop %v7567
  %v7569 = vmul.f32 %v7548, 1.442695
  %v7570 = vpow.pop %v7569
  %v7571 = vmul.f32 %v7549, 1.442695
  %v7572 = vpow.pop %v7571
  %v7573 = vmul.f32 %v7550, 1.442695
  %v7574 = vpow.pop %v7573
  %v7575 = vmul.f32 %v7551, 1.442695
  %v7576 = vpow.pop %v7575
  %v7577 = vmul.f32 %v7552, 1.442695
  %v7578 = vpow.pop %v7577
  %v7579 = vmul.f32 %v7553, 1.442695
  %v7580 = vpow.pop %v7579
  %v7581 = vmul.f32 %v7554, 1.442695
  %v7582 = vpow.pop %v7581
  %v7583 = vmul.f32 %v7555, 1.442695
  %v7584 = vpow.pop %v7583
  %v7585 = vmul.f32 %v7556, 1.442695
  %v7586 = vpow.pop %v7585
  %v7587 = vmul.f32 %v7557, 1.442695
  %v7588 = vpow.pop %v7587
  %v7589 = vmul.f32 %v7558, 1.442695
  %v7590 = vpow.pop %v7589
  %v7591 = vmul.f32 %v7511, %v7560
  %v7592 = vmul.f32 %v7512, %v7562
  %v7593 = vmul.f32 %v7513, %v7564
  %v7594 = vmul.f32 %v7514, %v7566
  %v7595 = vmul.f32 %v7515, %v7568
  %v7596 = vmul.f32 %v7516, %v7570
  %v7597 = vmul.f32 %v7517, %v7572
  %v7598 = vmul.f32 %v7518, %v7574
  %v7599 = vmul.f32 %v7519, %v7576
  %v7600 = vmul.f32 %v7520, %v7578
  %v7601 = vmul.f32 %v7521, %v7580
  %v7602 = vmul.f32 %v7522, %v7582
  %v7603 = vmul.f32 %v7523, %v7584
  %v7604 = vmul.f32 %v7524, %v7586
  %v7605 = vmul.f32 %v7525, %v7588
  %v7606 = vmul.f32 %v7526, %v7590
  %v7607 = vsub.f32 1.0, %v7591
  %v7608 = vsub.f32 1.0, %v7592
  %v7609 = vsub.f32 1.0, %v7593
  %v7610 = vsub.f32 1.0, %v7594
  %v7611 = vsub.f32 1.0, %v7595
  %v7612 = vsub.f32 1.0, %v7596
  %v7613 = vsub.f32 1.0, %v7597
  %v7614 = vsub.f32 1.0, %v7598
  %v7615 = vsub.f32 1.0, %v7599
  %v7616 = vsub.f32 1.0, %v7600
  %v7617 = vsub.f32 1.0, %v7601
  %v7618 = vsub.f32 1.0, %v7602
  %v7619 = vsub.f32 1.0, %v7603
  %v7620 = vsub.f32 1.0, %v7604
  %v7621 = vsub.f32 1.0, %v7605
  %v7622 = vsub.f32 1.0, %v7606
  %vm7623 = vcmp.ge.f32.partialorder %v7287, 0.0
  %vm7624 = vcmp.ge.f32.partialorder %v7288, 0.0
  %vm7625 = vcmp.ge.f32.partialorder %v7289, 0.0
  %vm7626 = vcmp.ge.f32.partialorder %v7290, 0.0
  %vm7627 = vcmp.ge.f32.partialorder %v7291, 0.0
  %vm7628 = vcmp.ge.f32.partialorder %v7292, 0.0
  %vm7629 = vcmp.ge.f32.partialorder %v7293, 0.0
  %vm7630 = vcmp.ge.f32.partialorder %v7294, 0.0
  %vm7631 = vcmp.ge.f32.partialorder %v7295, 0.0
  %vm7632 = vcmp.ge.f32.partialorder %v7296, 0.0
  %vm7633 = vcmp.ge.f32.partialorder %v7297, 0.0
  %vm7634 = vcmp.ge.f32.partialorder %v7298, 0.0
  %vm7635 = vcmp.ge.f32.partialorder %v7299, 0.0
  %vm7636 = vcmp.ge.f32.partialorder %v7300, 0.0
  %vm7637 = vcmp.ge.f32.partialorder %v7301, 0.0
  %vm7638 = vcmp.ge.f32.partialorder %v7302, 0.0
  %v7639 = vsub.f32 0.0, %v7607
  %v7640 = vsub.f32 0.0, %v7608
  %v7641 = vsub.f32 0.0, %v7609
  %v7642 = vsub.f32 0.0, %v7610
  %v7643 = vsub.f32 0.0, %v7611
  %v7644 = vsub.f32 0.0, %v7612
  %v7645 = vsub.f32 0.0, %v7613
  %v7646 = vsub.f32 0.0, %v7614
  %v7647 = vsub.f32 0.0, %v7615
  %v7648 = vsub.f32 0.0, %v7616
  %v7649 = vsub.f32 0.0, %v7617
  %v7650 = vsub.f32 0.0, %v7618
  %v7651 = vsub.f32 0.0, %v7619
  %v7652 = vsub.f32 0.0, %v7620
  %v7653 = vsub.f32 0.0, %v7621
  %v7654 = vsub.f32 0.0, %v7622
  %v7655 = vsel %vm7623, %v7607, %v7639
  %v7656 = vsel %vm7624, %v7608, %v7640
  %v7657 = vsel %vm7625, %v7609, %v7641
  %v7658 = vsel %vm7626, %v7610, %v7642
  %v7659 = vsel %vm7627, %v7611, %v7643
  %v7660 = vsel %vm7628, %v7612, %v7644
  %v7661 = vsel %vm7629, %v7613, %v7645
  %v7662 = vsel %vm7630, %v7614, %v7646
  %v7663 = vsel %vm7631, %v7615, %v7647
  %v7664 = vsel %vm7632, %v7616, %v7648
  %v7665 = vsel %vm7633, %v7617, %v7649
  %v7666 = vsel %vm7634, %v7618, %v7650
  %v7667 = vsel %vm7635, %v7619, %v7651
  %v7668 = vsel %vm7636, %v7620, %v7652
  %v7669 = vsel %vm7637, %v7621, %v7653
  %v7670 = vsel %vm7638, %v7622, %v7654
  %v7671 = vmul.f32 %v7225, 0.5
  %v7672 = vmul.f32 %v7228, 0.5
  %v7673 = vmul.f32 %v7233, 0.5
  %v7674 = vmul.f32 %v7236, 0.5
  %v7675 = vmul.f32 %v7241, 0.5
  %v7676 = vmul.f32 %v7244, 0.5
  %v7677 = vmul.f32 %v7249, 0.5
  %v7678 = vmul.f32 %v7252, 0.5
  %v7679 = vmul.f32 %v7257, 0.5
  %v7680 = vmul.f32 %v7260, 0.5
  %v7681 = vmul.f32 %v7265, 0.5
  %v7682 = vmul.f32 %v7268, 0.5
  %v7683 = vmul.f32 %v7273, 0.5
  %v7684 = vmul.f32 %v7276, 0.5
  %v7685 = vmul.f32 %v7281, 0.5
  %v7686 = vmul.f32 %v7284, 0.5
  %v7687 = vadd.f32 %v7655, 1.0
  %v7688 = vadd.f32 %v7656, 1.0
  %v7689 = vadd.f32 %v7657, 1.0
  %v7690 = vadd.f32 %v7658, 1.0
  %v7691 = vadd.f32 %v7659, 1.0
  %v7692 = vadd.f32 %v7660, 1.0
  %v7693 = vadd.f32 %v7661, 1.0
  %v7694 = vadd.f32 %v7662, 1.0
  %v7695 = vadd.f32 %v7663, 1.0
  %v7696 = vadd.f32 %v7664, 1.0
  %v7697 = vadd.f32 %v7665, 1.0
  %v7698 = vadd.f32 %v7666, 1.0
  %v7699 = vadd.f32 %v7667, 1.0
  %v7700 = vadd.f32 %v7668, 1.0
  %v7701 = vadd.f32 %v7669, 1.0
  %v7702 = vadd.f32 %v7670, 1.0
  %v7703 = vmul.f32 %v7671, %v7687
  %v7704 = vmul.f32 %v7672, %v7688
  %v7705 = vmul.f32 %v7673, %v7689
  %v7706 = vmul.f32 %v7674, %v7690
  %v7707 = vmul.f32 %v7675, %v7691
  %v7708 = vmul.f32 %v7676, %v7692
  %v7709 = vmul.f32 %v7677, %v7693
  %v7710 = vmul.f32 %v7678, %v7694
  %v7711 = vmul.f32 %v7679, %v7695
  %v7712 = vmul.f32 %v7680, %v7696
  %v7713 = vmul.f32 %v7681, %v7697
  %v7714 = vmul.f32 %v7682, %v7698
  %v7715 = vmul.f32 %v7683, %v7699
  %v7716 = vmul.f32 %v7684, %v7700
  %v7717 = vmul.f32 %v7685, %v7701
  %v7718 = vmul.f32 %v7686, %v7702
  %v7719 = vpack.c.bf16 %v7704, %v7703
  %v7720 = vpack.c.bf16 %v7706, %v7705
  %v7721 = vpack.c.bf16 %v7708, %v7707
  %v7722 = vpack.c.bf16 %v7710, %v7709
  %v7723 = vpack.c.bf16 %v7712, %v7711
  %v7724 = vpack.c.bf16 %v7714, %v7713
  %v7725 = vpack.c.bf16 %v7716, %v7715
  %v7726 = vpack.c.bf16 %v7718, %v7717
  %v7727 = vld [vmem:[%s4] sm:$0xf]
  %v7728 = vld [vmem:[%s4 + $0x4] sm:$0xf]
  %v7729 = vld [vmem:[%s4 + $0x8] sm:$0xf]
  %v7730 = vld [vmem:[%s4 + $0xc] sm:$0xf]
  %v7731 = vld [vmem:[%s4 + $0x10] sm:$0xf]
  %v7732 = vld [vmem:[%s4 + $0x14] sm:$0xf]
  %v7733 = vld [vmem:[%s4 + $0x18] sm:$0xf]
  %v7734 = vld [vmem:[%s4 + $0x1c] sm:$0xf]
  %v7735 = vld [vmem:[%s4 + $0x20] sm:$0xf]
  %v7736 = vld [vmem:[%s4 + $0x24] sm:$0xf]
  %v7737 = vld [vmem:[%s4 + $0x28] sm:$0xf]
  %v7738 = vld [vmem:[%s4 + $0x2c] sm:$0xf]
  %v7739 = vld [vmem:[%s4 + $0x30] sm:$0xf]
  %v7740 = vld [vmem:[%s4 + $0x34] sm:$0xf]
  %v7741 = vld [vmem:[%s4 + $0x38] sm:$0xf]
  %v7742 = vld [vmem:[%s4 + $0x3c] sm:$0xf]
  %v7743 = vlaneseq
  %v7744 = vshrl.u32 %v7743, 7
  %v7745 = vsub.s32 5, %v7744
  %v7746 = vrot.slane %v49, %v7745
  %v7763 = vunpack.c.l.b16 %v7727
  %v7764 = vunpack.c.l.b16 %v7728
  %v7765 = vunpack.c.l.b16 %v7729
  %v7766 = vunpack.c.l.b16 %v7730
  %v7767 = vunpack.c.l.b16 %v7731
  %v7768 = vunpack.c.l.b16 %v7732
  %v7769 = vunpack.c.l.b16 %v7733
  %v7770 = vunpack.c.l.b16 %v7734
  %v7771 = vunpack.c.l.b16 %v7735
  %v7772 = vunpack.c.l.b16 %v7736
  %v7773 = vunpack.c.l.b16 %v7737
  %v7774 = vunpack.c.l.b16 %v7738
  %v7775 = vunpack.c.l.b16 %v7739
  %v7776 = vunpack.c.l.b16 %v7740
  %v7777 = vunpack.c.l.b16 %v7741
  %v7778 = vunpack.c.l.b16 %v7742
  %v7779 = vpack.c.b16 %v7764, %v7763
  %v7780 = vpack.c.b16 %v7766, %v7765
  %v7781 = vpack.c.b16 %v7768, %v7767
  %v7782 = vpack.c.b16 %v7770, %v7769
  %v7783 = vpack.c.b16 %v7772, %v7771
  %v7784 = vpack.c.b16 %v7774, %v7773
  %v7785 = vpack.c.b16 %v7776, %v7775
  %v7786 = vpack.c.b16 %v7778, %v7777
  %7795 = vmatprep.subr.bf16.mxu0 0
  %7796 = vmatpush1.bf16.msra.mxu0 %v7786
  %7797 = vmatprep.subr.bf16.mxu0 0
  %7798 = vmatpush1.bf16.msra.mxu0 %v7785
  %7799 = vmatprep.subr.bf16.mxu0 0
  %7800 = vmatpush1.bf16.msra.mxu0 %v7784
  %7801 = vmatprep.subr.bf16.mxu0 0
  %7802 = vmatpush1.bf16.msra.mxu0 %v7783
  %7803 = vmatprep.subr.bf16.mxu0 0
  %7804 = vmatpush1.bf16.msra.mxu0 %v7782
  %7805 = vmatprep.subr.bf16.mxu0 0
  %7806 = vmatpush1.bf16.msra.mxu0 %v7781
  %7807 = vmatprep.subr.bf16.mxu0 0
  %7808 = vmatpush1.bf16.msra.mxu0 %v7780
  %7809 = vmatprep.subr.bf16.mxu0 0
  %7810 = vmatpush1.bf16.msra.mxu0 %v7779
  %7811 = vmatprep.subr.bf16.mxu0 0
  %7812 = vmatpush2.bf16.msra.mxu0 0
  %7813 = vmatprep.subr.bf16.mxu0 0
  %7814 = vmatpush2.bf16.msra.mxu0 0
  %7815 = vmatprep.subr.bf16.mxu0 0
  %7816 = vmatpush2.bf16.msra.mxu0 0
  %7817 = vmatprep.subr.bf16.mxu0 0
  %7818 = vmatpush2.bf16.msra.mxu0 0
  %7819 = vmatprep.subr.bf16.mxu0 0
  %7820 = vmatpush2.bf16.msra.mxu0 0
  %7821 = vmatprep.subr.bf16.mxu0 0
  %7822 = vmatpush2.bf16.msra.mxu0 0
  %7823 = vmatprep.subr.bf16.mxu0 0
  %7824 = vmatpush2.bf16.msra.mxu0 0
  %7825 = vmatprep.subr.bf16.mxu0 0
  %7826 = vmatpush2.bf16.msra.mxu0 0
  %7827 = vmatprep.mubr.bf16.mxu0 0
  %7828 = vmatmul.mubr.bf16.gmra.mxu0 %v7719
  %v7829 = vpop.f32.mrf.mxu0
  %v7830 = vadd.f32 %v7746, %v7829
  %v7831 = vpop.f32.mrf.mxu0
  %v7832 = vpop.f32.mrf.mxu0
  %v7833 = vadd.f32 %v7746, %v7832
  %v7834 = vpop.f32.mrf.mxu0
  %7835 = vmatprep.mubr.bf16.mxu0 0
  %7836 = vmatmul.mubr.bf16.gmra.mxu0 %v7720
  %v7837 = vpop.f32.mrf.mxu0
  %v7838 = vadd.f32 %v7746, %v7837
  %v7839 = vpop.f32.mrf.mxu0
  %v7840 = vpop.f32.mrf.mxu0
  %v7841 = vadd.f32 %v7746, %v7840
  %v7842 = vpop.f32.mrf.mxu0
  %7843 = vmatprep.mubr.bf16.mxu0 0
  %7844 = vmatmul.mubr.bf16.gmra.mxu0 %v7721
  %v7845 = vpop.f32.mrf.mxu0
  %v7846 = vadd.f32 %v7746, %v7845
  %v7847 = vpop.f32.mrf.mxu0
  %v7848 = vpop.f32.mrf.mxu0
  %v7849 = vadd.f32 %v7746, %v7848
  %v7850 = vpop.f32.mrf.mxu0
  %7851 = vmatprep.mubr.bf16.mxu0 0
  %7852 = vmatmul.mubr.bf16.gmra.mxu0 %v7722
  %v7853 = vpop.f32.mrf.mxu0
  %v7854 = vadd.f32 %v7746, %v7853
  %v7855 = vpop.f32.mrf.mxu0
  %v7856 = vpop.f32.mrf.mxu0
  %v7857 = vadd.f32 %v7746, %v7856
  %v7858 = vpop.f32.mrf.mxu0
  %7859 = vmatprep.mubr.bf16.mxu0 0
  %7860 = vmatmul.mubr.bf16.gmra.mxu0 %v7723
  %v7861 = vpop.f32.mrf.mxu0
  %v7862 = vadd.f32 %v7746, %v7861
  %v7863 = vpop.f32.mrf.mxu0
  %v7864 = vpop.f32.mrf.mxu0
  %v7865 = vadd.f32 %v7746, %v7864
  %v7866 = vpop.f32.mrf.mxu0
  %7867 = vmatprep.mubr.bf16.mxu0 0
  %7868 = vmatmul.mubr.bf16.gmra.mxu0 %v7724
  %v7869 = vpop.f32.mrf.mxu0
  %v7870 = vadd.f32 %v7746, %v7869
  %v7871 = vpop.f32.mrf.mxu0
  %v7872 = vpop.f32.mrf.mxu0
  %v7873 = vadd.f32 %v7746, %v7872
  %v7874 = vpop.f32.mrf.mxu0
  %7875 = vmatprep.mubr.bf16.mxu0 0
  %7876 = vmatmul.mubr.bf16.gmra.mxu0 %v7725
  %v7877 = vpop.f32.mrf.mxu0
  %v7878 = vadd.f32 %v7746, %v7877
  %v7879 = vpop.f32.mrf.mxu0
  %v7880 = vpop.f32.mrf.mxu0
  %v7881 = vadd.f32 %v7746, %v7880
  %v7882 = vpop.f32.mrf.mxu0
  %7883 = vmatprep.mubr.bf16.mxu0 0
  %7884 = vmatmul.mubr.bf16.gmra.mxu0 %v7726
  %v7885 = vpop.f32.mrf.mxu0
  %v7886 = vadd.f32 %v7746, %v7885
  %v7887 = vpop.f32.mrf.mxu0
  %v7888 = vpop.f32.mrf.mxu0
  %v7889 = vadd.f32 %v7746, %v7888
  %v7890 = vpop.f32.mrf.mxu0
  %7891 = vdwg.mxu0
  %v7892 = vsel %vm78, %v7830, 0.0
  %7893 = vadd.xlane.f32.xlu0 %v7892
  %v7894 = vpop.xlane.xlu0 %7893
  %v7895 = vsel %vm78, %v7833, 0.0
  %7896 = vadd.xlane.f32.xlu0 %v7895
  %v7897 = vpop.xlane.xlu0 %7896
  %v7898 = vsel %vm78, %v7838, 0.0
  %7899 = vadd.xlane.f32.xlu0 %v7898
  %v7900 = vpop.xlane.xlu0 %7899
  %v7901 = vsel %vm78, %v7841, 0.0
  %7902 = vadd.xlane.f32.xlu0 %v7901
  %v7903 = vpop.xlane.xlu0 %7902
  %v7904 = vsel %vm78, %v7846, 0.0
  %7905 = vadd.xlane.f32.xlu0 %v7904
  %v7906 = vpop.xlane.xlu0 %7905
  %v7907 = vsel %vm78, %v7849, 0.0
  %7908 = vadd.xlane.f32.xlu0 %v7907
  %v7909 = vpop.xlane.xlu0 %7908
  %v7910 = vsel %vm78, %v7854, 0.0
  %7911 = vadd.xlane.f32.xlu0 %v7910
  %v7912 = vpop.xlane.xlu0 %7911
  %v7913 = vsel %vm78, %v7857, 0.0
  %7914 = vadd.xlane.f32.xlu0 %v7913
  %v7915 = vpop.xlane.xlu0 %7914
  %v7916 = vsel %vm78, %v7862, 0.0
  %7917 = vadd.xlane.f32.xlu0 %v7916
  %v7918 = vpop.xlane.xlu0 %7917
  %v7919 = vsel %vm78, %v7865, 0.0
  %7920 = vadd.xlane.f32.xlu0 %v7919
  %v7921 = vpop.xlane.xlu0 %7920
  %v7922 = vsel %vm78, %v7870, 0.0
  %7923 = vadd.xlane.f32.xlu0 %v7922
  %v7924 = vpop.xlane.xlu0 %7923
  %v7925 = vsel %vm78, %v7873, 0.0
  %7926 = vadd.xlane.f32.xlu0 %v7925
  %v7927 = vpop.xlane.xlu0 %7926
  %v7928 = vsel %vm78, %v7878, 0.0
  %7929 = vadd.xlane.f32.xlu0 %v7928
  %v7930 = vpop.xlane.xlu0 %7929
  %v7931 = vsel %vm78, %v7881, 0.0
  %7932 = vadd.xlane.f32.xlu0 %v7931
  %v7933 = vpop.xlane.xlu0 %7932
  %v7934 = vsel %vm78, %v7886, 0.0
  %7935 = vadd.xlane.f32.xlu0 %v7934
  %v7936 = vpop.xlane.xlu0 %7935
  %v7937 = vsel %vm78, %v7889, 0.0
  %7938 = vadd.xlane.f32.xlu0 %v7937
  %v7939 = vpop.xlane.xlu0 %7938
  %v7940 = vmul.f32 %v7894, %v6921
  %v7941 = vmul.f32 %v7897, %v6921
  %v7942 = vmul.f32 %v7900, %v6921
  %v7943 = vmul.f32 %v7903, %v6921
  %v7944 = vmul.f32 %v7906, %v6921
  %v7945 = vmul.f32 %v7909, %v6921
  %v7946 = vmul.f32 %v7912, %v6921
  %v7947 = vmul.f32 %v7915, %v6921
  %v7948 = vmul.f32 %v7918, %v6921
  %v7949 = vmul.f32 %v7921, %v6921
  %v7950 = vmul.f32 %v7924, %v6921
  %v7951 = vmul.f32 %v7927, %v6921
  %v7952 = vmul.f32 %v7930, %v6921
  %v7953 = vmul.f32 %v7933, %v6921
  %v7954 = vmul.f32 %v7936, %v6921
  %v7955 = vmul.f32 %v7939, %v6921
  %v7956 = vsub.f32 %v7830, %v7940
  %v7957 = vsub.f32 %v7833, %v7941
  %v7958 = vsub.f32 %v7838, %v7942
  %v7959 = vsub.f32 %v7841, %v7943
  %v7960 = vsub.f32 %v7846, %v7944
  %v7961 = vsub.f32 %v7849, %v7945
  %v7962 = vsub.f32 %v7854, %v7946
  %v7963 = vsub.f32 %v7857, %v7947
  %v7964 = vsub.f32 %v7862, %v7948
  %v7965 = vsub.f32 %v7865, %v7949
  %v7966 = vsub.f32 %v7870, %v7950
  %v7967 = vsub.f32 %v7873, %v7951
  %v7968 = vsub.f32 %v7878, %v7952
  %v7969 = vsub.f32 %v7881, %v7953
  %v7970 = vsub.f32 %v7886, %v7954
  %v7971 = vsub.f32 %v7889, %v7955
  %v7972 = vmul.f32 %v7956, %v7956
  %v7973 = vmul.f32 %v7957, %v7957
  %v7974 = vmul.f32 %v7958, %v7958
  %v7975 = vmul.f32 %v7959, %v7959
  %v7976 = vmul.f32 %v7960, %v7960
  %v7977 = vmul.f32 %v7961, %v7961
  %v7978 = vmul.f32 %v7962, %v7962
  %v7979 = vmul.f32 %v7963, %v7963
  %v7980 = vmul.f32 %v7964, %v7964
  %v7981 = vmul.f32 %v7965, %v7965
  %v7982 = vmul.f32 %v7966, %v7966
  %v7983 = vmul.f32 %v7967, %v7967
  %v7984 = vmul.f32 %v7968, %v7968
  %v7985 = vmul.f32 %v7969, %v7969
  %v7986 = vmul.f32 %v7970, %v7970
  %v7987 = vmul.f32 %v7971, %v7971
  %v7988 = vsel %vm78, %v7972, 0.0
  %7989 = vadd.xlane.f32.xlu0 %v7988
  %v7990 = vpop.xlane.xlu0 %7989
  %v7991 = vsel %vm78, %v7973, 0.0
  %7992 = vadd.xlane.f32.xlu0 %v7991
  %v7993 = vpop.xlane.xlu0 %7992
  %v7994 = vsel %vm78, %v7974, 0.0
  %7995 = vadd.xlane.f32.xlu0 %v7994
  %v7996 = vpop.xlane.xlu0 %7995
  %v7997 = vsel %vm78, %v7975, 0.0
  %7998 = vadd.xlane.f32.xlu0 %v7997
  %v7999 = vpop.xlane.xlu0 %7998
  %v8000 = vsel %vm78, %v7976, 0.0
  %8001 = vadd.xlane.f32.xlu0 %v8000
  %v8002 = vpop.xlane.xlu0 %8001
  %v8003 = vsel %vm78, %v7977, 0.0
  %8004 = vadd.xlane.f32.xlu0 %v8003
  %v8005 = vpop.xlane.xlu0 %8004
  %v8006 = vsel %vm78, %v7978, 0.0
  %8007 = vadd.xlane.f32.xlu0 %v8006
  %v8008 = vpop.xlane.xlu0 %8007
  %v8009 = vsel %vm78, %v7979, 0.0
  %8010 = vadd.xlane.f32.xlu0 %v8009
  %v8011 = vpop.xlane.xlu0 %8010
  %v8012 = vsel %vm78, %v7980, 0.0
  %8013 = vadd.xlane.f32.xlu0 %v8012
  %v8014 = vpop.xlane.xlu0 %8013
  %v8015 = vsel %vm78, %v7981, 0.0
  %8016 = vadd.xlane.f32.xlu0 %v8015
  %v8017 = vpop.xlane.xlu0 %8016
  %v8018 = vsel %vm78, %v7982, 0.0
  %8019 = vadd.xlane.f32.xlu0 %v8018
  %v8020 = vpop.xlane.xlu0 %8019
  %v8021 = vsel %vm78, %v7983, 0.0
  %8022 = vadd.xlane.f32.xlu0 %v8021
  %v8023 = vpop.xlane.xlu0 %8022
  %v8024 = vsel %vm78, %v7984, 0.0
  %8025 = vadd.xlane.f32.xlu0 %v8024
  %v8026 = vpop.xlane.xlu0 %8025
  %v8027 = vsel %vm78, %v7985, 0.0
  %8028 = vadd.xlane.f32.xlu0 %v8027
  %v8029 = vpop.xlane.xlu0 %8028
  %v8030 = vsel %vm78, %v7986, 0.0
  %8031 = vadd.xlane.f32.xlu0 %v8030
  %v8032 = vpop.xlane.xlu0 %8031
  %v8033 = vsel %vm78, %v7987, 0.0
  %8034 = vadd.xlane.f32.xlu0 %v8033
  %v8035 = vpop.xlane.xlu0 %8034
  %v8036 = vmul.f32 %v7990, %v6921
  %v8037 = vmul.f32 %v7993, %v6921
  %v8038 = vmul.f32 %v7996, %v6921
  %v8039 = vmul.f32 %v7999, %v6921
  %v8040 = vmul.f32 %v8002, %v6921
  %v8041 = vmul.f32 %v8005, %v6921
  %v8042 = vmul.f32 %v8008, %v6921
  %v8043 = vmul.f32 %v8011, %v6921
  %v8044 = vmul.f32 %v8014, %v6921
  %v8045 = vmul.f32 %v8017, %v6921
  %v8046 = vmul.f32 %v8020, %v6921
  %v8047 = vmul.f32 %v8023, %v6921
  %v8048 = vmul.f32 %v8026, %v6921
  %v8049 = vmul.f32 %v8029, %v6921
  %v8050 = vmul.f32 %v8032, %v6921
  %v8051 = vmul.f32 %v8035, %v6921
  %v8052 = vadd.f32 %v8036, 1e-05
  %v8053 = vadd.f32 %v8037, 1e-05
  %v8054 = vadd.f32 %v8038, 1e-05
  %v8055 = vadd.f32 %v8039, 1e-05
  %v8056 = vadd.f32 %v8040, 1e-05
  %v8057 = vadd.f32 %v8041, 1e-05
  %v8058 = vadd.f32 %v8042, 1e-05
  %v8059 = vadd.f32 %v8043, 1e-05
  %v8060 = vadd.f32 %v8044, 1e-05
  %v8061 = vadd.f32 %v8045, 1e-05
  %v8062 = vadd.f32 %v8046, 1e-05
  %v8063 = vadd.f32 %v8047, 1e-05
  %v8064 = vadd.f32 %v8048, 1e-05
  %v8065 = vadd.f32 %v8049, 1e-05
  %v8066 = vadd.f32 %v8050, 1e-05
  %v8067 = vadd.f32 %v8051, 1e-05
  %v8068 = vrsqrt.pop %v8052
  %v8069 = vrsqrt.pop %v8053
  %v8070 = vrsqrt.pop %v8054
  %v8071 = vrsqrt.pop %v8055
  %v8072 = vrsqrt.pop %v8056
  %v8073 = vrsqrt.pop %v8057
  %v8074 = vrsqrt.pop %v8058
  %v8075 = vrsqrt.pop %v8059
  %v8076 = vrsqrt.pop %v8060
  %v8077 = vrsqrt.pop %v8061
  %v8078 = vrsqrt.pop %v8062
  %v8079 = vrsqrt.pop %v8063
  %v8080 = vrsqrt.pop %v8064
  %v8081 = vrsqrt.pop %v8065
  %v8082 = vrsqrt.pop %v8066
  %v8083 = vrsqrt.pop %v8067
  %v8084 = vmul.f32 %v7956, %v8068
  %v8085 = vmul.f32 %v7957, %v8069
  %v8086 = vmul.f32 %v7958, %v8070
  %v8087 = vmul.f32 %v7959, %v8071
  %v8088 = vmul.f32 %v7960, %v8072
  %v8089 = vmul.f32 %v7961, %v8073
  %v8090 = vmul.f32 %v7962, %v8074
  %v8091 = vmul.f32 %v7963, %v8075
  %v8092 = vmul.f32 %v7964, %v8076
  %v8093 = vmul.f32 %v7965, %v8077
  %v8094 = vmul.f32 %v7966, %v8078
  %v8095 = vmul.f32 %v7967, %v8079
  %v8096 = vmul.f32 %v7968, %v8080
  %v8097 = vmul.f32 %v7969, %v8081
  %v8098 = vmul.f32 %v7970, %v8082
  %v8099 = vmul.f32 %v7971, %v8083
  %v8100 = vlaneseq
  %v8101 = vshrl.u32 %v8100, 7
  %v8102 = vsub.s32 6, %v8101
  %v8103 = vrot.slane %v49, %v8102
  %v8104 = vmul.f32 %v8084, %v8103
  %v8105 = vmul.f32 %v8085, %v8103
  %v8106 = vmul.f32 %v8086, %v8103
  %v8107 = vmul.f32 %v8087, %v8103
  %v8108 = vmul.f32 %v8088, %v8103
  %v8109 = vmul.f32 %v8089, %v8103
  %v8110 = vmul.f32 %v8090, %v8103
  %v8111 = vmul.f32 %v8091, %v8103
  %v8112 = vmul.f32 %v8092, %v8103
  %v8113 = vmul.f32 %v8093, %v8103
  %v8114 = vmul.f32 %v8094, %v8103
  %v8115 = vmul.f32 %v8095, %v8103
  %v8116 = vmul.f32 %v8096, %v8103
  %v8117 = vmul.f32 %v8097, %v8103
  %v8118 = vmul.f32 %v8098, %v8103
  %v8119 = vmul.f32 %v8099, %v8103
  %v8120 = vlaneseq
  %v8121 = vshrl.u32 %v8120, 7
  %v8122 = vsub.s32 7, %v8121
  %v8123 = vrot.slane %v49, %v8122
  %v8124 = vadd.f32 %v8104, %v8123
  %v8125 = vadd.f32 %v8105, %v8123
  %v8126 = vadd.f32 %v8106, %v8123
  %v8127 = vadd.f32 %v8107, %v8123
  %v8128 = vadd.f32 %v8108, %v8123
  %v8129 = vadd.f32 %v8109, %v8123
  %v8130 = vadd.f32 %v8110, %v8123
  %v8131 = vadd.f32 %v8111, %v8123
  %v8132 = vadd.f32 %v8112, %v8123
  %v8133 = vadd.f32 %v8113, %v8123
  %v8134 = vadd.f32 %v8114, %v8123
  %v8135 = vadd.f32 %v8115, %v8123
  %v8136 = vadd.f32 %v8116, %v8123
  %v8137 = vadd.f32 %v8117, %v8123
  %v8138 = vadd.f32 %v8118, %v8123
  %v8139 = vadd.f32 %v8119, %v8123
  %v8140 = vadd.f32 %v7122, %v8124
  %v8141 = vadd.f32 %v7123, %v8125
  %v8142 = vadd.f32 %v7124, %v8126
  %v8143 = vadd.f32 %v7125, %v8127
  %v8144 = vadd.f32 %v7126, %v8128
  %v8145 = vadd.f32 %v7127, %v8129
  %v8146 = vadd.f32 %v7128, %v8130
  %v8147 = vadd.f32 %v7129, %v8131
  %v8148 = vadd.f32 %v7130, %v8132
  %v8149 = vadd.f32 %v7131, %v8133
  %v8150 = vadd.f32 %v7132, %v8134
  %v8151 = vadd.f32 %v7133, %v8135
  %v8152 = vadd.f32 %v7134, %v8136
  %v8153 = vadd.f32 %v7135, %v8137
  %v8154 = vadd.f32 %v7136, %v8138
  %v8155 = vadd.f32 %v7137, %v8139
  %8156 = vst.msk [vmem:[%s9] sm:$0xff] %vm78, %v8140
  %8157 = vst.msk [vmem:[%s9 + $0x8] sm:$0xff] %vm78, %v8141
  %8158 = vst.msk [vmem:[%s9 + $0x10] sm:$0xff] %vm78, %v8142
  %8159 = vst.msk [vmem:[%s9 + $0x18] sm:$0xff] %vm78, %v8143
  %8160 = vst.msk [vmem:[%s9 + $0x20] sm:$0xff] %vm78, %v8144
  %8161 = vst.msk [vmem:[%s9 + $0x28] sm:$0xff] %vm78, %v8145
  %8162 = vst.msk [vmem:[%s9 + $0x30] sm:$0xff] %vm78, %v8146
  %8163 = vst.msk [vmem:[%s9 + $0x38] sm:$0xff] %vm78, %v8147
  %8164 = vst.msk [vmem:[%s9 + $0x40] sm:$0xff] %vm78, %v8148
  %8165 = vst.msk [vmem:[%s9 + $0x48] sm:$0xff] %vm78, %v8149
  %8166 = vst.msk [vmem:[%s9 + $0x50] sm:$0xff] %vm78, %v8150
  %8167 = vst.msk [vmem:[%s9 + $0x58] sm:$0xff] %vm78, %v8151
  %8168 = vst.msk [vmem:[%s9 + $0x60] sm:$0xff] %vm78, %v8152
  %8169 = vst.msk [vmem:[%s9 + $0x68] sm:$0xff] %vm78, %v8153
  %8170 = vst.msk [vmem:[%s9 + $0x70] sm:$0xff] %vm78, %v8154
  %8171 = vst.msk [vmem:[%s9 + $0x78] sm:$0xff] %vm78, %v8155
  // Predicated region
  $region38: #{tpu_custom_call.1} parent=0 // pred_check
    _
  $region39: #{tpu_custom_call.1} parent=0 // pred_check_branch
    %8173 = sbr.rel (0) target = $region41
  $region40: #{tpu_custom_call.1} parent=0 // pred_region
    _
  $region41: #{tpu_custom_call.1} parent=0 // pred_fallthru
    _
  // Predicated region
  $region42: #{tpu_custom_call.1} parent=0 // pred_check
    _
  $region43: #{tpu_custom_call.1} parent=0 // pred_check_branch
    %8175 = sbr.rel (0) target = $region45
  $region44: #{tpu_custom_call.1} parent=0 // pred_region
    _
  $region45: #{tpu_custom_call.1} parent=0 // pred_fallthru
    _

</llo_original>
